<compile_context>
chip_gen: v7x
topology: tpu7x:2x2x1
jax: 0.10.0
libtpu: 0.0.40
codegen_flags: <defaults>
</compile_context>

<pallas_src>
import math
import functools

import jax
import jax.numpy as jnp
from jax.experimental import pallas as pl
from jax.experimental.pallas import tpu as pltpu


_LN_EPS = 1e-5


@functools.lru_cache(maxsize=None)
def _vmem_limit_bytes():
    """~75% of the physical per-core VMEM (48 MiB v7x, 96 MiB v5e/v6e)."""
    cap = 128 * 1024 * 1024
    try:
        cap = int(pltpu.get_tpu_info().vmem_capacity_bytes)
    except Exception:
        pass
    return int(cap * 3 // 4)


def _mosaic_params(*dims):
    return pltpu.CompilerParams(dimension_semantics=tuple(dims),
                                vmem_limit_bytes=_vmem_limit_bytes())


def _round_up(x, m):
    return (x + m - 1) // m * m


def _pick_tile(n, candidates):
    """Largest candidate tile that exactly divides n, else the full extent."""
    for c in candidates:
        if n % c == 0:
            return c
    return n


def _row_tile(m, cap=256):
    """Row tile <= cap; prefer >=2 grid steps so both v7x TCs get work."""
    t = _pick_tile(m, tuple(c for c in (512, 256, 128, 64, 32, 16, 8)
                            if c <= cap))
    if t == m and m % 16 == 0:
        t = m // 2
    return t


def _layernorm_f32(y, gamma, beta):
    mean = jnp.mean(y, axis=-1, keepdims=True)
    var = jnp.mean((y - mean) ** 2, axis=-1, keepdims=True)
    yn = (y - mean) * jax.lax.rsqrt(var + _LN_EPS)
    return yn * gamma + beta


# ----------------------------- Pallas kernels -----------------------------

def _mha_ln_kernel(xq_ref, xkv_ref, valid_ref, wqkv_ref, bqkv_ref,
                   wo_ref, bo_ref, g_ref, beta_ref, o_ref,
                   *, n_heads, causal, is_self):
    """Fused MHA block for one batch element:
       QKV proj -> batched-head attention -> out proj -> +residual -> LN.
       All intermediates stay in VMEM; output is a lane-dense (Lq, D) slab."""
    Lq, D = xq_ref.shape[1], xq_ref.shape[2]
    Lk = xkv_ref.shape[1]
    Dh = D // n_heads
    scale = 1.0 / math.sqrt(Dh)

    xq = xq_ref[0]                                   # (Lq, D) bf16
    resid = xq.astype(jnp.float32)                   # residual kept in f32

    if is_self:
        # single fused (Lq, D) x (D, 3D) MXU pass
        qkv = jnp.dot(xq, wqkv_ref[...],
                      preferred_element_type=jnp.float32) + bqkv_ref[...]
        q, k, v = qkv[:, :D], qkv[:, D:2 * D], qkv[:, 2 * D:]
    else:
        xkv = xkv_ref[0]
        q = jnp.dot(xq, wqkv_ref[:, :D],
                    preferred_element_type=jnp.float32) + bqkv_ref[:, :D]
        kv = jnp.dot(xkv, wqkv_ref[:, D:],
                     preferred_element_type=jnp.float32) + bqkv_ref[:, D:]
        k, v = kv[:, :D], kv[:, D:]

    # Additive mask bias built once, in-kernel (no (B, Lq, Lk) HBM traffic,
    # no per-head vselect).
    keep = jnp.broadcast_to(valid_ref[0] > 0.0, (Lq, Lk))
    if causal:
        rows = jax.lax.broadcasted_iota(jnp.int32, (Lq, Lk), 0)
        cols = jax.lax.broadcasted_iota(jnp.int32, (Lq, Lk), 1)
        keep = jnp.logical_and(keep, rows >= cols)
    bias = jnp.where(keep, 0.0, -1e9).astype(jnp.float32)

    def split_heads(t):                              # (L, D) -> (H, L, Dh)
        L = t.shape[0]
        return jnp.transpose(t.reshape(L, n_heads, Dh),
                             (1, 0, 2)).astype(jnp.bfloat16)

    qh, kh, vh = split_heads(q), split_heads(k), split_heads(v)

    # One batched score matmul over all heads (batch dim = H).
    s = jnp.einsum('hqd,hkd->hqk', qh, kh,
                   preferred_element_type=jnp.float32) * scale
    s = s + bias[None, :, :]
    s = s - jnp.max(s, axis=-1, keepdims=True)
    p = jnp.exp(s)
    denom = jnp.maximum(jnp.sum(p, axis=-1, keepdims=True), 1e-20)
    p = p * pl.reciprocal(denom, approx=True)
    ctx = jnp.einsum('hqk,hkd->hqd', p.astype(jnp.bfloat16), vh,
                     preferred_element_type=jnp.float32)
    attn = jnp.transpose(ctx, (1, 0, 2)).reshape(Lq, D)  # lane-dense slab

    # Output projection + residual + LayerNorm epilogue.
    attn = jnp.dot(attn.astype(jnp.bfloat16), wo_ref[...],
                   preferred_element_type=jnp.float32) + bo_ref[...]
    y = resid + attn
    o_ref[0] = _layernorm_f32(y, g_ref[...], beta_ref[...]).astype(o_ref.dtype)


def _ffn_ln_kernel(x_ref, w1_ref, b1_ref, w2_ref, b2_ref, g_ref, beta_ref,
                   o_ref, *, f_chunk):
    """Fused FFN block: x @ W1 + b1 -> ReLU -> @ W2 + b2 -> +residual -> LN.
       The hidden dim F is processed in <=f_chunk-wide slices so the f32
       intermediate stays inside the vreg/VMEM budget."""
    x = x_ref[...]                                   # (TM, D) bf16
    resid = x.astype(jnp.float32)
    F = w1_ref.shape[1]
    D_out = w2_ref.shape[1]

    y = jnp.zeros((x.shape[0], D_out), jnp.float32)
    n_chunks = max(1, -(-F // f_chunk))
    for c in range(n_chunks):                        # static, small
        lo = c * f_chunk
        hi = min(F, lo + f_chunk)
        h = jnp.dot(x, w1_ref[:, lo:hi],
                    preferred_element_type=jnp.float32) + b1_ref[:, lo:hi]
        h = jnp.maximum(h, 0.0)
        y = y + jnp.dot(h.astype(jnp.bfloat16), w2_ref[lo:hi, :],
                        preferred_element_type=jnp.float32)
    y = resid + y + b2_ref[...]
    o_ref[...] = _layernorm_f32(y, g_ref[...], beta_ref[...]).astype(o_ref.dtype)


def _linear_kernel(x_ref, w_ref, b_ref, o_ref):
    """Row/col tiled linear: (TM, D) @ (D, TN) + (1, TN)."""
    o_ref[...] = (jnp.dot(x_ref[...], w_ref[...],
                          preferred_element_type=jnp.float32)
                  + b_ref[...]).astype(o_ref.dtype)


# ----------------------------- Pallas wrappers -----------------------------

def mha_ln_block(x_q, x_kv, kv_valid, p, n_heads, *, causal, is_self):
    """x_q: (B, Lq, D) bf16; x_kv: (B, Lk, D) bf16; kv_valid: (B, 1, Lk) f32."""
    B, Lq, D = x_q.shape
    Lk = x_kv.shape[1]
    kern = functools.partial(_mha_ln_kernel, n_heads=n_heads,
                             causal=causal, is_self=is_self)
    return pl.pallas_call(
        kern,
        out_shape=jax.ShapeDtypeStruct((B, Lq, D), jnp.bfloat16),
        grid=(B,),
        in_specs=[pl.BlockSpec((1, Lq, D), lambda b: (b, 0, 0)),
                  pl.BlockSpec((1, Lk, D), lambda b: (b, 0, 0)),
                  pl.BlockSpec((1, 1, Lk), lambda b: (b, 0, 0)),
                  pl.BlockSpec((D, 3 * D), lambda b: (0, 0)),
                  pl.BlockSpec((1, 3 * D), lambda b: (0, 0)),
                  pl.BlockSpec((D, D), lambda b: (0, 0)),
                  pl.BlockSpec((1, D), lambda b: (0, 0)),
                  pl.BlockSpec((1, D), lambda b: (0, 0)),
                  pl.BlockSpec((1, D), lambda b: (0, 0))],
        out_specs=pl.BlockSpec((1, Lq, D), lambda b: (b, 0, 0)),
        compiler_params=_mosaic_params("parallel"),
    )(x_q, x_kv, kv_valid, p['wqkv'], p['bqkv'], p['wo'], p['bo'],
      p['ln_g'], p['ln_b'])


def ffn_ln_block(x, p, *, f_chunk=512):
    B, L, D = x.shape
    M = B * L
    TM = _row_tile(M, cap=256)
    F = p['w1'].shape[1]
    x2 = x.reshape(M, D)
    kern = functools.partial(_ffn_ln_kernel, f_chunk=min(F, f_chunk))
    out = pl.pallas_call(
        kern,
        out_shape=jax.ShapeDtypeStruct((M, D), jnp.bfloat16),
        grid=(M // TM,),
        in_specs=[pl.BlockSpec((TM, D), lambda i: (i, 0)),
                  pl.BlockSpec((D, F), lambda i: (0, 0)),
                  pl.BlockSpec((1, F), lambda i: (0, 0)),
                  pl.BlockSpec((F, D), lambda i: (0, 0)),
                  pl.BlockSpec((1, D), lambda i: (0, 0)),
                  pl.BlockSpec((1, D), lambda i: (0, 0)),
                  pl.BlockSpec((1, D), lambda i: (0, 0))],
        out_specs=pl.BlockSpec((TM, D), lambda i: (i, 0)),
        compiler_params=_mosaic_params("parallel"),
    )(x2, p['w1'], p['b1'], p['w2'], p['b2'], p['ffn_ln_g'], p['ffn_ln_b'])
    return out.reshape(B, L, D)


def linear_proj(x, w, b):
    """Row/vocab tiled output projection. x: (M, D) bf16; w: (D, V) bf16."""
    M, D = x.shape
    V = w.shape[1]
    Mp = _round_up(M, 8)
    Vp = _round_up(V, 128)
    if Mp != M:
        x = jnp.pad(x, ((0, Mp - M), (0, 0)))
    if Vp != V:
        w = jnp.pad(w, ((0, 0), (0, Vp - V)))
        b = jnp.pad(b, ((0, 0), (0, Vp - V)))
    TM = _row_tile(Mp, cap=256)
    TV = _pick_tile(Vp, (512, 256, 128))  # 256+ keeps the v6e/v7x MXU fully fed
    out = pl.pallas_call(
        _linear_kernel,
        out_shape=jax.ShapeDtypeStruct((Mp, Vp), jnp.float32),
        grid=(Mp // TM, Vp // TV),
        in_specs=[pl.BlockSpec((TM, D), lambda i, j: (i, 0)),
                  pl.BlockSpec((D, TV), lambda i, j: (0, j)),
                  pl.BlockSpec((1, TV), lambda i, j: (0, j))],
        out_specs=pl.BlockSpec((TM, TV), lambda i, j: (i, j)),
        compiler_params=_mosaic_params("parallel", "parallel"),
    )(x, w, b)
    return out[:M, :V]


# ----------------------------- model (JAX glue) -----------------------------

def sinusoidal_pe(max_len, d_model):
    pos = jnp.arange(max_len, dtype=jnp.float32)[:, None]
    i = jnp.arange(0, d_model, 2, dtype=jnp.float32)[None, :]
    div = jnp.exp(-math.log(10000.0) * i / d_model)
    pe = jnp.zeros((max_len, d_model), jnp.float32)
    pe = pe.at[:, 0::2].set(jnp.sin(pos * div))
    pe = pe.at[:, 1::2].set(jnp.cos(pos * div))
    return pe


def transformer_forward(params, src, tgt, cfg):
    D = cfg['d_model']
    H = cfg['n_heads']
    pad_id = cfg['pad_token_id']
    B, Ls = src.shape
    _, Lt = tgt.shape

    # key-valid vectors (1 real token / 0 pad); causal mask is built in-kernel
    src_valid = (src != pad_id).astype(jnp.float32).reshape(B, 1, Ls)
    tgt_valid = (tgt != pad_id).astype(jnp.float32).reshape(B, 1, Lt)

    pe = params['pe']
    emb = params['embedding']
    scale = math.sqrt(D)

    # TODO(synk): token-embedding gather + PE add stay in XLA (jnp.take); a
    # gather has no worthwhile dense Pallas equivalent at these sizes.
    # dropout == identity (inference)
    src_x = (jnp.take(emb, src, axis=0) * scale
             + pe[None, :Ls, :]).astype(jnp.bfloat16)
    tgt_x = (jnp.take(emb, tgt, axis=0) * scale
             + pe[None, :Lt, :]).astype(jnp.bfloat16)

    enc = src_x
    for lp in params['encoder']:
        enc = mha_ln_block(enc, enc, src_valid, lp['self_attn'], H,
                           causal=False, is_self=True)
        enc = ffn_ln_block(enc, lp)

    dec = tgt_x
    for lp in params['decoder']:
        dec = mha_ln_block(dec, dec, tgt_valid, lp['self_attn'], H,
                           causal=True, is_self=True)
        dec = mha_ln_block(dec, enc, src_valid, lp['cross_attn'], H,
                           causal=False, is_self=False)
        dec = ffn_ln_block(dec, lp)

    logits = linear_proj(dec.reshape(B * Lt, D), params['out_w'],
                         params['out_b'])
    return logits.reshape(B, Lt, cfg['vocab_size'])


# ----------------------------- param init -----------------------------

def init_params(key, cfg):
    D, F, V = cfg['d_model'], cfg['d_ff'], cfg['vocab_size']
    keys = iter(jax.random.split(key, 512))

    def w(shape, scale=0.05, dtype=jnp.bfloat16):
        return (jax.random.normal(next(keys), shape, jnp.float32)
                * scale).astype(dtype)

    def attn_block():
        return {'wqkv': w((D, 3 * D)),                       # packed Wq|Wk|Wv
                'bqkv': jnp.zeros((1, 3 * D), jnp.float32),
                'wo': w((D, D)),
                'bo': jnp.zeros((1, D), jnp.float32),
                'ln_g': jnp.ones((1, D), jnp.float32),
                'ln_b': jnp.zeros((1, D), jnp.float32)}

    def enc_layer():
        return {'self_attn': attn_block(),
                'w1': w((D, F)), 'b1': jnp.zeros((1, F), jnp.float32),
                'w2': w((F, D)), 'b2': jnp.zeros((1, D), jnp.float32),
                'ffn_ln_g': jnp.ones((1, D), jnp.float32),
                'ffn_ln_b': jnp.zeros((1, D), jnp.float32)}

    def dec_layer():
        p = enc_layer()
        p['cross_attn'] = attn_block()
        return p

    return {
        'embedding': w((V, D), dtype=jnp.float32),
        'pe': sinusoidal_pe(cfg['max_seq_length'], D),
        'encoder': [enc_layer() for _ in range(cfg['n_layers'])],
        'decoder': [dec_layer() for _ in range(cfg['n_layers'])],
        'out_w': w((D, V)),
        'out_b': jnp.zeros((1, V), jnp.float32),
    }


# ----------------------------- main -----------------------------

if __name__ == "__main__":
    # lane-dense demo shapes: d_model / d_ff / vocab are multiples of 128
    cfg = dict(vocab_size=256, d_model=128, n_heads=4, n_layers=2, d_ff=256,
               max_seq_length=16, dropout=0.1,
               pad_token_id=0, bos_token_id=1, eos_token_id=2)

    key = jax.random.PRNGKey(0)
    pkey, skey, tkey = jax.random.split(key, 3)
    params = init_params(pkey, cfg)

    B, Ls, Lt = 2, 8, 8
    src = jax.random.randint(skey, (B, Ls), 3, cfg['vocab_size'], jnp.int32)
    tgt = jax.random.randint(tkey, (B, Lt), 3, cfg['vocab_size'], jnp.int32)
    # add some padding to exercise the padding masks
    src = src.at[0, -2:].set(cfg['pad_token_id'])
    tgt = tgt.at[1, -3:].set(cfg['pad_token_id'])

    fwd = jax.jit(functools.partial(transformer_forward, cfg=cfg))
    logits = fwd(params, src, tgt)
    jax.block_until_ready(logits)

    assert logits.shape == (B, Lt, cfg['vocab_size'])
    assert bool(jnp.all(jnp.isfinite(logits)))
    print("KERNEL_OK")
</pallas_src>

<mosaic_0001>
module attributes {stable_mosaic.version = 11 : i64} {
  func.func @_ffn_ln_kernel(%arg0: i32, %arg1: memref<8x128xbf16, #tpu.memory_space<vmem>>, %arg2: memref<128x256xbf16, #tpu.memory_space<vmem>>, %arg3: memref<1x256xf32, #tpu.memory_space<vmem>>, %arg4: memref<256x128xbf16, #tpu.memory_space<vmem>>, %arg5: memref<1x128xf32, #tpu.memory_space<vmem>>, %arg6: memref<1x128xf32, #tpu.memory_space<vmem>>, %arg7: memref<1x128xf32, #tpu.memory_space<vmem>>, %arg8: memref<8x128xbf16, #tpu.memory_space<vmem>>) attributes {dimension_semantics = [#tpu.dimension_semantics<parallel>], iteration_bounds = array<i64: 2>, scalar_prefetch = 0 : i64, scratch_operands = 0 : i64, tpu.core_type = #tpu.core_type<tc>, window_params = [{transform_indices = @transform_0, window_bounds = array<i64: 8, 128>}, {pipeline_mode = #tpu.pipeline_mode<synchronous>, transform_indices = @transform_1, window_bounds = array<i64: 128, 256>}, {pipeline_mode = #tpu.pipeline_mode<synchronous>, transform_indices = @transform_2, window_bounds = array<i64: 1, 256>}, {pipeline_mode = #tpu.pipeline_mode<synchronous>, transform_indices = @transform_3, window_bounds = array<i64: 256, 128>}, {pipeline_mode = #tpu.pipeline_mode<synchronous>, transform_indices = @transform_4, window_bounds = array<i64: 1, 128>}, {pipeline_mode = #tpu.pipeline_mode<synchronous>, transform_indices = @transform_5, window_bounds = array<i64: 1, 128>}, {pipeline_mode = #tpu.pipeline_mode<synchronous>, transform_indices = @transform_6, window_bounds = array<i64: 1, 128>}, {transform_indices = @transform_7, window_bounds = array<i64: 8, 128>}]} {
    %c0 = arith.constant 0 : index
    %c0_0 = arith.constant 0 : index
    %0 = vector.load %arg1[%c0, %c0_0] : memref<8x128xbf16, #tpu.memory_space<vmem>>, vector<8x128xbf16>
    %1 = arith.extf %0 : vector<8x128xbf16> to vector<8x128xf32>
    %cst = arith.constant 0.000000e+00 : f32
    %2 = vector.broadcast %cst : f32 to vector<8x128xf32>
    %c0_1 = arith.constant 0 : index
    %c0_2 = arith.constant 0 : index
    %3 = vector.load %arg2[%c0_1, %c0_2] : memref<128x256xbf16, #tpu.memory_space<vmem>>, vector<128x256xbf16>
    %cst_3 = arith.constant dense<0.000000e+00> : vector<8x256xf32>
    %4 = tpu.matmul %0, %3, %cst_3 {dimension_numbers = #tpu.dot_dimension_numbers<[1], [0], [0], [1], [0, 0, 1, 1], [], []>} : vector<8x128xbf16>, vector<128x256xbf16>, vector<8x256xf32> -> vector<8x256xf32>
    %c0_4 = arith.constant 0 : index
    %c0_5 = arith.constant 0 : index
    %5 = vector.load %arg3[%c0_4, %c0_5] : memref<1x256xf32, #tpu.memory_space<vmem>>, vector<1x256xf32>
    %6 = vector.broadcast %5 : vector<1x256xf32> to vector<8x256xf32>
    %7 = arith.addf %4, %6 : vector<8x256xf32>
    %cst_6 = arith.constant 0.000000e+00 : f32
    %8 = vector.broadcast %cst_6 : f32 to vector<8x256xf32>
    %9 = arith.maximumf %7, %8 : vector<8x256xf32>
    %10 = arith.truncf %9 : vector<8x256xf32> to vector<8x256xbf16>
    %c0_7 = arith.constant 0 : index
    %c0_8 = arith.constant 0 : index
    %11 = vector.load %arg4[%c0_7, %c0_8] : memref<256x128xbf16, #tpu.memory_space<vmem>>, vector<256x128xbf16>
    %cst_9 = arith.constant dense<0.000000e+00> : vector<8x128xf32>
    %12 = tpu.matmul %10, %11, %cst_9 {dimension_numbers = #tpu.dot_dimension_numbers<[1], [0], [0], [1], [0, 0, 1, 1], [], []>} : vector<8x256xbf16>, vector<256x128xbf16>, vector<8x128xf32> -> vector<8x128xf32>
    %13 = arith.addf %2, %12 : vector<8x128xf32>
    %14 = arith.addf %1, %13 : vector<8x128xf32>
    %c0_10 = arith.constant 0 : index
    %c0_11 = arith.constant 0 : index
    %15 = vector.load %arg5[%c0_10, %c0_11] : memref<1x128xf32, #tpu.memory_space<vmem>>, vector<1x128xf32>
    %16 = vector.broadcast %15 : vector<1x128xf32> to vector<8x128xf32>
    %17 = arith.addf %14, %16 : vector<8x128xf32>
    %c0_12 = arith.constant 0 : index
    %c0_13 = arith.constant 0 : index
    %18 = vector.load %arg6[%c0_12, %c0_13] : memref<1x128xf32, #tpu.memory_space<vmem>>, vector<1x128xf32>
    %c0_14 = arith.constant 0 : index
    %c0_15 = arith.constant 0 : index
    %19 = vector.load %arg7[%c0_14, %c0_15] : memref<1x128xf32, #tpu.memory_space<vmem>>, vector<1x128xf32>
    %cst_16 = arith.constant dense<0.000000e+00> : vector<8xf32>
    %20 = vector.multi_reduction <add>, %17, %cst_16 [1] : vector<8x128xf32> to vector<8xf32>
    %21 = vector.shape_cast %20 : vector<8xf32> to vector<8x1xf32>
    %cst_17 = arith.constant 1.280000e+02 : f32
    %22 = vector.broadcast %cst_17 : f32 to vector<8x1xf32>
    %23 = arith.divf %21, %22 : vector<8x1xf32>
    %24 = vector.broadcast %23 : vector<8x1xf32> to vector<8x128xf32>
    %25 = arith.subf %17, %24 : vector<8x128xf32>
    %26 = arith.mulf %25, %25 : vector<8x128xf32>
    %cst_18 = arith.constant dense<0.000000e+00> : vector<8xf32>
    %27 = vector.multi_reduction <add>, %26, %cst_18 [1] : vector<8x128xf32> to vector<8xf32>
    %28 = vector.shape_cast %27 : vector<8xf32> to vector<8x1xf32>
    %cst_19 = arith.constant 1.280000e+02 : f32
    %29 = vector.broadcast %cst_19 : f32 to vector<8x1xf32>
    %30 = arith.divf %28, %29 : vector<8x1xf32>
    %31 = vector.broadcast %23 : vector<8x1xf32> to vector<8x128xf32>
    %32 = arith.subf %17, %31 : vector<8x128xf32>
    %cst_20 = arith.constant 9.99999974E-6 : f32
    %33 = vector.broadcast %cst_20 : f32 to vector<8x1xf32>
    %34 = arith.addf %30, %33 : vector<8x1xf32>
    %35 = math.rsqrt %34 : vector<8x1xf32>
    %36 = vector.broadcast %35 : vector<8x1xf32> to vector<8x128xf32>
    %37 = arith.mulf %32, %36 : vector<8x128xf32>
    %38 = vector.broadcast %18 : vector<1x128xf32> to vector<8x128xf32>
    %39 = arith.mulf %37, %38 : vector<8x128xf32>
    %40 = vector.broadcast %19 : vector<1x128xf32> to vector<8x128xf32>
    %41 = arith.addf %39, %40 : vector<8x128xf32>
    %42 = arith.truncf %41 : vector<8x128xf32> to vector<8x128xbf16>
    %c0_21 = arith.constant 0 : index
    %c0_22 = arith.constant 0 : index
    %43 = vector.load %arg8[%c0_21, %c0_22] : memref<8x128xbf16, #tpu.memory_space<vmem>>, vector<8x128xbf16>
    tpu.vector_store %arg8[%c0_21, %c0_22], %42 {strides = array<i32>} : memref<8x128xbf16, #tpu.memory_space<vmem>>, vector<8x128xbf16>,
    return
  }
  func.func @transform_0(%arg0: i32) -> (i32, i32) {
    %c0_i32 = arith.constant 0 : i32
    %c0_i32_0 = arith.constant 0 : i32
    return %arg0, %c0_i32 : i32, i32
  }
  func.func @transform_1(%arg0: i32) -> (i32, i32) {
    %c0_i32 = arith.constant 0 : i32
    %c0_i32_0 = arith.constant 0 : i32
    %c0_i32_1 = arith.constant 0 : i32
    return %c0_i32, %c0_i32_0 : i32, i32
  }
  func.func @transform_2(%arg0: i32) -> (i32, i32) {
    %c0_i32 = arith.constant 0 : i32
    %c0_i32_0 = arith.constant 0 : i32
    %c0_i32_1 = arith.constant 0 : i32
    return %c0_i32, %c0_i32_0 : i32, i32
  }
  func.func @transform_3(%arg0: i32) -> (i32, i32) {
    %c0_i32 = arith.constant 0 : i32
    %c0_i32_0 = arith.constant 0 : i32
    %c0_i32_1 = arith.constant 0 : i32
    return %c0_i32, %c0_i32_0 : i32, i32
  }
  func.func @transform_4(%arg0: i32) -> (i32, i32) {
    %c0_i32 = arith.constant 0 : i32
    %c0_i32_0 = arith.constant 0 : i32
    %c0_i32_1 = arith.constant 0 : i32
    return %c0_i32, %c0_i32_0 : i32, i32
  }
  func.func @transform_5(%arg0: i32) -> (i32, i32) {
    %c0_i32 = arith.constant 0 : i32
    %c0_i32_0 = arith.constant 0 : i32
    %c0_i32_1 = arith.constant 0 : i32
    return %c0_i32, %c0_i32_0 : i32, i32
  }
  func.func @transform_6(%arg0: i32) -> (i32, i32) {
    %c0_i32 = arith.constant 0 : i32
    %c0_i32_0 = arith.constant 0 : i32
    %c0_i32_1 = arith.constant 0 : i32
    return %c0_i32, %c0_i32_0 : i32, i32
  }
  func.func @transform_7(%arg0: i32) -> (i32, i32) {
    %c0_i32 = arith.constant 0 : i32
    %c0_i32_0 = arith.constant 0 : i32
    return %arg0, %c0_i32 : i32, i32
  }
}

module attributes {stable_mosaic.version = 11 : i64} {
  func.func @_mha_ln_kernel(%arg0: i32, %arg1: memref<1x8x128xbf16, #tpu.memory_space<vmem>>, %arg2: memref<1x8x128xbf16, #tpu.memory_space<vmem>>, %arg3: memref<1x1x8xf32, #tpu.memory_space<vmem>>, %arg4: memref<128x384xbf16, #tpu.memory_space<vmem>>, %arg5: memref<1x384xf32, #tpu.memory_space<vmem>>, %arg6: memref<128x128xbf16, #tpu.memory_space<vmem>>, %arg7: memref<1x128xf32, #tpu.memory_space<vmem>>, %arg8: memref<1x128xf32, #tpu.memory_space<vmem>>, %arg9: memref<1x128xf32, #tpu.memory_space<vmem>>, %arg10: memref<1x8x128xbf16, #tpu.memory_space<vmem>>) attributes {dimension_semantics = [#tpu.dimension_semantics<parallel>], iteration_bounds = array<i64: 2>, scalar_prefetch = 0 : i64, scratch_operands = 0 : i64, tpu.core_type = #tpu.core_type<tc>, window_params = [{transform_indices = @transform_0, window_bounds = array<i64: 1, 8, 128>}, {transform_indices = @transform_1, window_bounds = array<i64: 1, 8, 128>}, {transform_indices = @transform_2, window_bounds = array<i64: 1, 1, 8>}, {pipeline_mode = #tpu.pipeline_mode<synchronous>, transform_indices = @transform_3, window_bounds = array<i64: 128, 384>}, {pipeline_mode = #tpu.pipeline_mode<synchronous>, transform_indices = @transform_4, window_bounds = array<i64: 1, 384>}, {pipeline_mode = #tpu.pipeline_mode<synchronous>, transform_indices = @transform_5, window_bounds = array<i64: 128, 128>}, {pipeline_mode = #tpu.pipeline_mode<synchronous>, transform_indices = @transform_6, window_bounds = array<i64: 1, 128>}, {pipeline_mode = #tpu.pipeline_mode<synchronous>, transform_indices = @transform_7, window_bounds = array<i64: 1, 128>}, {pipeline_mode = #tpu.pipeline_mode<synchronous>, transform_indices = @transform_8, window_bounds = array<i64: 1, 128>}, {transform_indices = @transform_9, window_bounds = array<i64: 1, 8, 128>}]} {
    %c0 = arith.constant 0 : index
    %c0_0 = arith.constant 0 : index
    %c0_1 = arith.constant 0 : index
    %0 = vector.load %arg1[%c0, %c0_0, %c0_1] : memref<1x8x128xbf16, #tpu.memory_space<vmem>>, vector<1x8x128xbf16>
    %1 = vector.shape_cast %0 : vector<1x8x128xbf16> to vector<8x128xbf16>
    %2 = arith.extf %1 : vector<8x128xbf16> to vector<8x128xf32>
    %c0_2 = arith.constant 0 : index
    %c0_3 = arith.constant 0 : index
    %3 = vector.load %arg4[%c0_2, %c0_3] : memref<128x384xbf16, #tpu.memory_space<vmem>>, vector<128x384xbf16>
    %cst = arith.constant dense<0.000000e+00> : vector<8x384xf32>
    %4 = tpu.matmul %1, %3, %cst {dimension_numbers = #tpu.dot_dimension_numbers<[1], [0], [0], [1], [0, 0, 1, 1], [], []>} : vector<8x128xbf16>, vector<128x384xbf16>, vector<8x384xf32> -> vector<8x384xf32>
    %c0_4 = arith.constant 0 : index
    %c0_5 = arith.constant 0 : index
    %5 = vector.load %arg5[%c0_4, %c0_5] : memref<1x384xf32, #tpu.memory_space<vmem>>, vector<1x384xf32>
    %6 = vector.broadcast %5 : vector<1x384xf32> to vector<8x384xf32>
    %7 = arith.addf %4, %6 : vector<8x384xf32>
    %8 = vector.extract_strided_slice %7 {offsets = [0, 0], sizes = [8, 128], strides = [1, 1]} : vector<8x384xf32> to vector<8x128xf32>
    %9 = vector.extract_strided_slice %7 {offsets = [0, 128], sizes = [8, 128], strides = [1, 1]} : vector<8x384xf32> to vector<8x128xf32>
    %10 = vector.extract_strided_slice %7 {offsets = [0, 256], sizes = [8, 128], strides = [1, 1]} : vector<8x384xf32> to vector<8x128xf32>
    %c0_6 = arith.constant 0 : index
    %c0_7 = arith.constant 0 : index
    %c0_8 = arith.constant 0 : index
    %11 = vector.load %arg3[%c0_6, %c0_7, %c0_8] : memref<1x1x8xf32, #tpu.memory_space<vmem>>, vector<1x1x8xf32>
    %12 = vector.shape_cast %11 : vector<1x1x8xf32> to vector<1x8xf32>
    %cst_9 = arith.constant 0.000000e+00 : f32
    %13 = vector.broadcast %cst_9 : f32 to vector<1x8xf32>
    %14 = arith.cmpf ogt, %12, %13 : vector<1x8xf32>
    %15 = vector.shape_cast %14 : vector<1x8xi1> to vector<1x8xi1>
    %16 = vector.broadcast %15 : vector<1x8xi1> to vector<8x8xi1>
    %17 = tpu.iota {dimensions = array<i32: 0>} : vector<8x8xi32>
    %18 = tpu.iota {dimensions = array<i32: 1>} : vector<8x8xi32>
    %19 = arith.cmpi sge, %17, %18 : vector<8x8xi32>
    %20 = arith.andi %16, %19 : vector<8x8xi1>
    %cst_10 = arith.constant 0.000000e+00 : f32
    %cst_11 = arith.constant -1.000000e+09 : f32
    %21 = vector.broadcast %cst_10 : f32 to vector<8x8xf32>
    %22 = vector.broadcast %cst_11 : f32 to vector<8x8xf32>
    %23 = arith.select %20, %21, %22 : vector<8x8xi1>, vector<8x8xf32>
    %24 = vector.shape_cast %8 : vector<8x128xf32> to vector<8x4x32xf32>
    %25 = tpu.transpose %24, [1, 0, 2] : vector<8x4x32xf32> -> vector<4x8x32xf32>
    %26 = arith.truncf %25 : vector<4x8x32xf32> to vector<4x8x32xbf16>
    %27 = vector.shape_cast %9 : vector<8x128xf32> to vector<8x4x32xf32>
    %28 = tpu.transpose %27, [1, 0, 2] : vector<8x4x32xf32> -> vector<4x8x32xf32>
    %29 = arith.truncf %28 : vector<4x8x32xf32> to vector<4x8x32xbf16>
    %30 = vector.shape_cast %10 : vector<8x128xf32> to vector<8x4x32xf32>
    %31 = tpu.transpose %30, [1, 0, 2] : vector<8x4x32xf32> -> vector<4x8x32xf32>
    %32 = arith.truncf %31 : vector<4x8x32xf32> to vector<4x8x32xbf16>
    "tpu.trace_start"() <{level = 10 : i32, message = "hqd,hkd->hqk"}> : () -> ()
    %cst_12 = arith.constant dense<0.000000e+00> : vector<4x8x8xf32>
    %33 = tpu.matmul %26, %29, %cst_12 {dimension_numbers = #tpu.dot_dimension_numbers<[2], [2], [1], [1], [0, 0, 0, 1, 1, 1], [0], [0]>} : vector<4x8x32xbf16>, vector<4x8x32xbf16>, vector<4x8x8xf32> -> vector<4x8x8xf32>
    "tpu.trace_stop"() : () -> ()
    %cst_13 = arith.constant 0.176776692 : f32
    %34 = vector.broadcast %cst_13 : f32 to vector<4x8x8xf32>
    %35 = arith.mulf %33, %34 : vector<4x8x8xf32>
    %36 = vector.shape_cast %23 : vector<8x8xf32> to vector<1x8x8xf32>
    %37 = vector.broadcast %36 : vector<1x8x8xf32> to vector<4x8x8xf32>
    %38 = arith.addf %35, %37 : vector<4x8x8xf32>
    %cst_14 = arith.constant dense<0xFF800000> : vector<4x8xf32>
    %39 = vector.multi_reduction <maximumf>, %38, %cst_14 [2] : vector<4x8x8xf32> to vector<4x8xf32>
    %40 = vector.shape_cast %39 : vector<4x8xf32> to vector<4x8x1xf32>
    %41 = vector.broadcast %40 : vector<4x8x1xf32> to vector<4x8x8xf32>
    %42 = arith.subf %38, %41 : vector<4x8x8xf32>
    %43 = math.exp %42 : vector<4x8x8xf32>
    %cst_15 = arith.constant dense<0.000000e+00> : vector<4x8xf32>
    %44 = vector.multi_reduction <add>, %43, %cst_15 [2] : vector<4x8x8xf32> to vector<4x8xf32>
    %45 = vector.shape_cast %44 : vector<4x8xf32> to vector<4x8x1xf32>
    %cst_16 = arith.constant 9.99999968E-21 : f32
    %46 = vector.broadcast %cst_16 : f32 to vector<4x8x1xf32>
    %47 = arith.maximumf %45, %46 : vector<4x8x1xf32>
    %48 = tpu.reciprocal %47 {approx = true} : vector<4x8x1xf32> -> vector<4x8x1xf32>
    %49 = vector.broadcast %48 : vector<4x8x1xf32> to vector<4x8x8xf32>
    %50 = arith.mulf %43, %49 : vector<4x8x8xf32>
    %51 = arith.truncf %50 : vector<4x8x8xf32> to vector<4x8x8xbf16>
    "tpu.trace_start"() <{level = 10 : i32, message = "hqk,hkd->hqd"}> : () -> ()
    %cst_17 = arith.constant dense<0.000000e+00> : vector<4x8x32xf32>
    %52 = tpu.matmul %51, %32, %cst_17 {dimension_numbers = #tpu.dot_dimension_numbers<[2], [1], [1], [2], [0, 0, 0, 1, 1, 2], [0], [0]>} : vector<4x8x8xbf16>, vector<4x8x32xbf16>, vector<4x8x32xf32> -> vector<4x8x32xf32>
    "tpu.trace_stop"() : () -> ()
    %53 = tpu.transpose %52, [1, 0, 2] : vector<4x8x32xf32> -> vector<8x4x32xf32>
    %54 = vector.shape_cast %53 : vector<8x4x32xf32> to vector<8x128xf32>
    %55 = arith.truncf %54 : vector<8x128xf32> to vector<8x128xbf16>
    %c0_18 = arith.constant 0 : index
    %c0_19 = arith.constant 0 : index
    %56 = vector.load %arg6[%c0_18, %c0_19] : memref<128x128xbf16, #tpu.memory_space<vmem>>, vector<128x128xbf16>
    %cst_20 = arith.constant dense<0.000000e+00> : vector<8x128xf32>
    %57 = tpu.matmul %55, %56, %cst_20 {dimension_numbers = #tpu.dot_dimension_numbers<[1], [0], [0], [1], [0, 0, 1, 1], [], []>} : vector<8x128xbf16>, vector<128x128xbf16>, vector<8x128xf32> -> vector<8x128xf32>
    %c0_21 = arith.constant 0 : index
    %c0_22 = arith.constant 0 : index
    %58 = vector.load %arg7[%c0_21, %c0_22] : memref<1x128xf32, #tpu.memory_space<vmem>>, vector<1x128xf32>
    %59 = vector.broadcast %58 : vector<1x128xf32> to vector<8x128xf32>
    %60 = arith.addf %57, %59 : vector<8x128xf32>
    %61 = arith.addf %2, %60 : vector<8x128xf32>
    %c0_23 = arith.constant 0 : index
    %c0_24 = arith.constant 0 : index
    %62 = vector.load %arg8[%c0_23, %c0_24] : memref<1x128xf32, #tpu.memory_space<vmem>>, vector<1x128xf32>
    %c0_25 = arith.constant 0 : index
    %c0_26 = arith.constant 0 : index
    %63 = vector.load %arg9[%c0_25, %c0_26] : memref<1x128xf32, #tpu.memory_space<vmem>>, vector<1x128xf32>
    %cst_27 = arith.constant dense<0.000000e+00> : vector<8xf32>
    %64 = vector.multi_reduction <add>, %61, %cst_27 [1] : vector<8x128xf32> to vector<8xf32>
    %65 = vector.shape_cast %64 : vector<8xf32> to vector<8x1xf32>
    %cst_28 = arith.constant 1.280000e+02 : f32
    %66 = vector.broadcast %cst_28 : f32 to vector<8x1xf32>
    %67 = arith.divf %65, %66 : vector<8x1xf32>
    %68 = vector.broadcast %67 : vector<8x1xf32> to vector<8x128xf32>
    %69 = arith.subf %61, %68 : vector<8x128xf32>
    %70 = arith.mulf %69, %69 : vector<8x128xf32>
    %cst_29 = arith.constant dense<0.000000e+00> : vector<8xf32>
    %71 = vector.multi_reduction <add>, %70, %cst_29 [1] : vector<8x128xf32> to vector<8xf32>
    %72 = vector.shape_cast %71 : vector<8xf32> to vector<8x1xf32>
    %cst_30 = arith.constant 1.280000e+02 : f32
    %73 = vector.broadcast %cst_30 : f32 to vector<8x1xf32>
    %74 = arith.divf %72, %73 : vector<8x1xf32>
    %75 = vector.broadcast %67 : vector<8x1xf32> to vector<8x128xf32>
    %76 = arith.subf %61, %75 : vector<8x128xf32>
    %cst_31 = arith.constant 9.99999974E-6 : f32
    %77 = vector.broadcast %cst_31 : f32 to vector<8x1xf32>
    %78 = arith.addf %74, %77 : vector<8x1xf32>
    %79 = math.rsqrt %78 : vector<8x1xf32>
    %80 = vector.broadcast %79 : vector<8x1xf32> to vector<8x128xf32>
    %81 = arith.mulf %76, %80 : vector<8x128xf32>
    %82 = vector.broadcast %62 : vector<1x128xf32> to vector<8x128xf32>
    %83 = arith.mulf %81, %82 : vector<8x128xf32>
    %84 = vector.broadcast %63 : vector<1x128xf32> to vector<8x128xf32>
    %85 = arith.addf %83, %84 : vector<8x128xf32>
    %86 = arith.truncf %85 : vector<8x128xf32> to vector<8x128xbf16>
    %c0_32 = arith.constant 0 : index
    %c0_33 = arith.constant 0 : index
    %c0_34 = arith.constant 0 : index
    %87 = vector.load %arg10[%c0_32, %c0_33, %c0_34] : memref<1x8x128xbf16, #tpu.memory_space<vmem>>, vector<1x8x128xbf16>
    %88 = vector.shape_cast %87 : vector<1x8x128xbf16> to vector<8x128xbf16>
    %89 = vector.shape_cast %86 : vector<8x128xbf16> to vector<1x8x128xbf16>
    tpu.vector_store %arg10[%c0_32, %c0_33, %c0_34], %89 {strides = array<i32>} : memref<1x8x128xbf16, #tpu.memory_space<vmem>>, vector<1x8x128xbf16>,
    return
  }
  func.func @transform_0(%arg0: i32) -> (i32, i32, i32) {
    %c0_i32 = arith.constant 0 : i32
    %c0_i32_0 = arith.constant 0 : i32
    %c0_i32_1 = arith.constant 0 : i32
    return %arg0, %c0_i32, %c0_i32_0 : i32, i32, i32
  }
  func.func @transform_1(%arg0: i32) -> (i32, i32, i32) {
    %c0_i32 = arith.constant 0 : i32
    %c0_i32_0 = arith.constant 0 : i32
    %c0_i32_1 = arith.constant 0 : i32
    return %arg0, %c0_i32, %c0_i32_0 : i32, i32, i32
  }
  func.func @transform_2(%arg0: i32) -> (i32, i32, i32) {
    %c0_i32 = arith.constant 0 : i32
    %c0_i32_0 = arith.constant 0 : i32
    %c0_i32_1 = arith.constant 0 : i32
    return %arg0, %c0_i32, %c0_i32_0 : i32, i32, i32
  }
  func.func @transform_3(%arg0: i32) -> (i32, i32) {
    %c0_i32 = arith.constant 0 : i32
    %c0_i32_0 = arith.constant 0 : i32
    %c0_i32_1 = arith.constant 0 : i32
    return %c0_i32, %c0_i32_0 : i32, i32
  }
  func.func @transform_4(%arg0: i32) -> (i32, i32) {
    %c0_i32 = arith.constant 0 : i32
    %c0_i32_0 = arith.constant 0 : i32
    %c0_i32_1 = arith.constant 0 : i32
    return %c0_i32, %c0_i32_0 : i32, i32
  }
  func.func @transform_5(%arg0: i32) -> (i32, i32) {
    %c0_i32 = arith.constant 0 : i32
    %c0_i32_0 = arith.constant 0 : i32
    %c0_i32_1 = arith.constant 0 : i32
    return %c0_i32, %c0_i32_0 : i32, i32
  }
  func.func @transform_6(%arg0: i32) -> (i32, i32) {
    %c0_i32 = arith.constant 0 : i32
    %c0_i32_0 = arith.constant 0 : i32
    %c0_i32_1 = arith.constant 0 : i32
    return %c0_i32, %c0_i32_0 : i32, i32
  }
  func.func @transform_7(%arg0: i32) -> (i32, i32) {
    %c0_i32 = arith.constant 0 : i32
    %c0_i32_0 = arith.constant 0 : i32
    %c0_i32_1 = arith.constant 0 : i32
    return %c0_i32, %c0_i32_0 : i32, i32
  }
  func.func @transform_8(%arg0: i32) -> (i32, i32) {
    %c0_i32 = arith.constant 0 : i32
    %c0_i32_0 = arith.constant 0 : i32
    %c0_i32_1 = arith.constant 0 : i32
    return %c0_i32, %c0_i32_0 : i32, i32
  }
  func.func @transform_9(%arg0: i32) -> (i32, i32, i32) {
    %c0_i32 = arith.constant 0 : i32
    %c0_i32_0 = arith.constant 0 : i32
    %c0_i32_1 = arith.constant 0 : i32
    return %arg0, %c0_i32, %c0_i32_0 : i32, i32, i32
  }
}

module attributes {stable_mosaic.version = 11 : i64} {
  func.func @_mha_ln_kernel(%arg0: i32, %arg1: memref<1x8x128xbf16, #tpu.memory_space<vmem>>, %arg2: memref<1x8x128xbf16, #tpu.memory_space<vmem>>, %arg3: memref<1x1x8xf32, #tpu.memory_space<vmem>>, %arg4: memref<128x384xbf16, #tpu.memory_space<vmem>>, %arg5: memref<1x384xf32, #tpu.memory_space<vmem>>, %arg6: memref<128x128xbf16, #tpu.memory_space<vmem>>, %arg7: memref<1x128xf32, #tpu.memory_space<vmem>>, %arg8: memref<1x128xf32, #tpu.memory_space<vmem>>, %arg9: memref<1x128xf32, #tpu.memory_space<vmem>>, %arg10: memref<1x8x128xbf16, #tpu.memory_space<vmem>>) attributes {dimension_semantics = [#tpu.dimension_semantics<parallel>], iteration_bounds = array<i64: 2>, scalar_prefetch = 0 : i64, scratch_operands = 0 : i64, tpu.core_type = #tpu.core_type<tc>, window_params = [{transform_indices = @transform_0, window_bounds = array<i64: 1, 8, 128>}, {transform_indices = @transform_1, window_bounds = array<i64: 1, 8, 128>}, {transform_indices = @transform_2, window_bounds = array<i64: 1, 1, 8>}, {pipeline_mode = #tpu.pipeline_mode<synchronous>, transform_indices = @transform_3, window_bounds = array<i64: 128, 384>}, {pipeline_mode = #tpu.pipeline_mode<synchronous>, transform_indices = @transform_4, window_bounds = array<i64: 1, 384>}, {pipeline_mode = #tpu.pipeline_mode<synchronous>, transform_indices = @transform_5, window_bounds = array<i64: 128, 128>}, {pipeline_mode = #tpu.pipeline_mode<synchronous>, transform_indices = @transform_6, window_bounds = array<i64: 1, 128>}, {pipeline_mode = #tpu.pipeline_mode<synchronous>, transform_indices = @transform_7, window_bounds = array<i64: 1, 128>}, {pipeline_mode = #tpu.pipeline_mode<synchronous>, transform_indices = @transform_8, window_bounds = array<i64: 1, 128>}, {transform_indices = @transform_9, window_bounds = array<i64: 1, 8, 128>}]} {
    %c0 = arith.constant 0 : index
    %c0_0 = arith.constant 0 : index
    %c0_1 = arith.constant 0 : index
    %0 = vector.load %arg1[%c0, %c0_0, %c0_1] : memref<1x8x128xbf16, #tpu.memory_space<vmem>>, vector<1x8x128xbf16>
    %1 = vector.shape_cast %0 : vector<1x8x128xbf16> to vector<8x128xbf16>
    %2 = arith.extf %1 : vector<8x128xbf16> to vector<8x128xf32>
    %c0_2 = arith.constant 0 : index
    %c0_3 = arith.constant 0 : index
    %3 = vector.load %arg4[%c0_2, %c0_3] : memref<128x384xbf16, #tpu.memory_space<vmem>>, vector<128x384xbf16>
    %cst = arith.constant dense<0.000000e+00> : vector<8x384xf32>
    %4 = tpu.matmul %1, %3, %cst {dimension_numbers = #tpu.dot_dimension_numbers<[1], [0], [0], [1], [0, 0, 1, 1], [], []>} : vector<8x128xbf16>, vector<128x384xbf16>, vector<8x384xf32> -> vector<8x384xf32>
    %c0_4 = arith.constant 0 : index
    %c0_5 = arith.constant 0 : index
    %5 = vector.load %arg5[%c0_4, %c0_5] : memref<1x384xf32, #tpu.memory_space<vmem>>, vector<1x384xf32>
    %6 = vector.broadcast %5 : vector<1x384xf32> to vector<8x384xf32>
    %7 = arith.addf %4, %6 : vector<8x384xf32>
    %8 = vector.extract_strided_slice %7 {offsets = [0, 0], sizes = [8, 128], strides = [1, 1]} : vector<8x384xf32> to vector<8x128xf32>
    %9 = vector.extract_strided_slice %7 {offsets = [0, 128], sizes = [8, 128], strides = [1, 1]} : vector<8x384xf32> to vector<8x128xf32>
    %10 = vector.extract_strided_slice %7 {offsets = [0, 256], sizes = [8, 128], strides = [1, 1]} : vector<8x384xf32> to vector<8x128xf32>
    %c0_6 = arith.constant 0 : index
    %c0_7 = arith.constant 0 : index
    %c0_8 = arith.constant 0 : index
    %11 = vector.load %arg3[%c0_6, %c0_7, %c0_8] : memref<1x1x8xf32, #tpu.memory_space<vmem>>, vector<1x1x8xf32>
    %12 = vector.shape_cast %11 : vector<1x1x8xf32> to vector<1x8xf32>
    %cst_9 = arith.constant 0.000000e+00 : f32
    %13 = vector.broadcast %cst_9 : f32 to vector<1x8xf32>
    %14 = arith.cmpf ogt, %12, %13 : vector<1x8xf32>
    %15 = vector.shape_cast %14 : vector<1x8xi1> to vector<1x8xi1>
    %16 = vector.broadcast %15 : vector<1x8xi1> to vector<8x8xi1>
    %cst_10 = arith.constant 0.000000e+00 : f32
    %cst_11 = arith.constant -1.000000e+09 : f32
    %17 = vector.broadcast %cst_10 : f32 to vector<8x8xf32>
    %18 = vector.broadcast %cst_11 : f32 to vector<8x8xf32>
    %19 = arith.select %16, %17, %18 : vector<8x8xi1>, vector<8x8xf32>
    %20 = vector.shape_cast %8 : vector<8x128xf32> to vector<8x4x32xf32>
    %21 = tpu.transpose %20, [1, 0, 2] : vector<8x4x32xf32> -> vector<4x8x32xf32>
    %22 = arith.truncf %21 : vector<4x8x32xf32> to vector<4x8x32xbf16>
    %23 = vector.shape_cast %9 : vector<8x128xf32> to vector<8x4x32xf32>
    %24 = tpu.transpose %23, [1, 0, 2] : vector<8x4x32xf32> -> vector<4x8x32xf32>
    %25 = arith.truncf %24 : vector<4x8x32xf32> to vector<4x8x32xbf16>
    %26 = vector.shape_cast %10 : vector<8x128xf32> to vector<8x4x32xf32>
    %27 = tpu.transpose %26, [1, 0, 2] : vector<8x4x32xf32> -> vector<4x8x32xf32>
    %28 = arith.truncf %27 : vector<4x8x32xf32> to vector<4x8x32xbf16>
    "tpu.trace_start"() <{level = 10 : i32, message = "hqd,hkd->hqk"}> : () -> ()
    %cst_12 = arith.constant dense<0.000000e+00> : vector<4x8x8xf32>
    %29 = tpu.matmul %22, %25, %cst_12 {dimension_numbers = #tpu.dot_dimension_numbers<[2], [2], [1], [1], [0, 0, 0, 1, 1, 1], [0], [0]>} : vector<4x8x32xbf16>, vector<4x8x32xbf16>, vector<4x8x8xf32> -> vector<4x8x8xf32>
    "tpu.trace_stop"() : () -> ()
    %cst_13 = arith.constant 0.176776692 : f32
    %30 = vector.broadcast %cst_13 : f32 to vector<4x8x8xf32>
    %31 = arith.mulf %29, %30 : vector<4x8x8xf32>
    %32 = vector.shape_cast %19 : vector<8x8xf32> to vector<1x8x8xf32>
    %33 = vector.broadcast %32 : vector<1x8x8xf32> to vector<4x8x8xf32>
    %34 = arith.addf %31, %33 : vector<4x8x8xf32>
    %cst_14 = arith.constant dense<0xFF800000> : vector<4x8xf32>
    %35 = vector.multi_reduction <maximumf>, %34, %cst_14 [2] : vector<4x8x8xf32> to vector<4x8xf32>
    %36 = vector.shape_cast %35 : vector<4x8xf32> to vector<4x8x1xf32>
    %37 = vector.broadcast %36 : vector<4x8x1xf32> to vector<4x8x8xf32>
    %38 = arith.subf %34, %37 : vector<4x8x8xf32>
    %39 = math.exp %38 : vector<4x8x8xf32>
    %cst_15 = arith.constant dense<0.000000e+00> : vector<4x8xf32>
    %40 = vector.multi_reduction <add>, %39, %cst_15 [2] : vector<4x8x8xf32> to vector<4x8xf32>
    %41 = vector.shape_cast %40 : vector<4x8xf32> to vector<4x8x1xf32>
    %cst_16 = arith.constant 9.99999968E-21 : f32
    %42 = vector.broadcast %cst_16 : f32 to vector<4x8x1xf32>
    %43 = arith.maximumf %41, %42 : vector<4x8x1xf32>
    %44 = tpu.reciprocal %43 {approx = true} : vector<4x8x1xf32> -> vector<4x8x1xf32>
    %45 = vector.broadcast %44 : vector<4x8x1xf32> to vector<4x8x8xf32>
    %46 = arith.mulf %39, %45 : vector<4x8x8xf32>
    %47 = arith.truncf %46 : vector<4x8x8xf32> to vector<4x8x8xbf16>
    "tpu.trace_start"() <{level = 10 : i32, message = "hqk,hkd->hqd"}> : () -> ()
    %cst_17 = arith.constant dense<0.000000e+00> : vector<4x8x32xf32>
    %48 = tpu.matmul %47, %28, %cst_17 {dimension_numbers = #tpu.dot_dimension_numbers<[2], [1], [1], [2], [0, 0, 0, 1, 1, 2], [0], [0]>} : vector<4x8x8xbf16>, vector<4x8x32xbf16>, vector<4x8x32xf32> -> vector<4x8x32xf32>
    "tpu.trace_stop"() : () -> ()
    %49 = tpu.transpose %48, [1, 0, 2] : vector<4x8x32xf32> -> vector<8x4x32xf32>
    %50 = vector.shape_cast %49 : vector<8x4x32xf32> to vector<8x128xf32>
    %51 = arith.truncf %50 : vector<8x128xf32> to vector<8x128xbf16>
    %c0_18 = arith.constant 0 : index
    %c0_19 = arith.constant 0 : index
    %52 = vector.load %arg6[%c0_18, %c0_19] : memref<128x128xbf16, #tpu.memory_space<vmem>>, vector<128x128xbf16>
    %cst_20 = arith.constant dense<0.000000e+00> : vector<8x128xf32>
    %53 = tpu.matmul %51, %52, %cst_20 {dimension_numbers = #tpu.dot_dimension_numbers<[1], [0], [0], [1], [0, 0, 1, 1], [], []>} : vector<8x128xbf16>, vector<128x128xbf16>, vector<8x128xf32> -> vector<8x128xf32>
    %c0_21 = arith.constant 0 : index
    %c0_22 = arith.constant 0 : index
    %54 = vector.load %arg7[%c0_21, %c0_22] : memref<1x128xf32, #tpu.memory_space<vmem>>, vector<1x128xf32>
    %55 = vector.broadcast %54 : vector<1x128xf32> to vector<8x128xf32>
    %56 = arith.addf %53, %55 : vector<8x128xf32>
    %57 = arith.addf %2, %56 : vector<8x128xf32>
    %c0_23 = arith.constant 0 : index
    %c0_24 = arith.constant 0 : index
    %58 = vector.load %arg8[%c0_23, %c0_24] : memref<1x128xf32, #tpu.memory_space<vmem>>, vector<1x128xf32>
    %c0_25 = arith.constant 0 : index
    %c0_26 = arith.constant 0 : index
    %59 = vector.load %arg9[%c0_25, %c0_26] : memref<1x128xf32, #tpu.memory_space<vmem>>, vector<1x128xf32>
    %cst_27 = arith.constant dense<0.000000e+00> : vector<8xf32>
    %60 = vector.multi_reduction <add>, %57, %cst_27 [1] : vector<8x128xf32> to vector<8xf32>
    %61 = vector.shape_cast %60 : vector<8xf32> to vector<8x1xf32>
    %cst_28 = arith.constant 1.280000e+02 : f32
    %62 = vector.broadcast %cst_28 : f32 to vector<8x1xf32>
    %63 = arith.divf %61, %62 : vector<8x1xf32>
    %64 = vector.broadcast %63 : vector<8x1xf32> to vector<8x128xf32>
    %65 = arith.subf %57, %64 : vector<8x128xf32>
    %66 = arith.mulf %65, %65 : vector<8x128xf32>
    %cst_29 = arith.constant dense<0.000000e+00> : vector<8xf32>
    %67 = vector.multi_reduction <add>, %66, %cst_29 [1] : vector<8x128xf32> to vector<8xf32>
    %68 = vector.shape_cast %67 : vector<8xf32> to vector<8x1xf32>
    %cst_30 = arith.constant 1.280000e+02 : f32
    %69 = vector.broadcast %cst_30 : f32 to vector<8x1xf32>
    %70 = arith.divf %68, %69 : vector<8x1xf32>
    %71 = vector.broadcast %63 : vector<8x1xf32> to vector<8x128xf32>
    %72 = arith.subf %57, %71 : vector<8x128xf32>
    %cst_31 = arith.constant 9.99999974E-6 : f32
    %73 = vector.broadcast %cst_31 : f32 to vector<8x1xf32>
    %74 = arith.addf %70, %73 : vector<8x1xf32>
    %75 = math.rsqrt %74 : vector<8x1xf32>
    %76 = vector.broadcast %75 : vector<8x1xf32> to vector<8x128xf32>
    %77 = arith.mulf %72, %76 : vector<8x128xf32>
    %78 = vector.broadcast %58 : vector<1x128xf32> to vector<8x128xf32>
    %79 = arith.mulf %77, %78 : vector<8x128xf32>
    %80 = vector.broadcast %59 : vector<1x128xf32> to vector<8x128xf32>
    %81 = arith.addf %79, %80 : vector<8x128xf32>
    %82 = arith.truncf %81 : vector<8x128xf32> to vector<8x128xbf16>
    %c0_32 = arith.constant 0 : index
    %c0_33 = arith.constant 0 : index
    %c0_34 = arith.constant 0 : index
    %83 = vector.load %arg10[%c0_32, %c0_33, %c0_34] : memref<1x8x128xbf16, #tpu.memory_space<vmem>>, vector<1x8x128xbf16>
    %84 = vector.shape_cast %83 : vector<1x8x128xbf16> to vector<8x128xbf16>
    %85 = vector.shape_cast %82 : vector<8x128xbf16> to vector<1x8x128xbf16>
    tpu.vector_store %arg10[%c0_32, %c0_33, %c0_34], %85 {strides = array<i32>} : memref<1x8x128xbf16, #tpu.memory_space<vmem>>, vector<1x8x128xbf16>,
    return
  }
  func.func @transform_0(%arg0: i32) -> (i32, i32, i32) {
    %c0_i32 = arith.constant 0 : i32
    %c0_i32_0 = arith.constant 0 : i32
    %c0_i32_1 = arith.constant 0 : i32
    return %arg0, %c0_i32, %c0_i32_0 : i32, i32, i32
  }
  func.func @transform_1(%arg0: i32) -> (i32, i32, i32) {
    %c0_i32 = arith.constant 0 : i32
    %c0_i32_0 = arith.constant 0 : i32
    %c0_i32_1 = arith.constant 0 : i32
    return %arg0, %c0_i32, %c0_i32_0 : i32, i32, i32
  }
  func.func @transform_2(%arg0: i32) -> (i32, i32, i32) {
    %c0_i32 = arith.constant 0 : i32
    %c0_i32_0 = arith.constant 0 : i32
    %c0_i32_1 = arith.constant 0 : i32
    return %arg0, %c0_i32, %c0_i32_0 : i32, i32, i32
  }
  func.func @transform_3(%arg0: i32) -> (i32, i32) {
    %c0_i32 = arith.constant 0 : i32
    %c0_i32_0 = arith.constant 0 : i32
    %c0_i32_1 = arith.constant 0 : i32
    return %c0_i32, %c0_i32_0 : i32, i32
  }
  func.func @transform_4(%arg0: i32) -> (i32, i32) {
    %c0_i32 = arith.constant 0 : i32
    %c0_i32_0 = arith.constant 0 : i32
    %c0_i32_1 = arith.constant 0 : i32
    return %c0_i32, %c0_i32_0 : i32, i32
  }
  func.func @transform_5(%arg0: i32) -> (i32, i32) {
    %c0_i32 = arith.constant 0 : i32
    %c0_i32_0 = arith.constant 0 : i32
    %c0_i32_1 = arith.constant 0 : i32
    return %c0_i32, %c0_i32_0 : i32, i32
  }
  func.func @transform_6(%arg0: i32) -> (i32, i32) {
    %c0_i32 = arith.constant 0 : i32
    %c0_i32_0 = arith.constant 0 : i32
    %c0_i32_1 = arith.constant 0 : i32
    return %c0_i32, %c0_i32_0 : i32, i32
  }
  func.func @transform_7(%arg0: i32) -> (i32, i32) {
    %c0_i32 = arith.constant 0 : i32
    %c0_i32_0 = arith.constant 0 : i32
    %c0_i32_1 = arith.constant 0 : i32
    return %c0_i32, %c0_i32_0 : i32, i32
  }
  func.func @transform_8(%arg0: i32) -> (i32, i32) {
    %c0_i32 = arith.constant 0 : i32
    %c0_i32_0 = arith.constant 0 : i32
    %c0_i32_1 = arith.constant 0 : i32
    return %c0_i32, %c0_i32_0 : i32, i32
  }
  func.func @transform_9(%arg0: i32) -> (i32, i32, i32) {
    %c0_i32 = arith.constant 0 : i32
    %c0_i32_0 = arith.constant 0 : i32
    %c0_i32_1 = arith.constant 0 : i32
    return %arg0, %c0_i32, %c0_i32_0 : i32, i32, i32
  }
}

module attributes {stable_mosaic.version = 11 : i64} {
  func.func @_mha_ln_kernel(%arg0: i32, %arg1: memref<1x8x128xbf16, #tpu.memory_space<vmem>>, %arg2: memref<1x8x128xbf16, #tpu.memory_space<vmem>>, %arg3: memref<1x1x8xf32, #tpu.memory_space<vmem>>, %arg4: memref<128x384xbf16, #tpu.memory_space<vmem>>, %arg5: memref<1x384xf32, #tpu.memory_space<vmem>>, %arg6: memref<128x128xbf16, #tpu.memory_space<vmem>>, %arg7: memref<1x128xf32, #tpu.memory_space<vmem>>, %arg8: memref<1x128xf32, #tpu.memory_space<vmem>>, %arg9: memref<1x128xf32, #tpu.memory_space<vmem>>, %arg10: memref<1x8x128xbf16, #tpu.memory_space<vmem>>) attributes {dimension_semantics = [#tpu.dimension_semantics<parallel>], iteration_bounds = array<i64: 2>, scalar_prefetch = 0 : i64, scratch_operands = 0 : i64, tpu.core_type = #tpu.core_type<tc>, window_params = [{transform_indices = @transform_0, window_bounds = array<i64: 1, 8, 128>}, {transform_indices = @transform_1, window_bounds = array<i64: 1, 8, 128>}, {transform_indices = @transform_2, window_bounds = array<i64: 1, 1, 8>}, {pipeline_mode = #tpu.pipeline_mode<synchronous>, transform_indices = @transform_3, window_bounds = array<i64: 128, 384>}, {pipeline_mode = #tpu.pipeline_mode<synchronous>, transform_indices = @transform_4, window_bounds = array<i64: 1, 384>}, {pipeline_mode = #tpu.pipeline_mode<synchronous>, transform_indices = @transform_5, window_bounds = array<i64: 128, 128>}, {pipeline_mode = #tpu.pipeline_mode<synchronous>, transform_indices = @transform_6, window_bounds = array<i64: 1, 128>}, {pipeline_mode = #tpu.pipeline_mode<synchronous>, transform_indices = @transform_7, window_bounds = array<i64: 1, 128>}, {pipeline_mode = #tpu.pipeline_mode<synchronous>, transform_indices = @transform_8, window_bounds = array<i64: 1, 128>}, {transform_indices = @transform_9, window_bounds = array<i64: 1, 8, 128>}]} {
    %c0 = arith.constant 0 : index
    %c0_0 = arith.constant 0 : index
    %c0_1 = arith.constant 0 : index
    %0 = vector.load %arg1[%c0, %c0_0, %c0_1] : memref<1x8x128xbf16, #tpu.memory_space<vmem>>, vector<1x8x128xbf16>
    %1 = vector.shape_cast %0 : vector<1x8x128xbf16> to vector<8x128xbf16>
    %2 = arith.extf %1 : vector<8x128xbf16> to vector<8x128xf32>
    %c0_2 = arith.constant 0 : index
    %c0_3 = arith.constant 0 : index
    %c0_4 = arith.constant 0 : index
    %3 = vector.load %arg2[%c0_2, %c0_3, %c0_4] : memref<1x8x128xbf16, #tpu.memory_space<vmem>>, vector<1x8x128xbf16>
    %4 = vector.shape_cast %3 : vector<1x8x128xbf16> to vector<8x128xbf16>
    %c0_5 = arith.constant 0 : index
    %c0_6 = arith.constant 0 : index
    %5 = vector.load %arg4[%c0_5, %c0_6] : memref<128x384xbf16, #tpu.memory_space<vmem>>, vector<128x128xbf16>
    %cst = arith.constant dense<0.000000e+00> : vector<8x128xf32>
    %6 = tpu.matmul %1, %5, %cst {dimension_numbers = #tpu.dot_dimension_numbers<[1], [0], [0], [1], [0, 0, 1, 1], [], []>} : vector<8x128xbf16>, vector<128x128xbf16>, vector<8x128xf32> -> vector<8x128xf32>
    %c0_7 = arith.constant 0 : index
    %c0_8 = arith.constant 0 : index
    %7 = vector.load %arg5[%c0_7, %c0_8] : memref<1x384xf32, #tpu.memory_space<vmem>>, vector<1x128xf32>
    %8 = vector.broadcast %7 : vector<1x128xf32> to vector<8x128xf32>
    %9 = arith.addf %6, %8 : vector<8x128xf32>
    %c0_9 = arith.constant 0 : index
    %c128 = arith.constant 128 : index
    %10 = vector.load %arg4[%c0_9, %c128] : memref<128x384xbf16, #tpu.memory_space<vmem>>, vector<128x256xbf16>
    %cst_10 = arith.constant dense<0.000000e+00> : vector<8x256xf32>
    %11 = tpu.matmul %4, %10, %cst_10 {dimension_numbers = #tpu.dot_dimension_numbers<[1], [0], [0], [1], [0, 0, 1, 1], [], []>} : vector<8x128xbf16>, vector<128x256xbf16>, vector<8x256xf32> -> vector<8x256xf32>
    %c0_11 = arith.constant 0 : index
    %c128_12 = arith.constant 128 : index
    %12 = vector.load %arg5[%c0_11, %c128_12] : memref<1x384xf32, #tpu.memory_space<vmem>>, vector<1x256xf32>
    %13 = vector.broadcast %12 : vector<1x256xf32> to vector<8x256xf32>
    %14 = arith.addf %11, %13 : vector<8x256xf32>
    %15 = vector.extract_strided_slice %14 {offsets = [0, 0], sizes = [8, 128], strides = [1, 1]} : vector<8x256xf32> to vector<8x128xf32>
    %16 = vector.extract_strided_slice %14 {offsets = [0, 128], sizes = [8, 128], strides = [1, 1]} : vector<8x256xf32> to vector<8x128xf32>
    %c0_13 = arith.constant 0 : index
    %c0_14 = arith.constant 0 : index
    %c0_15 = arith.constant 0 : index
    %17 = vector.load %arg3[%c0_13, %c0_14, %c0_15] : memref<1x1x8xf32, #tpu.memory_space<vmem>>, vector<1x1x8xf32>
    %18 = vector.shape_cast %17 : vector<1x1x8xf32> to vector<1x8xf32>
    %cst_16 = arith.constant 0.000000e+00 : f32
    %19 = vector.broadcast %cst_16 : f32 to vector<1x8xf32>
    %20 = arith.cmpf ogt, %18, %19 : vector<1x8xf32>
    %21 = vector.shape_cast %20 : vector<1x8xi1> to vector<1x8xi1>
    %22 = vector.broadcast %21 : vector<1x8xi1> to vector<8x8xi1>
    %cst_17 = arith.constant 0.000000e+00 : f32
    %cst_18 = arith.constant -1.000000e+09 : f32
    %23 = vector.broadcast %cst_17 : f32 to vector<8x8xf32>
    %24 = vector.broadcast %cst_18 : f32 to vector<8x8xf32>
    %25 = arith.select %22, %23, %24 : vector<8x8xi1>, vector<8x8xf32>
    %26 = vector.shape_cast %9 : vector<8x128xf32> to vector<8x4x32xf32>
    %27 = tpu.transpose %26, [1, 0, 2] : vector<8x4x32xf32> -> vector<4x8x32xf32>
    %28 = arith.truncf %27 : vector<4x8x32xf32> to vector<4x8x32xbf16>
    %29 = vector.shape_cast %15 : vector<8x128xf32> to vector<8x4x32xf32>
    %30 = tpu.transpose %29, [1, 0, 2] : vector<8x4x32xf32> -> vector<4x8x32xf32>
    %31 = arith.truncf %30 : vector<4x8x32xf32> to vector<4x8x32xbf16>
    %32 = vector.shape_cast %16 : vector<8x128xf32> to vector<8x4x32xf32>
    %33 = tpu.transpose %32, [1, 0, 2] : vector<8x4x32xf32> -> vector<4x8x32xf32>
    %34 = arith.truncf %33 : vector<4x8x32xf32> to vector<4x8x32xbf16>
    "tpu.trace_start"() <{level = 10 : i32, message = "hqd,hkd->hqk"}> : () -> ()
    %cst_19 = arith.constant dense<0.000000e+00> : vector<4x8x8xf32>
    %35 = tpu.matmul %28, %31, %cst_19 {dimension_numbers = #tpu.dot_dimension_numbers<[2], [2], [1], [1], [0, 0, 0, 1, 1, 1], [0], [0]>} : vector<4x8x32xbf16>, vector<4x8x32xbf16>, vector<4x8x8xf32> -> vector<4x8x8xf32>
    "tpu.trace_stop"() : () -> ()
    %cst_20 = arith.constant 0.176776692 : f32
    %36 = vector.broadcast %cst_20 : f32 to vector<4x8x8xf32>
    %37 = arith.mulf %35, %36 : vector<4x8x8xf32>
    %38 = vector.shape_cast %25 : vector<8x8xf32> to vector<1x8x8xf32>
    %39 = vector.broadcast %38 : vector<1x8x8xf32> to vector<4x8x8xf32>
    %40 = arith.addf %37, %39 : vector<4x8x8xf32>
    %cst_21 = arith.constant dense<0xFF800000> : vector<4x8xf32>
    %41 = vector.multi_reduction <maximumf>, %40, %cst_21 [2] : vector<4x8x8xf32> to vector<4x8xf32>
    %42 = vector.shape_cast %41 : vector<4x8xf32> to vector<4x8x1xf32>
    %43 = vector.broadcast %42 : vector<4x8x1xf32> to vector<4x8x8xf32>
    %44 = arith.subf %40, %43 : vector<4x8x8xf32>
    %45 = math.exp %44 : vector<4x8x8xf32>
    %cst_22 = arith.constant dense<0.000000e+00> : vector<4x8xf32>
    %46 = vector.multi_reduction <add>, %45, %cst_22 [2] : vector<4x8x8xf32> to vector<4x8xf32>
    %47 = vector.shape_cast %46 : vector<4x8xf32> to vector<4x8x1xf32>
    %cst_23 = arith.constant 9.99999968E-21 : f32
    %48 = vector.broadcast %cst_23 : f32 to vector<4x8x1xf32>
    %49 = arith.maximumf %47, %48 : vector<4x8x1xf32>
    %50 = tpu.reciprocal %49 {approx = true} : vector<4x8x1xf32> -> vector<4x8x1xf32>
    %51 = vector.broadcast %50 : vector<4x8x1xf32> to vector<4x8x8xf32>
    %52 = arith.mulf %45, %51 : vector<4x8x8xf32>
    %53 = arith.truncf %52 : vector<4x8x8xf32> to vector<4x8x8xbf16>
    "tpu.trace_start"() <{level = 10 : i32, message = "hqk,hkd->hqd"}> : () -> ()
    %cst_24 = arith.constant dense<0.000000e+00> : vector<4x8x32xf32>
    %54 = tpu.matmul %53, %34, %cst_24 {dimension_numbers = #tpu.dot_dimension_numbers<[2], [1], [1], [2], [0, 0, 0, 1, 1, 2], [0], [0]>} : vector<4x8x8xbf16>, vector<4x8x32xbf16>, vector<4x8x32xf32> -> vector<4x8x32xf32>
    "tpu.trace_stop"() : () -> ()
    %55 = tpu.transpose %54, [1, 0, 2] : vector<4x8x32xf32> -> vector<8x4x32xf32>
    %56 = vector.shape_cast %55 : vector<8x4x32xf32> to vector<8x128xf32>
    %57 = arith.truncf %56 : vector<8x128xf32> to vector<8x128xbf16>
    %c0_25 = arith.constant 0 : index
    %c0_26 = arith.constant 0 : index
    %58 = vector.load %arg6[%c0_25, %c0_26] : memref<128x128xbf16, #tpu.memory_space<vmem>>, vector<128x128xbf16>
    %cst_27 = arith.constant dense<0.000000e+00> : vector<8x128xf32>
    %59 = tpu.matmul %57, %58, %cst_27 {dimension_numbers = #tpu.dot_dimension_numbers<[1], [0], [0], [1], [0, 0, 1, 1], [], []>} : vector<8x128xbf16>, vector<128x128xbf16>, vector<8x128xf32> -> vector<8x128xf32>
    %c0_28 = arith.constant 0 : index
    %c0_29 = arith.constant 0 : index
    %60 = vector.load %arg7[%c0_28, %c0_29] : memref<1x128xf32, #tpu.memory_space<vmem>>, vector<1x128xf32>
    %61 = vector.broadcast %60 : vector<1x128xf32> to vector<8x128xf32>
    %62 = arith.addf %59, %61 : vector<8x128xf32>
    %63 = arith.addf %2, %62 : vector<8x128xf32>
    %c0_30 = arith.constant 0 : index
    %c0_31 = arith.constant 0 : index
    %64 = vector.load %arg8[%c0_30, %c0_31] : memref<1x128xf32, #tpu.memory_space<vmem>>, vector<1x128xf32>
    %c0_32 = arith.constant 0 : index
    %c0_33 = arith.constant 0 : index
    %65 = vector.load %arg9[%c0_32, %c0_33] : memref<1x128xf32, #tpu.memory_space<vmem>>, vector<1x128xf32>
    %cst_34 = arith.constant dense<0.000000e+00> : vector<8xf32>
    %66 = vector.multi_reduction <add>, %63, %cst_34 [1] : vector<8x128xf32> to vector<8xf32>
    %67 = vector.shape_cast %66 : vector<8xf32> to vector<8x1xf32>
    %cst_35 = arith.constant 1.280000e+02 : f32
    %68 = vector.broadcast %cst_35 : f32 to vector<8x1xf32>
    %69 = arith.divf %67, %68 : vector<8x1xf32>
    %70 = vector.broadcast %69 : vector<8x1xf32> to vector<8x128xf32>
    %71 = arith.subf %63, %70 : vector<8x128xf32>
    %72 = arith.mulf %71, %71 : vector<8x128xf32>
    %cst_36 = arith.constant dense<0.000000e+00> : vector<8xf32>
    %73 = vector.multi_reduction <add>, %72, %cst_36 [1] : vector<8x128xf32> to vector<8xf32>
    %74 = vector.shape_cast %73 : vector<8xf32> to vector<8x1xf32>
    %cst_37 = arith.constant 1.280000e+02 : f32
    %75 = vector.broadcast %cst_37 : f32 to vector<8x1xf32>
    %76 = arith.divf %74, %75 : vector<8x1xf32>
    %77 = vector.broadcast %69 : vector<8x1xf32> to vector<8x128xf32>
    %78 = arith.subf %63, %77 : vector<8x128xf32>
    %cst_38 = arith.constant 9.99999974E-6 : f32
    %79 = vector.broadcast %cst_38 : f32 to vector<8x1xf32>
    %80 = arith.addf %76, %79 : vector<8x1xf32>
    %81 = math.rsqrt %80 : vector<8x1xf32>
    %82 = vector.broadcast %81 : vector<8x1xf32> to vector<8x128xf32>
    %83 = arith.mulf %78, %82 : vector<8x128xf32>
    %84 = vector.broadcast %64 : vector<1x128xf32> to vector<8x128xf32>
    %85 = arith.mulf %83, %84 : vector<8x128xf32>
    %86 = vector.broadcast %65 : vector<1x128xf32> to vector<8x128xf32>
    %87 = arith.addf %85, %86 : vector<8x128xf32>
    %88 = arith.truncf %87 : vector<8x128xf32> to vector<8x128xbf16>
    %c0_39 = arith.constant 0 : index
    %c0_40 = arith.constant 0 : index
    %c0_41 = arith.constant 0 : index
    %89 = vector.load %arg10[%c0_39, %c0_40, %c0_41] : memref<1x8x128xbf16, #tpu.memory_space<vmem>>, vector<1x8x128xbf16>
    %90 = vector.shape_cast %89 : vector<1x8x128xbf16> to vector<8x128xbf16>
    %91 = vector.shape_cast %88 : vector<8x128xbf16> to vector<1x8x128xbf16>
    tpu.vector_store %arg10[%c0_39, %c0_40, %c0_41], %91 {strides = array<i32>} : memref<1x8x128xbf16, #tpu.memory_space<vmem>>, vector<1x8x128xbf16>,
    return
  }
  func.func @transform_0(%arg0: i32) -> (i32, i32, i32) {
    %c0_i32 = arith.constant 0 : i32
    %c0_i32_0 = arith.constant 0 : i32
    %c0_i32_1 = arith.constant 0 : i32
    return %arg0, %c0_i32, %c0_i32_0 : i32, i32, i32
  }
  func.func @transform_1(%arg0: i32) -> (i32, i32, i32) {
    %c0_i32 = arith.constant 0 : i32
    %c0_i32_0 = arith.constant 0 : i32
    %c0_i32_1 = arith.constant 0 : i32
    return %arg0, %c0_i32, %c0_i32_0 : i32, i32, i32
  }
  func.func @transform_2(%arg0: i32) -> (i32, i32, i32) {
    %c0_i32 = arith.constant 0 : i32
    %c0_i32_0 = arith.constant 0 : i32
    %c0_i32_1 = arith.constant 0 : i32
    return %arg0, %c0_i32, %c0_i32_0 : i32, i32, i32
  }
  func.func @transform_3(%arg0: i32) -> (i32, i32) {
    %c0_i32 = arith.constant 0 : i32
    %c0_i32_0 = arith.constant 0 : i32
    %c0_i32_1 = arith.constant 0 : i32
    return %c0_i32, %c0_i32_0 : i32, i32
  }
  func.func @transform_4(%arg0: i32) -> (i32, i32) {
    %c0_i32 = arith.constant 0 : i32
    %c0_i32_0 = arith.constant 0 : i32
    %c0_i32_1 = arith.constant 0 : i32
    return %c0_i32, %c0_i32_0 : i32, i32
  }
  func.func @transform_5(%arg0: i32) -> (i32, i32) {
    %c0_i32 = arith.constant 0 : i32
    %c0_i32_0 = arith.constant 0 : i32
    %c0_i32_1 = arith.constant 0 : i32
    return %c0_i32, %c0_i32_0 : i32, i32
  }
  func.func @transform_6(%arg0: i32) -> (i32, i32) {
    %c0_i32 = arith.constant 0 : i32
    %c0_i32_0 = arith.constant 0 : i32
    %c0_i32_1 = arith.constant 0 : i32
    return %c0_i32, %c0_i32_0 : i32, i32
  }
  func.func @transform_7(%arg0: i32) -> (i32, i32) {
    %c0_i32 = arith.constant 0 : i32
    %c0_i32_0 = arith.constant 0 : i32
    %c0_i32_1 = arith.constant 0 : i32
    return %c0_i32, %c0_i32_0 : i32, i32
  }
  func.func @transform_8(%arg0: i32) -> (i32, i32) {
    %c0_i32 = arith.constant 0 : i32
    %c0_i32_0 = arith.constant 0 : i32
    %c0_i32_1 = arith.constant 0 : i32
    return %c0_i32, %c0_i32_0 : i32, i32
  }
  func.func @transform_9(%arg0: i32) -> (i32, i32, i32) {
    %c0_i32 = arith.constant 0 : i32
    %c0_i32_0 = arith.constant 0 : i32
    %c0_i32_1 = arith.constant 0 : i32
    return %arg0, %c0_i32, %c0_i32_0 : i32, i32, i32
  }
}

module attributes {stable_mosaic.version = 11 : i64} {
  func.func @_linear_kernel(%arg0: i32, %arg1: i32, %arg2: memref<8x128xbf16, #tpu.memory_space<vmem>>, %arg3: memref<128x256xbf16, #tpu.memory_space<vmem>>, %arg4: memref<1x256xf32, #tpu.memory_space<vmem>>, %arg5: memref<8x256xf32, #tpu.memory_space<vmem>>) attributes {dimension_semantics = [#tpu.dimension_semantics<parallel>, #tpu.dimension_semantics<parallel>], iteration_bounds = array<i64: 2, 1>, scalar_prefetch = 0 : i64, scratch_operands = 0 : i64, tpu.core_type = #tpu.core_type<tc>, window_params = [{transform_indices = @transform_0, window_bounds = array<i64: 8, 128>}, {transform_indices = @transform_1, window_bounds = array<i64: 128, 256>}, {transform_indices = @transform_2, window_bounds = array<i64: 1, 256>}, {transform_indices = @transform_3, window_bounds = array<i64: 8, 256>}]} {
    %c0 = arith.constant 0 : index
    %c0_0 = arith.constant 0 : index
    %0 = vector.load %arg2[%c0, %c0_0] : memref<8x128xbf16, #tpu.memory_space<vmem>>, vector<8x128xbf16>
    %c0_1 = arith.constant 0 : index
    %c0_2 = arith.constant 0 : index
    %1 = vector.load %arg3[%c0_1, %c0_2] : memref<128x256xbf16, #tpu.memory_space<vmem>>, vector<128x256xbf16>
    %cst = arith.constant dense<0.000000e+00> : vector<8x256xf32>
    %2 = tpu.matmul %0, %1, %cst {dimension_numbers = #tpu.dot_dimension_numbers<[1], [0], [0], [1], [0, 0, 1, 1], [], []>} : vector<8x128xbf16>, vector<128x256xbf16>, vector<8x256xf32> -> vector<8x256xf32>
    %c0_3 = arith.constant 0 : index
    %c0_4 = arith.constant 0 : index
    %3 = vector.load %arg4[%c0_3, %c0_4] : memref<1x256xf32, #tpu.memory_space<vmem>>, vector<1x256xf32>
    %4 = vector.broadcast %3 : vector<1x256xf32> to vector<8x256xf32>
    %5 = arith.addf %2, %4 : vector<8x256xf32>
    %c0_5 = arith.constant 0 : index
    %c0_6 = arith.constant 0 : index
    %6 = vector.load %arg5[%c0_5, %c0_6] : memref<8x256xf32, #tpu.memory_space<vmem>>, vector<8x256xf32>
    tpu.vector_store %arg5[%c0_5, %c0_6], %5 {strides = array<i32>} : memref<8x256xf32, #tpu.memory_space<vmem>>, vector<8x256xf32>,
    return
  }
  func.func @transform_0(%arg0: i32, %arg1: i32) -> (i32, i32) {
    %c0_i32 = arith.constant 0 : i32
    %c0_i32_0 = arith.constant 0 : i32
    return %arg0, %c0_i32 : i32, i32
  }
  func.func @transform_1(%arg0: i32, %arg1: i32) -> (i32, i32) {
    %c0_i32 = arith.constant 0 : i32
    %c0_i32_0 = arith.constant 0 : i32
    return %c0_i32, %arg1 : i32, i32
  }
  func.func @transform_2(%arg0: i32, %arg1: i32) -> (i32, i32) {
    %c0_i32 = arith.constant 0 : i32
    %c0_i32_0 = arith.constant 0 : i32
    return %c0_i32, %arg1 : i32, i32
  }
  func.func @transform_3(%arg0: i32, %arg1: i32) -> (i32, i32) {
    %c0_i32 = arith.constant 0 : i32
    return %arg0, %arg1 : i32, i32
  }
}

</mosaic_0001>

<llo_original>
// kernel: transformer_forward.12
$region0: #{transformer_forward.12}
  #allocation0 [shape = 'u32[]', space=smem, size = 0x4, offset = 0x4, fixed_abs, tag = 'smem constant byte address 0x4 - core index']
  #allocation1 [shape = 'u32[144,128]{1,0:T(1,128)}', space=vmem, size = 0x12000, scoped, tag = 'internal scratch']
  %s0 = inlined_call_operand.hbm [shape: bf16[16,128], index: 0, kind: input, shape index: {}]
  %s1 = inlined_call_operand.hbm [shape: bf16[128,256], index: 1, kind: input, shape index: {}]
  %s2 = inlined_call_operand.hbm [shape: f32[1,256], index: 2, kind: input, shape index: {}]
  %s3 = inlined_call_operand.hbm [shape: bf16[256,128], index: 3, kind: input, shape index: {}]
  %s4 = inlined_call_operand.hbm [shape: f32[1,128], index: 4, kind: input, shape index: {}]
  %s5 = inlined_call_operand.hbm [shape: f32[1,128], index: 5, kind: input, shape index: {}]
  %s6 = inlined_call_operand.hbm [shape: f32[1,128], index: 6, kind: input, shape index: {}]
  %s7 = inlined_call_operand.hbm [shape: bf16[16,128], index: 7, kind: output, shape index: {}]
  %s8 = sld [smem:[#allocation0]]
  $region89: #{transformer_forward.12} parent=0
    _
  %s10 = ssub.s32 1, %s8
  %s11 = scalar_select 0, %s10, %s8
  $region1: #{transformer_forward.12} parent=0
    #allocation2 [shape = 'u8[4096]{0}', space=vmem, size = 0x1000, scoped, tag = 'input window, operand 0']
    #allocation3 [shape = 's32[2]{0}', space=sflag, size = 0x8, scoped, tag = 'scoped memory for transformer_forward.12']
    #allocation4 [shape = 's32[2]{0}', space=sflag, size = 0x8, scoped, tag = 'scoped memory for transformer_forward.12']
    #allocation5 [shape = 'u8[65536]{0}', space=vmem, size = 0x10000, scoped, tag = 'input window, operand 1, single buffered']
    #allocation6 [shape = 's32[1]{0}', space=sflag, size = 0x4, scoped, tag = 'scoped memory for transformer_forward.12']
    #allocation7 [shape = 'u8[1024]{0}', space=vmem, size = 0x400, scoped, tag = 'input window, operand 2, single buffered']
    #allocation8 [shape = 'u8[65536]{0}', space=vmem, size = 0x10000, scoped, tag = 'input window, operand 3, single buffered']
    #allocation9 [shape = 's32[1]{0}', space=sflag, size = 0x4, scoped, tag = 'scoped memory for transformer_forward.12']
    #allocation10 [shape = 'u8[512]{0}', space=vmem, size = 0x400, scoped, tag = 'input window, operand 4, single buffered']
    #allocation11 [shape = 'u8[512]{0}', space=vmem, size = 0x400, scoped, tag = 'input window, operand 5, single buffered']
    #allocation12 [shape = 's32[1]{0}', space=sflag, size = 0x4, scoped, tag = 'scoped memory for transformer_forward.12']
    #allocation13 [shape = 'u8[512]{0}', space=vmem, size = 0x400, scoped, tag = 'input window, operand 6, single buffered']
    #allocation14 [shape = 'u8[4096]{0}', space=vmem, size = 0x1000, scoped, tag = 'output window, operand 0']
    %12 = vsyncpa [#allocation3], 0
    %s13 = scalar_lea.sflag [#allocation3], 1
    %14 = vsyncpa %s13, 0
    %15 = vsyncpa [#allocation6], 0
    %16 = vsyncpa [#allocation9], 0
    %17 = vsyncpa [#allocation12], 0
    %18 = vsyncpa [#allocation4], 0
    %s19 = scalar_lea.sflag [#allocation4], 1
    %20 = vsyncpa %s19, 0
    loop: start=0, step=1, limit=4
    $region2: #{transformer_forward.12} parent=1 // loop_pre_header
      _
    $region3: #{transformer_forward.12} parent=1 // loop_header
      %s22 = sphi 0, %s26
      %p23 = scmp.ge.s32.totalorder %s22, 4
      %s32 = sphi 0, %s34
      %s35 = sphi 0, %s32
      %s36 = sphi 0, %s35
      %s52 = sphi 0, %s36
      %s56 = sphi 0, %s56
      %s58 = sphi 0, %s56
      %s59 = sphi 0, %s58
      %s73 = sphi 0, %s59
      %s77 = sphi 0, %s77
      %s79 = sphi 0, %s77
      %s80 = sphi 0, %s79
      %s94 = sphi 0, %s80
      %s98 = sphi 0, %s98
      %s100 = sphi 0, %s98
      %s101 = sphi 0, %s100
      %s115 = sphi 0, %s101
      %s119 = sphi 0, %s119
      %s121 = sphi 0, %s119
      %s122 = sphi 0, %s121
      %s136 = sphi 0, %s122
      %s140 = sphi 0, %s140
      %s142 = sphi 0, %s140
      %s143 = sphi 0, %s142
      %s157 = sphi 0, %s143
      %s161 = sphi 0, %s161
      %s163 = sphi 0, %s161
      %s164 = sphi 0, %s163
      %s178 = sphi 0, %s164
      %s184 = sphi 0, %s186
      %s187 = sphi 0, %s184
      %s188 = sphi 0, %s187
      %s204 = sphi 0, %s188
    $region4: #{transformer_forward.12} parent=1 // loop_header_branch
      %25 = sbr.rel (%p23) target = $region8
    $region5: #{transformer_forward.12} parent=1 // loop_body
      %s27 = ssub.s32 %s22, 1
      %s28 = ssub.s32 %s22, 2
      %s29 = sadd.s32 %s22, 1
      %s30 = ssub.s32 %s22, %s29
      %p31 = scmp.eq.s32.totalorder %s30, 0
      %s33 = sadd.s32 %s32, 1
      %s34 = scalar_select %p31, %s32, %s33
      %p37 = pneg %p31
      %p38 = scmp.eq.s32.totalorder %s22, 1
      %p39 = por %p37, %p38
      %p40 = scmp.ne.s32.totalorder %s32, %s35
      %p41 = scmp.eq.s32.totalorder %s22, 0
      %p42 = por %p40, %p41
      %p43 = scmp.ne.s32.totalorder %s32, %s35
      %p44 = scmp.eq.s32.totalorder %s27, 1
      %p45 = por %p43, %p44
      %p46 = scmp.ne.s32.totalorder %s35, %s36
      %p47 = scmp.eq.s32.totalorder %s27, 0
      %p48 = por %p46, %p47
      %p49 = scmp.ne.s32.totalorder %s35, %s36
      %p50 = scmp.eq.s32.totalorder %s28, 1
      %p51 = por %p49, %p50
      %p53 = scmp.ne.s32.totalorder %s36, %s52
      %p54 = scmp.eq.s32.totalorder %s28, 0
      %p55 = por %p53, %p54
      %s57 = sadd.s32 %s56, 1
      %p60 = scmp.eq.s32.totalorder %s22, 1
      %p61 = scmp.ne.s32.totalorder %s56, %s58
      %p62 = scmp.eq.s32.totalorder %s22, 0
      %p63 = por %p61, %p62
      %p64 = scmp.ne.s32.totalorder %s56, %s58
      %p65 = scmp.eq.s32.totalorder %s27, 1
      %p66 = por %p64, %p65
      %p67 = scmp.ne.s32.totalorder %s58, %s59
      %p68 = scmp.eq.s32.totalorder %s27, 0
      %p69 = por %p67, %p68
      %p70 = scmp.ne.s32.totalorder %s58, %s59
      %p71 = scmp.eq.s32.totalorder %s28, 1
      %p72 = por %p70, %p71
      %p74 = scmp.ne.s32.totalorder %s59, %s73
      %p75 = scmp.eq.s32.totalorder %s28, 0
      %p76 = por %p74, %p75
      %s78 = sadd.s32 %s77, 1
      %p81 = scmp.eq.s32.totalorder %s22, 1
      %p82 = scmp.ne.s32.totalorder %s77, %s79
      %p83 = scmp.eq.s32.totalorder %s22, 0
      %p84 = por %p82, %p83
      %p85 = scmp.ne.s32.totalorder %s77, %s79
      %p86 = scmp.eq.s32.totalorder %s27, 1
      %p87 = por %p85, %p86
      %p88 = scmp.ne.s32.totalorder %s79, %s80
      %p89 = scmp.eq.s32.totalorder %s27, 0
      %p90 = por %p88, %p89
      %p91 = scmp.ne.s32.totalorder %s79, %s80
      %p92 = scmp.eq.s32.totalorder %s28, 1
      %p93 = por %p91, %p92
      %p95 = scmp.ne.s32.totalorder %s80, %s94
      %p96 = scmp.eq.s32.totalorder %s28, 0
      %p97 = por %p95, %p96
      %s99 = sadd.s32 %s98, 1
      %p102 = scmp.eq.s32.totalorder %s22, 1
      %p103 = scmp.ne.s32.totalorder %s98, %s100
      %p104 = scmp.eq.s32.totalorder %s22, 0
      %p105 = por %p103, %p104
      %p106 = scmp.ne.s32.totalorder %s98, %s100
      %p107 = scmp.eq.s32.totalorder %s27, 1
      %p108 = por %p106, %p107
      %p109 = scmp.ne.s32.totalorder %s100, %s101
      %p110 = scmp.eq.s32.totalorder %s27, 0
      %p111 = por %p109, %p110
      %p112 = scmp.ne.s32.totalorder %s100, %s101
      %p113 = scmp.eq.s32.totalorder %s28, 1
      %p114 = por %p112, %p113
      %p116 = scmp.ne.s32.totalorder %s101, %s115
      %p117 = scmp.eq.s32.totalorder %s28, 0
      %p118 = por %p116, %p117
      %s120 = sadd.s32 %s119, 1
      %p123 = scmp.eq.s32.totalorder %s22, 1
      %p124 = scmp.ne.s32.totalorder %s119, %s121
      %p125 = scmp.eq.s32.totalorder %s22, 0
      %p126 = por %p124, %p125
      %p127 = scmp.ne.s32.totalorder %s119, %s121
      %p128 = scmp.eq.s32.totalorder %s27, 1
      %p129 = por %p127, %p128
      %p130 = scmp.ne.s32.totalorder %s121, %s122
      %p131 = scmp.eq.s32.totalorder %s27, 0
      %p132 = por %p130, %p131
      %p133 = scmp.ne.s32.totalorder %s121, %s122
      %p134 = scmp.eq.s32.totalorder %s28, 1
      %p135 = por %p133, %p134
      %p137 = scmp.ne.s32.totalorder %s122, %s136
      %p138 = scmp.eq.s32.totalorder %s28, 0
      %p139 = por %p137, %p138
      %s141 = sadd.s32 %s140, 1
      %p144 = scmp.eq.s32.totalorder %s22, 1
      %p145 = scmp.ne.s32.totalorder %s140, %s142
      %p146 = scmp.eq.s32.totalorder %s22, 0
      %p147 = por %p145, %p146
      %p148 = scmp.ne.s32.totalorder %s140, %s142
      %p149 = scmp.eq.s32.totalorder %s27, 1
      %p150 = por %p148, %p149
      %p151 = scmp.ne.s32.totalorder %s142, %s143
      %p152 = scmp.eq.s32.totalorder %s27, 0
      %p153 = por %p151, %p152
      %p154 = scmp.ne.s32.totalorder %s142, %s143
      %p155 = scmp.eq.s32.totalorder %s28, 1
      %p156 = por %p154, %p155
      %p158 = scmp.ne.s32.totalorder %s143, %s157
      %p159 = scmp.eq.s32.totalorder %s28, 0
      %p160 = por %p158, %p159
      %s162 = sadd.s32 %s161, 1
      %p165 = scmp.eq.s32.totalorder %s22, 1
      %p166 = scmp.ne.s32.totalorder %s161, %s163
      %p167 = scmp.eq.s32.totalorder %s22, 0
      %p168 = por %p166, %p167
      %p169 = scmp.ne.s32.totalorder %s161, %s163
      %p170 = scmp.eq.s32.totalorder %s27, 1
      %p171 = por %p169, %p170
      %p172 = scmp.ne.s32.totalorder %s163, %s164
      %p173 = scmp.eq.s32.totalorder %s27, 0
      %p174 = por %p172, %p173
      %p175 = scmp.ne.s32.totalorder %s163, %s164
      %p176 = scmp.eq.s32.totalorder %s28, 1
      %p177 = por %p175, %p176
      %p179 = scmp.ne.s32.totalorder %s164, %s178
      %p180 = scmp.eq.s32.totalorder %s28, 0
      %p181 = por %p179, %p180
      %s182 = ssub.s32 %s22, %s29
      %p183 = scmp.eq.s32.totalorder %s182, 0
      %s185 = sadd.s32 %s184, 1
      %s186 = scalar_select %p183, %s184, %s185
      %p189 = pneg %p183
      %p190 = scmp.eq.s32.totalorder %s22, 1
      %p191 = por %p189, %p190
      %p192 = scmp.ne.s32.totalorder %s184, %s187
      %p193 = scmp.eq.s32.totalorder %s22, 0
      %p194 = por %p192, %p193
      %p195 = scmp.ne.s32.totalorder %s184, %s187
      %p196 = scmp.eq.s32.totalorder %s27, 1
      %p197 = por %p195, %p196
      %p198 = scmp.ne.s32.totalorder %s187, %s188
      %p199 = scmp.eq.s32.totalorder %s27, 0
      %p200 = por %p198, %p199
      %p201 = scmp.ne.s32.totalorder %s187, %s188
      %p202 = scmp.eq.s32.totalorder %s28, 1
      %p203 = por %p201, %p202
      %p205 = scmp.ne.s32.totalorder %s188, %s204
      %p206 = scmp.eq.s32.totalorder %s28, 0
      %p207 = por %p205, %p206
      %p208 = scmp.le.s32.totalorder 1, %s22
      %p209 = scmp.lt.s32.totalorder %s22, 3
      %p210 = pnand %p208, %p209
      %p211 = pneg %p210
      // Predicated region
      $region9: #{transformer_forward.12} parent=5 // pred_check
        _
      $region10: #{transformer_forward.12} parent=5 // pred_check_branch
        %213 = sbr.rel (%p210) target = $region12
      $region11: #{transformer_forward.12} parent=5 // pred_region
        %s214 = ssub.s32 %s22, 1
        // Predicated region
        $region13: #{transformer_forward.12} parent=11 // pred_check
          %p215 = pneg %p69
        $region14: #{transformer_forward.12} parent=11 // pred_check_branch
          %217 = sbr.rel (%p215) target = $region16
        $region15: #{transformer_forward.12} parent=11 // pred_region
          %s219 = ssub.s32 2048, 2048
          %220 = vsyncadd [#allocation6], %s219
          %s221 = sshll.u32 [#allocation5], 4
          %s222 = int_to_ptr.vmem [resolvable:$true] %s221
          %227 = dma.hbm_to_vmem [thread:$0]  %s1, 2048, %s222, [#allocation6], 128, 128, 8
        $region16: #{transformer_forward.12} parent=11 // pred_fallthru
          _
        // Predicated region
        $region17: #{transformer_forward.12} parent=11 // pred_check
          %p228 = pneg %p90
        $region18: #{transformer_forward.12} parent=11 // pred_check_branch
          %230 = sbr.rel (%p228) target = $region20
        $region19: #{transformer_forward.12} parent=11 // pred_region
          %s232 = ssub.s32 32, 32
          %233 = vsyncadd [#allocation6], %s232
          %s235 = sshll.u32 [#allocation7], 4
          %s236 = int_to_ptr.vmem [resolvable:$true] %s235
          %238 = dma.hbm_to_vmem [thread:$0]  %s2, 32, %s236, [#allocation6]
        $region20: #{transformer_forward.12} parent=11 // pred_fallthru
          _
        // Predicated region
        $region21: #{transformer_forward.12} parent=11 // pred_check
          %p239 = pneg %p111
        $region22: #{transformer_forward.12} parent=11 // pred_check_branch
          %241 = sbr.rel (%p239) target = $region24
        $region23: #{transformer_forward.12} parent=11 // pred_region
          %s243 = ssub.s32 2048, 2048
          %244 = vsyncadd [#allocation9], %s243
          %s245 = sshll.u32 [#allocation8], 4
          %s246 = int_to_ptr.vmem [resolvable:$true] %s245
          %251 = dma.hbm_to_vmem [thread:$0]  %s3, 2048, %s246, [#allocation9], 64, 64, 4
        $region24: #{transformer_forward.12} parent=11 // pred_fallthru
          _
        // Predicated region
        $region25: #{transformer_forward.12} parent=11 // pred_check
          %p252 = pneg %p132
        $region26: #{transformer_forward.12} parent=11 // pred_check_branch
          %254 = sbr.rel (%p252) target = $region28
        $region27: #{transformer_forward.12} parent=11 // pred_region
          %s256 = ssub.s32 16, 16
          %257 = vsyncadd [#allocation9], %s256
          %s259 = sshll.u32 [#allocation10], 4
          %s260 = int_to_ptr.vmem [resolvable:$true] %s259
          %262 = dma.hbm_to_vmem [thread:$0]  %s4, 16, %s260, [#allocation9]
        $region28: #{transformer_forward.12} parent=11 // pred_fallthru
          _
        // Predicated region
        $region29: #{transformer_forward.12} parent=11 // pred_check
          %p263 = pneg %p153
        $region30: #{transformer_forward.12} parent=11 // pred_check_branch
          %265 = sbr.rel (%p263) target = $region32
        $region31: #{transformer_forward.12} parent=11 // pred_region
          %s267 = ssub.s32 16, 16
          %268 = vsyncadd [#allocation12], %s267
          %s270 = sshll.u32 [#allocation11], 4
          %s271 = int_to_ptr.vmem [resolvable:$true] %s270
          %273 = dma.hbm_to_vmem [thread:$0]  %s5, 16, %s271, [#allocation12]
        $region32: #{transformer_forward.12} parent=11 // pred_fallthru
          _
        // Predicated region
        $region33: #{transformer_forward.12} parent=11 // pred_check
          %p274 = pneg %p174
        $region34: #{transformer_forward.12} parent=11 // pred_check_branch
          %276 = sbr.rel (%p274) target = $region36
        $region35: #{transformer_forward.12} parent=11 // pred_region
          %s278 = ssub.s32 16, 16
          %279 = vsyncadd [#allocation12], %s278
          %s281 = sshll.u32 [#allocation13], 4
          %s282 = int_to_ptr.vmem [resolvable:$true] %s281
          %284 = dma.hbm_to_vmem [thread:$0]  %s6, 16, %s282, [#allocation12]
        $region36: #{transformer_forward.12} parent=11 // pred_fallthru
          _
      $region12: #{transformer_forward.12} parent=5 // pred_fallthru
        _
      %p285 = scmp.lt.s32.totalorder %s22, 2
      // Predicated region
      $region37: #{transformer_forward.12} parent=5 // pred_check
        %p286 = pneg %p285
      $region38: #{transformer_forward.12} parent=5 // pred_check_branch
        %288 = sbr.rel (%p286) target = $region40
      $region39: #{transformer_forward.12} parent=5 // pred_region
        // Predicated region
        $region41: #{transformer_forward.12} parent=39 // pred_check
          %p289 = pneg %p42
        $region42: #{transformer_forward.12} parent=39 // pred_check_branch
          %291 = sbr.rel (%p289) target = $region44
        $region43: #{transformer_forward.12} parent=39 // pred_region
          %s292 = sand.u32 %s32, 1
          %s293 = scalar_lea.sflag [#allocation3], %s292
          %s294 = sand.u32 %s32, 1
          %s295 = smul.addr %s294, 4
          %s296 = scalar_lea.vmem [#allocation2], %s295
          %s298 = ssub.s32 64, 64
          %299 = vsyncadd %s293, %s298
          %s300 = smul.addr %s22, 64
          %s301 = scalar_lea.hbm %s0, %s300
          %s303 = sshll.u32 %s296, 4
          %s304 = int_to_ptr.vmem [resolvable:$true] %s303
          %306 = dma.hbm_to_vmem [thread:$0]  %s301, 64, %s304, %s293
        $region44: #{transformer_forward.12} parent=39 // pred_fallthru
          _
      $region40: #{transformer_forward.12} parent=5 // pred_fallthru
        _
      %p307 = scmp.le.s32.totalorder 1, %s22
      %p308 = scmp.lt.s32.totalorder %s22, 3
      %p309 = pnand %p307, %p308
      %p310 = pneg %p309
      // Predicated region
      $region45: #{transformer_forward.12} parent=5 // pred_check
        _
      $region46: #{transformer_forward.12} parent=5 // pred_check_branch
        %312 = sbr.rel (%p309) target = $region48
      $region47: #{transformer_forward.12} parent=5 // pred_region
        %s313 = ssub.s32 %s22, 1
        %s314 = sand.u32 %s35, 1
        %s315 = scalar_lea.sflag [#allocation3], %s314
        %s316 = sand.u32 %s35, 1
        %s317 = smul.addr %s316, 4
        %s318 = scalar_lea.vmem [#allocation2], %s317
        // Predicated region
        $region49: #{transformer_forward.12} parent=47 // pred_check
          %p319 = pneg %p48
        $region50: #{transformer_forward.12} parent=47 // pred_check_branch
          %321 = sbr.rel (%p319) target = $region52
        $region51: #{transformer_forward.12} parent=47 // pred_region
          %322 = dma.done %s315, 64
        $region52: #{transformer_forward.12} parent=47 // pred_fallthru
          _
        // Predicated region
        $region53: #{transformer_forward.12} parent=47 // pred_check
          %p323 = pneg %p69
        $region54: #{transformer_forward.12} parent=47 // pred_check_branch
          %325 = sbr.rel (%p323) target = $region56
        $region55: #{transformer_forward.12} parent=47 // pred_region
          %326 = dma.done [#allocation6], 2048
        $region56: #{transformer_forward.12} parent=47 // pred_fallthru
          _
        // Predicated region
        $region57: #{transformer_forward.12} parent=47 // pred_check
          %p327 = pneg %p90
        $region58: #{transformer_forward.12} parent=47 // pred_check_branch
          %329 = sbr.rel (%p327) target = $region60
        $region59: #{transformer_forward.12} parent=47 // pred_region
          %330 = dma.done [#allocation6], 32
        $region60: #{transformer_forward.12} parent=47 // pred_fallthru
          _
        // Predicated region
        $region61: #{transformer_forward.12} parent=47 // pred_check
          %p331 = pneg %p111
        $region62: #{transformer_forward.12} parent=47 // pred_check_branch
          %333 = sbr.rel (%p331) target = $region64
        $region63: #{transformer_forward.12} parent=47 // pred_region
          %334 = dma.done [#allocation9], 2048
        $region64: #{transformer_forward.12} parent=47 // pred_fallthru
          _
        // Predicated region
        $region65: #{transformer_forward.12} parent=47 // pred_check
          %p335 = pneg %p132
        $region66: #{transformer_forward.12} parent=47 // pred_check_branch
          %337 = sbr.rel (%p335) target = $region68
        $region67: #{transformer_forward.12} parent=47 // pred_region
          %338 = dma.done [#allocation9], 16
        $region68: #{transformer_forward.12} parent=47 // pred_fallthru
          _
        // Predicated region
        $region69: #{transformer_forward.12} parent=47 // pred_check
          %p339 = pneg %p153
        $region70: #{transformer_forward.12} parent=47 // pred_check_branch
          %341 = sbr.rel (%p339) target = $region72
        $region71: #{transformer_forward.12} parent=47 // pred_region
          %342 = dma.done [#allocation12], 16
        $region72: #{transformer_forward.12} parent=47 // pred_fallthru
          _
        // Predicated region
        $region73: #{transformer_forward.12} parent=47 // pred_check
          %p343 = pneg %p174
        $region74: #{transformer_forward.12} parent=47 // pred_check_branch
          %345 = sbr.rel (%p343) target = $region76
        $region75: #{transformer_forward.12} parent=47 // pred_region
          %346 = dma.done [#allocation12], 16
        $region76: #{transformer_forward.12} parent=47 // pred_fallthru
          _
        %s347 = sand.u32 %s35, 1
        %s348 = scalar_lea.sflag [#allocation3], %s347
        %s349 = sand.u32 %s35, 1
        %s350 = smul.addr %s349, 4
        %s351 = scalar_lea.vmem [#allocation2], %s350
        %p352 = pneg %p48
        %p353 = pneg %p45
        %p354 = pneg %p69
        %p355 = pneg %p66
        %p356 = pneg %p90
        %p357 = pneg %p87
        %p358 = pneg %p111
        %p359 = pneg %p108
        %p360 = pneg %p132
        %p361 = pneg %p129
        %p362 = pneg %p153
        %p363 = pneg %p150
        %p364 = pneg %p174
        %p365 = pneg %p171
        %p366 = pneg %p200
        %p367 = pneg %p197
        %s368 = sand.u32 %s187, 1
        %s369 = scalar_lea.sflag [#allocation4], %s368
        %s370 = sand.u32 %s187, 1
        %s371 = smul.addr %s370, 4
        %s372 = scalar_lea.vmem [#allocation14], %s371
        %v374 = vld [vmem:[%s318] sm:$0xf]
        %v375 = vunpack.c.l.bf16 %v374
        %v376 = vld [vmem:[#allocation5] sm:$0xff]
        %v377 = vld [vmem:[#allocation5 + $0x8] sm:$0xff]
        %v378 = vld [vmem:[#allocation5 + $0x10] sm:$0xff]
        %v379 = vld [vmem:[#allocation5 + $0x18] sm:$0xff]
        %v380 = vld [vmem:[#allocation5 + $0x20] sm:$0xff]
        %v381 = vld [vmem:[#allocation5 + $0x28] sm:$0xff]
        %v382 = vld [vmem:[#allocation5 + $0x30] sm:$0xff]
        %v383 = vld [vmem:[#allocation5 + $0x38] sm:$0xff]
        %v384 = vld [vmem:[#allocation5 + $0x40] sm:$0xff]
        %v385 = vld [vmem:[#allocation5 + $0x48] sm:$0xff]
        %v386 = vld [vmem:[#allocation5 + $0x50] sm:$0xff]
        %v387 = vld [vmem:[#allocation5 + $0x58] sm:$0xff]
        %v388 = vld [vmem:[#allocation5 + $0x60] sm:$0xff]
        %v389 = vld [vmem:[#allocation5 + $0x68] sm:$0xff]
        %v390 = vld [vmem:[#allocation5 + $0x70] sm:$0xff]
        %v391 = vld [vmem:[#allocation5 + $0x78] sm:$0xff]
        %v392 = vld [vmem:[#allocation7] sm:$0x3]
        %v394 = vlaneseq
        %v395 = vshrl.u32 %v394, 7
        %v396 = vsub.s32 0, %v395
        %v397 = vrot.slane %v392, %v396
        %v398 = vlaneseq
        %v399 = vshrl.u32 %v398, 7
        %v400 = vsub.s32 1, %v399
        %v401 = vrot.slane %v392, %v400
        %v420 = vunpack.c.l.b16 %v376
        %v421 = vunpack.c.h.b16 %v376
        %v422 = vunpack.c.l.b16 %v377
        %v423 = vunpack.c.h.b16 %v377
        %v424 = vunpack.c.l.b16 %v378
        %v425 = vunpack.c.h.b16 %v378
        %v426 = vunpack.c.l.b16 %v379
        %v427 = vunpack.c.h.b16 %v379
        %v428 = vunpack.c.l.b16 %v380
        %v429 = vunpack.c.h.b16 %v380
        %v430 = vunpack.c.l.b16 %v381
        %v431 = vunpack.c.h.b16 %v381
        %v432 = vunpack.c.l.b16 %v382
        %v433 = vunpack.c.h.b16 %v382
        %v434 = vunpack.c.l.b16 %v383
        %v435 = vunpack.c.h.b16 %v383
        %v436 = vunpack.c.l.b16 %v384
        %v437 = vunpack.c.h.b16 %v384
        %v438 = vunpack.c.l.b16 %v385
        %v439 = vunpack.c.h.b16 %v385
        %v440 = vunpack.c.l.b16 %v386
        %v441 = vunpack.c.h.b16 %v386
        %v442 = vunpack.c.l.b16 %v387
        %v443 = vunpack.c.h.b16 %v387
        %v444 = vunpack.c.l.b16 %v388
        %v445 = vunpack.c.h.b16 %v388
        %v446 = vunpack.c.l.b16 %v389
        %v447 = vunpack.c.h.b16 %v389
        %v448 = vunpack.c.l.b16 %v390
        %v449 = vunpack.c.h.b16 %v390
        %v450 = vunpack.c.l.b16 %v391
        %v451 = vunpack.c.h.b16 %v391
        %v452 = vpack.c.b16 %v422, %v420
        %v453 = vpack.c.b16 %v423, %v421
        %v454 = vpack.c.b16 %v426, %v424
        %v455 = vpack.c.b16 %v427, %v425
        %v456 = vpack.c.b16 %v430, %v428
        %v457 = vpack.c.b16 %v431, %v429
        %v458 = vpack.c.b16 %v434, %v432
        %v459 = vpack.c.b16 %v435, %v433
        %v460 = vpack.c.b16 %v438, %v436
        %v461 = vpack.c.b16 %v439, %v437
        %v462 = vpack.c.b16 %v442, %v440
        %v463 = vpack.c.b16 %v443, %v441
        %v464 = vpack.c.b16 %v446, %v444
        %v465 = vpack.c.b16 %v447, %v445
        %v466 = vpack.c.b16 %v450, %v448
        %v467 = vpack.c.b16 %v451, %v449
        %484 = vmatprep.subr.bf16.mxu0 %v453
        %485 = vmatpush1.bf16.msra.mxu0 %v452
        %486 = vmatprep.subr.bf16.mxu0 %v455
        %487 = vmatpush1.bf16.msra.mxu0 %v454
        %488 = vmatprep.subr.bf16.mxu0 %v457
        %489 = vmatpush1.bf16.msra.mxu0 %v456
        %490 = vmatprep.subr.bf16.mxu0 %v459
        %491 = vmatpush1.bf16.msra.mxu0 %v458
        %492 = vmatprep.subr.bf16.mxu0 %v461
        %493 = vmatpush1.bf16.msra.mxu0 %v460
        %494 = vmatprep.subr.bf16.mxu0 %v463
        %495 = vmatpush1.bf16.msra.mxu0 %v462
        %496 = vmatprep.subr.bf16.mxu0 %v465
        %497 = vmatpush1.bf16.msra.mxu0 %v464
        %498 = vmatprep.subr.bf16.mxu0 %v467
        %499 = vmatpush1.bf16.msra.mxu0 %v466
        %500 = vmatprep.subr.bf16.mxu0 0
        %501 = vmatpush1.bf16.msra.mxu0 0
        %502 = vmatprep.subr.bf16.mxu0 0
        %503 = vmatpush1.bf16.msra.mxu0 0
        %504 = vmatprep.subr.bf16.mxu0 0
        %505 = vmatpush1.bf16.msra.mxu0 0
        %506 = vmatprep.subr.bf16.mxu0 0
        %507 = vmatpush1.bf16.msra.mxu0 0
        %508 = vmatprep.subr.bf16.mxu0 0
        %509 = vmatpush1.bf16.msra.mxu0 0
        %510 = vmatprep.subr.bf16.mxu0 0
        %511 = vmatpush1.bf16.msra.mxu0 0
        %512 = vmatprep.subr.bf16.mxu0 0
        %513 = vmatpush1.bf16.msra.mxu0 0
        %514 = vmatprep.subr.bf16.mxu0 0
        %515 = vmatpush1.bf16.msra.mxu0 0
        %516 = vmatprep.mubr.bf16.mxu0 0
        %517 = vmatmul.mubr.bf16.gmra.mrb[0].mxu0 %v374
        %v518 = vpop.f32.mrb[0].mxu0
        %v519 = vadd.f32 %v397, %v518
        %v520 = vpop.f32.mrb[0].mxu0
        %v521 = vadd.f32 %v401, %v520
        %v522 = vpop.f32.mrb[0].mxu0
        %v523 = vpop.f32.mrb[0].mxu0
        %524 = vdwg.mxu0
        %v525 = vmax.f32 %v519, 0.0
        %v526 = vmax.f32 %v521, 0.0
        %v527 = vpack.c.bf16 %v525, %v525
        %v528 = vpack.c.bf16 %v526, %v526
        %v529 = vld [vmem:[#allocation8] sm:$0xf]
        %v530 = vld [vmem:[#allocation8 + $0x4] sm:$0xf]
        %v531 = vld [vmem:[#allocation8 + $0x8] sm:$0xf]
        %v532 = vld [vmem:[#allocation8 + $0xc] sm:$0xf]
        %v533 = vld [vmem:[#allocation8 + $0x10] sm:$0xf]
        %v534 = vld [vmem:[#allocation8 + $0x14] sm:$0xf]
        %v535 = vld [vmem:[#allocation8 + $0x18] sm:$0xf]
        %v536 = vld [vmem:[#allocation8 + $0x1c] sm:$0xf]
        %v537 = vld [vmem:[#allocation8 + $0x20] sm:$0xf]
        %v538 = vld [vmem:[#allocation8 + $0x24] sm:$0xf]
        %v539 = vld [vmem:[#allocation8 + $0x28] sm:$0xf]
        %v540 = vld [vmem:[#allocation8 + $0x2c] sm:$0xf]
        %v541 = vld [vmem:[#allocation8 + $0x30] sm:$0xf]
        %v542 = vld [vmem:[#allocation8 + $0x34] sm:$0xf]
        %v543 = vld [vmem:[#allocation8 + $0x38] sm:$0xf]
        %v544 = vld [vmem:[#allocation8 + $0x3c] sm:$0xf]
        %v545 = vld [vmem:[#allocation8 + $0x40] sm:$0xf]
        %v546 = vld [vmem:[#allocation8 + $0x44] sm:$0xf]
        %v547 = vld [vmem:[#allocation8 + $0x48] sm:$0xf]
        %v548 = vld [vmem:[#allocation8 + $0x4c] sm:$0xf]
        %v549 = vld [vmem:[#allocation8 + $0x50] sm:$0xf]
        %v550 = vld [vmem:[#allocation8 + $0x54] sm:$0xf]
        %v551 = vld [vmem:[#allocation8 + $0x58] sm:$0xf]
        %v552 = vld [vmem:[#allocation8 + $0x5c] sm:$0xf]
        %v553 = vld [vmem:[#allocation8 + $0x60] sm:$0xf]
        %v554 = vld [vmem:[#allocation8 + $0x64] sm:$0xf]
        %v555 = vld [vmem:[#allocation8 + $0x68] sm:$0xf]
        %v556 = vld [vmem:[#allocation8 + $0x6c] sm:$0xf]
        %v557 = vld [vmem:[#allocation8 + $0x70] sm:$0xf]
        %v558 = vld [vmem:[#allocation8 + $0x74] sm:$0xf]
        %v559 = vld [vmem:[#allocation8 + $0x78] sm:$0xf]
        %v560 = vld [vmem:[#allocation8 + $0x7c] sm:$0xf]
        %v593 = vunpack.c.l.b16 %v529
        %v594 = vunpack.c.l.b16 %v530
        %v595 = vunpack.c.l.b16 %v531
        %v596 = vunpack.c.l.b16 %v532
        %v597 = vunpack.c.l.b16 %v533
        %v598 = vunpack.c.l.b16 %v534
        %v599 = vunpack.c.l.b16 %v535
        %v600 = vunpack.c.l.b16 %v536
        %v601 = vunpack.c.l.b16 %v537
        %v602 = vunpack.c.l.b16 %v538
        %v603 = vunpack.c.l.b16 %v539
        %v604 = vunpack.c.l.b16 %v540
        %v605 = vunpack.c.l.b16 %v541
        %v606 = vunpack.c.l.b16 %v542
        %v607 = vunpack.c.l.b16 %v543
        %v608 = vunpack.c.l.b16 %v544
        %v609 = vunpack.c.l.b16 %v545
        %v610 = vunpack.c.l.b16 %v546
        %v611 = vunpack.c.l.b16 %v547
        %v612 = vunpack.c.l.b16 %v548
        %v613 = vunpack.c.l.b16 %v549
        %v614 = vunpack.c.l.b16 %v550
        %v615 = vunpack.c.l.b16 %v551
        %v616 = vunpack.c.l.b16 %v552
        %v617 = vunpack.c.l.b16 %v553
        %v618 = vunpack.c.l.b16 %v554
        %v619 = vunpack.c.l.b16 %v555
        %v620 = vunpack.c.l.b16 %v556
        %v621 = vunpack.c.l.b16 %v557
        %v622 = vunpack.c.l.b16 %v558
        %v623 = vunpack.c.l.b16 %v559
        %v624 = vunpack.c.l.b16 %v560
        %v625 = vpack.c.b16 %v594, %v593
        %v626 = vpack.c.b16 %v596, %v595
        %v627 = vpack.c.b16 %v598, %v597
        %v628 = vpack.c.b16 %v600, %v599
        %v629 = vpack.c.b16 %v602, %v601
        %v630 = vpack.c.b16 %v604, %v603
        %v631 = vpack.c.b16 %v606, %v605
        %v632 = vpack.c.b16 %v608, %v607
        %v633 = vpack.c.b16 %v610, %v609
        %v634 = vpack.c.b16 %v612, %v611
        %v635 = vpack.c.b16 %v614, %v613
        %v636 = vpack.c.b16 %v616, %v615
        %v637 = vpack.c.b16 %v618, %v617
        %v638 = vpack.c.b16 %v620, %v619
        %v639 = vpack.c.b16 %v622, %v621
        %v640 = vpack.c.b16 %v624, %v623
        %657 = vmatprep.subr.bf16.mxu0 0
        %658 = vmatpush1.bf16.msra.mxu0 %v625
        %659 = vmatprep.subr.bf16.mxu0 0
        %660 = vmatpush1.bf16.msra.mxu0 %v626
        %661 = vmatprep.subr.bf16.mxu0 0
        %662 = vmatpush1.bf16.msra.mxu0 %v627
        %663 = vmatprep.subr.bf16.mxu0 0
        %664 = vmatpush1.bf16.msra.mxu0 %v628
        %665 = vmatprep.subr.bf16.mxu0 0
        %666 = vmatpush1.bf16.msra.mxu0 %v629
        %667 = vmatprep.subr.bf16.mxu0 0
        %668 = vmatpush1.bf16.msra.mxu0 %v630
        %669 = vmatprep.subr.bf16.mxu0 0
        %670 = vmatpush1.bf16.msra.mxu0 %v631
        %671 = vmatprep.subr.bf16.mxu0 0
        %672 = vmatpush1.bf16.msra.mxu0 %v632
        %673 = vmatprep.subr.bf16.mxu0 0
        %674 = vmatpush1.bf16.msra.mxu0 %v633
        %675 = vmatprep.subr.bf16.mxu0 0
        %676 = vmatpush1.bf16.msra.mxu0 %v634
        %677 = vmatprep.subr.bf16.mxu0 0
        %678 = vmatpush1.bf16.msra.mxu0 %v635
        %679 = vmatprep.subr.bf16.mxu0 0
        %680 = vmatpush1.bf16.msra.mxu0 %v636
        %681 = vmatprep.subr.bf16.mxu0 0
        %682 = vmatpush1.bf16.msra.mxu0 %v637
        %683 = vmatprep.subr.bf16.mxu0 0
        %684 = vmatpush1.bf16.msra.mxu0 %v638
        %685 = vmatprep.subr.bf16.mxu0 0
        %686 = vmatpush1.bf16.msra.mxu0 %v639
        %687 = vmatprep.subr.bf16.mxu0 0
        %688 = vmatpush1.bf16.msra.mxu0 %v640
        %689 = vmatprep.mubr.bf16.mxu0 %v528
        %690 = vmatmul.mubr.bf16.gmra.mrb[0].mxu0 %v527
        %v691 = vpop.f32.mrb[0].mxu0
        %v692 = vadd.f32 0.0, %v691
        %v693 = vpop.f32.mrb[0].mxu0
        %v694 = vpop.f32.mrb[0].mxu0
        %v695 = vpop.f32.mrb[0].mxu0
        %696 = vdwg.mxu0
        %v697 = vadd.f32 %v375, %v692
        %v698 = vld [vmem:[#allocation10] sm:$0x1]
        %v700 = vlaneseq
        %v701 = vshrl.u32 %v700, 7
        %v702 = vsub.s32 0, %v701
        %v703 = vrot.slane %v698, %v702
        %v705 = vadd.f32 %v697, %v703
        %v706 = vld [vmem:[#allocation11] sm:$0x1]
        %v707 = vld [vmem:[#allocation13] sm:$0x1]
        %708 = vadd.xlane.f32.xlu0 %v705
        %v709 = vpop.xlane.xlu0 %708
        %v710 = vrcp.pop 128.0
        %v711 = vmul.f32 %v709, %v710
        %v712 = vsub.f32 %v705, %v711
        %v713 = vmul.f32 %v712, %v712
        %714 = vadd.xlane.f32.xlu0 %v713
        %v715 = vpop.xlane.xlu0 %714
        %v716 = vmul.f32 %v715, %v710
        %v717 = vadd.f32 %v716, 1e-05
        %v718 = vrsqrt.pop %v717
        %v719 = vmul.f32 %v712, %v718
        %v721 = vlaneseq
        %v722 = vshrl.u32 %v721, 7
        %v723 = vsub.s32 0, %v722
        %v724 = vrot.slane %v706, %v723
        %v726 = vmul.f32 %v719, %v724
        %v728 = vlaneseq
        %v729 = vshrl.u32 %v728, 7
        %v730 = vsub.s32 0, %v729
        %v731 = vrot.slane %v707, %v730
        %v733 = vadd.f32 %v726, %v731
        %v734 = vpack.c.bf16 %v733, %v733
        %735 = vst [vmem:[%s372] sm:$0xf] %v734
        %s736 = sand.u32 %s187, 1
        %s737 = scalar_lea.sflag [#allocation4], %s736
        %s738 = sand.u32 %s187, 1
        %s739 = smul.addr %s738, 4
        %s740 = scalar_lea.vmem [#allocation14], %s739
        // Predicated region
        $region77: #{transformer_forward.12} parent=47 // pred_check
          %p741 = pneg %p197
        $region78: #{transformer_forward.12} parent=47 // pred_check_branch
          %743 = sbr.rel (%p741) target = $region80
        $region79: #{transformer_forward.12} parent=47 // pred_region
          %s745 = ssub.s32 64, 64
          %746 = vsyncadd %s737, %s745
          %s747 = smul.addr %s27, 64
          %s748 = scalar_lea.hbm %s7, %s747
          %s750 = sshll.u32 %s740, 4
          %s751 = int_to_ptr.vmem [resolvable:$true] %s750
          %753 = dma.vmem_to_hbm [thread:$0]  %s751, 64, %s748, %s737
        $region80: #{transformer_forward.12} parent=47 // pred_fallthru
          _
      $region48: #{transformer_forward.12} parent=5 // pred_fallthru
        _
      %p754 = scmp.le.s32.totalorder 2, %s22
      // Predicated region
      $region81: #{transformer_forward.12} parent=5 // pred_check
        %p755 = pneg %p754
      $region82: #{transformer_forward.12} parent=5 // pred_check_branch
        %757 = sbr.rel (%p755) target = $region84
      $region83: #{transformer_forward.12} parent=5 // pred_region
        %s758 = ssub.s32 %s22, 2
        // Predicated region
        $region85: #{transformer_forward.12} parent=83 // pred_check
          %p759 = pneg %p203
        $region86: #{transformer_forward.12} parent=83 // pred_check_branch
          %761 = sbr.rel (%p759) target = $region88
        $region87: #{transformer_forward.12} parent=83 // pred_region
          %s762 = sand.u32 %s188, 1
          %s763 = scalar_lea.sflag [#allocation4], %s762
          %s764 = sand.u32 %s188, 1
          %s765 = smul.addr %s764, 4
          %s766 = scalar_lea.vmem [#allocation14], %s765
          %767 = dma.done %s763, 64
        $region88: #{transformer_forward.12} parent=83 // pred_fallthru
          _
      $region84: #{transformer_forward.12} parent=5 // pred_fallthru
        _
    $region6: #{transformer_forward.12} parent=1 // loop_footer
      %s26 = sadd.s32 1, %s22
    $region7: #{transformer_forward.12} parent=1 // loop_footer_branch
      %21 = sbr.rel target = $region3
    $region8: #{transformer_forward.12} parent=1 // loop_exit
      _
    %768 = vsyncpa [#allocation3], 1
    %s769 = scalar_lea.sflag [#allocation3], 1
    %770 = vsyncpa %s769, 1
    %771 = vsyncpa [#allocation6], 1
    %772 = vsyncpa [#allocation9], 1
    %773 = vsyncpa [#allocation12], 1
    %774 = vsyncpa [#allocation4], 1
    %s775 = scalar_lea.sflag [#allocation4], 1
    %776 = vsyncpa %s775, 1

// kernel: transformer_forward.15
$region0: #{transformer_forward.15}
  #allocation0 [shape = 'u32[]', space=smem, size = 0x4, offset = 0x4, fixed_abs, tag = 'smem constant byte address 0x4 - core index']
  #allocation1 [shape = 'u32[144,128]{1,0:T(1,128)}', space=vmem, size = 0x12000, scoped, tag = 'internal scratch']
  %s0 = inlined_call_operand.hbm [shape: bf16[2,8,128], index: 0, kind: input, shape index: {}, may-alias: {0,1}]
  %s1 = inlined_call_operand.hbm [shape: bf16[2,8,128], index: 1, kind: input, shape index: {}, may-alias: {0,1}]
  %s2 = inlined_call_operand.hbm [shape: f32[2,1,8], index: 2, kind: input, shape index: {}]
  %s3 = inlined_call_operand.hbm [shape: bf16[128,384], index: 3, kind: input, shape index: {}]
  %s4 = inlined_call_operand.hbm [shape: f32[1,384], index: 4, kind: input, shape index: {}]
  %s5 = inlined_call_operand.hbm [shape: bf16[128,128], index: 5, kind: input, shape index: {}]
  %s6 = inlined_call_operand.hbm [shape: f32[1,128], index: 6, kind: input, shape index: {}]
  %s7 = inlined_call_operand.hbm [shape: f32[1,128], index: 7, kind: input, shape index: {}]
  %s8 = inlined_call_operand.hbm [shape: f32[1,128], index: 8, kind: input, shape index: {}]
  %s9 = inlined_call_operand.hbm [shape: bf16[2,8,128], index: 9, kind: output, shape index: {}]
  %s10 = sld [smem:[#allocation0]]
  $region105: #{transformer_forward.15} parent=0
    _
  %s12 = ssub.s32 1, %s10
  %s13 = scalar_select 0, %s12, %s10
  $region1: #{transformer_forward.15} parent=0
    #allocation2 [shape = 'u8[4096]{0}', space=vmem, size = 0x1000, scoped, tag = 'input window, operand 0']
    #allocation3 [shape = 's32[2]{0}', space=sflag, size = 0x8, scoped, tag = 'scoped memory for transformer_forward.15']
    #allocation4 [shape = 's32[2]{0}', space=sflag, size = 0x8, scoped, tag = 'scoped memory for transformer_forward.15']
    #allocation5 [shape = 'u8[4096]{0}', space=vmem, size = 0x1000, scoped, tag = 'input window, operand 1']
    #allocation6 [shape = 's32[2]{0}', space=sflag, size = 0x8, scoped, tag = 'scoped memory for transformer_forward.15']
    #allocation7 [shape = 'u8[1024]{0}', space=vmem, size = 0x400, scoped, tag = 'input window, operand 2']
    #allocation8 [shape = 'u8[98304]{0}', space=vmem, size = 0x18000, scoped, tag = 'input window, operand 3, single buffered']
    #allocation9 [shape = 's32[1]{0}', space=sflag, size = 0x4, scoped, tag = 'scoped memory for transformer_forward.15']
    #allocation10 [shape = 'u8[1536]{0}', space=vmem, size = 0x800, scoped, tag = 'input window, operand 4, single buffered']
    #allocation11 [shape = 'u8[32768]{0}', space=vmem, size = 0x8000, scoped, tag = 'input window, operand 5, single buffered']
    #allocation12 [shape = 's32[1]{0}', space=sflag, size = 0x4, scoped, tag = 'scoped memory for transformer_forward.15']
    #allocation13 [shape = 'u8[512]{0}', space=vmem, size = 0x400, scoped, tag = 'input window, operand 6, single buffered']
    #allocation14 [shape = 'u8[512]{0}', space=vmem, size = 0x400, scoped, tag = 'input window, operand 7, single buffered']
    #allocation15 [shape = 's32[1]{0}', space=sflag, size = 0x4, scoped, tag = 'scoped memory for transformer_forward.15']
    #allocation16 [shape = 'u8[512]{0}', space=vmem, size = 0x400, scoped, tag = 'input window, operand 8, single buffered']
    #allocation17 [shape = 'u8[4096]{0}', space=vmem, size = 0x1000, scoped, tag = 'output window, operand 0']
    %14 = vsyncpa [#allocation3], 0
    %s15 = scalar_lea.sflag [#allocation3], 1
    %16 = vsyncpa %s15, 0
    %17 = vsyncpa [#allocation6], 0
    %s18 = scalar_lea.sflag [#allocation6], 1
    %19 = vsyncpa %s18, 0
    %20 = vsyncpa [#allocation9], 0
    %21 = vsyncpa [#allocation12], 0
    %22 = vsyncpa [#allocation15], 0
    %23 = vsyncpa [#allocation4], 0
    %s24 = scalar_lea.sflag [#allocation4], 1
    %25 = vsyncpa %s24, 0
    loop: start=0, step=1, limit=4
    $region2: #{transformer_forward.15} parent=1 // loop_pre_header
      _
    $region3: #{transformer_forward.15} parent=1 // loop_header
      %s27 = sphi 0, %s31
      %p28 = scmp.ge.s32.totalorder %s27, 4
      %s37 = sphi 0, %s39
      %s40 = sphi 0, %s37
      %s41 = sphi 0, %s40
      %s57 = sphi 0, %s41
      %s63 = sphi 0, %s65
      %s66 = sphi 0, %s63
      %s67 = sphi 0, %s66
      %s83 = sphi 0, %s67
      %s89 = sphi 0, %s91
      %s92 = sphi 0, %s89
      %s93 = sphi 0, %s92
      %s109 = sphi 0, %s93
      %s113 = sphi 0, %s113
      %s115 = sphi 0, %s113
      %s116 = sphi 0, %s115
      %s130 = sphi 0, %s116
      %s134 = sphi 0, %s134
      %s136 = sphi 0, %s134
      %s137 = sphi 0, %s136
      %s151 = sphi 0, %s137
      %s155 = sphi 0, %s155
      %s157 = sphi 0, %s155
      %s158 = sphi 0, %s157
      %s172 = sphi 0, %s158
      %s176 = sphi 0, %s176
      %s178 = sphi 0, %s176
      %s179 = sphi 0, %s178
      %s193 = sphi 0, %s179
      %s197 = sphi 0, %s197
      %s199 = sphi 0, %s197
      %s200 = sphi 0, %s199
      %s214 = sphi 0, %s200
      %s218 = sphi 0, %s218
      %s220 = sphi 0, %s218
      %s221 = sphi 0, %s220
      %s235 = sphi 0, %s221
      %s241 = sphi 0, %s243
      %s244 = sphi 0, %s241
      %s245 = sphi 0, %s244
      %s261 = sphi 0, %s245
    $region4: #{transformer_forward.15} parent=1 // loop_header_branch
      %30 = sbr.rel (%p28) target = $region8
    $region5: #{transformer_forward.15} parent=1 // loop_body
      %s32 = ssub.s32 %s27, 1
      %s33 = ssub.s32 %s27, 2
      %s34 = sadd.s32 %s27, 1
      %s35 = ssub.s32 %s27, %s34
      %p36 = scmp.eq.s32.totalorder %s35, 0
      %s38 = sadd.s32 %s37, 1
      %s39 = scalar_select %p36, %s37, %s38
      %p42 = pneg %p36
      %p43 = scmp.eq.s32.totalorder %s27, 1
      %p44 = por %p42, %p43
      %p45 = scmp.ne.s32.totalorder %s37, %s40
      %p46 = scmp.eq.s32.totalorder %s27, 0
      %p47 = por %p45, %p46
      %p48 = scmp.ne.s32.totalorder %s37, %s40
      %p49 = scmp.eq.s32.totalorder %s32, 1
      %p50 = por %p48, %p49
      %p51 = scmp.ne.s32.totalorder %s40, %s41
      %p52 = scmp.eq.s32.totalorder %s32, 0
      %p53 = por %p51, %p52
      %p54 = scmp.ne.s32.totalorder %s40, %s41
      %p55 = scmp.eq.s32.totalorder %s33, 1
      %p56 = por %p54, %p55
      %p58 = scmp.ne.s32.totalorder %s41, %s57
      %p59 = scmp.eq.s32.totalorder %s33, 0
      %p60 = por %p58, %p59
      %s61 = ssub.s32 %s27, %s34
      %p62 = scmp.eq.s32.totalorder %s61, 0
      %s64 = sadd.s32 %s63, 1
      %s65 = scalar_select %p62, %s63, %s64
      %p68 = pneg %p62
      %p69 = scmp.eq.s32.totalorder %s27, 1
      %p70 = por %p68, %p69
      %p71 = scmp.ne.s32.totalorder %s63, %s66
      %p72 = scmp.eq.s32.totalorder %s27, 0
      %p73 = por %p71, %p72
      %p74 = scmp.ne.s32.totalorder %s63, %s66
      %p75 = scmp.eq.s32.totalorder %s32, 1
      %p76 = por %p74, %p75
      %p77 = scmp.ne.s32.totalorder %s66, %s67
      %p78 = scmp.eq.s32.totalorder %s32, 0
      %p79 = por %p77, %p78
      %p80 = scmp.ne.s32.totalorder %s66, %s67
      %p81 = scmp.eq.s32.totalorder %s33, 1
      %p82 = por %p80, %p81
      %p84 = scmp.ne.s32.totalorder %s67, %s83
      %p85 = scmp.eq.s32.totalorder %s33, 0
      %p86 = por %p84, %p85
      %s87 = ssub.s32 %s27, %s34
      %p88 = scmp.eq.s32.totalorder %s87, 0
      %s90 = sadd.s32 %s89, 1
      %s91 = scalar_select %p88, %s89, %s90
      %p94 = pneg %p88
      %p95 = scmp.eq.s32.totalorder %s27, 1
      %p96 = por %p94, %p95
      %p97 = scmp.ne.s32.totalorder %s89, %s92
      %p98 = scmp.eq.s32.totalorder %s27, 0
      %p99 = por %p97, %p98
      %p100 = scmp.ne.s32.totalorder %s89, %s92
      %p101 = scmp.eq.s32.totalorder %s32, 1
      %p102 = por %p100, %p101
      %p103 = scmp.ne.s32.totalorder %s92, %s93
      %p104 = scmp.eq.s32.totalorder %s32, 0
      %p105 = por %p103, %p104
      %p106 = scmp.ne.s32.totalorder %s92, %s93
      %p107 = scmp.eq.s32.totalorder %s33, 1
      %p108 = por %p106, %p107
      %p110 = scmp.ne.s32.totalorder %s93, %s109
      %p111 = scmp.eq.s32.totalorder %s33, 0
      %p112 = por %p110, %p111
      %s114 = sadd.s32 %s113, 1
      %p117 = scmp.eq.s32.totalorder %s27, 1
      %p118 = scmp.ne.s32.totalorder %s113, %s115
      %p119 = scmp.eq.s32.totalorder %s27, 0
      %p120 = por %p118, %p119
      %p121 = scmp.ne.s32.totalorder %s113, %s115
      %p122 = scmp.eq.s32.totalorder %s32, 1
      %p123 = por %p121, %p122
      %p124 = scmp.ne.s32.totalorder %s115, %s116
      %p125 = scmp.eq.s32.totalorder %s32, 0
      %p126 = por %p124, %p125
      %p127 = scmp.ne.s32.totalorder %s115, %s116
      %p128 = scmp.eq.s32.totalorder %s33, 1
      %p129 = por %p127, %p128
      %p131 = scmp.ne.s32.totalorder %s116, %s130
      %p132 = scmp.eq.s32.totalorder %s33, 0
      %p133 = por %p131, %p132
      %s135 = sadd.s32 %s134, 1
      %p138 = scmp.eq.s32.totalorder %s27, 1
      %p139 = scmp.ne.s32.totalorder %s134, %s136
      %p140 = scmp.eq.s32.totalorder %s27, 0
      %p141 = por %p139, %p140
      %p142 = scmp.ne.s32.totalorder %s134, %s136
      %p143 = scmp.eq.s32.totalorder %s32, 1
      %p144 = por %p142, %p143
      %p145 = scmp.ne.s32.totalorder %s136, %s137
      %p146 = scmp.eq.s32.totalorder %s32, 0
      %p147 = por %p145, %p146
      %p148 = scmp.ne.s32.totalorder %s136, %s137
      %p149 = scmp.eq.s32.totalorder %s33, 1
      %p150 = por %p148, %p149
      %p152 = scmp.ne.s32.totalorder %s137, %s151
      %p153 = scmp.eq.s32.totalorder %s33, 0
      %p154 = por %p152, %p153
      %s156 = sadd.s32 %s155, 1
      %p159 = scmp.eq.s32.totalorder %s27, 1
      %p160 = scmp.ne.s32.totalorder %s155, %s157
      %p161 = scmp.eq.s32.totalorder %s27, 0
      %p162 = por %p160, %p161
      %p163 = scmp.ne.s32.totalorder %s155, %s157
      %p164 = scmp.eq.s32.totalorder %s32, 1
      %p165 = por %p163, %p164
      %p166 = scmp.ne.s32.totalorder %s157, %s158
      %p167 = scmp.eq.s32.totalorder %s32, 0
      %p168 = por %p166, %p167
      %p169 = scmp.ne.s32.totalorder %s157, %s158
      %p170 = scmp.eq.s32.totalorder %s33, 1
      %p171 = por %p169, %p170
      %p173 = scmp.ne.s32.totalorder %s158, %s172
      %p174 = scmp.eq.s32.totalorder %s33, 0
      %p175 = por %p173, %p174
      %s177 = sadd.s32 %s176, 1
      %p180 = scmp.eq.s32.totalorder %s27, 1
      %p181 = scmp.ne.s32.totalorder %s176, %s178
      %p182 = scmp.eq.s32.totalorder %s27, 0
      %p183 = por %p181, %p182
      %p184 = scmp.ne.s32.totalorder %s176, %s178
      %p185 = scmp.eq.s32.totalorder %s32, 1
      %p186 = por %p184, %p185
      %p187 = scmp.ne.s32.totalorder %s178, %s179
      %p188 = scmp.eq.s32.totalorder %s32, 0
      %p189 = por %p187, %p188
      %p190 = scmp.ne.s32.totalorder %s178, %s179
      %p191 = scmp.eq.s32.totalorder %s33, 1
      %p192 = por %p190, %p191
      %p194 = scmp.ne.s32.totalorder %s179, %s193
      %p195 = scmp.eq.s32.totalorder %s33, 0
      %p196 = por %p194, %p195
      %s198 = sadd.s32 %s197, 1
      %p201 = scmp.eq.s32.totalorder %s27, 1
      %p202 = scmp.ne.s32.totalorder %s197, %s199
      %p203 = scmp.eq.s32.totalorder %s27, 0
      %p204 = por %p202, %p203
      %p205 = scmp.ne.s32.totalorder %s197, %s199
      %p206 = scmp.eq.s32.totalorder %s32, 1
      %p207 = por %p205, %p206
      %p208 = scmp.ne.s32.totalorder %s199, %s200
      %p209 = scmp.eq.s32.totalorder %s32, 0
      %p210 = por %p208, %p209
      %p211 = scmp.ne.s32.totalorder %s199, %s200
      %p212 = scmp.eq.s32.totalorder %s33, 1
      %p213 = por %p211, %p212
      %p215 = scmp.ne.s32.totalorder %s200, %s214
      %p216 = scmp.eq.s32.totalorder %s33, 0
      %p217 = por %p215, %p216
      %s219 = sadd.s32 %s218, 1
      %p222 = scmp.eq.s32.totalorder %s27, 1
      %p223 = scmp.ne.s32.totalorder %s218, %s220
      %p224 = scmp.eq.s32.totalorder %s27, 0
      %p225 = por %p223, %p224
      %p226 = scmp.ne.s32.totalorder %s218, %s220
      %p227 = scmp.eq.s32.totalorder %s32, 1
      %p228 = por %p226, %p227
      %p229 = scmp.ne.s32.totalorder %s220, %s221
      %p230 = scmp.eq.s32.totalorder %s32, 0
      %p231 = por %p229, %p230
      %p232 = scmp.ne.s32.totalorder %s220, %s221
      %p233 = scmp.eq.s32.totalorder %s33, 1
      %p234 = por %p232, %p233
      %p236 = scmp.ne.s32.totalorder %s221, %s235
      %p237 = scmp.eq.s32.totalorder %s33, 0
      %p238 = por %p236, %p237
      %s239 = ssub.s32 %s27, %s34
      %p240 = scmp.eq.s32.totalorder %s239, 0
      %s242 = sadd.s32 %s241, 1
      %s243 = scalar_select %p240, %s241, %s242
      %p246 = pneg %p240
      %p247 = scmp.eq.s32.totalorder %s27, 1
      %p248 = por %p246, %p247
      %p249 = scmp.ne.s32.totalorder %s241, %s244
      %p250 = scmp.eq.s32.totalorder %s27, 0
      %p251 = por %p249, %p250
      %p252 = scmp.ne.s32.totalorder %s241, %s244
      %p253 = scmp.eq.s32.totalorder %s32, 1
      %p254 = por %p252, %p253
      %p255 = scmp.ne.s32.totalorder %s244, %s245
      %p256 = scmp.eq.s32.totalorder %s32, 0
      %p257 = por %p255, %p256
      %p258 = scmp.ne.s32.totalorder %s244, %s245
      %p259 = scmp.eq.s32.totalorder %s33, 1
      %p260 = por %p258, %p259
      %p262 = scmp.ne.s32.totalorder %s245, %s261
      %p263 = scmp.eq.s32.totalorder %s33, 0
      %p264 = por %p262, %p263
      %p265 = scmp.le.s32.totalorder 1, %s27
      %p266 = scmp.lt.s32.totalorder %s27, 3
      %p267 = pnand %p265, %p266
      %p268 = pneg %p267
      // Predicated region
      $region9: #{transformer_forward.15} parent=5 // pred_check
        _
      $region10: #{transformer_forward.15} parent=5 // pred_check_branch
        %270 = sbr.rel (%p267) target = $region12
      $region11: #{transformer_forward.15} parent=5 // pred_region
        %s271 = ssub.s32 %s27, 1
        // Predicated region
        $region13: #{transformer_forward.15} parent=11 // pred_check
          %p272 = pneg %p126
        $region14: #{transformer_forward.15} parent=11 // pred_check_branch
          %274 = sbr.rel (%p272) target = $region16
        $region15: #{transformer_forward.15} parent=11 // pred_region
          %s276 = ssub.s32 3072, 3072
          %277 = vsyncadd [#allocation9], %s276
          %s278 = sshll.u32 [#allocation8], 4
          %s279 = int_to_ptr.vmem [resolvable:$true] %s278
          %284 = dma.hbm_to_vmem [thread:$0]  %s3, 3072, %s279, [#allocation9], 192, 192, 12
        $region16: #{transformer_forward.15} parent=11 // pred_fallthru
          _
        // Predicated region
        $region17: #{transformer_forward.15} parent=11 // pred_check
          %p285 = pneg %p147
        $region18: #{transformer_forward.15} parent=11 // pred_check_branch
          %287 = sbr.rel (%p285) target = $region20
        $region19: #{transformer_forward.15} parent=11 // pred_region
          %s289 = ssub.s32 48, 48
          %290 = vsyncadd [#allocation9], %s289
          %s292 = sshll.u32 [#allocation10], 4
          %s293 = int_to_ptr.vmem [resolvable:$true] %s292
          %295 = dma.hbm_to_vmem [thread:$0]  %s4, 48, %s293, [#allocation9]
        $region20: #{transformer_forward.15} parent=11 // pred_fallthru
          _
        // Predicated region
        $region21: #{transformer_forward.15} parent=11 // pred_check
          %p296 = pneg %p168
        $region22: #{transformer_forward.15} parent=11 // pred_check_branch
          %298 = sbr.rel (%p296) target = $region24
        $region23: #{transformer_forward.15} parent=11 // pred_region
          %s300 = ssub.s32 1024, 1024
          %301 = vsyncadd [#allocation12], %s300
          %s302 = sshll.u32 [#allocation11], 4
          %s303 = int_to_ptr.vmem [resolvable:$true] %s302
          %308 = dma.hbm_to_vmem [thread:$0]  %s5, 1024, %s303, [#allocation12], 64, 64, 4
        $region24: #{transformer_forward.15} parent=11 // pred_fallthru
          _
        // Predicated region
        $region25: #{transformer_forward.15} parent=11 // pred_check
          %p309 = pneg %p189
        $region26: #{transformer_forward.15} parent=11 // pred_check_branch
          %311 = sbr.rel (%p309) target = $region28
        $region27: #{transformer_forward.15} parent=11 // pred_region
          %s313 = ssub.s32 16, 16
          %314 = vsyncadd [#allocation12], %s313
          %s316 = sshll.u32 [#allocation13], 4
          %s317 = int_to_ptr.vmem [resolvable:$true] %s316
          %319 = dma.hbm_to_vmem [thread:$0]  %s6, 16, %s317, [#allocation12]
        $region28: #{transformer_forward.15} parent=11 // pred_fallthru
          _
        // Predicated region
        $region29: #{transformer_forward.15} parent=11 // pred_check
          %p320 = pneg %p210
        $region30: #{transformer_forward.15} parent=11 // pred_check_branch
          %322 = sbr.rel (%p320) target = $region32
        $region31: #{transformer_forward.15} parent=11 // pred_region
          %s324 = ssub.s32 16, 16
          %325 = vsyncadd [#allocation15], %s324
          %s327 = sshll.u32 [#allocation14], 4
          %s328 = int_to_ptr.vmem [resolvable:$true] %s327
          %330 = dma.hbm_to_vmem [thread:$0]  %s7, 16, %s328, [#allocation15]
        $region32: #{transformer_forward.15} parent=11 // pred_fallthru
          _
        // Predicated region
        $region33: #{transformer_forward.15} parent=11 // pred_check
          %p331 = pneg %p231
        $region34: #{transformer_forward.15} parent=11 // pred_check_branch
          %333 = sbr.rel (%p331) target = $region36
        $region35: #{transformer_forward.15} parent=11 // pred_region
          %s335 = ssub.s32 16, 16
          %336 = vsyncadd [#allocation15], %s335
          %s338 = sshll.u32 [#allocation16], 4
          %s339 = int_to_ptr.vmem [resolvable:$true] %s338
          %341 = dma.hbm_to_vmem [thread:$0]  %s8, 16, %s339, [#allocation15]
        $region36: #{transformer_forward.15} parent=11 // pred_fallthru
          _
      $region12: #{transformer_forward.15} parent=5 // pred_fallthru
        _
      %p342 = scmp.lt.s32.totalorder %s27, 2
      // Predicated region
      $region37: #{transformer_forward.15} parent=5 // pred_check
        %p343 = pneg %p342
      $region38: #{transformer_forward.15} parent=5 // pred_check_branch
        %345 = sbr.rel (%p343) target = $region40
      $region39: #{transformer_forward.15} parent=5 // pred_region
        // Predicated region
        $region41: #{transformer_forward.15} parent=39 // pred_check
          %p346 = pneg %p47
        $region42: #{transformer_forward.15} parent=39 // pred_check_branch
          %348 = sbr.rel (%p346) target = $region44
        $region43: #{transformer_forward.15} parent=39 // pred_region
          %s349 = sand.u32 %s37, 1
          %s350 = scalar_lea.sflag [#allocation3], %s349
          %s351 = sand.u32 %s37, 1
          %s352 = smul.addr %s351, 4
          %s353 = scalar_lea.vmem [#allocation2], %s352
          %s355 = ssub.s32 64, 64
          %356 = vsyncadd %s350, %s355
          %s357 = smul.addr %s27, 64
          %s358 = scalar_lea.hbm %s0, %s357
          %s360 = sshll.u32 %s353, 4
          %s361 = int_to_ptr.vmem [resolvable:$true] %s360
          %363 = dma.hbm_to_vmem [thread:$0]  %s358, 64, %s361, %s350
        $region44: #{transformer_forward.15} parent=39 // pred_fallthru
          _
        // Predicated region
        $region45: #{transformer_forward.15} parent=39 // pred_check
          %p364 = pneg %p73
        $region46: #{transformer_forward.15} parent=39 // pred_check_branch
          %366 = sbr.rel (%p364) target = $region48
        $region47: #{transformer_forward.15} parent=39 // pred_region
          %s367 = sand.u32 %s27, 1
          %s368 = scalar_lea.sflag [#allocation6], %s367
          %s369 = sand.u32 %s63, 1
          %s370 = smul.addr %s369, 4
          %s371 = scalar_lea.vmem [#allocation5], %s370
          %s373 = ssub.s32 64, 64
          %374 = vsyncadd %s368, %s373
          %s375 = smul.addr %s27, 64
          %s376 = scalar_lea.hbm %s1, %s375
          %s378 = sshll.u32 %s371, 4
          %s379 = int_to_ptr.vmem [resolvable:$true] %s378
          %381 = dma.hbm_to_vmem [thread:$0]  %s376, 64, %s379, %s368
        $region48: #{transformer_forward.15} parent=39 // pred_fallthru
          _
        // Predicated region
        $region49: #{transformer_forward.15} parent=39 // pred_check
          %p382 = pneg %p99
        $region50: #{transformer_forward.15} parent=39 // pred_check_branch
          %384 = sbr.rel (%p382) target = $region52
        $region51: #{transformer_forward.15} parent=39 // pred_region
          %s385 = sand.u32 %s27, 1
          %s386 = scalar_lea.sflag [#allocation6], %s385
          %s387 = sand.u32 %s89, 1
          %s388 = scalar_lea.vmem [#allocation7], %s387
          %s390 = ssub.s32 16, 16
          %391 = vsyncadd %s386, %s390
          %s392 = smul.addr %s27, 16
          %s393 = scalar_lea.hbm %s2, %s392
          %s395 = sshll.u32 %s388, 4
          %s396 = int_to_ptr.vmem [resolvable:$true] %s395
          %398 = dma.hbm_to_vmem [thread:$0]  %s393, 16, %s396, %s386
        $region52: #{transformer_forward.15} parent=39 // pred_fallthru
          _
      $region40: #{transformer_forward.15} parent=5 // pred_fallthru
        _
      %p399 = scmp.le.s32.totalorder 1, %s27
      %p400 = scmp.lt.s32.totalorder %s27, 3
      %p401 = pnand %p399, %p400
      %p402 = pneg %p401
      // Predicated region
      $region53: #{transformer_forward.15} parent=5 // pred_check
        _
      $region54: #{transformer_forward.15} parent=5 // pred_check_branch
        %404 = sbr.rel (%p401) target = $region56
      $region55: #{transformer_forward.15} parent=5 // pred_region
        %s405 = ssub.s32 %s27, 1
        %s406 = sand.u32 %s40, 1
        %s407 = scalar_lea.sflag [#allocation3], %s406
        %s408 = sand.u32 %s40, 1
        %s409 = smul.addr %s408, 4
        %s410 = scalar_lea.vmem [#allocation2], %s409
        // Predicated region
        $region57: #{transformer_forward.15} parent=55 // pred_check
          %p411 = pneg %p53
        $region58: #{transformer_forward.15} parent=55 // pred_check_branch
          %413 = sbr.rel (%p411) target = $region60
        $region59: #{transformer_forward.15} parent=55 // pred_region
          %414 = dma.done %s407, 64
        $region60: #{transformer_forward.15} parent=55 // pred_fallthru
          _
        %s415 = sand.u32 %s32, 1
        %s416 = scalar_lea.sflag [#allocation6], %s415
        %s417 = sand.u32 %s66, 1
        %s418 = smul.addr %s417, 4
        %s419 = scalar_lea.vmem [#allocation5], %s418
        // Predicated region
        $region61: #{transformer_forward.15} parent=55 // pred_check
          %p420 = pneg %p79
        $region62: #{transformer_forward.15} parent=55 // pred_check_branch
          %422 = sbr.rel (%p420) target = $region64
        $region63: #{transformer_forward.15} parent=55 // pred_region
          %423 = dma.done %s416, 64
        $region64: #{transformer_forward.15} parent=55 // pred_fallthru
          _
        %s424 = sand.u32 %s32, 1
        %s425 = scalar_lea.sflag [#allocation6], %s424
        %s426 = sand.u32 %s92, 1
        %s427 = scalar_lea.vmem [#allocation7], %s426
        // Predicated region
        $region65: #{transformer_forward.15} parent=55 // pred_check
          %p428 = pneg %p105
        $region66: #{transformer_forward.15} parent=55 // pred_check_branch
          %430 = sbr.rel (%p428) target = $region68
        $region67: #{transformer_forward.15} parent=55 // pred_region
          %431 = dma.done %s425, 16
        $region68: #{transformer_forward.15} parent=55 // pred_fallthru
          _
        // Predicated region
        $region69: #{transformer_forward.15} parent=55 // pred_check
          %p432 = pneg %p126
        $region70: #{transformer_forward.15} parent=55 // pred_check_branch
          %434 = sbr.rel (%p432) target = $region72
        $region71: #{transformer_forward.15} parent=55 // pred_region
          %435 = dma.done [#allocation9], 3072
        $region72: #{transformer_forward.15} parent=55 // pred_fallthru
          _
        // Predicated region
        $region73: #{transformer_forward.15} parent=55 // pred_check
          %p436 = pneg %p147
        $region74: #{transformer_forward.15} parent=55 // pred_check_branch
          %438 = sbr.rel (%p436) target = $region76
        $region75: #{transformer_forward.15} parent=55 // pred_region
          %439 = dma.done [#allocation9], 48
        $region76: #{transformer_forward.15} parent=55 // pred_fallthru
          _
        // Predicated region
        $region77: #{transformer_forward.15} parent=55 // pred_check
          %p440 = pneg %p168
        $region78: #{transformer_forward.15} parent=55 // pred_check_branch
          %442 = sbr.rel (%p440) target = $region80
        $region79: #{transformer_forward.15} parent=55 // pred_region
          %443 = dma.done [#allocation12], 1024
        $region80: #{transformer_forward.15} parent=55 // pred_fallthru
          _
        // Predicated region
        $region81: #{transformer_forward.15} parent=55 // pred_check
          %p444 = pneg %p189
        $region82: #{transformer_forward.15} parent=55 // pred_check_branch
          %446 = sbr.rel (%p444) target = $region84
        $region83: #{transformer_forward.15} parent=55 // pred_region
          %447 = dma.done [#allocation12], 16
        $region84: #{transformer_forward.15} parent=55 // pred_fallthru
          _
        // Predicated region
        $region85: #{transformer_forward.15} parent=55 // pred_check
          %p448 = pneg %p210
        $region86: #{transformer_forward.15} parent=55 // pred_check_branch
          %450 = sbr.rel (%p448) target = $region88
        $region87: #{transformer_forward.15} parent=55 // pred_region
          %451 = dma.done [#allocation15], 16
        $region88: #{transformer_forward.15} parent=55 // pred_fallthru
          _
        // Predicated region
        $region89: #{transformer_forward.15} parent=55 // pred_check
          %p452 = pneg %p231
        $region90: #{transformer_forward.15} parent=55 // pred_check_branch
          %454 = sbr.rel (%p452) target = $region92
        $region91: #{transformer_forward.15} parent=55 // pred_region
          %455 = dma.done [#allocation15], 16
        $region92: #{transformer_forward.15} parent=55 // pred_fallthru
          _
        %s456 = sand.u32 %s40, 1
        %s457 = scalar_lea.sflag [#allocation3], %s456
        %s458 = sand.u32 %s40, 1
        %s459 = smul.addr %s458, 4
        %s460 = scalar_lea.vmem [#allocation2], %s459
        %p461 = pneg %p53
        %p462 = pneg %p50
        %s463 = sand.u32 %s32, 1
        %s464 = scalar_lea.sflag [#allocation6], %s463
        %s465 = sand.u32 %s66, 1
        %s466 = smul.addr %s465, 4
        %s467 = scalar_lea.vmem [#allocation5], %s466
        %p468 = pneg %p79
        %p469 = pneg %p76
        %s470 = sand.u32 %s32, 1
        %s471 = scalar_lea.sflag [#allocation6], %s470
        %s472 = sand.u32 %s92, 1
        %s473 = scalar_lea.vmem [#allocation7], %s472
        %p474 = pneg %p105
        %p475 = pneg %p102
        %p476 = pneg %p126
        %p477 = pneg %p123
        %p478 = pneg %p147
        %p479 = pneg %p144
        %p480 = pneg %p168
        %p481 = pneg %p165
        %p482 = pneg %p189
        %p483 = pneg %p186
        %p484 = pneg %p210
        %p485 = pneg %p207
        %p486 = pneg %p231
        %p487 = pneg %p228
        %p488 = pneg %p257
        %p489 = pneg %p254
        %s490 = sand.u32 %s244, 1
        %s491 = scalar_lea.sflag [#allocation4], %s490
        %s492 = sand.u32 %s244, 1
        %s493 = smul.addr %s492, 4
        %s494 = scalar_lea.vmem [#allocation17], %s493
        %v496 = vld [vmem:[%s410] sm:$0xf]
        %v497 = vunpack.c.l.bf16 %v496
        %v498 = vld [vmem:[#allocation8] sm:$0xff]
        %v499 = vld [vmem:[#allocation8 + $0x8] sm:$0xf]
        %v500 = vld [vmem:[#allocation8 + $0xc] sm:$0xff]
        %v501 = vld [vmem:[#allocation8 + $0x14] sm:$0xf]
        %v502 = vld [vmem:[#allocation8 + $0x18] sm:$0xff]
        %v503 = vld [vmem:[#allocation8 + $0x20] sm:$0xf]
        %v504 = vld [vmem:[#allocation8 + $0x24] sm:$0xff]
        %v505 = vld [vmem:[#allocation8 + $0x2c] sm:$0xf]
        %v506 = vld [vmem:[#allocation8 + $0x30] sm:$0xff]
        %v507 = vld [vmem:[#allocation8 + $0x38] sm:$0xf]
        %v508 = vld [vmem:[#allocation8 + $0x3c] sm:$0xff]
        %v509 = vld [vmem:[#allocation8 + $0x44] sm:$0xf]
        %v510 = vld [vmem:[#allocation8 + $0x48] sm:$0xff]
        %v511 = vld [vmem:[#allocation8 + $0x50] sm:$0xf]
        %v512 = vld [vmem:[#allocation8 + $0x54] sm:$0xff]
        %v513 = vld [vmem:[#allocation8 + $0x5c] sm:$0xf]
        %v514 = vld [vmem:[#allocation8 + $0x60] sm:$0xff]
        %v515 = vld [vmem:[#allocation8 + $0x68] sm:$0xf]
        %v516 = vld [vmem:[#allocation8 + $0x6c] sm:$0xff]
        %v517 = vld [vmem:[#allocation8 + $0x74] sm:$0xf]
        %v518 = vld [vmem:[#allocation8 + $0x78] sm:$0xff]
        %v519 = vld [vmem:[#allocation8 + $0x80] sm:$0xf]
        %v520 = vld [vmem:[#allocation8 + $0x84] sm:$0xff]
        %v521 = vld [vmem:[#allocation8 + $0x8c] sm:$0xf]
        %v522 = vld [vmem:[#allocation8 + $0x90] sm:$0xff]
        %v523 = vld [vmem:[#allocation8 + $0x98] sm:$0xf]
        %v524 = vld [vmem:[#allocation8 + $0x9c] sm:$0xff]
        %v525 = vld [vmem:[#allocation8 + $0xa4] sm:$0xf]
        %v526 = vld [vmem:[#allocation8 + $0xa8] sm:$0xff]
        %v527 = vld [vmem:[#allocation8 + $0xb0] sm:$0xf]
        %v528 = vld [vmem:[#allocation8 + $0xb4] sm:$0xff]
        %v529 = vld [vmem:[#allocation8 + $0xbc] sm:$0xf]
        %v530 = vld [vmem:[#allocation10] sm:$0x7]
        %v532 = vlaneseq
        %v533 = vshrl.u32 %v532, 7
        %v534 = vsub.s32 0, %v533
        %v535 = vrot.slane %v530, %v534
        %v536 = vlaneseq
        %v537 = vshrl.u32 %v536, 7
        %v538 = vsub.s32 1, %v537
        %v539 = vrot.slane %v530, %v538
        %v540 = vlaneseq
        %v541 = vshrl.u32 %v540, 7
        %v542 = vsub.s32 2, %v541
        %v543 = vrot.slane %v530, %v542
        %v579 = vunpack.c.l.b16 %v498
        %v580 = vunpack.c.h.b16 %v498
        %v581 = vunpack.c.l.b16 %v499
        %v582 = vunpack.c.l.b16 %v500
        %v583 = vunpack.c.h.b16 %v500
        %v584 = vunpack.c.l.b16 %v501
        %v585 = vunpack.c.l.b16 %v502
        %v586 = vunpack.c.h.b16 %v502
        %v587 = vunpack.c.l.b16 %v503
        %v588 = vunpack.c.l.b16 %v504
        %v589 = vunpack.c.h.b16 %v504
        %v590 = vunpack.c.l.b16 %v505
        %v591 = vunpack.c.l.b16 %v506
        %v592 = vunpack.c.h.b16 %v506
        %v593 = vunpack.c.l.b16 %v507
        %v594 = vunpack.c.l.b16 %v508
        %v595 = vunpack.c.h.b16 %v508
        %v596 = vunpack.c.l.b16 %v509
        %v597 = vunpack.c.l.b16 %v510
        %v598 = vunpack.c.h.b16 %v510
        %v599 = vunpack.c.l.b16 %v511
        %v600 = vunpack.c.l.b16 %v512
        %v601 = vunpack.c.h.b16 %v512
        %v602 = vunpack.c.l.b16 %v513
        %v603 = vunpack.c.l.b16 %v514
        %v604 = vunpack.c.h.b16 %v514
        %v605 = vunpack.c.l.b16 %v515
        %v606 = vunpack.c.l.b16 %v516
        %v607 = vunpack.c.h.b16 %v516
        %v608 = vunpack.c.l.b16 %v517
        %v609 = vunpack.c.l.b16 %v518
        %v610 = vunpack.c.h.b16 %v518
        %v611 = vunpack.c.l.b16 %v519
        %v612 = vunpack.c.l.b16 %v520
        %v613 = vunpack.c.h.b16 %v520
        %v614 = vunpack.c.l.b16 %v521
        %v615 = vunpack.c.l.b16 %v522
        %v616 = vunpack.c.h.b16 %v522
        %v617 = vunpack.c.l.b16 %v523
        %v618 = vunpack.c.l.b16 %v524
        %v619 = vunpack.c.h.b16 %v524
        %v620 = vunpack.c.l.b16 %v525
        %v621 = vunpack.c.l.b16 %v526
        %v622 = vunpack.c.h.b16 %v526
        %v623 = vunpack.c.l.b16 %v527
        %v624 = vunpack.c.l.b16 %v528
        %v625 = vunpack.c.h.b16 %v528
        %v626 = vunpack.c.l.b16 %v529
        %v627 = vpack.c.b16 %v582, %v579
        %v628 = vpack.c.b16 %v583, %v580
        %v629 = vpack.c.b16 %v584, %v581
        %v630 = vpack.c.b16 %v588, %v585
        %v631 = vpack.c.b16 %v589, %v586
        %v632 = vpack.c.b16 %v590, %v587
        %v633 = vpack.c.b16 %v594, %v591
        %v634 = vpack.c.b16 %v595, %v592
        %v635 = vpack.c.b16 %v596, %v593
        %v636 = vpack.c.b16 %v600, %v597
        %v637 = vpack.c.b16 %v601, %v598
        %v638 = vpack.c.b16 %v602, %v599
        %v639 = vpack.c.b16 %v606, %v603
        %v640 = vpack.c.b16 %v607, %v604
        %v641 = vpack.c.b16 %v608, %v605
        %v642 = vpack.c.b16 %v612, %v609
        %v643 = vpack.c.b16 %v613, %v610
        %v644 = vpack.c.b16 %v614, %v611
        %v645 = vpack.c.b16 %v618, %v615
        %v646 = vpack.c.b16 %v619, %v616
        %v647 = vpack.c.b16 %v620, %v617
        %v648 = vpack.c.b16 %v624, %v621
        %v649 = vpack.c.b16 %v625, %v622
        %v650 = vpack.c.b16 %v626, %v623
        %675 = vmatprep.subr.bf16.mxu0 %v628
        %676 = vmatpush1.bf16.msra.mxu0 %v627
        %677 = vmatprep.subr.bf16.mxu0 %v631
        %678 = vmatpush1.bf16.msra.mxu0 %v630
        %679 = vmatprep.subr.bf16.mxu0 %v634
        %680 = vmatpush1.bf16.msra.mxu0 %v633
        %681 = vmatprep.subr.bf16.mxu0 %v637
        %682 = vmatpush1.bf16.msra.mxu0 %v636
        %683 = vmatprep.subr.bf16.mxu0 %v640
        %684 = vmatpush1.bf16.msra.mxu0 %v639
        %685 = vmatprep.subr.bf16.mxu0 %v643
        %686 = vmatpush1.bf16.msra.mxu0 %v642
        %687 = vmatprep.subr.bf16.mxu0 %v646
        %688 = vmatpush1.bf16.msra.mxu0 %v645
        %689 = vmatprep.subr.bf16.mxu0 %v649
        %690 = vmatpush1.bf16.msra.mxu0 %v648
        %691 = vmatprep.subr.bf16.mxu0 0
        %692 = vmatpush1.bf16.msra.mxu0 0
        %693 = vmatprep.subr.bf16.mxu0 0
        %694 = vmatpush1.bf16.msra.mxu0 0
        %695 = vmatprep.subr.bf16.mxu0 0
        %696 = vmatpush1.bf16.msra.mxu0 0
        %697 = vmatprep.subr.bf16.mxu0 0
        %698 = vmatpush1.bf16.msra.mxu0 0
        %699 = vmatprep.subr.bf16.mxu0 0
        %700 = vmatpush1.bf16.msra.mxu0 0
        %701 = vmatprep.subr.bf16.mxu0 0
        %702 = vmatpush1.bf16.msra.mxu0 0
        %703 = vmatprep.subr.bf16.mxu0 0
        %704 = vmatpush1.bf16.msra.mxu0 0
        %705 = vmatprep.subr.bf16.mxu0 0
        %706 = vmatpush1.bf16.msra.mxu0 0
        %707 = vmatprep.mubr.bf16.mxu0 0
        %708 = vmatmul.mubr.bf16.gmra.mrb[0].mxu0 %v496
        %v709 = vpop.f32.mrb[0].mxu0
        %v710 = vadd.f32 %v535, %v709
        %v711 = vpop.f32.mrb[0].mxu0
        %v712 = vadd.f32 %v539, %v711
        %v713 = vpop.f32.mrb[0].mxu0
        %v714 = vpop.f32.mrb[0].mxu0
        %715 = vdwg.mxu0
        %716 = vmatprep.subr.bf16.mxu0 0
        %717 = vmatpush1.bf16.msra.mxu0 %v629
        %718 = vmatprep.subr.bf16.mxu0 0
        %719 = vmatpush1.bf16.msra.mxu0 %v632
        %720 = vmatprep.subr.bf16.mxu0 0
        %721 = vmatpush1.bf16.msra.mxu0 %v635
        %722 = vmatprep.subr.bf16.mxu0 0
        %723 = vmatpush1.bf16.msra.mxu0 %v638
        %724 = vmatprep.subr.bf16.mxu0 0
        %725 = vmatpush1.bf16.msra.mxu0 %v641
        %726 = vmatprep.subr.bf16.mxu0 0
        %727 = vmatpush1.bf16.msra.mxu0 %v644
        %728 = vmatprep.subr.bf16.mxu0 0
        %729 = vmatpush1.bf16.msra.mxu0 %v647
        %730 = vmatprep.subr.bf16.mxu0 0
        %731 = vmatpush1.bf16.msra.mxu0 %v650
        %732 = vmatprep.subr.bf16.mxu0 0
        %733 = vmatpush1.bf16.msra.mxu0 0
        %734 = vmatprep.subr.bf16.mxu0 0
        %735 = vmatpush1.bf16.msra.mxu0 0
        %736 = vmatprep.subr.bf16.mxu0 0
        %737 = vmatpush1.bf16.msra.mxu0 0
        %738 = vmatprep.subr.bf16.mxu0 0
        %739 = vmatpush1.bf16.msra.mxu0 0
        %740 = vmatprep.subr.bf16.mxu0 0
        %741 = vmatpush1.bf16.msra.mxu0 0
        %742 = vmatprep.subr.bf16.mxu0 0
        %743 = vmatpush1.bf16.msra.mxu0 0
        %744 = vmatprep.subr.bf16.mxu0 0
        %745 = vmatpush1.bf16.msra.mxu0 0
        %746 = vmatprep.subr.bf16.mxu0 0
        %747 = vmatpush1.bf16.msra.mxu0 0
        %748 = vmatprep.mubr.bf16.mxu0 0
        %749 = vmatmul.mubr.bf16.gmra.mrb[0].mxu0 %v496
        %v750 = vpop.f32.mrb[0].mxu0
        %v751 = vadd.f32 %v543, %v750
        %v752 = vpop.f32.mrb[0].mxu0
        %v753 = vpop.f32.mrb[0].mxu0
        %v754 = vpop.f32.mrb[0].mxu0
        %755 = vdwg.mxu0
        %v756 = vld [vmem:[%s427] sm:$0x1]
        %vm757 = vcmp.gt.f32.partialorder %v756, 0.0
        %v758 = vsel %vm757, 1, 0
        %v759 = vlaneseq
        %v760 = vshrl.u32 %v759, 7
        %v761 = vsub.s32 0, %v760
        %v762 = vrot.slane %v758, %v761
        %vm763 = vcmp.eq.s32.totalorder %v762, 1
        %v764 = vlaneseq
        %v765 = vshrl.u32 %v764, 7
        %v766 = vlaneseq
        %v767 = vand.u32 %v766, 127
        %vm768 = vcmp.ge.s32.totalorder %v765, %v767
        %vm769 = vmand %vm763, %vm768
        %v770 = vsel %vm769, 0.0, -1e+09
        %772 = vrot.lane.b32.xlu0 %v710, 96
        %v773 = vpop.permute.xlu0 %772
        %775 = vrot.lane.b32.xlu0 %v710, 64
        %v776 = vpop.permute.xlu0 %775
        %778 = vrot.lane.b32.xlu0 %v710, 32
        %v779 = vpop.permute.xlu0 %778
        %v781 = vcombine.low %v710, %v776
        %v782 = vcombine.high %v710, %v776
        %v784 = vunpack.c.l.s4 1983009808
        %v785 = vunpack.c.0.s8 %v784
        %v786 = vlaneseq
        %v787 = vshrl.u32 %v786, 7
        %v788 = vsub.s32 %v785, %v787
        %v789 = vrot.slane %v781, %v788
        %v791 = vunpack.c.l.s4 1983009808
        %v792 = vunpack.c.0.s8 %v791
        %v793 = vlaneseq
        %v794 = vshrl.u32 %v793, 7
        %v795 = vsub.s32 %v792, %v794
        %v796 = vrot.slane %v782, %v795
        %v797 = vcombine.low %v773, %v779
        %v798 = vcombine.high %v773, %v779
        %v800 = vunpack.c.l.s4 1983009808
        %v801 = vunpack.c.0.s8 %v800
        %v802 = vlaneseq
        %v803 = vshrl.u32 %v802, 7
        %v804 = vsub.s32 %v801, %v803
        %v805 = vrot.slane %v797, %v804
        %v807 = vunpack.c.l.s4 1983009808
        %v808 = vunpack.c.0.s8 %v807
        %v809 = vlaneseq
        %v810 = vshrl.u32 %v809, 7
        %v811 = vsub.s32 %v808, %v810
        %v812 = vrot.slane %v798, %v811
        %v813 = vcombine.low %v789, %v805
        %v814 = vcombine.high %v789, %v805
        %v816 = vunpack.c.l.s4 1934713408
        %v817 = vunpack.c.0.s8 %v816
        %v818 = vlaneseq
        %v819 = vshrl.u32 %v818, 7
        %v820 = vsub.s32 %v817, %v819
        %v821 = vrot.slane %v813, %v820
        %v823 = vunpack.c.l.s4 1934713408
        %v824 = vunpack.c.0.s8 %v823
        %v825 = vlaneseq
        %v826 = vshrl.u32 %v825, 7
        %v827 = vsub.s32 %v824, %v826
        %v828 = vrot.slane %v814, %v827
        %v829 = vcombine.low %v796, %v812
        %v830 = vcombine.high %v796, %v812
        %v832 = vunpack.c.l.s4 1934713408
        %v833 = vunpack.c.0.s8 %v832
        %v834 = vlaneseq
        %v835 = vshrl.u32 %v834, 7
        %v836 = vsub.s32 %v833, %v835
        %v837 = vrot.slane %v829, %v836
        %v839 = vunpack.c.l.s4 1934713408
        %v840 = vunpack.c.0.s8 %v839
        %v841 = vlaneseq
        %v842 = vshrl.u32 %v841, 7
        %v843 = vsub.s32 %v840, %v842
        %v844 = vrot.slane %v830, %v843
        %v845 = vcombine.high %v821, 0.0
        %v846 = vcombine.high %v828, 0.0
        %v847 = vcombine.high %v837, 0.0
        %v848 = vcombine.high %v844, 0.0
        %v849 = vcombine.low %v821, %v828
        %v851 = vunpack.c.l.s4 1983009808
        %v852 = vunpack.c.0.s8 %v851
        %v853 = vlaneseq
        %v854 = vshrl.u32 %v853, 7
        %v855 = vsub.s32 %v852, %v854
        %v856 = vrot.slane %v849, %v855
        %v857 = vcombine.low %v845, %v846
        %v859 = vunpack.c.l.s4 1983009808
        %v860 = vunpack.c.0.s8 %v859
        %v861 = vlaneseq
        %v862 = vshrl.u32 %v861, 7
        %v863 = vsub.s32 %v860, %v862
        %v864 = vrot.slane %v857, %v863
        %v865 = vcombine.low %v837, %v844
        %v867 = vunpack.c.l.s4 1983009808
        %v868 = vunpack.c.0.s8 %v867
        %v869 = vlaneseq
        %v870 = vshrl.u32 %v869, 7
        %v871 = vsub.s32 %v868, %v870
        %v872 = vrot.slane %v865, %v871
        %v873 = vcombine.low %v847, %v848
        %v875 = vunpack.c.l.s4 1983009808
        %v876 = vunpack.c.0.s8 %v875
        %v877 = vlaneseq
        %v878 = vshrl.u32 %v877, 7
        %v879 = vsub.s32 %v876, %v878
        %v880 = vrot.slane %v873, %v879
        %v881 = vcombine.low %v856, %v864
        %v882 = vcombine.high %v856, %v864
        %v884 = vunpack.c.l.s4 1934713408
        %v885 = vunpack.c.0.s8 %v884
        %v886 = vlaneseq
        %v887 = vshrl.u32 %v886, 7
        %v888 = vsub.s32 %v885, %v887
        %v889 = vrot.slane %v881, %v888
        %v891 = vunpack.c.l.s4 1934713408
        %v892 = vunpack.c.0.s8 %v891
        %v893 = vlaneseq
        %v894 = vshrl.u32 %v893, 7
        %v895 = vsub.s32 %v892, %v894
        %v896 = vrot.slane %v882, %v895
        %v897 = vcombine.low %v872, %v880
        %v898 = vcombine.high %v872, %v880
        %v900 = vunpack.c.l.s4 1934713408
        %v901 = vunpack.c.0.s8 %v900
        %v902 = vlaneseq
        %v903 = vshrl.u32 %v902, 7
        %v904 = vsub.s32 %v901, %v903
        %v905 = vrot.slane %v897, %v904
        %v907 = vunpack.c.l.s4 1934713408
        %v908 = vunpack.c.0.s8 %v907
        %v909 = vlaneseq
        %v910 = vshrl.u32 %v909, 7
        %v911 = vsub.s32 %v908, %v910
        %v912 = vrot.slane %v898, %v911
        %v913 = vcombine.low %v889, %v905
        %v914 = vcombine.high %v889, %v905
        %v915 = vcombine.low %v896, %v912
        %v916 = vcombine.high %v896, %v912
        %v917 = vpack.c.bf16 %v913, %v913
        %v918 = vpack.c.bf16 %v914, %v914
        %v919 = vpack.c.bf16 %v915, %v915
        %v920 = vpack.c.bf16 %v916, %v916
        %922 = vrot.lane.b32.xlu0 %v712, 96
        %v923 = vpop.permute.xlu0 %922
        %925 = vrot.lane.b32.xlu0 %v712, 64
        %v926 = vpop.permute.xlu0 %925
        %928 = vrot.lane.b32.xlu0 %v712, 32
        %v929 = vpop.permute.xlu0 %928
        %v931 = vcombine.low %v712, %v926
        %v932 = vcombine.high %v712, %v926
        %v934 = vunpack.c.l.s4 1983009808
        %v935 = vunpack.c.0.s8 %v934
        %v936 = vlaneseq
        %v937 = vshrl.u32 %v936, 7
        %v938 = vsub.s32 %v935, %v937
        %v939 = vrot.slane %v931, %v938
        %v941 = vunpack.c.l.s4 1983009808
        %v942 = vunpack.c.0.s8 %v941
        %v943 = vlaneseq
        %v944 = vshrl.u32 %v943, 7
        %v945 = vsub.s32 %v942, %v944
        %v946 = vrot.slane %v932, %v945
        %v947 = vcombine.low %v923, %v929
        %v948 = vcombine.high %v923, %v929
        %v950 = vunpack.c.l.s4 1983009808
        %v951 = vunpack.c.0.s8 %v950
        %v952 = vlaneseq
        %v953 = vshrl.u32 %v952, 7
        %v954 = vsub.s32 %v951, %v953
        %v955 = vrot.slane %v947, %v954
        %v957 = vunpack.c.l.s4 1983009808
        %v958 = vunpack.c.0.s8 %v957
        %v959 = vlaneseq
        %v960 = vshrl.u32 %v959, 7
        %v961 = vsub.s32 %v958, %v960
        %v962 = vrot.slane %v948, %v961
        %v963 = vcombine.low %v939, %v955
        %v964 = vcombine.high %v939, %v955
        %v966 = vunpack.c.l.s4 1934713408
        %v967 = vunpack.c.0.s8 %v966
        %v968 = vlaneseq
        %v969 = vshrl.u32 %v968, 7
        %v970 = vsub.s32 %v967, %v969
        %v971 = vrot.slane %v963, %v970
        %v973 = vunpack.c.l.s4 1934713408
        %v974 = vunpack.c.0.s8 %v973
        %v975 = vlaneseq
        %v976 = vshrl.u32 %v975, 7
        %v977 = vsub.s32 %v974, %v976
        %v978 = vrot.slane %v964, %v977
        %v979 = vcombine.low %v946, %v962
        %v980 = vcombine.high %v946, %v962
        %v982 = vunpack.c.l.s4 1934713408
        %v983 = vunpack.c.0.s8 %v982
        %v984 = vlaneseq
        %v985 = vshrl.u32 %v984, 7
        %v986 = vsub.s32 %v983, %v985
        %v987 = vrot.slane %v979, %v986
        %v989 = vunpack.c.l.s4 1934713408
        %v990 = vunpack.c.0.s8 %v989
        %v991 = vlaneseq
        %v992 = vshrl.u32 %v991, 7
        %v993 = vsub.s32 %v990, %v992
        %v994 = vrot.slane %v980, %v993
        %v995 = vcombine.high %v971, 0.0
        %v996 = vcombine.high %v978, 0.0
        %v997 = vcombine.high %v987, 0.0
        %v998 = vcombine.high %v994, 0.0
        %v999 = vcombine.low %v971, %v978
        %v1001 = vunpack.c.l.s4 1983009808
        %v1002 = vunpack.c.0.s8 %v1001
        %v1003 = vlaneseq
        %v1004 = vshrl.u32 %v1003, 7
        %v1005 = vsub.s32 %v1002, %v1004
        %v1006 = vrot.slane %v999, %v1005
        %v1007 = vcombine.low %v995, %v996
        %v1009 = vunpack.c.l.s4 1983009808
        %v1010 = vunpack.c.0.s8 %v1009
        %v1011 = vlaneseq
        %v1012 = vshrl.u32 %v1011, 7
        %v1013 = vsub.s32 %v1010, %v1012
        %v1014 = vrot.slane %v1007, %v1013
        %v1015 = vcombine.low %v987, %v994
        %v1017 = vunpack.c.l.s4 1983009808
        %v1018 = vunpack.c.0.s8 %v1017
        %v1019 = vlaneseq
        %v1020 = vshrl.u32 %v1019, 7
        %v1021 = vsub.s32 %v1018, %v1020
        %v1022 = vrot.slane %v1015, %v1021
        %v1023 = vcombine.low %v997, %v998
        %v1025 = vunpack.c.l.s4 1983009808
        %v1026 = vunpack.c.0.s8 %v1025
        %v1027 = vlaneseq
        %v1028 = vshrl.u32 %v1027, 7
        %v1029 = vsub.s32 %v1026, %v1028
        %v1030 = vrot.slane %v1023, %v1029
        %v1031 = vcombine.low %v1006, %v1014
        %v1032 = vcombine.high %v1006, %v1014
        %v1034 = vunpack.c.l.s4 1934713408
        %v1035 = vunpack.c.0.s8 %v1034
        %v1036 = vlaneseq
        %v1037 = vshrl.u32 %v1036, 7
        %v1038 = vsub.s32 %v1035, %v1037
        %v1039 = vrot.slane %v1031, %v1038
        %v1041 = vunpack.c.l.s4 1934713408
        %v1042 = vunpack.c.0.s8 %v1041
        %v1043 = vlaneseq
        %v1044 = vshrl.u32 %v1043, 7
        %v1045 = vsub.s32 %v1042, %v1044
        %v1046 = vrot.slane %v1032, %v1045
        %v1047 = vcombine.low %v1022, %v1030
        %v1048 = vcombine.high %v1022, %v1030
        %v1050 = vunpack.c.l.s4 1934713408
        %v1051 = vunpack.c.0.s8 %v1050
        %v1052 = vlaneseq
        %v1053 = vshrl.u32 %v1052, 7
        %v1054 = vsub.s32 %v1051, %v1053
        %v1055 = vrot.slane %v1047, %v1054
        %v1057 = vunpack.c.l.s4 1934713408
        %v1058 = vunpack.c.0.s8 %v1057
        %v1059 = vlaneseq
        %v1060 = vshrl.u32 %v1059, 7
        %v1061 = vsub.s32 %v1058, %v1060
        %v1062 = vrot.slane %v1048, %v1061
        %v1063 = vcombine.low %v1039, %v1055
        %v1064 = vcombine.high %v1039, %v1055
        %v1065 = vcombine.low %v1046, %v1062
        %v1066 = vcombine.high %v1046, %v1062
        %v1067 = vpack.c.bf16 %v1063, %v1063
        %v1068 = vpack.c.bf16 %v1064, %v1064
        %v1069 = vpack.c.bf16 %v1065, %v1065
        %v1070 = vpack.c.bf16 %v1066, %v1066
        %1072 = vrot.lane.b32.xlu0 %v751, 96
        %v1073 = vpop.permute.xlu0 %1072
        %1075 = vrot.lane.b32.xlu0 %v751, 64
        %v1076 = vpop.permute.xlu0 %1075
        %1078 = vrot.lane.b32.xlu0 %v751, 32
        %v1079 = vpop.permute.xlu0 %1078
        %v1081 = vcombine.low %v751, %v1076
        %v1082 = vcombine.high %v751, %v1076
        %v1084 = vunpack.c.l.s4 1983009808
        %v1085 = vunpack.c.0.s8 %v1084
        %v1086 = vlaneseq
        %v1087 = vshrl.u32 %v1086, 7
        %v1088 = vsub.s32 %v1085, %v1087
        %v1089 = vrot.slane %v1081, %v1088
        %v1091 = vunpack.c.l.s4 1983009808
        %v1092 = vunpack.c.0.s8 %v1091
        %v1093 = vlaneseq
        %v1094 = vshrl.u32 %v1093, 7
        %v1095 = vsub.s32 %v1092, %v1094
        %v1096 = vrot.slane %v1082, %v1095
        %v1097 = vcombine.low %v1073, %v1079
        %v1098 = vcombine.high %v1073, %v1079
        %v1100 = vunpack.c.l.s4 1983009808
        %v1101 = vunpack.c.0.s8 %v1100
        %v1102 = vlaneseq
        %v1103 = vshrl.u32 %v1102, 7
        %v1104 = vsub.s32 %v1101, %v1103
        %v1105 = vrot.slane %v1097, %v1104
        %v1107 = vunpack.c.l.s4 1983009808
        %v1108 = vunpack.c.0.s8 %v1107
        %v1109 = vlaneseq
        %v1110 = vshrl.u32 %v1109, 7
        %v1111 = vsub.s32 %v1108, %v1110
        %v1112 = vrot.slane %v1098, %v1111
        %v1113 = vcombine.low %v1089, %v1105
        %v1114 = vcombine.high %v1089, %v1105
        %v1116 = vunpack.c.l.s4 1934713408
        %v1117 = vunpack.c.0.s8 %v1116
        %v1118 = vlaneseq
        %v1119 = vshrl.u32 %v1118, 7
        %v1120 = vsub.s32 %v1117, %v1119
        %v1121 = vrot.slane %v1113, %v1120
        %v1123 = vunpack.c.l.s4 1934713408
        %v1124 = vunpack.c.0.s8 %v1123
        %v1125 = vlaneseq
        %v1126 = vshrl.u32 %v1125, 7
        %v1127 = vsub.s32 %v1124, %v1126
        %v1128 = vrot.slane %v1114, %v1127
        %v1129 = vcombine.low %v1096, %v1112
        %v1130 = vcombine.high %v1096, %v1112
        %v1132 = vunpack.c.l.s4 1934713408
        %v1133 = vunpack.c.0.s8 %v1132
        %v1134 = vlaneseq
        %v1135 = vshrl.u32 %v1134, 7
        %v1136 = vsub.s32 %v1133, %v1135
        %v1137 = vrot.slane %v1129, %v1136
        %v1139 = vunpack.c.l.s4 1934713408
        %v1140 = vunpack.c.0.s8 %v1139
        %v1141 = vlaneseq
        %v1142 = vshrl.u32 %v1141, 7
        %v1143 = vsub.s32 %v1140, %v1142
        %v1144 = vrot.slane %v1130, %v1143
        %v1145 = vcombine.high %v1121, 0.0
        %v1146 = vcombine.high %v1128, 0.0
        %v1147 = vcombine.high %v1137, 0.0
        %v1148 = vcombine.high %v1144, 0.0
        %v1149 = vcombine.low %v1121, %v1128
        %v1151 = vunpack.c.l.s4 1983009808
        %v1152 = vunpack.c.0.s8 %v1151
        %v1153 = vlaneseq
        %v1154 = vshrl.u32 %v1153, 7
        %v1155 = vsub.s32 %v1152, %v1154
        %v1156 = vrot.slane %v1149, %v1155
        %v1157 = vcombine.low %v1145, %v1146
        %v1159 = vunpack.c.l.s4 1983009808
        %v1160 = vunpack.c.0.s8 %v1159
        %v1161 = vlaneseq
        %v1162 = vshrl.u32 %v1161, 7
        %v1163 = vsub.s32 %v1160, %v1162
        %v1164 = vrot.slane %v1157, %v1163
        %v1165 = vcombine.low %v1137, %v1144
        %v1167 = vunpack.c.l.s4 1983009808
        %v1168 = vunpack.c.0.s8 %v1167
        %v1169 = vlaneseq
        %v1170 = vshrl.u32 %v1169, 7
        %v1171 = vsub.s32 %v1168, %v1170
        %v1172 = vrot.slane %v1165, %v1171
        %v1173 = vcombine.low %v1147, %v1148
        %v1175 = vunpack.c.l.s4 1983009808
        %v1176 = vunpack.c.0.s8 %v1175
        %v1177 = vlaneseq
        %v1178 = vshrl.u32 %v1177, 7
        %v1179 = vsub.s32 %v1176, %v1178
        %v1180 = vrot.slane %v1173, %v1179
        %v1181 = vcombine.low %v1156, %v1164
        %v1182 = vcombine.high %v1156, %v1164
        %v1184 = vunpack.c.l.s4 1934713408
        %v1185 = vunpack.c.0.s8 %v1184
        %v1186 = vlaneseq
        %v1187 = vshrl.u32 %v1186, 7
        %v1188 = vsub.s32 %v1185, %v1187
        %v1189 = vrot.slane %v1181, %v1188
        %v1191 = vunpack.c.l.s4 1934713408
        %v1192 = vunpack.c.0.s8 %v1191
        %v1193 = vlaneseq
        %v1194 = vshrl.u32 %v1193, 7
        %v1195 = vsub.s32 %v1192, %v1194
        %v1196 = vrot.slane %v1182, %v1195
        %v1197 = vcombine.low %v1172, %v1180
        %v1198 = vcombine.high %v1172, %v1180
        %v1200 = vunpack.c.l.s4 1934713408
        %v1201 = vunpack.c.0.s8 %v1200
        %v1202 = vlaneseq
        %v1203 = vshrl.u32 %v1202, 7
        %v1204 = vsub.s32 %v1201, %v1203
        %v1205 = vrot.slane %v1197, %v1204
        %v1207 = vunpack.c.l.s4 1934713408
        %v1208 = vunpack.c.0.s8 %v1207
        %v1209 = vlaneseq
        %v1210 = vshrl.u32 %v1209, 7
        %v1211 = vsub.s32 %v1208, %v1210
        %v1212 = vrot.slane %v1198, %v1211
        %v1213 = vcombine.low %v1189, %v1205
        %v1214 = vcombine.high %v1189, %v1205
        %v1215 = vcombine.low %v1196, %v1212
        %v1216 = vcombine.high %v1196, %v1212
        %v1217 = vpack.c.bf16 %v1213, %v1213
        %v1218 = vpack.c.bf16 %v1214, %v1214
        %v1219 = vpack.c.bf16 %v1215, %v1215
        %v1220 = vpack.c.bf16 %v1216, %v1216
        %vm1221 = vcmask 261120
        %v1223 = vsel %vm1221, %v917, 0
        %v1226 = vsel %vm1221, %v1067, 0
        %1228 = vmatprep.subr.bf16.mxu0 0
        %1229 = vmatpush1.bf16.xpose.msra.mxu0 %v1226
        %1230 = vmatprep.subr.bf16.mxu0 0
        %1231 = vmatpush1.bf16.xpose.msra.mxu0 0
        %1232 = vmatprep.subr.bf16.mxu0 0
        %1233 = vmatpush1.bf16.xpose.msra.mxu0 0
        %1234 = vmatprep.subr.bf16.mxu0 0
        %1235 = vmatpush1.bf16.xpose.msra.mxu0 0
        %1236 = vmatprep.subr.bf16.mxu0 0
        %1237 = vmatpush1.bf16.xpose.msra.mxu0 0
        %1238 = vmatprep.subr.bf16.mxu0 0
        %1239 = vmatpush1.bf16.xpose.msra.mxu0 0
        %1240 = vmatprep.subr.bf16.mxu0 0
        %1241 = vmatpush1.bf16.xpose.msra.mxu0 0
        %1242 = vmatprep.subr.bf16.mxu0 0
        %1243 = vmatpush1.bf16.xpose.msra.mxu0 0
        %1244 = vmatprep.subr.bf16.mxu0 0
        %1245 = vmatpush1.bf16.xpose.msra.mxu0 0
        %1246 = vmatprep.subr.bf16.mxu0 0
        %1247 = vmatpush1.bf16.xpose.msra.mxu0 0
        %1248 = vmatprep.subr.bf16.mxu0 0
        %1249 = vmatpush1.bf16.xpose.msra.mxu0 0
        %1250 = vmatprep.subr.bf16.mxu0 0
        %1251 = vmatpush1.bf16.xpose.msra.mxu0 0
        %1252 = vmatprep.subr.bf16.mxu0 0
        %1253 = vmatpush1.bf16.xpose.msra.mxu0 0
        %1254 = vmatprep.subr.bf16.mxu0 0
        %1255 = vmatpush1.bf16.xpose.msra.mxu0 0
        %1256 = vmatprep.subr.bf16.mxu0 0
        %1257 = vmatpush1.bf16.xpose.msra.mxu0 0
        %1258 = vmatprep.subr.bf16.mxu0 0
        %1259 = vmatpush1.bf16.xpose.msra.mxu0 0
        %1260 = vmatprep.mubr.bf16.mxu0 0
        %1261 = vmatmul.mubr.bf16.gmra.mrb[0].mxu0 %v1223
        %v1262 = vpop.f32.mrb[0].mxu0
        %v1263 = vadd.f32 0.0, %v1262
        %v1264 = vpop.f32.mrb[0].mxu0
        %v1265 = vpop.f32.mrb[0].mxu0
        %v1266 = vpop.f32.mrb[0].mxu0
        %1267 = vdwg.mxu0
        %v1269 = vsel %vm1221, %v918, 0
        %v1272 = vsel %vm1221, %v1068, 0
        %1274 = vmatprep.subr.bf16.mxu0 0
        %1275 = vmatpush1.bf16.xpose.msra.mxu0 %v1272
        %1276 = vmatprep.subr.bf16.mxu0 0
        %1277 = vmatpush1.bf16.xpose.msra.mxu0 0
        %1278 = vmatprep.subr.bf16.mxu0 0
        %1279 = vmatpush1.bf16.xpose.msra.mxu0 0
        %1280 = vmatprep.subr.bf16.mxu0 0
        %1281 = vmatpush1.bf16.xpose.msra.mxu0 0
        %1282 = vmatprep.subr.bf16.mxu0 0
        %1283 = vmatpush1.bf16.xpose.msra.mxu0 0
        %1284 = vmatprep.subr.bf16.mxu0 0
        %1285 = vmatpush1.bf16.xpose.msra.mxu0 0
        %1286 = vmatprep.subr.bf16.mxu0 0
        %1287 = vmatpush1.bf16.xpose.msra.mxu0 0
        %1288 = vmatprep.subr.bf16.mxu0 0
        %1289 = vmatpush1.bf16.xpose.msra.mxu0 0
        %1290 = vmatprep.subr.bf16.mxu0 0
        %1291 = vmatpush1.bf16.xpose.msra.mxu0 0
        %1292 = vmatprep.subr.bf16.mxu0 0
        %1293 = vmatpush1.bf16.xpose.msra.mxu0 0
        %1294 = vmatprep.subr.bf16.mxu0 0
        %1295 = vmatpush1.bf16.xpose.msra.mxu0 0
        %1296 = vmatprep.subr.bf16.mxu0 0
        %1297 = vmatpush1.bf16.xpose.msra.mxu0 0
        %1298 = vmatprep.subr.bf16.mxu0 0
        %1299 = vmatpush1.bf16.xpose.msra.mxu0 0
        %1300 = vmatprep.subr.bf16.mxu0 0
        %1301 = vmatpush1.bf16.xpose.msra.mxu0 0
        %1302 = vmatprep.subr.bf16.mxu0 0
        %1303 = vmatpush1.bf16.xpose.msra.mxu0 0
        %1304 = vmatprep.subr.bf16.mxu0 0
        %1305 = vmatpush1.bf16.xpose.msra.mxu0 0
        %1306 = vmatprep.mubr.bf16.mxu0 0
        %1307 = vmatmul.mubr.bf16.gmra.mrb[0].mxu0 %v1269
        %v1308 = vpop.f32.mrb[0].mxu0
        %v1309 = vadd.f32 0.0, %v1308
        %v1310 = vpop.f32.mrb[0].mxu0
        %v1311 = vpop.f32.mrb[0].mxu0
        %v1312 = vpop.f32.mrb[0].mxu0
        %1313 = vdwg.mxu0
        %v1315 = vsel %vm1221, %v919, 0
        %v1318 = vsel %vm1221, %v1069, 0
        %1320 = vmatprep.subr.bf16.mxu0 0
        %1321 = vmatpush1.bf16.xpose.msra.mxu0 %v1318
        %1322 = vmatprep.subr.bf16.mxu0 0
        %1323 = vmatpush1.bf16.xpose.msra.mxu0 0
        %1324 = vmatprep.subr.bf16.mxu0 0
        %1325 = vmatpush1.bf16.xpose.msra.mxu0 0
        %1326 = vmatprep.subr.bf16.mxu0 0
        %1327 = vmatpush1.bf16.xpose.msra.mxu0 0
        %1328 = vmatprep.subr.bf16.mxu0 0
        %1329 = vmatpush1.bf16.xpose.msra.mxu0 0
        %1330 = vmatprep.subr.bf16.mxu0 0
        %1331 = vmatpush1.bf16.xpose.msra.mxu0 0
        %1332 = vmatprep.subr.bf16.mxu0 0
        %1333 = vmatpush1.bf16.xpose.msra.mxu0 0
        %1334 = vmatprep.subr.bf16.mxu0 0
        %1335 = vmatpush1.bf16.xpose.msra.mxu0 0
        %1336 = vmatprep.subr.bf16.mxu0 0
        %1337 = vmatpush1.bf16.xpose.msra.mxu0 0
        %1338 = vmatprep.subr.bf16.mxu0 0
        %1339 = vmatpush1.bf16.xpose.msra.mxu0 0
        %1340 = vmatprep.subr.bf16.mxu0 0
        %1341 = vmatpush1.bf16.xpose.msra.mxu0 0
        %1342 = vmatprep.subr.bf16.mxu0 0
        %1343 = vmatpush1.bf16.xpose.msra.mxu0 0
        %1344 = vmatprep.subr.bf16.mxu0 0
        %1345 = vmatpush1.bf16.xpose.msra.mxu0 0
        %1346 = vmatprep.subr.bf16.mxu0 0
        %1347 = vmatpush1.bf16.xpose.msra.mxu0 0
        %1348 = vmatprep.subr.bf16.mxu0 0
        %1349 = vmatpush1.bf16.xpose.msra.mxu0 0
        %1350 = vmatprep.subr.bf16.mxu0 0
        %1351 = vmatpush1.bf16.xpose.msra.mxu0 0
        %1352 = vmatprep.mubr.bf16.mxu0 0
        %1353 = vmatmul.mubr.bf16.gmra.mrb[0].mxu0 %v1315
        %v1354 = vpop.f32.mrb[0].mxu0
        %v1355 = vadd.f32 0.0, %v1354
        %v1356 = vpop.f32.mrb[0].mxu0
        %v1357 = vpop.f32.mrb[0].mxu0
        %v1358 = vpop.f32.mrb[0].mxu0
        %1359 = vdwg.mxu0
        %v1361 = vsel %vm1221, %v920, 0
        %v1364 = vsel %vm1221, %v1070, 0
        %1366 = vmatprep.subr.bf16.mxu0 0
        %1367 = vmatpush1.bf16.xpose.msra.mxu0 %v1364
        %1368 = vmatprep.subr.bf16.mxu0 0
        %1369 = vmatpush1.bf16.xpose.msra.mxu0 0
        %1370 = vmatprep.subr.bf16.mxu0 0
        %1371 = vmatpush1.bf16.xpose.msra.mxu0 0
        %1372 = vmatprep.subr.bf16.mxu0 0
        %1373 = vmatpush1.bf16.xpose.msra.mxu0 0
        %1374 = vmatprep.subr.bf16.mxu0 0
        %1375 = vmatpush1.bf16.xpose.msra.mxu0 0
        %1376 = vmatprep.subr.bf16.mxu0 0
        %1377 = vmatpush1.bf16.xpose.msra.mxu0 0
        %1378 = vmatprep.subr.bf16.mxu0 0
        %1379 = vmatpush1.bf16.xpose.msra.mxu0 0
        %1380 = vmatprep.subr.bf16.mxu0 0
        %1381 = vmatpush1.bf16.xpose.msra.mxu0 0
        %1382 = vmatprep.subr.bf16.mxu0 0
        %1383 = vmatpush1.bf16.xpose.msra.mxu0 0
        %1384 = vmatprep.subr.bf16.mxu0 0
        %1385 = vmatpush1.bf16.xpose.msra.mxu0 0
        %1386 = vmatprep.subr.bf16.mxu0 0
        %1387 = vmatpush1.bf16.xpose.msra.mxu0 0
        %1388 = vmatprep.subr.bf16.mxu0 0
        %1389 = vmatpush1.bf16.xpose.msra.mxu0 0
        %1390 = vmatprep.subr.bf16.mxu0 0
        %1391 = vmatpush1.bf16.xpose.msra.mxu0 0
        %1392 = vmatprep.subr.bf16.mxu0 0
        %1393 = vmatpush1.bf16.xpose.msra.mxu0 0
        %1394 = vmatprep.subr.bf16.mxu0 0
        %1395 = vmatpush1.bf16.xpose.msra.mxu0 0
        %1396 = vmatprep.subr.bf16.mxu0 0
        %1397 = vmatpush1.bf16.xpose.msra.mxu0 0
        %1398 = vmatprep.mubr.bf16.mxu0 0
        %1399 = vmatmul.mubr.bf16.gmra.mrb[0].mxu0 %v1361
        %v1400 = vpop.f32.mrb[0].mxu0
        %v1401 = vadd.f32 0.0, %v1400
        %v1402 = vpop.f32.mrb[0].mxu0
        %v1403 = vpop.f32.mrb[0].mxu0
        %v1404 = vpop.f32.mrb[0].mxu0
        %1405 = vdwg.mxu0
        %v1406 = vmul.f32 %v1263, 0.17677669
        %v1407 = vmul.f32 %v1309, 0.17677669
        %v1408 = vmul.f32 %v1355, 0.17677669
        %v1409 = vmul.f32 %v1401, 0.17677669
        %v1410 = vadd.f32 %v1406, %v770
        %v1411 = vadd.f32 %v1407, %v770
        %v1412 = vadd.f32 %v1408, %v770
        %v1413 = vadd.f32 %v1409, %v770
        %vm1414 = vcmask 64512
        %v1415 = vsel %vm1414, %v1410, -inf
        %1416 = vmax.xlane.f32.xlu0 %v1415
        %v1417 = vpop.xlane.xlu0 %1416
        %v1418 = vsel %vm1414, %v1411, -inf
        %1419 = vmax.xlane.f32.xlu0 %v1418
        %v1420 = vpop.xlane.xlu0 %1419
        %v1421 = vsel %vm1414, %v1412, -inf
        %1422 = vmax.xlane.f32.xlu0 %v1421
        %v1423 = vpop.xlane.xlu0 %1422
        %v1424 = vsel %vm1414, %v1413, -inf
        %1425 = vmax.xlane.f32.xlu0 %v1424
        %v1426 = vpop.xlane.xlu0 %1425
        %v1427 = vsub.f32 %v1410, %v1417
        %v1428 = vsub.f32 %v1411, %v1420
        %v1429 = vsub.f32 %v1412, %v1423
        %v1430 = vsub.f32 %v1413, %v1426
        %v1431 = vmul.f32 %v1427, 1.442695
        %v1432 = vpow.pop %v1431
        %v1433 = vmul.f32 %v1428, 1.442695
        %v1434 = vpow.pop %v1433
        %v1435 = vmul.f32 %v1429, 1.442695
        %v1436 = vpow.pop %v1435
        %v1437 = vmul.f32 %v1430, 1.442695
        %v1438 = vpow.pop %v1437
        %v1439 = vsel %vm1414, %v1432, 0.0
        %1440 = vadd.xlane.f32.xlu0 %v1439
        %v1441 = vpop.xlane.xlu0 %1440
        %v1442 = vsel %vm1414, %v1434, 0.0
        %1443 = vadd.xlane.f32.xlu0 %v1442
        %v1444 = vpop.xlane.xlu0 %1443
        %v1445 = vsel %vm1414, %v1436, 0.0
        %1446 = vadd.xlane.f32.xlu0 %v1445
        %v1447 = vpop.xlane.xlu0 %1446
        %v1448 = vsel %vm1414, %v1438, 0.0
        %1449 = vadd.xlane.f32.xlu0 %v1448
        %v1450 = vpop.xlane.xlu0 %1449
        %v1451 = vmax.f32 %v1441, 1e-20
        %v1452 = vmax.f32 %v1444, 1e-20
        %v1453 = vmax.f32 %v1447, 1e-20
        %v1454 = vmax.f32 %v1450, 1e-20
        %v1455 = vrcp.pop %v1451
        %v1456 = vrcp.pop %v1452
        %v1457 = vrcp.pop %v1453
        %v1458 = vrcp.pop %v1454
        %v1459 = vmul.f32 %v1432, %v1455
        %v1460 = vmul.f32 %v1434, %v1456
        %v1461 = vmul.f32 %v1436, %v1457
        %v1462 = vmul.f32 %v1438, %v1458
        %v1463 = vpack.c.bf16 %v1459, %v1459
        %v1464 = vpack.c.bf16 %v1460, %v1460
        %v1465 = vpack.c.bf16 %v1461, %v1461
        %v1466 = vpack.c.bf16 %v1462, %v1462
        %v1468 = vsel %vm1414, %v1463, 0
        %vm1470 = vcmask 1043456
        %v1472 = vsel %vm1470, %v1217, 0
        %1474 = vmatprep.subr.bf16.mxu0 0
        %1475 = vmatpush1.bf16.msra.mxu0 %v1472
        %1476 = vmatprep.subr.bf16.mxu0 0
        %1477 = vmatpush1.bf16.msra.mxu0 0
        %1478 = vmatprep.subr.bf16.mxu0 0
        %1479 = vmatpush1.bf16.msra.mxu0 0
        %1480 = vmatprep.subr.bf16.mxu0 0
        %1481 = vmatpush1.bf16.msra.mxu0 0
        %1482 = vmatprep.subr.bf16.mxu0 0
        %1483 = vmatpush1.bf16.msra.mxu0 0
        %1484 = vmatprep.subr.bf16.mxu0 0
        %1485 = vmatpush1.bf16.msra.mxu0 0
        %1486 = vmatprep.subr.bf16.mxu0 0
        %1487 = vmatpush1.bf16.msra.mxu0 0
        %1488 = vmatprep.subr.bf16.mxu0 0
        %1489 = vmatpush1.bf16.msra.mxu0 0
        %1490 = vmatprep.subr.bf16.mxu0 0
        %1491 = vmatpush1.bf16.msra.mxu0 0
        %1492 = vmatprep.subr.bf16.mxu0 0
        %1493 = vmatpush1.bf16.msra.mxu0 0
        %1494 = vmatprep.subr.bf16.mxu0 0
        %1495 = vmatpush1.bf16.msra.mxu0 0
        %1496 = vmatprep.subr.bf16.mxu0 0
        %1497 = vmatpush1.bf16.msra.mxu0 0
        %1498 = vmatprep.subr.bf16.mxu0 0
        %1499 = vmatpush1.bf16.msra.mxu0 0
        %1500 = vmatprep.subr.bf16.mxu0 0
        %1501 = vmatpush1.bf16.msra.mxu0 0
        %1502 = vmatprep.subr.bf16.mxu0 0
        %1503 = vmatpush1.bf16.msra.mxu0 0
        %1504 = vmatprep.subr.bf16.mxu0 0
        %1505 = vmatpush1.bf16.msra.mxu0 0
        %1506 = vmatprep.mubr.bf16.mxu0 0
        %1507 = vmatmul.mubr.bf16.gmra.mrb[0].mxu0 %v1468
        %v1508 = vpop.f32.mrb[0].mxu0
        %v1509 = vadd.f32 0.0, %v1508
        %v1510 = vpop.f32.mrb[0].mxu0
        %v1511 = vpop.f32.mrb[0].mxu0
        %v1512 = vpop.f32.mrb[0].mxu0
        %1513 = vdwg.mxu0
        %v1515 = vsel %vm1414, %v1464, 0
        %v1518 = vsel %vm1470, %v1218, 0
        %1520 = vmatprep.subr.bf16.mxu0 0
        %1521 = vmatpush1.bf16.msra.mxu0 %v1518
        %1522 = vmatprep.subr.bf16.mxu0 0
        %1523 = vmatpush1.bf16.msra.mxu0 0
        %1524 = vmatprep.subr.bf16.mxu0 0
        %1525 = vmatpush1.bf16.msra.mxu0 0
        %1526 = vmatprep.subr.bf16.mxu0 0
        %1527 = vmatpush1.bf16.msra.mxu0 0
        %1528 = vmatprep.subr.bf16.mxu0 0
        %1529 = vmatpush1.bf16.msra.mxu0 0
        %1530 = vmatprep.subr.bf16.mxu0 0
        %1531 = vmatpush1.bf16.msra.mxu0 0
        %1532 = vmatprep.subr.bf16.mxu0 0
        %1533 = vmatpush1.bf16.msra.mxu0 0
        %1534 = vmatprep.subr.bf16.mxu0 0
        %1535 = vmatpush1.bf16.msra.mxu0 0
        %1536 = vmatprep.subr.bf16.mxu0 0
        %1537 = vmatpush1.bf16.msra.mxu0 0
        %1538 = vmatprep.subr.bf16.mxu0 0
        %1539 = vmatpush1.bf16.msra.mxu0 0
        %1540 = vmatprep.subr.bf16.mxu0 0
        %1541 = vmatpush1.bf16.msra.mxu0 0
        %1542 = vmatprep.subr.bf16.mxu0 0
        %1543 = vmatpush1.bf16.msra.mxu0 0
        %1544 = vmatprep.subr.bf16.mxu0 0
        %1545 = vmatpush1.bf16.msra.mxu0 0
        %1546 = vmatprep.subr.bf16.mxu0 0
        %1547 = vmatpush1.bf16.msra.mxu0 0
        %1548 = vmatprep.subr.bf16.mxu0 0
        %1549 = vmatpush1.bf16.msra.mxu0 0
        %1550 = vmatprep.subr.bf16.mxu0 0
        %1551 = vmatpush1.bf16.msra.mxu0 0
        %1552 = vmatprep.mubr.bf16.mxu0 0
        %1553 = vmatmul.mubr.bf16.gmra.mrb[0].mxu0 %v1515
        %v1554 = vpop.f32.mrb[0].mxu0
        %v1555 = vadd.f32 0.0, %v1554
        %v1556 = vpop.f32.mrb[0].mxu0
        %v1557 = vpop.f32.mrb[0].mxu0
        %v1558 = vpop.f32.mrb[0].mxu0
        %1559 = vdwg.mxu0
        %v1561 = vsel %vm1414, %v1465, 0
        %v1564 = vsel %vm1470, %v1219, 0
        %1566 = vmatprep.subr.bf16.mxu0 0
        %1567 = vmatpush1.bf16.msra.mxu0 %v1564
        %1568 = vmatprep.subr.bf16.mxu0 0
        %1569 = vmatpush1.bf16.msra.mxu0 0
        %1570 = vmatprep.subr.bf16.mxu0 0
        %1571 = vmatpush1.bf16.msra.mxu0 0
        %1572 = vmatprep.subr.bf16.mxu0 0
        %1573 = vmatpush1.bf16.msra.mxu0 0
        %1574 = vmatprep.subr.bf16.mxu0 0
        %1575 = vmatpush1.bf16.msra.mxu0 0
        %1576 = vmatprep.subr.bf16.mxu0 0
        %1577 = vmatpush1.bf16.msra.mxu0 0
        %1578 = vmatprep.subr.bf16.mxu0 0
        %1579 = vmatpush1.bf16.msra.mxu0 0
        %1580 = vmatprep.subr.bf16.mxu0 0
        %1581 = vmatpush1.bf16.msra.mxu0 0
        %1582 = vmatprep.subr.bf16.mxu0 0
        %1583 = vmatpush1.bf16.msra.mxu0 0
        %1584 = vmatprep.subr.bf16.mxu0 0
        %1585 = vmatpush1.bf16.msra.mxu0 0
        %1586 = vmatprep.subr.bf16.mxu0 0
        %1587 = vmatpush1.bf16.msra.mxu0 0
        %1588 = vmatprep.subr.bf16.mxu0 0
        %1589 = vmatpush1.bf16.msra.mxu0 0
        %1590 = vmatprep.subr.bf16.mxu0 0
        %1591 = vmatpush1.bf16.msra.mxu0 0
        %1592 = vmatprep.subr.bf16.mxu0 0
        %1593 = vmatpush1.bf16.msra.mxu0 0
        %1594 = vmatprep.subr.bf16.mxu0 0
        %1595 = vmatpush1.bf16.msra.mxu0 0
        %1596 = vmatprep.subr.bf16.mxu0 0
        %1597 = vmatpush1.bf16.msra.mxu0 0
        %1598 = vmatprep.mubr.bf16.mxu0 0
        %1599 = vmatmul.mubr.bf16.gmra.mrb[0].mxu0 %v1561
        %v1600 = vpop.f32.mrb[0].mxu0
        %v1601 = vadd.f32 0.0, %v1600
        %v1602 = vpop.f32.mrb[0].mxu0
        %v1603 = vpop.f32.mrb[0].mxu0
        %v1604 = vpop.f32.mrb[0].mxu0
        %1605 = vdwg.mxu0
        %v1607 = vsel %vm1414, %v1466, 0
        %v1610 = vsel %vm1470, %v1220, 0
        %1612 = vmatprep.subr.bf16.mxu0 0
        %1613 = vmatpush1.bf16.msra.mxu0 %v1610
        %1614 = vmatprep.subr.bf16.mxu0 0
        %1615 = vmatpush1.bf16.msra.mxu0 0
        %1616 = vmatprep.subr.bf16.mxu0 0
        %1617 = vmatpush1.bf16.msra.mxu0 0
        %1618 = vmatprep.subr.bf16.mxu0 0
        %1619 = vmatpush1.bf16.msra.mxu0 0
        %1620 = vmatprep.subr.bf16.mxu0 0
        %1621 = vmatpush1.bf16.msra.mxu0 0
        %1622 = vmatprep.subr.bf16.mxu0 0
        %1623 = vmatpush1.bf16.msra.mxu0 0
        %1624 = vmatprep.subr.bf16.mxu0 0
        %1625 = vmatpush1.bf16.msra.mxu0 0
        %1626 = vmatprep.subr.bf16.mxu0 0
        %1627 = vmatpush1.bf16.msra.mxu0 0
        %1628 = vmatprep.subr.bf16.mxu0 0
        %1629 = vmatpush1.bf16.msra.mxu0 0
        %1630 = vmatprep.subr.bf16.mxu0 0
        %1631 = vmatpush1.bf16.msra.mxu0 0
        %1632 = vmatprep.subr.bf16.mxu0 0
        %1633 = vmatpush1.bf16.msra.mxu0 0
        %1634 = vmatprep.subr.bf16.mxu0 0
        %1635 = vmatpush1.bf16.msra.mxu0 0
        %1636 = vmatprep.subr.bf16.mxu0 0
        %1637 = vmatpush1.bf16.msra.mxu0 0
        %1638 = vmatprep.subr.bf16.mxu0 0
        %1639 = vmatpush1.bf16.msra.mxu0 0
        %1640 = vmatprep.subr.bf16.mxu0 0
        %1641 = vmatpush1.bf16.msra.mxu0 0
        %1642 = vmatprep.subr.bf16.mxu0 0
        %1643 = vmatpush1.bf16.msra.mxu0 0
        %1644 = vmatprep.mubr.bf16.mxu0 0
        %1645 = vmatmul.mubr.bf16.gmra.mrb[0].mxu0 %v1607
        %v1646 = vpop.f32.mrb[0].mxu0
        %v1647 = vadd.f32 0.0, %v1646
        %v1648 = vpop.f32.mrb[0].mxu0
        %v1649 = vpop.f32.mrb[0].mxu0
        %v1650 = vpop.f32.mrb[0].mxu0
        %1651 = vdwg.mxu0
        %v1652 = vcombine.low %v1509, %v1601
        %v1653 = vcombine.high %v1509, %v1601
        %v1655 = vunpack.c.l.s4 1983009808
        %v1656 = vunpack.c.0.s8 %v1655
        %v1657 = vlaneseq
        %v1658 = vshrl.u32 %v1657, 7
        %v1659 = vsub.s32 %v1656, %v1658
        %v1660 = vrot.slane %v1652, %v1659
        %v1662 = vunpack.c.l.s4 1983009808
        %v1663 = vunpack.c.0.s8 %v1662
        %v1664 = vlaneseq
        %v1665 = vshrl.u32 %v1664, 7
        %v1666 = vsub.s32 %v1663, %v1665
        %v1667 = vrot.slane %v1653, %v1666
        %v1668 = vcombine.low %v1555, %v1647
        %v1669 = vcombine.high %v1555, %v1647
        %v1671 = vunpack.c.l.s4 1983009808
        %v1672 = vunpack.c.0.s8 %v1671
        %v1673 = vlaneseq
        %v1674 = vshrl.u32 %v1673, 7
        %v1675 = vsub.s32 %v1672, %v1674
        %v1676 = vrot.slane %v1668, %v1675
        %v1678 = vunpack.c.l.s4 1983009808
        %v1679 = vunpack.c.0.s8 %v1678
        %v1680 = vlaneseq
        %v1681 = vshrl.u32 %v1680, 7
        %v1682 = vsub.s32 %v1679, %v1681
        %v1683 = vrot.slane %v1669, %v1682
        %v1684 = vcombine.low %v1660, %v1676
        %v1685 = vcombine.high %v1660, %v1676
        %v1687 = vunpack.c.l.s4 1934713408
        %v1688 = vunpack.c.0.s8 %v1687
        %v1689 = vlaneseq
        %v1690 = vshrl.u32 %v1689, 7
        %v1691 = vsub.s32 %v1688, %v1690
        %v1692 = vrot.slane %v1684, %v1691
        %v1694 = vunpack.c.l.s4 1934713408
        %v1695 = vunpack.c.0.s8 %v1694
        %v1696 = vlaneseq
        %v1697 = vshrl.u32 %v1696, 7
        %v1698 = vsub.s32 %v1695, %v1697
        %v1699 = vrot.slane %v1685, %v1698
        %v1700 = vcombine.low %v1667, %v1683
        %v1701 = vcombine.high %v1667, %v1683
        %v1703 = vunpack.c.l.s4 1934713408
        %v1704 = vunpack.c.0.s8 %v1703
        %v1705 = vlaneseq
        %v1706 = vshrl.u32 %v1705, 7
        %v1707 = vsub.s32 %v1704, %v1706
        %v1708 = vrot.slane %v1700, %v1707
        %v1710 = vunpack.c.l.s4 1934713408
        %v1711 = vunpack.c.0.s8 %v1710
        %v1712 = vlaneseq
        %v1713 = vshrl.u32 %v1712, 7
        %v1714 = vsub.s32 %v1711, %v1713
        %v1715 = vrot.slane %v1701, %v1714
        %v1716 = vcombine.high %v1692, 0.0
        %v1717 = vcombine.high %v1699, 0.0
        %v1718 = vcombine.high %v1708, 0.0
        %v1719 = vcombine.high %v1715, 0.0
        %v1720 = vcombine.low %v1692, %v1699
        %v1722 = vunpack.c.l.s4 1983009808
        %v1723 = vunpack.c.0.s8 %v1722
        %v1724 = vlaneseq
        %v1725 = vshrl.u32 %v1724, 7
        %v1726 = vsub.s32 %v1723, %v1725
        %v1727 = vrot.slane %v1720, %v1726
        %v1728 = vcombine.low %v1716, %v1717
        %v1730 = vunpack.c.l.s4 1983009808
        %v1731 = vunpack.c.0.s8 %v1730
        %v1732 = vlaneseq
        %v1733 = vshrl.u32 %v1732, 7
        %v1734 = vsub.s32 %v1731, %v1733
        %v1735 = vrot.slane %v1728, %v1734
        %v1736 = vcombine.low %v1708, %v1715
        %v1738 = vunpack.c.l.s4 1983009808
        %v1739 = vunpack.c.0.s8 %v1738
        %v1740 = vlaneseq
        %v1741 = vshrl.u32 %v1740, 7
        %v1742 = vsub.s32 %v1739, %v1741
        %v1743 = vrot.slane %v1736, %v1742
        %v1744 = vcombine.low %v1718, %v1719
        %v1746 = vunpack.c.l.s4 1983009808
        %v1747 = vunpack.c.0.s8 %v1746
        %v1748 = vlaneseq
        %v1749 = vshrl.u32 %v1748, 7
        %v1750 = vsub.s32 %v1747, %v1749
        %v1751 = vrot.slane %v1744, %v1750
        %v1752 = vcombine.low %v1727, %v1735
        %v1753 = vcombine.high %v1727, %v1735
        %v1755 = vunpack.c.l.s4 1934713408
        %v1756 = vunpack.c.0.s8 %v1755
        %v1757 = vlaneseq
        %v1758 = vshrl.u32 %v1757, 7
        %v1759 = vsub.s32 %v1756, %v1758
        %v1760 = vrot.slane %v1752, %v1759
        %v1762 = vunpack.c.l.s4 1934713408
        %v1763 = vunpack.c.0.s8 %v1762
        %v1764 = vlaneseq
        %v1765 = vshrl.u32 %v1764, 7
        %v1766 = vsub.s32 %v1763, %v1765
        %v1767 = vrot.slane %v1753, %v1766
        %v1768 = vcombine.low %v1743, %v1751
        %v1769 = vcombine.high %v1743, %v1751
        %v1771 = vunpack.c.l.s4 1934713408
        %v1772 = vunpack.c.0.s8 %v1771
        %v1773 = vlaneseq
        %v1774 = vshrl.u32 %v1773, 7
        %v1775 = vsub.s32 %v1772, %v1774
        %v1776 = vrot.slane %v1768, %v1775
        %v1778 = vunpack.c.l.s4 1934713408
        %v1779 = vunpack.c.0.s8 %v1778
        %v1780 = vlaneseq
        %v1781 = vshrl.u32 %v1780, 7
        %v1782 = vsub.s32 %v1779, %v1781
        %v1783 = vrot.slane %v1769, %v1782
        %v1784 = vcombine.low %v1760, %v1776
        %v1785 = vcombine.high %v1760, %v1776
        %v1786 = vcombine.low %v1767, %v1783
        %v1787 = vcombine.high %v1767, %v1783
        %1789 = vrot.lane.b32.xlu0 %v1785, 32
        %v1790 = vpop.permute.xlu0 %1789
        %1793 = vrot.lane.b32.xlu0 %v1786, 64
        %v1794 = vpop.permute.xlu0 %1793
        %1797 = vrot.lane.b32.xlu0 %v1787, 96
        %v1798 = vpop.permute.xlu0 %1797
        %v1800 = vsel %vm1221, %v1784, %v1790
        %vm1801 = vcmask 523264
        %v1802 = vsel %vm1801, %v1800, %v1794
        %vm1803 = vcmask 785408
        %v1804 = vsel %vm1803, %v1802, %v1798
        %v1805 = vpack.c.bf16 %v1804, %v1804
        %v1806 = vld [vmem:[#allocation11] sm:$0xf]
        %v1807 = vld [vmem:[#allocation11 + $0x4] sm:$0xf]
        %v1808 = vld [vmem:[#allocation11 + $0x8] sm:$0xf]
        %v1809 = vld [vmem:[#allocation11 + $0xc] sm:$0xf]
        %v1810 = vld [vmem:[#allocation11 + $0x10] sm:$0xf]
        %v1811 = vld [vmem:[#allocation11 + $0x14] sm:$0xf]
        %v1812 = vld [vmem:[#allocation11 + $0x18] sm:$0xf]
        %v1813 = vld [vmem:[#allocation11 + $0x1c] sm:$0xf]
        %v1814 = vld [vmem:[#allocation11 + $0x20] sm:$0xf]
        %v1815 = vld [vmem:[#allocation11 + $0x24] sm:$0xf]
        %v1816 = vld [vmem:[#allocation11 + $0x28] sm:$0xf]
        %v1817 = vld [vmem:[#allocation11 + $0x2c] sm:$0xf]
        %v1818 = vld [vmem:[#allocation11 + $0x30] sm:$0xf]
        %v1819 = vld [vmem:[#allocation11 + $0x34] sm:$0xf]
        %v1820 = vld [vmem:[#allocation11 + $0x38] sm:$0xf]
        %v1821 = vld [vmem:[#allocation11 + $0x3c] sm:$0xf]
        %v1822 = vld [vmem:[#allocation13] sm:$0x1]
        %v1824 = vlaneseq
        %v1825 = vshrl.u32 %v1824, 7
        %v1826 = vsub.s32 0, %v1825
        %v1827 = vrot.slane %v1822, %v1826
        %v1845 = vunpack.c.l.b16 %v1806
        %v1846 = vunpack.c.l.b16 %v1807
        %v1847 = vunpack.c.l.b16 %v1808
        %v1848 = vunpack.c.l.b16 %v1809
        %v1849 = vunpack.c.l.b16 %v1810
        %v1850 = vunpack.c.l.b16 %v1811
        %v1851 = vunpack.c.l.b16 %v1812
        %v1852 = vunpack.c.l.b16 %v1813
        %v1853 = vunpack.c.l.b16 %v1814
        %v1854 = vunpack.c.l.b16 %v1815
        %v1855 = vunpack.c.l.b16 %v1816
        %v1856 = vunpack.c.l.b16 %v1817
        %v1857 = vunpack.c.l.b16 %v1818
        %v1858 = vunpack.c.l.b16 %v1819
        %v1859 = vunpack.c.l.b16 %v1820
        %v1860 = vunpack.c.l.b16 %v1821
        %v1861 = vpack.c.b16 %v1846, %v1845
        %v1862 = vpack.c.b16 %v1848, %v1847
        %v1863 = vpack.c.b16 %v1850, %v1849
        %v1864 = vpack.c.b16 %v1852, %v1851
        %v1865 = vpack.c.b16 %v1854, %v1853
        %v1866 = vpack.c.b16 %v1856, %v1855
        %v1867 = vpack.c.b16 %v1858, %v1857
        %v1868 = vpack.c.b16 %v1860, %v1859
        %1877 = vmatprep.subr.bf16.mxu0 0
        %1878 = vmatpush1.bf16.msra.mxu0 %v1861
        %1879 = vmatprep.subr.bf16.mxu0 0
        %1880 = vmatpush1.bf16.msra.mxu0 %v1862
        %1881 = vmatprep.subr.bf16.mxu0 0
        %1882 = vmatpush1.bf16.msra.mxu0 %v1863
        %1883 = vmatprep.subr.bf16.mxu0 0
        %1884 = vmatpush1.bf16.msra.mxu0 %v1864
        %1885 = vmatprep.subr.bf16.mxu0 0
        %1886 = vmatpush1.bf16.msra.mxu0 %v1865
        %1887 = vmatprep.subr.bf16.mxu0 0
        %1888 = vmatpush1.bf16.msra.mxu0 %v1866
        %1889 = vmatprep.subr.bf16.mxu0 0
        %1890 = vmatpush1.bf16.msra.mxu0 %v1867
        %1891 = vmatprep.subr.bf16.mxu0 0
        %1892 = vmatpush1.bf16.msra.mxu0 %v1868
        %1893 = vmatprep.subr.bf16.mxu0 0
        %1894 = vmatpush1.bf16.msra.mxu0 0
        %1895 = vmatprep.subr.bf16.mxu0 0
        %1896 = vmatpush1.bf16.msra.mxu0 0
        %1897 = vmatprep.subr.bf16.mxu0 0
        %1898 = vmatpush1.bf16.msra.mxu0 0
        %1899 = vmatprep.subr.bf16.mxu0 0
        %1900 = vmatpush1.bf16.msra.mxu0 0
        %1901 = vmatprep.subr.bf16.mxu0 0
        %1902 = vmatpush1.bf16.msra.mxu0 0
        %1903 = vmatprep.subr.bf16.mxu0 0
        %1904 = vmatpush1.bf16.msra.mxu0 0
        %1905 = vmatprep.subr.bf16.mxu0 0
        %1906 = vmatpush1.bf16.msra.mxu0 0
        %1907 = vmatprep.subr.bf16.mxu0 0
        %1908 = vmatpush1.bf16.msra.mxu0 0
        %1909 = vmatprep.mubr.bf16.mxu0 0
        %1910 = vmatmul.mubr.bf16.gmra.mrb[0].mxu0 %v1805
        %v1911 = vpop.f32.mrb[0].mxu0
        %v1912 = vadd.f32 %v1827, %v1911
        %v1913 = vpop.f32.mrb[0].mxu0
        %v1914 = vpop.f32.mrb[0].mxu0
        %v1915 = vpop.f32.mrb[0].mxu0
        %1916 = vdwg.mxu0
        %v1917 = vadd.f32 %v497, %v1912
        %v1918 = vld [vmem:[#allocation14] sm:$0x1]
        %v1919 = vld [vmem:[#allocation16] sm:$0x1]
        %1920 = vadd.xlane.f32.xlu0 %v1917
        %v1921 = vpop.xlane.xlu0 %1920
        %v1922 = vrcp.pop 128.0
        %v1923 = vmul.f32 %v1921, %v1922
        %v1924 = vsub.f32 %v1917, %v1923
        %v1925 = vmul.f32 %v1924, %v1924
        %1926 = vadd.xlane.f32.xlu0 %v1925
        %v1927 = vpop.xlane.xlu0 %1926
        %v1928 = vmul.f32 %v1927, %v1922
        %v1929 = vadd.f32 %v1928, 1e-05
        %v1930 = vrsqrt.pop %v1929
        %v1931 = vmul.f32 %v1924, %v1930
        %v1933 = vlaneseq
        %v1934 = vshrl.u32 %v1933, 7
        %v1935 = vsub.s32 0, %v1934
        %v1936 = vrot.slane %v1918, %v1935
        %v1938 = vmul.f32 %v1931, %v1936
        %v1940 = vlaneseq
        %v1941 = vshrl.u32 %v1940, 7
        %v1942 = vsub.s32 0, %v1941
        %v1943 = vrot.slane %v1919, %v1942
        %v1945 = vadd.f32 %v1938, %v1943
        %v1946 = vpack.c.bf16 %v1945, %v1945
        %1947 = vst [vmem:[%s494] sm:$0xf] %v1946
        %s1948 = sand.u32 %s244, 1
        %s1949 = scalar_lea.sflag [#allocation4], %s1948
        %s1950 = sand.u32 %s244, 1
        %s1951 = smul.addr %s1950, 4
        %s1952 = scalar_lea.vmem [#allocation17], %s1951
        // Predicated region
        $region93: #{transformer_forward.15} parent=55 // pred_check
          %p1953 = pneg %p254
        $region94: #{transformer_forward.15} parent=55 // pred_check_branch
          %1955 = sbr.rel (%p1953) target = $region96
        $region95: #{transformer_forward.15} parent=55 // pred_region
          %s1957 = ssub.s32 64, 64
          %1958 = vsyncadd %s1949, %s1957
          %s1959 = smul.addr %s32, 64
          %s1960 = scalar_lea.hbm %s9, %s1959
          %s1962 = sshll.u32 %s1952, 4
          %s1963 = int_to_ptr.vmem [resolvable:$true] %s1962
          %1965 = dma.vmem_to_hbm [thread:$0]  %s1963, 64, %s1960, %s1949
        $region96: #{transformer_forward.15} parent=55 // pred_fallthru
          _
      $region56: #{transformer_forward.15} parent=5 // pred_fallthru
        _
      %p1966 = scmp.le.s32.totalorder 2, %s27
      // Predicated region
      $region97: #{transformer_forward.15} parent=5 // pred_check
        %p1967 = pneg %p1966
      $region98: #{transformer_forward.15} parent=5 // pred_check_branch
        %1969 = sbr.rel (%p1967) target = $region100
      $region99: #{transformer_forward.15} parent=5 // pred_region
        %s1970 = ssub.s32 %s27, 2
        // Predicated region
        $region101: #{transformer_forward.15} parent=99 // pred_check
          %p1971 = pneg %p260
        $region102: #{transformer_forward.15} parent=99 // pred_check_branch
          %1973 = sbr.rel (%p1971) target = $region104
        $region103: #{transformer_forward.15} parent=99 // pred_region
          %s1974 = sand.u32 %s245, 1
          %s1975 = scalar_lea.sflag [#allocation4], %s1974
          %s1976 = sand.u32 %s245, 1
          %s1977 = smul.addr %s1976, 4
          %s1978 = scalar_lea.vmem [#allocation17], %s1977
          %1979 = dma.done %s1975, 64
        $region104: #{transformer_forward.15} parent=99 // pred_fallthru
          _
      $region100: #{transformer_forward.15} parent=5 // pred_fallthru
        _
    $region6: #{transformer_forward.15} parent=1 // loop_footer
      %s31 = sadd.s32 1, %s27
    $region7: #{transformer_forward.15} parent=1 // loop_footer_branch
      %26 = sbr.rel target = $region3
    $region8: #{transformer_forward.15} parent=1 // loop_exit
      _
    %1980 = vsyncpa [#allocation3], 1
    %s1981 = scalar_lea.sflag [#allocation3], 1
    %1982 = vsyncpa %s1981, 1
    %1983 = vsyncpa [#allocation6], 1
    %s1984 = scalar_lea.sflag [#allocation6], 1
    %1985 = vsyncpa %s1984, 1
    %1986 = vsyncpa [#allocation9], 1
    %1987 = vsyncpa [#allocation12], 1
    %1988 = vsyncpa [#allocation15], 1
    %1989 = vsyncpa [#allocation4], 1
    %s1990 = scalar_lea.sflag [#allocation4], 1
    %1991 = vsyncpa %s1990, 1

// kernel: transformer_forward.16
$region0: #{transformer_forward.16}
  #allocation0 [shape = 'u32[]', space=smem, size = 0x4, offset = 0x4, fixed_abs, tag = 'smem constant byte address 0x4 - core index']
  #allocation1 [shape = 'u32[144,128]{1,0:T(1,128)}', space=vmem, size = 0x12000, scoped, tag = 'internal scratch']
  %s0 = inlined_call_operand.hbm [shape: bf16[2,8,128], index: 0, kind: input, shape index: {}]
  %s1 = inlined_call_operand.hbm [shape: bf16[2,8,128], index: 1, kind: input, shape index: {}]
  %s2 = inlined_call_operand.hbm [shape: f32[2,1,8], index: 2, kind: input, shape index: {}]
  %s3 = inlined_call_operand.hbm [shape: bf16[128,384], index: 3, kind: input, shape index: {}]
  %s4 = inlined_call_operand.hbm [shape: f32[1,384], index: 4, kind: input, shape index: {}]
  %s5 = inlined_call_operand.hbm [shape: bf16[128,128], index: 5, kind: input, shape index: {}]
  %s6 = inlined_call_operand.hbm [shape: f32[1,128], index: 6, kind: input, shape index: {}]
  %s7 = inlined_call_operand.hbm [shape: f32[1,128], index: 7, kind: input, shape index: {}]
  %s8 = inlined_call_operand.hbm [shape: f32[1,128], index: 8, kind: input, shape index: {}]
  %s9 = inlined_call_operand.hbm [shape: bf16[2,8,128], index: 9, kind: output, shape index: {}]
  %s10 = sld [smem:[#allocation0]]
  $region105: #{transformer_forward.16} parent=0
    _
  %s12 = ssub.s32 1, %s10
  %s13 = scalar_select 0, %s12, %s10
  $region1: #{transformer_forward.16} parent=0
    #allocation2 [shape = 'u8[4096]{0}', space=vmem, size = 0x1000, scoped, tag = 'input window, operand 0']
    #allocation3 [shape = 's32[2]{0}', space=sflag, size = 0x8, scoped, tag = 'scoped memory for transformer_forward.16']
    #allocation4 [shape = 's32[2]{0}', space=sflag, size = 0x8, scoped, tag = 'scoped memory for transformer_forward.16']
    #allocation5 [shape = 'u8[4096]{0}', space=vmem, size = 0x1000, scoped, tag = 'input window, operand 1']
    #allocation6 [shape = 's32[2]{0}', space=sflag, size = 0x8, scoped, tag = 'scoped memory for transformer_forward.16']
    #allocation7 [shape = 'u8[1024]{0}', space=vmem, size = 0x400, scoped, tag = 'input window, operand 2']
    #allocation8 [shape = 'u8[98304]{0}', space=vmem, size = 0x18000, scoped, tag = 'input window, operand 3, single buffered']
    #allocation9 [shape = 's32[1]{0}', space=sflag, size = 0x4, scoped, tag = 'scoped memory for transformer_forward.16']
    #allocation10 [shape = 'u8[1536]{0}', space=vmem, size = 0x800, scoped, tag = 'input window, operand 4, single buffered']
    #allocation11 [shape = 'u8[32768]{0}', space=vmem, size = 0x8000, scoped, tag = 'input window, operand 5, single buffered']
    #allocation12 [shape = 's32[1]{0}', space=sflag, size = 0x4, scoped, tag = 'scoped memory for transformer_forward.16']
    #allocation13 [shape = 'u8[512]{0}', space=vmem, size = 0x400, scoped, tag = 'input window, operand 6, single buffered']
    #allocation14 [shape = 'u8[512]{0}', space=vmem, size = 0x400, scoped, tag = 'input window, operand 7, single buffered']
    #allocation15 [shape = 's32[1]{0}', space=sflag, size = 0x4, scoped, tag = 'scoped memory for transformer_forward.16']
    #allocation16 [shape = 'u8[512]{0}', space=vmem, size = 0x400, scoped, tag = 'input window, operand 8, single buffered']
    #allocation17 [shape = 'u8[4096]{0}', space=vmem, size = 0x1000, scoped, tag = 'output window, operand 0']
    %14 = vsyncpa [#allocation3], 0
    %s15 = scalar_lea.sflag [#allocation3], 1
    %16 = vsyncpa %s15, 0
    %17 = vsyncpa [#allocation6], 0
    %s18 = scalar_lea.sflag [#allocation6], 1
    %19 = vsyncpa %s18, 0
    %20 = vsyncpa [#allocation9], 0
    %21 = vsyncpa [#allocation12], 0
    %22 = vsyncpa [#allocation15], 0
    %23 = vsyncpa [#allocation4], 0
    %s24 = scalar_lea.sflag [#allocation4], 1
    %25 = vsyncpa %s24, 0
    loop: start=0, step=1, limit=4
    $region2: #{transformer_forward.16} parent=1 // loop_pre_header
      _
    $region3: #{transformer_forward.16} parent=1 // loop_header
      %s27 = sphi 0, %s31
      %p28 = scmp.ge.s32.totalorder %s27, 4
      %s37 = sphi 0, %s39
      %s40 = sphi 0, %s37
      %s41 = sphi 0, %s40
      %s57 = sphi 0, %s41
      %s63 = sphi 0, %s65
      %s66 = sphi 0, %s63
      %s67 = sphi 0, %s66
      %s83 = sphi 0, %s67
      %s89 = sphi 0, %s91
      %s92 = sphi 0, %s89
      %s93 = sphi 0, %s92
      %s109 = sphi 0, %s93
      %s113 = sphi 0, %s113
      %s115 = sphi 0, %s113
      %s116 = sphi 0, %s115
      %s130 = sphi 0, %s116
      %s134 = sphi 0, %s134
      %s136 = sphi 0, %s134
      %s137 = sphi 0, %s136
      %s151 = sphi 0, %s137
      %s155 = sphi 0, %s155
      %s157 = sphi 0, %s155
      %s158 = sphi 0, %s157
      %s172 = sphi 0, %s158
      %s176 = sphi 0, %s176
      %s178 = sphi 0, %s176
      %s179 = sphi 0, %s178
      %s193 = sphi 0, %s179
      %s197 = sphi 0, %s197
      %s199 = sphi 0, %s197
      %s200 = sphi 0, %s199
      %s214 = sphi 0, %s200
      %s218 = sphi 0, %s218
      %s220 = sphi 0, %s218
      %s221 = sphi 0, %s220
      %s235 = sphi 0, %s221
      %s241 = sphi 0, %s243
      %s244 = sphi 0, %s241
      %s245 = sphi 0, %s244
      %s261 = sphi 0, %s245
    $region4: #{transformer_forward.16} parent=1 // loop_header_branch
      %30 = sbr.rel (%p28) target = $region8
    $region5: #{transformer_forward.16} parent=1 // loop_body
      %s32 = ssub.s32 %s27, 1
      %s33 = ssub.s32 %s27, 2
      %s34 = sadd.s32 %s27, 1
      %s35 = ssub.s32 %s27, %s34
      %p36 = scmp.eq.s32.totalorder %s35, 0
      %s38 = sadd.s32 %s37, 1
      %s39 = scalar_select %p36, %s37, %s38
      %p42 = pneg %p36
      %p43 = scmp.eq.s32.totalorder %s27, 1
      %p44 = por %p42, %p43
      %p45 = scmp.ne.s32.totalorder %s37, %s40
      %p46 = scmp.eq.s32.totalorder %s27, 0
      %p47 = por %p45, %p46
      %p48 = scmp.ne.s32.totalorder %s37, %s40
      %p49 = scmp.eq.s32.totalorder %s32, 1
      %p50 = por %p48, %p49
      %p51 = scmp.ne.s32.totalorder %s40, %s41
      %p52 = scmp.eq.s32.totalorder %s32, 0
      %p53 = por %p51, %p52
      %p54 = scmp.ne.s32.totalorder %s40, %s41
      %p55 = scmp.eq.s32.totalorder %s33, 1
      %p56 = por %p54, %p55
      %p58 = scmp.ne.s32.totalorder %s41, %s57
      %p59 = scmp.eq.s32.totalorder %s33, 0
      %p60 = por %p58, %p59
      %s61 = ssub.s32 %s27, %s34
      %p62 = scmp.eq.s32.totalorder %s61, 0
      %s64 = sadd.s32 %s63, 1
      %s65 = scalar_select %p62, %s63, %s64
      %p68 = pneg %p62
      %p69 = scmp.eq.s32.totalorder %s27, 1
      %p70 = por %p68, %p69
      %p71 = scmp.ne.s32.totalorder %s63, %s66
      %p72 = scmp.eq.s32.totalorder %s27, 0
      %p73 = por %p71, %p72
      %p74 = scmp.ne.s32.totalorder %s63, %s66
      %p75 = scmp.eq.s32.totalorder %s32, 1
      %p76 = por %p74, %p75
      %p77 = scmp.ne.s32.totalorder %s66, %s67
      %p78 = scmp.eq.s32.totalorder %s32, 0
      %p79 = por %p77, %p78
      %p80 = scmp.ne.s32.totalorder %s66, %s67
      %p81 = scmp.eq.s32.totalorder %s33, 1
      %p82 = por %p80, %p81
      %p84 = scmp.ne.s32.totalorder %s67, %s83
      %p85 = scmp.eq.s32.totalorder %s33, 0
      %p86 = por %p84, %p85
      %s87 = ssub.s32 %s27, %s34
      %p88 = scmp.eq.s32.totalorder %s87, 0
      %s90 = sadd.s32 %s89, 1
      %s91 = scalar_select %p88, %s89, %s90
      %p94 = pneg %p88
      %p95 = scmp.eq.s32.totalorder %s27, 1
      %p96 = por %p94, %p95
      %p97 = scmp.ne.s32.totalorder %s89, %s92
      %p98 = scmp.eq.s32.totalorder %s27, 0
      %p99 = por %p97, %p98
      %p100 = scmp.ne.s32.totalorder %s89, %s92
      %p101 = scmp.eq.s32.totalorder %s32, 1
      %p102 = por %p100, %p101
      %p103 = scmp.ne.s32.totalorder %s92, %s93
      %p104 = scmp.eq.s32.totalorder %s32, 0
      %p105 = por %p103, %p104
      %p106 = scmp.ne.s32.totalorder %s92, %s93
      %p107 = scmp.eq.s32.totalorder %s33, 1
      %p108 = por %p106, %p107
      %p110 = scmp.ne.s32.totalorder %s93, %s109
      %p111 = scmp.eq.s32.totalorder %s33, 0
      %p112 = por %p110, %p111
      %s114 = sadd.s32 %s113, 1
      %p117 = scmp.eq.s32.totalorder %s27, 1
      %p118 = scmp.ne.s32.totalorder %s113, %s115
      %p119 = scmp.eq.s32.totalorder %s27, 0
      %p120 = por %p118, %p119
      %p121 = scmp.ne.s32.totalorder %s113, %s115
      %p122 = scmp.eq.s32.totalorder %s32, 1
      %p123 = por %p121, %p122
      %p124 = scmp.ne.s32.totalorder %s115, %s116
      %p125 = scmp.eq.s32.totalorder %s32, 0
      %p126 = por %p124, %p125
      %p127 = scmp.ne.s32.totalorder %s115, %s116
      %p128 = scmp.eq.s32.totalorder %s33, 1
      %p129 = por %p127, %p128
      %p131 = scmp.ne.s32.totalorder %s116, %s130
      %p132 = scmp.eq.s32.totalorder %s33, 0
      %p133 = por %p131, %p132
      %s135 = sadd.s32 %s134, 1
      %p138 = scmp.eq.s32.totalorder %s27, 1
      %p139 = scmp.ne.s32.totalorder %s134, %s136
      %p140 = scmp.eq.s32.totalorder %s27, 0
      %p141 = por %p139, %p140
      %p142 = scmp.ne.s32.totalorder %s134, %s136
      %p143 = scmp.eq.s32.totalorder %s32, 1
      %p144 = por %p142, %p143
      %p145 = scmp.ne.s32.totalorder %s136, %s137
      %p146 = scmp.eq.s32.totalorder %s32, 0
      %p147 = por %p145, %p146
      %p148 = scmp.ne.s32.totalorder %s136, %s137
      %p149 = scmp.eq.s32.totalorder %s33, 1
      %p150 = por %p148, %p149
      %p152 = scmp.ne.s32.totalorder %s137, %s151
      %p153 = scmp.eq.s32.totalorder %s33, 0
      %p154 = por %p152, %p153
      %s156 = sadd.s32 %s155, 1
      %p159 = scmp.eq.s32.totalorder %s27, 1
      %p160 = scmp.ne.s32.totalorder %s155, %s157
      %p161 = scmp.eq.s32.totalorder %s27, 0
      %p162 = por %p160, %p161
      %p163 = scmp.ne.s32.totalorder %s155, %s157
      %p164 = scmp.eq.s32.totalorder %s32, 1
      %p165 = por %p163, %p164
      %p166 = scmp.ne.s32.totalorder %s157, %s158
      %p167 = scmp.eq.s32.totalorder %s32, 0
      %p168 = por %p166, %p167
      %p169 = scmp.ne.s32.totalorder %s157, %s158
      %p170 = scmp.eq.s32.totalorder %s33, 1
      %p171 = por %p169, %p170
      %p173 = scmp.ne.s32.totalorder %s158, %s172
      %p174 = scmp.eq.s32.totalorder %s33, 0
      %p175 = por %p173, %p174
      %s177 = sadd.s32 %s176, 1
      %p180 = scmp.eq.s32.totalorder %s27, 1
      %p181 = scmp.ne.s32.totalorder %s176, %s178
      %p182 = scmp.eq.s32.totalorder %s27, 0
      %p183 = por %p181, %p182
      %p184 = scmp.ne.s32.totalorder %s176, %s178
      %p185 = scmp.eq.s32.totalorder %s32, 1
      %p186 = por %p184, %p185
      %p187 = scmp.ne.s32.totalorder %s178, %s179
      %p188 = scmp.eq.s32.totalorder %s32, 0
      %p189 = por %p187, %p188
      %p190 = scmp.ne.s32.totalorder %s178, %s179
      %p191 = scmp.eq.s32.totalorder %s33, 1
      %p192 = por %p190, %p191
      %p194 = scmp.ne.s32.totalorder %s179, %s193
      %p195 = scmp.eq.s32.totalorder %s33, 0
      %p196 = por %p194, %p195
      %s198 = sadd.s32 %s197, 1
      %p201 = scmp.eq.s32.totalorder %s27, 1
      %p202 = scmp.ne.s32.totalorder %s197, %s199
      %p203 = scmp.eq.s32.totalorder %s27, 0
      %p204 = por %p202, %p203
      %p205 = scmp.ne.s32.totalorder %s197, %s199
      %p206 = scmp.eq.s32.totalorder %s32, 1
      %p207 = por %p205, %p206
      %p208 = scmp.ne.s32.totalorder %s199, %s200
      %p209 = scmp.eq.s32.totalorder %s32, 0
      %p210 = por %p208, %p209
      %p211 = scmp.ne.s32.totalorder %s199, %s200
      %p212 = scmp.eq.s32.totalorder %s33, 1
      %p213 = por %p211, %p212
      %p215 = scmp.ne.s32.totalorder %s200, %s214
      %p216 = scmp.eq.s32.totalorder %s33, 0
      %p217 = por %p215, %p216
      %s219 = sadd.s32 %s218, 1
      %p222 = scmp.eq.s32.totalorder %s27, 1
      %p223 = scmp.ne.s32.totalorder %s218, %s220
      %p224 = scmp.eq.s32.totalorder %s27, 0
      %p225 = por %p223, %p224
      %p226 = scmp.ne.s32.totalorder %s218, %s220
      %p227 = scmp.eq.s32.totalorder %s32, 1
      %p228 = por %p226, %p227
      %p229 = scmp.ne.s32.totalorder %s220, %s221
      %p230 = scmp.eq.s32.totalorder %s32, 0
      %p231 = por %p229, %p230
      %p232 = scmp.ne.s32.totalorder %s220, %s221
      %p233 = scmp.eq.s32.totalorder %s33, 1
      %p234 = por %p232, %p233
      %p236 = scmp.ne.s32.totalorder %s221, %s235
      %p237 = scmp.eq.s32.totalorder %s33, 0
      %p238 = por %p236, %p237
      %s239 = ssub.s32 %s27, %s34
      %p240 = scmp.eq.s32.totalorder %s239, 0
      %s242 = sadd.s32 %s241, 1
      %s243 = scalar_select %p240, %s241, %s242
      %p246 = pneg %p240
      %p247 = scmp.eq.s32.totalorder %s27, 1
      %p248 = por %p246, %p247
      %p249 = scmp.ne.s32.totalorder %s241, %s244
      %p250 = scmp.eq.s32.totalorder %s27, 0
      %p251 = por %p249, %p250
      %p252 = scmp.ne.s32.totalorder %s241, %s244
      %p253 = scmp.eq.s32.totalorder %s32, 1
      %p254 = por %p252, %p253
      %p255 = scmp.ne.s32.totalorder %s244, %s245
      %p256 = scmp.eq.s32.totalorder %s32, 0
      %p257 = por %p255, %p256
      %p258 = scmp.ne.s32.totalorder %s244, %s245
      %p259 = scmp.eq.s32.totalorder %s33, 1
      %p260 = por %p258, %p259
      %p262 = scmp.ne.s32.totalorder %s245, %s261
      %p263 = scmp.eq.s32.totalorder %s33, 0
      %p264 = por %p262, %p263
      %p265 = scmp.le.s32.totalorder 1, %s27
      %p266 = scmp.lt.s32.totalorder %s27, 3
      %p267 = pnand %p265, %p266
      %p268 = pneg %p267
      // Predicated region
      $region9: #{transformer_forward.16} parent=5 // pred_check
        _
      $region10: #{transformer_forward.16} parent=5 // pred_check_branch
        %270 = sbr.rel (%p267) target = $region12
      $region11: #{transformer_forward.16} parent=5 // pred_region
        %s271 = ssub.s32 %s27, 1
        // Predicated region
        $region13: #{transformer_forward.16} parent=11 // pred_check
          %p272 = pneg %p126
        $region14: #{transformer_forward.16} parent=11 // pred_check_branch
          %274 = sbr.rel (%p272) target = $region16
        $region15: #{transformer_forward.16} parent=11 // pred_region
          %s276 = ssub.s32 3072, 3072
          %277 = vsyncadd [#allocation9], %s276
          %s278 = sshll.u32 [#allocation8], 4
          %s279 = int_to_ptr.vmem [resolvable:$true] %s278
          %284 = dma.hbm_to_vmem [thread:$0]  %s3, 3072, %s279, [#allocation9], 192, 192, 12
        $region16: #{transformer_forward.16} parent=11 // pred_fallthru
          _
        // Predicated region
        $region17: #{transformer_forward.16} parent=11 // pred_check
          %p285 = pneg %p147
        $region18: #{transformer_forward.16} parent=11 // pred_check_branch
          %287 = sbr.rel (%p285) target = $region20
        $region19: #{transformer_forward.16} parent=11 // pred_region
          %s289 = ssub.s32 48, 48
          %290 = vsyncadd [#allocation9], %s289
          %s292 = sshll.u32 [#allocation10], 4
          %s293 = int_to_ptr.vmem [resolvable:$true] %s292
          %295 = dma.hbm_to_vmem [thread:$0]  %s4, 48, %s293, [#allocation9]
        $region20: #{transformer_forward.16} parent=11 // pred_fallthru
          _
        // Predicated region
        $region21: #{transformer_forward.16} parent=11 // pred_check
          %p296 = pneg %p168
        $region22: #{transformer_forward.16} parent=11 // pred_check_branch
          %298 = sbr.rel (%p296) target = $region24
        $region23: #{transformer_forward.16} parent=11 // pred_region
          %s300 = ssub.s32 1024, 1024
          %301 = vsyncadd [#allocation12], %s300
          %s302 = sshll.u32 [#allocation11], 4
          %s303 = int_to_ptr.vmem [resolvable:$true] %s302
          %308 = dma.hbm_to_vmem [thread:$0]  %s5, 1024, %s303, [#allocation12], 64, 64, 4
        $region24: #{transformer_forward.16} parent=11 // pred_fallthru
          _
        // Predicated region
        $region25: #{transformer_forward.16} parent=11 // pred_check
          %p309 = pneg %p189
        $region26: #{transformer_forward.16} parent=11 // pred_check_branch
          %311 = sbr.rel (%p309) target = $region28
        $region27: #{transformer_forward.16} parent=11 // pred_region
          %s313 = ssub.s32 16, 16
          %314 = vsyncadd [#allocation12], %s313
          %s316 = sshll.u32 [#allocation13], 4
          %s317 = int_to_ptr.vmem [resolvable:$true] %s316
          %319 = dma.hbm_to_vmem [thread:$0]  %s6, 16, %s317, [#allocation12]
        $region28: #{transformer_forward.16} parent=11 // pred_fallthru
          _
        // Predicated region
        $region29: #{transformer_forward.16} parent=11 // pred_check
          %p320 = pneg %p210
        $region30: #{transformer_forward.16} parent=11 // pred_check_branch
          %322 = sbr.rel (%p320) target = $region32
        $region31: #{transformer_forward.16} parent=11 // pred_region
          %s324 = ssub.s32 16, 16
          %325 = vsyncadd [#allocation15], %s324
          %s327 = sshll.u32 [#allocation14], 4
          %s328 = int_to_ptr.vmem [resolvable:$true] %s327
          %330 = dma.hbm_to_vmem [thread:$0]  %s7, 16, %s328, [#allocation15]
        $region32: #{transformer_forward.16} parent=11 // pred_fallthru
          _
        // Predicated region
        $region33: #{transformer_forward.16} parent=11 // pred_check
          %p331 = pneg %p231
        $region34: #{transformer_forward.16} parent=11 // pred_check_branch
          %333 = sbr.rel (%p331) target = $region36
        $region35: #{transformer_forward.16} parent=11 // pred_region
          %s335 = ssub.s32 16, 16
          %336 = vsyncadd [#allocation15], %s335
          %s338 = sshll.u32 [#allocation16], 4
          %s339 = int_to_ptr.vmem [resolvable:$true] %s338
          %341 = dma.hbm_to_vmem [thread:$0]  %s8, 16, %s339, [#allocation15]
        $region36: #{transformer_forward.16} parent=11 // pred_fallthru
          _
      $region12: #{transformer_forward.16} parent=5 // pred_fallthru
        _
      %p342 = scmp.lt.s32.totalorder %s27, 2
      // Predicated region
      $region37: #{transformer_forward.16} parent=5 // pred_check
        %p343 = pneg %p342
      $region38: #{transformer_forward.16} parent=5 // pred_check_branch
        %345 = sbr.rel (%p343) target = $region40
      $region39: #{transformer_forward.16} parent=5 // pred_region
        // Predicated region
        $region41: #{transformer_forward.16} parent=39 // pred_check
          %p346 = pneg %p47
        $region42: #{transformer_forward.16} parent=39 // pred_check_branch
          %348 = sbr.rel (%p346) target = $region44
        $region43: #{transformer_forward.16} parent=39 // pred_region
          %s349 = sand.u32 %s37, 1
          %s350 = scalar_lea.sflag [#allocation3], %s349
          %s351 = sand.u32 %s37, 1
          %s352 = smul.addr %s351, 4
          %s353 = scalar_lea.vmem [#allocation2], %s352
          %s355 = ssub.s32 64, 64
          %356 = vsyncadd %s350, %s355
          %s357 = smul.addr %s27, 64
          %s358 = scalar_lea.hbm %s0, %s357
          %s360 = sshll.u32 %s353, 4
          %s361 = int_to_ptr.vmem [resolvable:$true] %s360
          %363 = dma.hbm_to_vmem [thread:$0]  %s358, 64, %s361, %s350
        $region44: #{transformer_forward.16} parent=39 // pred_fallthru
          _
        // Predicated region
        $region45: #{transformer_forward.16} parent=39 // pred_check
          %p364 = pneg %p73
        $region46: #{transformer_forward.16} parent=39 // pred_check_branch
          %366 = sbr.rel (%p364) target = $region48
        $region47: #{transformer_forward.16} parent=39 // pred_region
          %s367 = sand.u32 %s27, 1
          %s368 = scalar_lea.sflag [#allocation6], %s367
          %s369 = sand.u32 %s63, 1
          %s370 = smul.addr %s369, 4
          %s371 = scalar_lea.vmem [#allocation5], %s370
          %s373 = ssub.s32 64, 64
          %374 = vsyncadd %s368, %s373
          %s375 = smul.addr %s27, 64
          %s376 = scalar_lea.hbm %s1, %s375
          %s378 = sshll.u32 %s371, 4
          %s379 = int_to_ptr.vmem [resolvable:$true] %s378
          %381 = dma.hbm_to_vmem [thread:$0]  %s376, 64, %s379, %s368
        $region48: #{transformer_forward.16} parent=39 // pred_fallthru
          _
        // Predicated region
        $region49: #{transformer_forward.16} parent=39 // pred_check
          %p382 = pneg %p99
        $region50: #{transformer_forward.16} parent=39 // pred_check_branch
          %384 = sbr.rel (%p382) target = $region52
        $region51: #{transformer_forward.16} parent=39 // pred_region
          %s385 = sand.u32 %s27, 1
          %s386 = scalar_lea.sflag [#allocation6], %s385
          %s387 = sand.u32 %s89, 1
          %s388 = scalar_lea.vmem [#allocation7], %s387
          %s390 = ssub.s32 16, 16
          %391 = vsyncadd %s386, %s390
          %s392 = smul.addr %s27, 16
          %s393 = scalar_lea.hbm %s2, %s392
          %s395 = sshll.u32 %s388, 4
          %s396 = int_to_ptr.vmem [resolvable:$true] %s395
          %398 = dma.hbm_to_vmem [thread:$0]  %s393, 16, %s396, %s386
        $region52: #{transformer_forward.16} parent=39 // pred_fallthru
          _
      $region40: #{transformer_forward.16} parent=5 // pred_fallthru
        _
      %p399 = scmp.le.s32.totalorder 1, %s27
      %p400 = scmp.lt.s32.totalorder %s27, 3
      %p401 = pnand %p399, %p400
      %p402 = pneg %p401
      // Predicated region
      $region53: #{transformer_forward.16} parent=5 // pred_check
        _
      $region54: #{transformer_forward.16} parent=5 // pred_check_branch
        %404 = sbr.rel (%p401) target = $region56
      $region55: #{transformer_forward.16} parent=5 // pred_region
        %s405 = ssub.s32 %s27, 1
        %s406 = sand.u32 %s40, 1
        %s407 = scalar_lea.sflag [#allocation3], %s406
        %s408 = sand.u32 %s40, 1
        %s409 = smul.addr %s408, 4
        %s410 = scalar_lea.vmem [#allocation2], %s409
        // Predicated region
        $region57: #{transformer_forward.16} parent=55 // pred_check
          %p411 = pneg %p53
        $region58: #{transformer_forward.16} parent=55 // pred_check_branch
          %413 = sbr.rel (%p411) target = $region60
        $region59: #{transformer_forward.16} parent=55 // pred_region
          %414 = dma.done %s407, 64
        $region60: #{transformer_forward.16} parent=55 // pred_fallthru
          _
        %s415 = sand.u32 %s32, 1
        %s416 = scalar_lea.sflag [#allocation6], %s415
        %s417 = sand.u32 %s66, 1
        %s418 = smul.addr %s417, 4
        %s419 = scalar_lea.vmem [#allocation5], %s418
        // Predicated region
        $region61: #{transformer_forward.16} parent=55 // pred_check
          %p420 = pneg %p79
        $region62: #{transformer_forward.16} parent=55 // pred_check_branch
          %422 = sbr.rel (%p420) target = $region64
        $region63: #{transformer_forward.16} parent=55 // pred_region
          %423 = dma.done %s416, 64
        $region64: #{transformer_forward.16} parent=55 // pred_fallthru
          _
        %s424 = sand.u32 %s32, 1
        %s425 = scalar_lea.sflag [#allocation6], %s424
        %s426 = sand.u32 %s92, 1
        %s427 = scalar_lea.vmem [#allocation7], %s426
        // Predicated region
        $region65: #{transformer_forward.16} parent=55 // pred_check
          %p428 = pneg %p105
        $region66: #{transformer_forward.16} parent=55 // pred_check_branch
          %430 = sbr.rel (%p428) target = $region68
        $region67: #{transformer_forward.16} parent=55 // pred_region
          %431 = dma.done %s425, 16
        $region68: #{transformer_forward.16} parent=55 // pred_fallthru
          _
        // Predicated region
        $region69: #{transformer_forward.16} parent=55 // pred_check
          %p432 = pneg %p126
        $region70: #{transformer_forward.16} parent=55 // pred_check_branch
          %434 = sbr.rel (%p432) target = $region72
        $region71: #{transformer_forward.16} parent=55 // pred_region
          %435 = dma.done [#allocation9], 3072
        $region72: #{transformer_forward.16} parent=55 // pred_fallthru
          _
        // Predicated region
        $region73: #{transformer_forward.16} parent=55 // pred_check
          %p436 = pneg %p147
        $region74: #{transformer_forward.16} parent=55 // pred_check_branch
          %438 = sbr.rel (%p436) target = $region76
        $region75: #{transformer_forward.16} parent=55 // pred_region
          %439 = dma.done [#allocation9], 48
        $region76: #{transformer_forward.16} parent=55 // pred_fallthru
          _
        // Predicated region
        $region77: #{transformer_forward.16} parent=55 // pred_check
          %p440 = pneg %p168
        $region78: #{transformer_forward.16} parent=55 // pred_check_branch
          %442 = sbr.rel (%p440) target = $region80
        $region79: #{transformer_forward.16} parent=55 // pred_region
          %443 = dma.done [#allocation12], 1024
        $region80: #{transformer_forward.16} parent=55 // pred_fallthru
          _
        // Predicated region
        $region81: #{transformer_forward.16} parent=55 // pred_check
          %p444 = pneg %p189
        $region82: #{transformer_forward.16} parent=55 // pred_check_branch
          %446 = sbr.rel (%p444) target = $region84
        $region83: #{transformer_forward.16} parent=55 // pred_region
          %447 = dma.done [#allocation12], 16
        $region84: #{transformer_forward.16} parent=55 // pred_fallthru
          _
        // Predicated region
        $region85: #{transformer_forward.16} parent=55 // pred_check
          %p448 = pneg %p210
        $region86: #{transformer_forward.16} parent=55 // pred_check_branch
          %450 = sbr.rel (%p448) target = $region88
        $region87: #{transformer_forward.16} parent=55 // pred_region
          %451 = dma.done [#allocation15], 16
        $region88: #{transformer_forward.16} parent=55 // pred_fallthru
          _
        // Predicated region
        $region89: #{transformer_forward.16} parent=55 // pred_check
          %p452 = pneg %p231
        $region90: #{transformer_forward.16} parent=55 // pred_check_branch
          %454 = sbr.rel (%p452) target = $region92
        $region91: #{transformer_forward.16} parent=55 // pred_region
          %455 = dma.done [#allocation15], 16
        $region92: #{transformer_forward.16} parent=55 // pred_fallthru
          _
        %s456 = sand.u32 %s40, 1
        %s457 = scalar_lea.sflag [#allocation3], %s456
        %s458 = sand.u32 %s40, 1
        %s459 = smul.addr %s458, 4
        %s460 = scalar_lea.vmem [#allocation2], %s459
        %p461 = pneg %p53
        %p462 = pneg %p50
        %s463 = sand.u32 %s32, 1
        %s464 = scalar_lea.sflag [#allocation6], %s463
        %s465 = sand.u32 %s66, 1
        %s466 = smul.addr %s465, 4
        %s467 = scalar_lea.vmem [#allocation5], %s466
        %p468 = pneg %p79
        %p469 = pneg %p76
        %s470 = sand.u32 %s32, 1
        %s471 = scalar_lea.sflag [#allocation6], %s470
        %s472 = sand.u32 %s92, 1
        %s473 = scalar_lea.vmem [#allocation7], %s472
        %p474 = pneg %p105
        %p475 = pneg %p102
        %p476 = pneg %p126
        %p477 = pneg %p123
        %p478 = pneg %p147
        %p479 = pneg %p144
        %p480 = pneg %p168
        %p481 = pneg %p165
        %p482 = pneg %p189
        %p483 = pneg %p186
        %p484 = pneg %p210
        %p485 = pneg %p207
        %p486 = pneg %p231
        %p487 = pneg %p228
        %p488 = pneg %p257
        %p489 = pneg %p254
        %s490 = sand.u32 %s244, 1
        %s491 = scalar_lea.sflag [#allocation4], %s490
        %s492 = sand.u32 %s244, 1
        %s493 = smul.addr %s492, 4
        %s494 = scalar_lea.vmem [#allocation17], %s493
        %v496 = vld [vmem:[%s410] sm:$0xf]
        %v497 = vunpack.c.l.bf16 %v496
        %v498 = vld [vmem:[%s419] sm:$0xf]
        %v499 = vld [vmem:[#allocation8] sm:$0xf]
        %v500 = vld [vmem:[#allocation8 + $0xc] sm:$0xf]
        %v501 = vld [vmem:[#allocation8 + $0x18] sm:$0xf]
        %v502 = vld [vmem:[#allocation8 + $0x24] sm:$0xf]
        %v503 = vld [vmem:[#allocation8 + $0x30] sm:$0xf]
        %v504 = vld [vmem:[#allocation8 + $0x3c] sm:$0xf]
        %v505 = vld [vmem:[#allocation8 + $0x48] sm:$0xf]
        %v506 = vld [vmem:[#allocation8 + $0x54] sm:$0xf]
        %v507 = vld [vmem:[#allocation8 + $0x60] sm:$0xf]
        %v508 = vld [vmem:[#allocation8 + $0x6c] sm:$0xf]
        %v509 = vld [vmem:[#allocation8 + $0x78] sm:$0xf]
        %v510 = vld [vmem:[#allocation8 + $0x84] sm:$0xf]
        %v511 = vld [vmem:[#allocation8 + $0x90] sm:$0xf]
        %v512 = vld [vmem:[#allocation8 + $0x9c] sm:$0xf]
        %v513 = vld [vmem:[#allocation8 + $0xa8] sm:$0xf]
        %v514 = vld [vmem:[#allocation8 + $0xb4] sm:$0xf]
        %v515 = vld [vmem:[#allocation10] sm:$0x1]
        %v517 = vlaneseq
        %v518 = vshrl.u32 %v517, 7
        %v519 = vsub.s32 0, %v518
        %v520 = vrot.slane %v515, %v519
        %v538 = vunpack.c.l.b16 %v499
        %v539 = vunpack.c.l.b16 %v500
        %v540 = vunpack.c.l.b16 %v501
        %v541 = vunpack.c.l.b16 %v502
        %v542 = vunpack.c.l.b16 %v503
        %v543 = vunpack.c.l.b16 %v504
        %v544 = vunpack.c.l.b16 %v505
        %v545 = vunpack.c.l.b16 %v506
        %v546 = vunpack.c.l.b16 %v507
        %v547 = vunpack.c.l.b16 %v508
        %v548 = vunpack.c.l.b16 %v509
        %v549 = vunpack.c.l.b16 %v510
        %v550 = vunpack.c.l.b16 %v511
        %v551 = vunpack.c.l.b16 %v512
        %v552 = vunpack.c.l.b16 %v513
        %v553 = vunpack.c.l.b16 %v514
        %v554 = vpack.c.b16 %v539, %v538
        %v555 = vpack.c.b16 %v541, %v540
        %v556 = vpack.c.b16 %v543, %v542
        %v557 = vpack.c.b16 %v545, %v544
        %v558 = vpack.c.b16 %v547, %v546
        %v559 = vpack.c.b16 %v549, %v548
        %v560 = vpack.c.b16 %v551, %v550
        %v561 = vpack.c.b16 %v553, %v552
        %570 = vmatprep.subr.bf16.mxu0 0
        %571 = vmatpush1.bf16.msra.mxu0 %v554
        %572 = vmatprep.subr.bf16.mxu0 0
        %573 = vmatpush1.bf16.msra.mxu0 %v555
        %574 = vmatprep.subr.bf16.mxu0 0
        %575 = vmatpush1.bf16.msra.mxu0 %v556
        %576 = vmatprep.subr.bf16.mxu0 0
        %577 = vmatpush1.bf16.msra.mxu0 %v557
        %578 = vmatprep.subr.bf16.mxu0 0
        %579 = vmatpush1.bf16.msra.mxu0 %v558
        %580 = vmatprep.subr.bf16.mxu0 0
        %581 = vmatpush1.bf16.msra.mxu0 %v559
        %582 = vmatprep.subr.bf16.mxu0 0
        %583 = vmatpush1.bf16.msra.mxu0 %v560
        %584 = vmatprep.subr.bf16.mxu0 0
        %585 = vmatpush1.bf16.msra.mxu0 %v561
        %586 = vmatprep.subr.bf16.mxu0 0
        %587 = vmatpush1.bf16.msra.mxu0 0
        %588 = vmatprep.subr.bf16.mxu0 0
        %589 = vmatpush1.bf16.msra.mxu0 0
        %590 = vmatprep.subr.bf16.mxu0 0
        %591 = vmatpush1.bf16.msra.mxu0 0
        %592 = vmatprep.subr.bf16.mxu0 0
        %593 = vmatpush1.bf16.msra.mxu0 0
        %594 = vmatprep.subr.bf16.mxu0 0
        %595 = vmatpush1.bf16.msra.mxu0 0
        %596 = vmatprep.subr.bf16.mxu0 0
        %597 = vmatpush1.bf16.msra.mxu0 0
        %598 = vmatprep.subr.bf16.mxu0 0
        %599 = vmatpush1.bf16.msra.mxu0 0
        %600 = vmatprep.subr.bf16.mxu0 0
        %601 = vmatpush1.bf16.msra.mxu0 0
        %602 = vmatprep.mubr.bf16.mxu0 0
        %603 = vmatmul.mubr.bf16.gmra.mrb[0].mxu0 %v496
        %v604 = vpop.f32.mrb[0].mxu0
        %v605 = vadd.f32 %v520, %v604
        %v606 = vpop.f32.mrb[0].mxu0
        %v607 = vpop.f32.mrb[0].mxu0
        %v608 = vpop.f32.mrb[0].mxu0
        %609 = vdwg.mxu0
        %v610 = vld [vmem:[#allocation8 + $0x4] sm:$0xff]
        %v611 = vld [vmem:[#allocation8 + $0x10] sm:$0xff]
        %v612 = vld [vmem:[#allocation8 + $0x1c] sm:$0xff]
        %v613 = vld [vmem:[#allocation8 + $0x28] sm:$0xff]
        %v614 = vld [vmem:[#allocation8 + $0x34] sm:$0xff]
        %v615 = vld [vmem:[#allocation8 + $0x40] sm:$0xff]
        %v616 = vld [vmem:[#allocation8 + $0x4c] sm:$0xff]
        %v617 = vld [vmem:[#allocation8 + $0x58] sm:$0xff]
        %v618 = vld [vmem:[#allocation8 + $0x64] sm:$0xff]
        %v619 = vld [vmem:[#allocation8 + $0x70] sm:$0xff]
        %v620 = vld [vmem:[#allocation8 + $0x7c] sm:$0xff]
        %v621 = vld [vmem:[#allocation8 + $0x88] sm:$0xff]
        %v622 = vld [vmem:[#allocation8 + $0x94] sm:$0xff]
        %v623 = vld [vmem:[#allocation8 + $0xa0] sm:$0xff]
        %v624 = vld [vmem:[#allocation8 + $0xac] sm:$0xff]
        %v625 = vld [vmem:[#allocation8 + $0xb8] sm:$0xff]
        %v626 = vld [vmem:[#allocation10 + $0x1] sm:$0x3]
        %v628 = vlaneseq
        %v629 = vshrl.u32 %v628, 7
        %v630 = vsub.s32 0, %v629
        %v631 = vrot.slane %v626, %v630
        %v632 = vlaneseq
        %v633 = vshrl.u32 %v632, 7
        %v634 = vsub.s32 1, %v633
        %v635 = vrot.slane %v626, %v634
        %v654 = vunpack.c.l.b16 %v610
        %v655 = vunpack.c.h.b16 %v610
        %v656 = vunpack.c.l.b16 %v611
        %v657 = vunpack.c.h.b16 %v611
        %v658 = vunpack.c.l.b16 %v612
        %v659 = vunpack.c.h.b16 %v612
        %v660 = vunpack.c.l.b16 %v613
        %v661 = vunpack.c.h.b16 %v613
        %v662 = vunpack.c.l.b16 %v614
        %v663 = vunpack.c.h.b16 %v614
        %v664 = vunpack.c.l.b16 %v615
        %v665 = vunpack.c.h.b16 %v615
        %v666 = vunpack.c.l.b16 %v616
        %v667 = vunpack.c.h.b16 %v616
        %v668 = vunpack.c.l.b16 %v617
        %v669 = vunpack.c.h.b16 %v617
        %v670 = vunpack.c.l.b16 %v618
        %v671 = vunpack.c.h.b16 %v618
        %v672 = vunpack.c.l.b16 %v619
        %v673 = vunpack.c.h.b16 %v619
        %v674 = vunpack.c.l.b16 %v620
        %v675 = vunpack.c.h.b16 %v620
        %v676 = vunpack.c.l.b16 %v621
        %v677 = vunpack.c.h.b16 %v621
        %v678 = vunpack.c.l.b16 %v622
        %v679 = vunpack.c.h.b16 %v622
        %v680 = vunpack.c.l.b16 %v623
        %v681 = vunpack.c.h.b16 %v623
        %v682 = vunpack.c.l.b16 %v624
        %v683 = vunpack.c.h.b16 %v624
        %v684 = vunpack.c.l.b16 %v625
        %v685 = vunpack.c.h.b16 %v625
        %v686 = vpack.c.b16 %v656, %v654
        %v687 = vpack.c.b16 %v657, %v655
        %v688 = vpack.c.b16 %v660, %v658
        %v689 = vpack.c.b16 %v661, %v659
        %v690 = vpack.c.b16 %v664, %v662
        %v691 = vpack.c.b16 %v665, %v663
        %v692 = vpack.c.b16 %v668, %v666
        %v693 = vpack.c.b16 %v669, %v667
        %v694 = vpack.c.b16 %v672, %v670
        %v695 = vpack.c.b16 %v673, %v671
        %v696 = vpack.c.b16 %v676, %v674
        %v697 = vpack.c.b16 %v677, %v675
        %v698 = vpack.c.b16 %v680, %v678
        %v699 = vpack.c.b16 %v681, %v679
        %v700 = vpack.c.b16 %v684, %v682
        %v701 = vpack.c.b16 %v685, %v683
        %718 = vmatprep.subr.bf16.mxu0 %v687
        %719 = vmatpush1.bf16.msra.mxu0 %v686
        %720 = vmatprep.subr.bf16.mxu0 %v689
        %721 = vmatpush1.bf16.msra.mxu0 %v688
        %722 = vmatprep.subr.bf16.mxu0 %v691
        %723 = vmatpush1.bf16.msra.mxu0 %v690
        %724 = vmatprep.subr.bf16.mxu0 %v693
        %725 = vmatpush1.bf16.msra.mxu0 %v692
        %726 = vmatprep.subr.bf16.mxu0 %v695
        %727 = vmatpush1.bf16.msra.mxu0 %v694
        %728 = vmatprep.subr.bf16.mxu0 %v697
        %729 = vmatpush1.bf16.msra.mxu0 %v696
        %730 = vmatprep.subr.bf16.mxu0 %v699
        %731 = vmatpush1.bf16.msra.mxu0 %v698
        %732 = vmatprep.subr.bf16.mxu0 %v701
        %733 = vmatpush1.bf16.msra.mxu0 %v700
        %734 = vmatprep.subr.bf16.mxu0 0
        %735 = vmatpush1.bf16.msra.mxu0 0
        %736 = vmatprep.subr.bf16.mxu0 0
        %737 = vmatpush1.bf16.msra.mxu0 0
        %738 = vmatprep.subr.bf16.mxu0 0
        %739 = vmatpush1.bf16.msra.mxu0 0
        %740 = vmatprep.subr.bf16.mxu0 0
        %741 = vmatpush1.bf16.msra.mxu0 0
        %742 = vmatprep.subr.bf16.mxu0 0
        %743 = vmatpush1.bf16.msra.mxu0 0
        %744 = vmatprep.subr.bf16.mxu0 0
        %745 = vmatpush1.bf16.msra.mxu0 0
        %746 = vmatprep.subr.bf16.mxu0 0
        %747 = vmatpush1.bf16.msra.mxu0 0
        %748 = vmatprep.subr.bf16.mxu0 0
        %749 = vmatpush1.bf16.msra.mxu0 0
        %750 = vmatprep.mubr.bf16.mxu0 0
        %751 = vmatmul.mubr.bf16.gmra.mrb[0].mxu0 %v498
        %v752 = vpop.f32.mrb[0].mxu0
        %v753 = vadd.f32 %v631, %v752
        %v754 = vpop.f32.mrb[0].mxu0
        %v755 = vadd.f32 %v635, %v754
        %v756 = vpop.f32.mrb[0].mxu0
        %v757 = vpop.f32.mrb[0].mxu0
        %758 = vdwg.mxu0
        %v759 = vld [vmem:[%s427] sm:$0x1]
        %vm760 = vcmp.gt.f32.partialorder %v759, 0.0
        %v761 = vsel %vm760, 1, 0
        %v762 = vlaneseq
        %v763 = vshrl.u32 %v762, 7
        %v764 = vsub.s32 0, %v763
        %v765 = vrot.slane %v761, %v764
        %vm766 = vcmp.eq.s32.totalorder %v765, 1
        %v767 = vsel %vm766, 0.0, -1e+09
        %769 = vrot.lane.b32.xlu0 %v605, 96
        %v770 = vpop.permute.xlu0 %769
        %772 = vrot.lane.b32.xlu0 %v605, 64
        %v773 = vpop.permute.xlu0 %772
        %775 = vrot.lane.b32.xlu0 %v605, 32
        %v776 = vpop.permute.xlu0 %775
        %v778 = vcombine.low %v605, %v773
        %v779 = vcombine.high %v605, %v773
        %v781 = vunpack.c.l.s4 1983009808
        %v782 = vunpack.c.0.s8 %v781
        %v783 = vlaneseq
        %v784 = vshrl.u32 %v783, 7
        %v785 = vsub.s32 %v782, %v784
        %v786 = vrot.slane %v778, %v785
        %v788 = vunpack.c.l.s4 1983009808
        %v789 = vunpack.c.0.s8 %v788
        %v790 = vlaneseq
        %v791 = vshrl.u32 %v790, 7
        %v792 = vsub.s32 %v789, %v791
        %v793 = vrot.slane %v779, %v792
        %v794 = vcombine.low %v770, %v776
        %v795 = vcombine.high %v770, %v776
        %v797 = vunpack.c.l.s4 1983009808
        %v798 = vunpack.c.0.s8 %v797
        %v799 = vlaneseq
        %v800 = vshrl.u32 %v799, 7
        %v801 = vsub.s32 %v798, %v800
        %v802 = vrot.slane %v794, %v801
        %v804 = vunpack.c.l.s4 1983009808
        %v805 = vunpack.c.0.s8 %v804
        %v806 = vlaneseq
        %v807 = vshrl.u32 %v806, 7
        %v808 = vsub.s32 %v805, %v807
        %v809 = vrot.slane %v795, %v808
        %v810 = vcombine.low %v786, %v802
        %v811 = vcombine.high %v786, %v802
        %v813 = vunpack.c.l.s4 1934713408
        %v814 = vunpack.c.0.s8 %v813
        %v815 = vlaneseq
        %v816 = vshrl.u32 %v815, 7
        %v817 = vsub.s32 %v814, %v816
        %v818 = vrot.slane %v810, %v817
        %v820 = vunpack.c.l.s4 1934713408
        %v821 = vunpack.c.0.s8 %v820
        %v822 = vlaneseq
        %v823 = vshrl.u32 %v822, 7
        %v824 = vsub.s32 %v821, %v823
        %v825 = vrot.slane %v811, %v824
        %v826 = vcombine.low %v793, %v809
        %v827 = vcombine.high %v793, %v809
        %v829 = vunpack.c.l.s4 1934713408
        %v830 = vunpack.c.0.s8 %v829
        %v831 = vlaneseq
        %v832 = vshrl.u32 %v831, 7
        %v833 = vsub.s32 %v830, %v832
        %v834 = vrot.slane %v826, %v833
        %v836 = vunpack.c.l.s4 1934713408
        %v837 = vunpack.c.0.s8 %v836
        %v838 = vlaneseq
        %v839 = vshrl.u32 %v838, 7
        %v840 = vsub.s32 %v837, %v839
        %v841 = vrot.slane %v827, %v840
        %v842 = vcombine.high %v818, 0.0
        %v843 = vcombine.high %v825, 0.0
        %v844 = vcombine.high %v834, 0.0
        %v845 = vcombine.high %v841, 0.0
        %v846 = vcombine.low %v818, %v825
        %v848 = vunpack.c.l.s4 1983009808
        %v849 = vunpack.c.0.s8 %v848
        %v850 = vlaneseq
        %v851 = vshrl.u32 %v850, 7
        %v852 = vsub.s32 %v849, %v851
        %v853 = vrot.slane %v846, %v852
        %v854 = vcombine.low %v842, %v843
        %v856 = vunpack.c.l.s4 1983009808
        %v857 = vunpack.c.0.s8 %v856
        %v858 = vlaneseq
        %v859 = vshrl.u32 %v858, 7
        %v860 = vsub.s32 %v857, %v859
        %v861 = vrot.slane %v854, %v860
        %v862 = vcombine.low %v834, %v841
        %v864 = vunpack.c.l.s4 1983009808
        %v865 = vunpack.c.0.s8 %v864
        %v866 = vlaneseq
        %v867 = vshrl.u32 %v866, 7
        %v868 = vsub.s32 %v865, %v867
        %v869 = vrot.slane %v862, %v868
        %v870 = vcombine.low %v844, %v845
        %v872 = vunpack.c.l.s4 1983009808
        %v873 = vunpack.c.0.s8 %v872
        %v874 = vlaneseq
        %v875 = vshrl.u32 %v874, 7
        %v876 = vsub.s32 %v873, %v875
        %v877 = vrot.slane %v870, %v876
        %v878 = vcombine.low %v853, %v861
        %v879 = vcombine.high %v853, %v861
        %v881 = vunpack.c.l.s4 1934713408
        %v882 = vunpack.c.0.s8 %v881
        %v883 = vlaneseq
        %v884 = vshrl.u32 %v883, 7
        %v885 = vsub.s32 %v882, %v884
        %v886 = vrot.slane %v878, %v885
        %v888 = vunpack.c.l.s4 1934713408
        %v889 = vunpack.c.0.s8 %v888
        %v890 = vlaneseq
        %v891 = vshrl.u32 %v890, 7
        %v892 = vsub.s32 %v889, %v891
        %v893 = vrot.slane %v879, %v892
        %v894 = vcombine.low %v869, %v877
        %v895 = vcombine.high %v869, %v877
        %v897 = vunpack.c.l.s4 1934713408
        %v898 = vunpack.c.0.s8 %v897
        %v899 = vlaneseq
        %v900 = vshrl.u32 %v899, 7
        %v901 = vsub.s32 %v898, %v900
        %v902 = vrot.slane %v894, %v901
        %v904 = vunpack.c.l.s4 1934713408
        %v905 = vunpack.c.0.s8 %v904
        %v906 = vlaneseq
        %v907 = vshrl.u32 %v906, 7
        %v908 = vsub.s32 %v905, %v907
        %v909 = vrot.slane %v895, %v908
        %v910 = vcombine.low %v886, %v902
        %v911 = vcombine.high %v886, %v902
        %v912 = vcombine.low %v893, %v909
        %v913 = vcombine.high %v893, %v909
        %v914 = vpack.c.bf16 %v910, %v910
        %v915 = vpack.c.bf16 %v911, %v911
        %v916 = vpack.c.bf16 %v912, %v912
        %v917 = vpack.c.bf16 %v913, %v913
        %919 = vrot.lane.b32.xlu0 %v753, 96
        %v920 = vpop.permute.xlu0 %919
        %922 = vrot.lane.b32.xlu0 %v753, 64
        %v923 = vpop.permute.xlu0 %922
        %925 = vrot.lane.b32.xlu0 %v753, 32
        %v926 = vpop.permute.xlu0 %925
        %v928 = vcombine.low %v753, %v923
        %v929 = vcombine.high %v753, %v923
        %v931 = vunpack.c.l.s4 1983009808
        %v932 = vunpack.c.0.s8 %v931
        %v933 = vlaneseq
        %v934 = vshrl.u32 %v933, 7
        %v935 = vsub.s32 %v932, %v934
        %v936 = vrot.slane %v928, %v935
        %v938 = vunpack.c.l.s4 1983009808
        %v939 = vunpack.c.0.s8 %v938
        %v940 = vlaneseq
        %v941 = vshrl.u32 %v940, 7
        %v942 = vsub.s32 %v939, %v941
        %v943 = vrot.slane %v929, %v942
        %v944 = vcombine.low %v920, %v926
        %v945 = vcombine.high %v920, %v926
        %v947 = vunpack.c.l.s4 1983009808
        %v948 = vunpack.c.0.s8 %v947
        %v949 = vlaneseq
        %v950 = vshrl.u32 %v949, 7
        %v951 = vsub.s32 %v948, %v950
        %v952 = vrot.slane %v944, %v951
        %v954 = vunpack.c.l.s4 1983009808
        %v955 = vunpack.c.0.s8 %v954
        %v956 = vlaneseq
        %v957 = vshrl.u32 %v956, 7
        %v958 = vsub.s32 %v955, %v957
        %v959 = vrot.slane %v945, %v958
        %v960 = vcombine.low %v936, %v952
        %v961 = vcombine.high %v936, %v952
        %v963 = vunpack.c.l.s4 1934713408
        %v964 = vunpack.c.0.s8 %v963
        %v965 = vlaneseq
        %v966 = vshrl.u32 %v965, 7
        %v967 = vsub.s32 %v964, %v966
        %v968 = vrot.slane %v960, %v967
        %v970 = vunpack.c.l.s4 1934713408
        %v971 = vunpack.c.0.s8 %v970
        %v972 = vlaneseq
        %v973 = vshrl.u32 %v972, 7
        %v974 = vsub.s32 %v971, %v973
        %v975 = vrot.slane %v961, %v974
        %v976 = vcombine.low %v943, %v959
        %v977 = vcombine.high %v943, %v959
        %v979 = vunpack.c.l.s4 1934713408
        %v980 = vunpack.c.0.s8 %v979
        %v981 = vlaneseq
        %v982 = vshrl.u32 %v981, 7
        %v983 = vsub.s32 %v980, %v982
        %v984 = vrot.slane %v976, %v983
        %v986 = vunpack.c.l.s4 1934713408
        %v987 = vunpack.c.0.s8 %v986
        %v988 = vlaneseq
        %v989 = vshrl.u32 %v988, 7
        %v990 = vsub.s32 %v987, %v989
        %v991 = vrot.slane %v977, %v990
        %v992 = vcombine.high %v968, 0.0
        %v993 = vcombine.high %v975, 0.0
        %v994 = vcombine.high %v984, 0.0
        %v995 = vcombine.high %v991, 0.0
        %v996 = vcombine.low %v968, %v975
        %v998 = vunpack.c.l.s4 1983009808
        %v999 = vunpack.c.0.s8 %v998
        %v1000 = vlaneseq
        %v1001 = vshrl.u32 %v1000, 7
        %v1002 = vsub.s32 %v999, %v1001
        %v1003 = vrot.slane %v996, %v1002
        %v1004 = vcombine.low %v992, %v993
        %v1006 = vunpack.c.l.s4 1983009808
        %v1007 = vunpack.c.0.s8 %v1006
        %v1008 = vlaneseq
        %v1009 = vshrl.u32 %v1008, 7
        %v1010 = vsub.s32 %v1007, %v1009
        %v1011 = vrot.slane %v1004, %v1010
        %v1012 = vcombine.low %v984, %v991
        %v1014 = vunpack.c.l.s4 1983009808
        %v1015 = vunpack.c.0.s8 %v1014
        %v1016 = vlaneseq
        %v1017 = vshrl.u32 %v1016, 7
        %v1018 = vsub.s32 %v1015, %v1017
        %v1019 = vrot.slane %v1012, %v1018
        %v1020 = vcombine.low %v994, %v995
        %v1022 = vunpack.c.l.s4 1983009808
        %v1023 = vunpack.c.0.s8 %v1022
        %v1024 = vlaneseq
        %v1025 = vshrl.u32 %v1024, 7
        %v1026 = vsub.s32 %v1023, %v1025
        %v1027 = vrot.slane %v1020, %v1026
        %v1028 = vcombine.low %v1003, %v1011
        %v1029 = vcombine.high %v1003, %v1011
        %v1031 = vunpack.c.l.s4 1934713408
        %v1032 = vunpack.c.0.s8 %v1031
        %v1033 = vlaneseq
        %v1034 = vshrl.u32 %v1033, 7
        %v1035 = vsub.s32 %v1032, %v1034
        %v1036 = vrot.slane %v1028, %v1035
        %v1038 = vunpack.c.l.s4 1934713408
        %v1039 = vunpack.c.0.s8 %v1038
        %v1040 = vlaneseq
        %v1041 = vshrl.u32 %v1040, 7
        %v1042 = vsub.s32 %v1039, %v1041
        %v1043 = vrot.slane %v1029, %v1042
        %v1044 = vcombine.low %v1019, %v1027
        %v1045 = vcombine.high %v1019, %v1027
        %v1047 = vunpack.c.l.s4 1934713408
        %v1048 = vunpack.c.0.s8 %v1047
        %v1049 = vlaneseq
        %v1050 = vshrl.u32 %v1049, 7
        %v1051 = vsub.s32 %v1048, %v1050
        %v1052 = vrot.slane %v1044, %v1051
        %v1054 = vunpack.c.l.s4 1934713408
        %v1055 = vunpack.c.0.s8 %v1054
        %v1056 = vlaneseq
        %v1057 = vshrl.u32 %v1056, 7
        %v1058 = vsub.s32 %v1055, %v1057
        %v1059 = vrot.slane %v1045, %v1058
        %v1060 = vcombine.low %v1036, %v1052
        %v1061 = vcombine.high %v1036, %v1052
        %v1062 = vcombine.low %v1043, %v1059
        %v1063 = vcombine.high %v1043, %v1059
        %v1064 = vpack.c.bf16 %v1060, %v1060
        %v1065 = vpack.c.bf16 %v1061, %v1061
        %v1066 = vpack.c.bf16 %v1062, %v1062
        %v1067 = vpack.c.bf16 %v1063, %v1063
        %1069 = vrot.lane.b32.xlu0 %v755, 96
        %v1070 = vpop.permute.xlu0 %1069
        %1072 = vrot.lane.b32.xlu0 %v755, 64
        %v1073 = vpop.permute.xlu0 %1072
        %1075 = vrot.lane.b32.xlu0 %v755, 32
        %v1076 = vpop.permute.xlu0 %1075
        %v1078 = vcombine.low %v755, %v1073
        %v1079 = vcombine.high %v755, %v1073
        %v1081 = vunpack.c.l.s4 1983009808
        %v1082 = vunpack.c.0.s8 %v1081
        %v1083 = vlaneseq
        %v1084 = vshrl.u32 %v1083, 7
        %v1085 = vsub.s32 %v1082, %v1084
        %v1086 = vrot.slane %v1078, %v1085
        %v1088 = vunpack.c.l.s4 1983009808
        %v1089 = vunpack.c.0.s8 %v1088
        %v1090 = vlaneseq
        %v1091 = vshrl.u32 %v1090, 7
        %v1092 = vsub.s32 %v1089, %v1091
        %v1093 = vrot.slane %v1079, %v1092
        %v1094 = vcombine.low %v1070, %v1076
        %v1095 = vcombine.high %v1070, %v1076
        %v1097 = vunpack.c.l.s4 1983009808
        %v1098 = vunpack.c.0.s8 %v1097
        %v1099 = vlaneseq
        %v1100 = vshrl.u32 %v1099, 7
        %v1101 = vsub.s32 %v1098, %v1100
        %v1102 = vrot.slane %v1094, %v1101
        %v1104 = vunpack.c.l.s4 1983009808
        %v1105 = vunpack.c.0.s8 %v1104
        %v1106 = vlaneseq
        %v1107 = vshrl.u32 %v1106, 7
        %v1108 = vsub.s32 %v1105, %v1107
        %v1109 = vrot.slane %v1095, %v1108
        %v1110 = vcombine.low %v1086, %v1102
        %v1111 = vcombine.high %v1086, %v1102
        %v1113 = vunpack.c.l.s4 1934713408
        %v1114 = vunpack.c.0.s8 %v1113
        %v1115 = vlaneseq
        %v1116 = vshrl.u32 %v1115, 7
        %v1117 = vsub.s32 %v1114, %v1116
        %v1118 = vrot.slane %v1110, %v1117
        %v1120 = vunpack.c.l.s4 1934713408
        %v1121 = vunpack.c.0.s8 %v1120
        %v1122 = vlaneseq
        %v1123 = vshrl.u32 %v1122, 7
        %v1124 = vsub.s32 %v1121, %v1123
        %v1125 = vrot.slane %v1111, %v1124
        %v1126 = vcombine.low %v1093, %v1109
        %v1127 = vcombine.high %v1093, %v1109
        %v1129 = vunpack.c.l.s4 1934713408
        %v1130 = vunpack.c.0.s8 %v1129
        %v1131 = vlaneseq
        %v1132 = vshrl.u32 %v1131, 7
        %v1133 = vsub.s32 %v1130, %v1132
        %v1134 = vrot.slane %v1126, %v1133
        %v1136 = vunpack.c.l.s4 1934713408
        %v1137 = vunpack.c.0.s8 %v1136
        %v1138 = vlaneseq
        %v1139 = vshrl.u32 %v1138, 7
        %v1140 = vsub.s32 %v1137, %v1139
        %v1141 = vrot.slane %v1127, %v1140
        %v1142 = vcombine.high %v1118, 0.0
        %v1143 = vcombine.high %v1125, 0.0
        %v1144 = vcombine.high %v1134, 0.0
        %v1145 = vcombine.high %v1141, 0.0
        %v1146 = vcombine.low %v1118, %v1125
        %v1148 = vunpack.c.l.s4 1983009808
        %v1149 = vunpack.c.0.s8 %v1148
        %v1150 = vlaneseq
        %v1151 = vshrl.u32 %v1150, 7
        %v1152 = vsub.s32 %v1149, %v1151
        %v1153 = vrot.slane %v1146, %v1152
        %v1154 = vcombine.low %v1142, %v1143
        %v1156 = vunpack.c.l.s4 1983009808
        %v1157 = vunpack.c.0.s8 %v1156
        %v1158 = vlaneseq
        %v1159 = vshrl.u32 %v1158, 7
        %v1160 = vsub.s32 %v1157, %v1159
        %v1161 = vrot.slane %v1154, %v1160
        %v1162 = vcombine.low %v1134, %v1141
        %v1164 = vunpack.c.l.s4 1983009808
        %v1165 = vunpack.c.0.s8 %v1164
        %v1166 = vlaneseq
        %v1167 = vshrl.u32 %v1166, 7
        %v1168 = vsub.s32 %v1165, %v1167
        %v1169 = vrot.slane %v1162, %v1168
        %v1170 = vcombine.low %v1144, %v1145
        %v1172 = vunpack.c.l.s4 1983009808
        %v1173 = vunpack.c.0.s8 %v1172
        %v1174 = vlaneseq
        %v1175 = vshrl.u32 %v1174, 7
        %v1176 = vsub.s32 %v1173, %v1175
        %v1177 = vrot.slane %v1170, %v1176
        %v1178 = vcombine.low %v1153, %v1161
        %v1179 = vcombine.high %v1153, %v1161
        %v1181 = vunpack.c.l.s4 1934713408
        %v1182 = vunpack.c.0.s8 %v1181
        %v1183 = vlaneseq
        %v1184 = vshrl.u32 %v1183, 7
        %v1185 = vsub.s32 %v1182, %v1184
        %v1186 = vrot.slane %v1178, %v1185
        %v1188 = vunpack.c.l.s4 1934713408
        %v1189 = vunpack.c.0.s8 %v1188
        %v1190 = vlaneseq
        %v1191 = vshrl.u32 %v1190, 7
        %v1192 = vsub.s32 %v1189, %v1191
        %v1193 = vrot.slane %v1179, %v1192
        %v1194 = vcombine.low %v1169, %v1177
        %v1195 = vcombine.high %v1169, %v1177
        %v1197 = vunpack.c.l.s4 1934713408
        %v1198 = vunpack.c.0.s8 %v1197
        %v1199 = vlaneseq
        %v1200 = vshrl.u32 %v1199, 7
        %v1201 = vsub.s32 %v1198, %v1200
        %v1202 = vrot.slane %v1194, %v1201
        %v1204 = vunpack.c.l.s4 1934713408
        %v1205 = vunpack.c.0.s8 %v1204
        %v1206 = vlaneseq
        %v1207 = vshrl.u32 %v1206, 7
        %v1208 = vsub.s32 %v1205, %v1207
        %v1209 = vrot.slane %v1195, %v1208
        %v1210 = vcombine.low %v1186, %v1202
        %v1211 = vcombine.high %v1186, %v1202
        %v1212 = vcombine.low %v1193, %v1209
        %v1213 = vcombine.high %v1193, %v1209
        %v1214 = vpack.c.bf16 %v1210, %v1210
        %v1215 = vpack.c.bf16 %v1211, %v1211
        %v1216 = vpack.c.bf16 %v1212, %v1212
        %v1217 = vpack.c.bf16 %v1213, %v1213
        %vm1218 = vcmask 261120
        %v1220 = vsel %vm1218, %v914, 0
        %v1223 = vsel %vm1218, %v1064, 0
        %1225 = vmatprep.subr.bf16.mxu0 0
        %1226 = vmatpush1.bf16.xpose.msra.mxu0 %v1223
        %1227 = vmatprep.subr.bf16.mxu0 0
        %1228 = vmatpush1.bf16.xpose.msra.mxu0 0
        %1229 = vmatprep.subr.bf16.mxu0 0
        %1230 = vmatpush1.bf16.xpose.msra.mxu0 0
        %1231 = vmatprep.subr.bf16.mxu0 0
        %1232 = vmatpush1.bf16.xpose.msra.mxu0 0
        %1233 = vmatprep.subr.bf16.mxu0 0
        %1234 = vmatpush1.bf16.xpose.msra.mxu0 0
        %1235 = vmatprep.subr.bf16.mxu0 0
        %1236 = vmatpush1.bf16.xpose.msra.mxu0 0
        %1237 = vmatprep.subr.bf16.mxu0 0
        %1238 = vmatpush1.bf16.xpose.msra.mxu0 0
        %1239 = vmatprep.subr.bf16.mxu0 0
        %1240 = vmatpush1.bf16.xpose.msra.mxu0 0
        %1241 = vmatprep.subr.bf16.mxu0 0
        %1242 = vmatpush1.bf16.xpose.msra.mxu0 0
        %1243 = vmatprep.subr.bf16.mxu0 0
        %1244 = vmatpush1.bf16.xpose.msra.mxu0 0
        %1245 = vmatprep.subr.bf16.mxu0 0
        %1246 = vmatpush1.bf16.xpose.msra.mxu0 0
        %1247 = vmatprep.subr.bf16.mxu0 0
        %1248 = vmatpush1.bf16.xpose.msra.mxu0 0
        %1249 = vmatprep.subr.bf16.mxu0 0
        %1250 = vmatpush1.bf16.xpose.msra.mxu0 0
        %1251 = vmatprep.subr.bf16.mxu0 0
        %1252 = vmatpush1.bf16.xpose.msra.mxu0 0
        %1253 = vmatprep.subr.bf16.mxu0 0
        %1254 = vmatpush1.bf16.xpose.msra.mxu0 0
        %1255 = vmatprep.subr.bf16.mxu0 0
        %1256 = vmatpush1.bf16.xpose.msra.mxu0 0
        %1257 = vmatprep.mubr.bf16.mxu0 0
        %1258 = vmatmul.mubr.bf16.gmra.mrb[0].mxu0 %v1220
        %v1259 = vpop.f32.mrb[0].mxu0
        %v1260 = vadd.f32 0.0, %v1259
        %v1261 = vpop.f32.mrb[0].mxu0
        %v1262 = vpop.f32.mrb[0].mxu0
        %v1263 = vpop.f32.mrb[0].mxu0
        %1264 = vdwg.mxu0
        %v1266 = vsel %vm1218, %v915, 0
        %v1269 = vsel %vm1218, %v1065, 0
        %1271 = vmatprep.subr.bf16.mxu0 0
        %1272 = vmatpush1.bf16.xpose.msra.mxu0 %v1269
        %1273 = vmatprep.subr.bf16.mxu0 0
        %1274 = vmatpush1.bf16.xpose.msra.mxu0 0
        %1275 = vmatprep.subr.bf16.mxu0 0
        %1276 = vmatpush1.bf16.xpose.msra.mxu0 0
        %1277 = vmatprep.subr.bf16.mxu0 0
        %1278 = vmatpush1.bf16.xpose.msra.mxu0 0
        %1279 = vmatprep.subr.bf16.mxu0 0
        %1280 = vmatpush1.bf16.xpose.msra.mxu0 0
        %1281 = vmatprep.subr.bf16.mxu0 0
        %1282 = vmatpush1.bf16.xpose.msra.mxu0 0
        %1283 = vmatprep.subr.bf16.mxu0 0
        %1284 = vmatpush1.bf16.xpose.msra.mxu0 0
        %1285 = vmatprep.subr.bf16.mxu0 0
        %1286 = vmatpush1.bf16.xpose.msra.mxu0 0
        %1287 = vmatprep.subr.bf16.mxu0 0
        %1288 = vmatpush1.bf16.xpose.msra.mxu0 0
        %1289 = vmatprep.subr.bf16.mxu0 0
        %1290 = vmatpush1.bf16.xpose.msra.mxu0 0
        %1291 = vmatprep.subr.bf16.mxu0 0
        %1292 = vmatpush1.bf16.xpose.msra.mxu0 0
        %1293 = vmatprep.subr.bf16.mxu0 0
        %1294 = vmatpush1.bf16.xpose.msra.mxu0 0
        %1295 = vmatprep.subr.bf16.mxu0 0
        %1296 = vmatpush1.bf16.xpose.msra.mxu0 0
        %1297 = vmatprep.subr.bf16.mxu0 0
        %1298 = vmatpush1.bf16.xpose.msra.mxu0 0
        %1299 = vmatprep.subr.bf16.mxu0 0
        %1300 = vmatpush1.bf16.xpose.msra.mxu0 0
        %1301 = vmatprep.subr.bf16.mxu0 0
        %1302 = vmatpush1.bf16.xpose.msra.mxu0 0
        %1303 = vmatprep.mubr.bf16.mxu0 0
        %1304 = vmatmul.mubr.bf16.gmra.mrb[0].mxu0 %v1266
        %v1305 = vpop.f32.mrb[0].mxu0
        %v1306 = vadd.f32 0.0, %v1305
        %v1307 = vpop.f32.mrb[0].mxu0
        %v1308 = vpop.f32.mrb[0].mxu0
        %v1309 = vpop.f32.mrb[0].mxu0
        %1310 = vdwg.mxu0
        %v1312 = vsel %vm1218, %v916, 0
        %v1315 = vsel %vm1218, %v1066, 0
        %1317 = vmatprep.subr.bf16.mxu0 0
        %1318 = vmatpush1.bf16.xpose.msra.mxu0 %v1315
        %1319 = vmatprep.subr.bf16.mxu0 0
        %1320 = vmatpush1.bf16.xpose.msra.mxu0 0
        %1321 = vmatprep.subr.bf16.mxu0 0
        %1322 = vmatpush1.bf16.xpose.msra.mxu0 0
        %1323 = vmatprep.subr.bf16.mxu0 0
        %1324 = vmatpush1.bf16.xpose.msra.mxu0 0
        %1325 = vmatprep.subr.bf16.mxu0 0
        %1326 = vmatpush1.bf16.xpose.msra.mxu0 0
        %1327 = vmatprep.subr.bf16.mxu0 0
        %1328 = vmatpush1.bf16.xpose.msra.mxu0 0
        %1329 = vmatprep.subr.bf16.mxu0 0
        %1330 = vmatpush1.bf16.xpose.msra.mxu0 0
        %1331 = vmatprep.subr.bf16.mxu0 0
        %1332 = vmatpush1.bf16.xpose.msra.mxu0 0
        %1333 = vmatprep.subr.bf16.mxu0 0
        %1334 = vmatpush1.bf16.xpose.msra.mxu0 0
        %1335 = vmatprep.subr.bf16.mxu0 0
        %1336 = vmatpush1.bf16.xpose.msra.mxu0 0
        %1337 = vmatprep.subr.bf16.mxu0 0
        %1338 = vmatpush1.bf16.xpose.msra.mxu0 0
        %1339 = vmatprep.subr.bf16.mxu0 0
        %1340 = vmatpush1.bf16.xpose.msra.mxu0 0
        %1341 = vmatprep.subr.bf16.mxu0 0
        %1342 = vmatpush1.bf16.xpose.msra.mxu0 0
        %1343 = vmatprep.subr.bf16.mxu0 0
        %1344 = vmatpush1.bf16.xpose.msra.mxu0 0
        %1345 = vmatprep.subr.bf16.mxu0 0
        %1346 = vmatpush1.bf16.xpose.msra.mxu0 0
        %1347 = vmatprep.subr.bf16.mxu0 0
        %1348 = vmatpush1.bf16.xpose.msra.mxu0 0
        %1349 = vmatprep.mubr.bf16.mxu0 0
        %1350 = vmatmul.mubr.bf16.gmra.mrb[0].mxu0 %v1312
        %v1351 = vpop.f32.mrb[0].mxu0
        %v1352 = vadd.f32 0.0, %v1351
        %v1353 = vpop.f32.mrb[0].mxu0
        %v1354 = vpop.f32.mrb[0].mxu0
        %v1355 = vpop.f32.mrb[0].mxu0
        %1356 = vdwg.mxu0
        %v1358 = vsel %vm1218, %v917, 0
        %v1361 = vsel %vm1218, %v1067, 0
        %1363 = vmatprep.subr.bf16.mxu0 0
        %1364 = vmatpush1.bf16.xpose.msra.mxu0 %v1361
        %1365 = vmatprep.subr.bf16.mxu0 0
        %1366 = vmatpush1.bf16.xpose.msra.mxu0 0
        %1367 = vmatprep.subr.bf16.mxu0 0
        %1368 = vmatpush1.bf16.xpose.msra.mxu0 0
        %1369 = vmatprep.subr.bf16.mxu0 0
        %1370 = vmatpush1.bf16.xpose.msra.mxu0 0
        %1371 = vmatprep.subr.bf16.mxu0 0
        %1372 = vmatpush1.bf16.xpose.msra.mxu0 0
        %1373 = vmatprep.subr.bf16.mxu0 0
        %1374 = vmatpush1.bf16.xpose.msra.mxu0 0
        %1375 = vmatprep.subr.bf16.mxu0 0
        %1376 = vmatpush1.bf16.xpose.msra.mxu0 0
        %1377 = vmatprep.subr.bf16.mxu0 0
        %1378 = vmatpush1.bf16.xpose.msra.mxu0 0
        %1379 = vmatprep.subr.bf16.mxu0 0
        %1380 = vmatpush1.bf16.xpose.msra.mxu0 0
        %1381 = vmatprep.subr.bf16.mxu0 0
        %1382 = vmatpush1.bf16.xpose.msra.mxu0 0
        %1383 = vmatprep.subr.bf16.mxu0 0
        %1384 = vmatpush1.bf16.xpose.msra.mxu0 0
        %1385 = vmatprep.subr.bf16.mxu0 0
        %1386 = vmatpush1.bf16.xpose.msra.mxu0 0
        %1387 = vmatprep.subr.bf16.mxu0 0
        %1388 = vmatpush1.bf16.xpose.msra.mxu0 0
        %1389 = vmatprep.subr.bf16.mxu0 0
        %1390 = vmatpush1.bf16.xpose.msra.mxu0 0
        %1391 = vmatprep.subr.bf16.mxu0 0
        %1392 = vmatpush1.bf16.xpose.msra.mxu0 0
        %1393 = vmatprep.subr.bf16.mxu0 0
        %1394 = vmatpush1.bf16.xpose.msra.mxu0 0
        %1395 = vmatprep.mubr.bf16.mxu0 0
        %1396 = vmatmul.mubr.bf16.gmra.mrb[0].mxu0 %v1358
        %v1397 = vpop.f32.mrb[0].mxu0
        %v1398 = vadd.f32 0.0, %v1397
        %v1399 = vpop.f32.mrb[0].mxu0
        %v1400 = vpop.f32.mrb[0].mxu0
        %v1401 = vpop.f32.mrb[0].mxu0
        %1402 = vdwg.mxu0
        %v1403 = vmul.f32 %v1260, 0.17677669
        %v1404 = vmul.f32 %v1306, 0.17677669
        %v1405 = vmul.f32 %v1352, 0.17677669
        %v1406 = vmul.f32 %v1398, 0.17677669
        %v1407 = vadd.f32 %v1403, %v767
        %v1408 = vadd.f32 %v1404, %v767
        %v1409 = vadd.f32 %v1405, %v767
        %v1410 = vadd.f32 %v1406, %v767
        %vm1411 = vcmask 64512
        %v1412 = vsel %vm1411, %v1407, -inf
        %1413 = vmax.xlane.f32.xlu0 %v1412
        %v1414 = vpop.xlane.xlu0 %1413
        %v1415 = vsel %vm1411, %v1408, -inf
        %1416 = vmax.xlane.f32.xlu0 %v1415
        %v1417 = vpop.xlane.xlu0 %1416
        %v1418 = vsel %vm1411, %v1409, -inf
        %1419 = vmax.xlane.f32.xlu0 %v1418
        %v1420 = vpop.xlane.xlu0 %1419
        %v1421 = vsel %vm1411, %v1410, -inf
        %1422 = vmax.xlane.f32.xlu0 %v1421
        %v1423 = vpop.xlane.xlu0 %1422
        %v1424 = vsub.f32 %v1407, %v1414
        %v1425 = vsub.f32 %v1408, %v1417
        %v1426 = vsub.f32 %v1409, %v1420
        %v1427 = vsub.f32 %v1410, %v1423
        %v1428 = vmul.f32 %v1424, 1.442695
        %v1429 = vpow.pop %v1428
        %v1430 = vmul.f32 %v1425, 1.442695
        %v1431 = vpow.pop %v1430
        %v1432 = vmul.f32 %v1426, 1.442695
        %v1433 = vpow.pop %v1432
        %v1434 = vmul.f32 %v1427, 1.442695
        %v1435 = vpow.pop %v1434
        %v1436 = vsel %vm1411, %v1429, 0.0
        %1437 = vadd.xlane.f32.xlu0 %v1436
        %v1438 = vpop.xlane.xlu0 %1437
        %v1439 = vsel %vm1411, %v1431, 0.0
        %1440 = vadd.xlane.f32.xlu0 %v1439
        %v1441 = vpop.xlane.xlu0 %1440
        %v1442 = vsel %vm1411, %v1433, 0.0
        %1443 = vadd.xlane.f32.xlu0 %v1442
        %v1444 = vpop.xlane.xlu0 %1443
        %v1445 = vsel %vm1411, %v1435, 0.0
        %1446 = vadd.xlane.f32.xlu0 %v1445
        %v1447 = vpop.xlane.xlu0 %1446
        %v1448 = vmax.f32 %v1438, 1e-20
        %v1449 = vmax.f32 %v1441, 1e-20
        %v1450 = vmax.f32 %v1444, 1e-20
        %v1451 = vmax.f32 %v1447, 1e-20
        %v1452 = vrcp.pop %v1448
        %v1453 = vrcp.pop %v1449
        %v1454 = vrcp.pop %v1450
        %v1455 = vrcp.pop %v1451
        %v1456 = vmul.f32 %v1429, %v1452
        %v1457 = vmul.f32 %v1431, %v1453
        %v1458 = vmul.f32 %v1433, %v1454
        %v1459 = vmul.f32 %v1435, %v1455
        %v1460 = vpack.c.bf16 %v1456, %v1456
        %v1461 = vpack.c.bf16 %v1457, %v1457
        %v1462 = vpack.c.bf16 %v1458, %v1458
        %v1463 = vpack.c.bf16 %v1459, %v1459
        %v1465 = vsel %vm1411, %v1460, 0
        %vm1467 = vcmask 1043456
        %v1469 = vsel %vm1467, %v1214, 0
        %1471 = vmatprep.subr.bf16.mxu0 0
        %1472 = vmatpush1.bf16.msra.mxu0 %v1469
        %1473 = vmatprep.subr.bf16.mxu0 0
        %1474 = vmatpush1.bf16.msra.mxu0 0
        %1475 = vmatprep.subr.bf16.mxu0 0
        %1476 = vmatpush1.bf16.msra.mxu0 0
        %1477 = vmatprep.subr.bf16.mxu0 0
        %1478 = vmatpush1.bf16.msra.mxu0 0
        %1479 = vmatprep.subr.bf16.mxu0 0
        %1480 = vmatpush1.bf16.msra.mxu0 0
        %1481 = vmatprep.subr.bf16.mxu0 0
        %1482 = vmatpush1.bf16.msra.mxu0 0
        %1483 = vmatprep.subr.bf16.mxu0 0
        %1484 = vmatpush1.bf16.msra.mxu0 0
        %1485 = vmatprep.subr.bf16.mxu0 0
        %1486 = vmatpush1.bf16.msra.mxu0 0
        %1487 = vmatprep.subr.bf16.mxu0 0
        %1488 = vmatpush1.bf16.msra.mxu0 0
        %1489 = vmatprep.subr.bf16.mxu0 0
        %1490 = vmatpush1.bf16.msra.mxu0 0
        %1491 = vmatprep.subr.bf16.mxu0 0
        %1492 = vmatpush1.bf16.msra.mxu0 0
        %1493 = vmatprep.subr.bf16.mxu0 0
        %1494 = vmatpush1.bf16.msra.mxu0 0
        %1495 = vmatprep.subr.bf16.mxu0 0
        %1496 = vmatpush1.bf16.msra.mxu0 0
        %1497 = vmatprep.subr.bf16.mxu0 0
        %1498 = vmatpush1.bf16.msra.mxu0 0
        %1499 = vmatprep.subr.bf16.mxu0 0
        %1500 = vmatpush1.bf16.msra.mxu0 0
        %1501 = vmatprep.subr.bf16.mxu0 0
        %1502 = vmatpush1.bf16.msra.mxu0 0
        %1503 = vmatprep.mubr.bf16.mxu0 0
        %1504 = vmatmul.mubr.bf16.gmra.mrb[0].mxu0 %v1465
        %v1505 = vpop.f32.mrb[0].mxu0
        %v1506 = vadd.f32 0.0, %v1505
        %v1507 = vpop.f32.mrb[0].mxu0
        %v1508 = vpop.f32.mrb[0].mxu0
        %v1509 = vpop.f32.mrb[0].mxu0
        %1510 = vdwg.mxu0
        %v1512 = vsel %vm1411, %v1461, 0
        %v1515 = vsel %vm1467, %v1215, 0
        %1517 = vmatprep.subr.bf16.mxu0 0
        %1518 = vmatpush1.bf16.msra.mxu0 %v1515
        %1519 = vmatprep.subr.bf16.mxu0 0
        %1520 = vmatpush1.bf16.msra.mxu0 0
        %1521 = vmatprep.subr.bf16.mxu0 0
        %1522 = vmatpush1.bf16.msra.mxu0 0
        %1523 = vmatprep.subr.bf16.mxu0 0
        %1524 = vmatpush1.bf16.msra.mxu0 0
        %1525 = vmatprep.subr.bf16.mxu0 0
        %1526 = vmatpush1.bf16.msra.mxu0 0
        %1527 = vmatprep.subr.bf16.mxu0 0
        %1528 = vmatpush1.bf16.msra.mxu0 0
        %1529 = vmatprep.subr.bf16.mxu0 0
        %1530 = vmatpush1.bf16.msra.mxu0 0
        %1531 = vmatprep.subr.bf16.mxu0 0
        %1532 = vmatpush1.bf16.msra.mxu0 0
        %1533 = vmatprep.subr.bf16.mxu0 0
        %1534 = vmatpush1.bf16.msra.mxu0 0
        %1535 = vmatprep.subr.bf16.mxu0 0
        %1536 = vmatpush1.bf16.msra.mxu0 0
        %1537 = vmatprep.subr.bf16.mxu0 0
        %1538 = vmatpush1.bf16.msra.mxu0 0
        %1539 = vmatprep.subr.bf16.mxu0 0
        %1540 = vmatpush1.bf16.msra.mxu0 0
        %1541 = vmatprep.subr.bf16.mxu0 0
        %1542 = vmatpush1.bf16.msra.mxu0 0
        %1543 = vmatprep.subr.bf16.mxu0 0
        %1544 = vmatpush1.bf16.msra.mxu0 0
        %1545 = vmatprep.subr.bf16.mxu0 0
        %1546 = vmatpush1.bf16.msra.mxu0 0
        %1547 = vmatprep.subr.bf16.mxu0 0
        %1548 = vmatpush1.bf16.msra.mxu0 0
        %1549 = vmatprep.mubr.bf16.mxu0 0
        %1550 = vmatmul.mubr.bf16.gmra.mrb[0].mxu0 %v1512
        %v1551 = vpop.f32.mrb[0].mxu0
        %v1552 = vadd.f32 0.0, %v1551
        %v1553 = vpop.f32.mrb[0].mxu0
        %v1554 = vpop.f32.mrb[0].mxu0
        %v1555 = vpop.f32.mrb[0].mxu0
        %1556 = vdwg.mxu0
        %v1558 = vsel %vm1411, %v1462, 0
        %v1561 = vsel %vm1467, %v1216, 0
        %1563 = vmatprep.subr.bf16.mxu0 0
        %1564 = vmatpush1.bf16.msra.mxu0 %v1561
        %1565 = vmatprep.subr.bf16.mxu0 0
        %1566 = vmatpush1.bf16.msra.mxu0 0
        %1567 = vmatprep.subr.bf16.mxu0 0
        %1568 = vmatpush1.bf16.msra.mxu0 0
        %1569 = vmatprep.subr.bf16.mxu0 0
        %1570 = vmatpush1.bf16.msra.mxu0 0
        %1571 = vmatprep.subr.bf16.mxu0 0
        %1572 = vmatpush1.bf16.msra.mxu0 0
        %1573 = vmatprep.subr.bf16.mxu0 0
        %1574 = vmatpush1.bf16.msra.mxu0 0
        %1575 = vmatprep.subr.bf16.mxu0 0
        %1576 = vmatpush1.bf16.msra.mxu0 0
        %1577 = vmatprep.subr.bf16.mxu0 0
        %1578 = vmatpush1.bf16.msra.mxu0 0
        %1579 = vmatprep.subr.bf16.mxu0 0
        %1580 = vmatpush1.bf16.msra.mxu0 0
        %1581 = vmatprep.subr.bf16.mxu0 0
        %1582 = vmatpush1.bf16.msra.mxu0 0
        %1583 = vmatprep.subr.bf16.mxu0 0
        %1584 = vmatpush1.bf16.msra.mxu0 0
        %1585 = vmatprep.subr.bf16.mxu0 0
        %1586 = vmatpush1.bf16.msra.mxu0 0
        %1587 = vmatprep.subr.bf16.mxu0 0
        %1588 = vmatpush1.bf16.msra.mxu0 0
        %1589 = vmatprep.subr.bf16.mxu0 0
        %1590 = vmatpush1.bf16.msra.mxu0 0
        %1591 = vmatprep.subr.bf16.mxu0 0
        %1592 = vmatpush1.bf16.msra.mxu0 0
        %1593 = vmatprep.subr.bf16.mxu0 0
        %1594 = vmatpush1.bf16.msra.mxu0 0
        %1595 = vmatprep.mubr.bf16.mxu0 0
        %1596 = vmatmul.mubr.bf16.gmra.mrb[0].mxu0 %v1558
        %v1597 = vpop.f32.mrb[0].mxu0
        %v1598 = vadd.f32 0.0, %v1597
        %v1599 = vpop.f32.mrb[0].mxu0
        %v1600 = vpop.f32.mrb[0].mxu0
        %v1601 = vpop.f32.mrb[0].mxu0
        %1602 = vdwg.mxu0
        %v1604 = vsel %vm1411, %v1463, 0
        %v1607 = vsel %vm1467, %v1217, 0
        %1609 = vmatprep.subr.bf16.mxu0 0
        %1610 = vmatpush1.bf16.msra.mxu0 %v1607
        %1611 = vmatprep.subr.bf16.mxu0 0
        %1612 = vmatpush1.bf16.msra.mxu0 0
        %1613 = vmatprep.subr.bf16.mxu0 0
        %1614 = vmatpush1.bf16.msra.mxu0 0
        %1615 = vmatprep.subr.bf16.mxu0 0
        %1616 = vmatpush1.bf16.msra.mxu0 0
        %1617 = vmatprep.subr.bf16.mxu0 0
        %1618 = vmatpush1.bf16.msra.mxu0 0
        %1619 = vmatprep.subr.bf16.mxu0 0
        %1620 = vmatpush1.bf16.msra.mxu0 0
        %1621 = vmatprep.subr.bf16.mxu0 0
        %1622 = vmatpush1.bf16.msra.mxu0 0
        %1623 = vmatprep.subr.bf16.mxu0 0
        %1624 = vmatpush1.bf16.msra.mxu0 0
        %1625 = vmatprep.subr.bf16.mxu0 0
        %1626 = vmatpush1.bf16.msra.mxu0 0
        %1627 = vmatprep.subr.bf16.mxu0 0
        %1628 = vmatpush1.bf16.msra.mxu0 0
        %1629 = vmatprep.subr.bf16.mxu0 0
        %1630 = vmatpush1.bf16.msra.mxu0 0
        %1631 = vmatprep.subr.bf16.mxu0 0
        %1632 = vmatpush1.bf16.msra.mxu0 0
        %1633 = vmatprep.subr.bf16.mxu0 0
        %1634 = vmatpush1.bf16.msra.mxu0 0
        %1635 = vmatprep.subr.bf16.mxu0 0
        %1636 = vmatpush1.bf16.msra.mxu0 0
        %1637 = vmatprep.subr.bf16.mxu0 0
        %1638 = vmatpush1.bf16.msra.mxu0 0
        %1639 = vmatprep.subr.bf16.mxu0 0
        %1640 = vmatpush1.bf16.msra.mxu0 0
        %1641 = vmatprep.mubr.bf16.mxu0 0
        %1642 = vmatmul.mubr.bf16.gmra.mrb[0].mxu0 %v1604
        %v1643 = vpop.f32.mrb[0].mxu0
        %v1644 = vadd.f32 0.0, %v1643
        %v1645 = vpop.f32.mrb[0].mxu0
        %v1646 = vpop.f32.mrb[0].mxu0
        %v1647 = vpop.f32.mrb[0].mxu0
        %1648 = vdwg.mxu0
        %v1649 = vcombine.low %v1506, %v1598
        %v1650 = vcombine.high %v1506, %v1598
        %v1652 = vunpack.c.l.s4 1983009808
        %v1653 = vunpack.c.0.s8 %v1652
        %v1654 = vlaneseq
        %v1655 = vshrl.u32 %v1654, 7
        %v1656 = vsub.s32 %v1653, %v1655
        %v1657 = vrot.slane %v1649, %v1656
        %v1659 = vunpack.c.l.s4 1983009808
        %v1660 = vunpack.c.0.s8 %v1659
        %v1661 = vlaneseq
        %v1662 = vshrl.u32 %v1661, 7
        %v1663 = vsub.s32 %v1660, %v1662
        %v1664 = vrot.slane %v1650, %v1663
        %v1665 = vcombine.low %v1552, %v1644
        %v1666 = vcombine.high %v1552, %v1644
        %v1668 = vunpack.c.l.s4 1983009808
        %v1669 = vunpack.c.0.s8 %v1668
        %v1670 = vlaneseq
        %v1671 = vshrl.u32 %v1670, 7
        %v1672 = vsub.s32 %v1669, %v1671
        %v1673 = vrot.slane %v1665, %v1672
        %v1675 = vunpack.c.l.s4 1983009808
        %v1676 = vunpack.c.0.s8 %v1675
        %v1677 = vlaneseq
        %v1678 = vshrl.u32 %v1677, 7
        %v1679 = vsub.s32 %v1676, %v1678
        %v1680 = vrot.slane %v1666, %v1679
        %v1681 = vcombine.low %v1657, %v1673
        %v1682 = vcombine.high %v1657, %v1673
        %v1684 = vunpack.c.l.s4 1934713408
        %v1685 = vunpack.c.0.s8 %v1684
        %v1686 = vlaneseq
        %v1687 = vshrl.u32 %v1686, 7
        %v1688 = vsub.s32 %v1685, %v1687
        %v1689 = vrot.slane %v1681, %v1688
        %v1691 = vunpack.c.l.s4 1934713408
        %v1692 = vunpack.c.0.s8 %v1691
        %v1693 = vlaneseq
        %v1694 = vshrl.u32 %v1693, 7
        %v1695 = vsub.s32 %v1692, %v1694
        %v1696 = vrot.slane %v1682, %v1695
        %v1697 = vcombine.low %v1664, %v1680
        %v1698 = vcombine.high %v1664, %v1680
        %v1700 = vunpack.c.l.s4 1934713408
        %v1701 = vunpack.c.0.s8 %v1700
        %v1702 = vlaneseq
        %v1703 = vshrl.u32 %v1702, 7
        %v1704 = vsub.s32 %v1701, %v1703
        %v1705 = vrot.slane %v1697, %v1704
        %v1707 = vunpack.c.l.s4 1934713408
        %v1708 = vunpack.c.0.s8 %v1707
        %v1709 = vlaneseq
        %v1710 = vshrl.u32 %v1709, 7
        %v1711 = vsub.s32 %v1708, %v1710
        %v1712 = vrot.slane %v1698, %v1711
        %v1713 = vcombine.high %v1689, 0.0
        %v1714 = vcombine.high %v1696, 0.0
        %v1715 = vcombine.high %v1705, 0.0
        %v1716 = vcombine.high %v1712, 0.0
        %v1717 = vcombine.low %v1689, %v1696
        %v1719 = vunpack.c.l.s4 1983009808
        %v1720 = vunpack.c.0.s8 %v1719
        %v1721 = vlaneseq
        %v1722 = vshrl.u32 %v1721, 7
        %v1723 = vsub.s32 %v1720, %v1722
        %v1724 = vrot.slane %v1717, %v1723
        %v1725 = vcombine.low %v1713, %v1714
        %v1727 = vunpack.c.l.s4 1983009808
        %v1728 = vunpack.c.0.s8 %v1727
        %v1729 = vlaneseq
        %v1730 = vshrl.u32 %v1729, 7
        %v1731 = vsub.s32 %v1728, %v1730
        %v1732 = vrot.slane %v1725, %v1731
        %v1733 = vcombine.low %v1705, %v1712
        %v1735 = vunpack.c.l.s4 1983009808
        %v1736 = vunpack.c.0.s8 %v1735
        %v1737 = vlaneseq
        %v1738 = vshrl.u32 %v1737, 7
        %v1739 = vsub.s32 %v1736, %v1738
        %v1740 = vrot.slane %v1733, %v1739
        %v1741 = vcombine.low %v1715, %v1716
        %v1743 = vunpack.c.l.s4 1983009808
        %v1744 = vunpack.c.0.s8 %v1743
        %v1745 = vlaneseq
        %v1746 = vshrl.u32 %v1745, 7
        %v1747 = vsub.s32 %v1744, %v1746
        %v1748 = vrot.slane %v1741, %v1747
        %v1749 = vcombine.low %v1724, %v1732
        %v1750 = vcombine.high %v1724, %v1732
        %v1752 = vunpack.c.l.s4 1934713408
        %v1753 = vunpack.c.0.s8 %v1752
        %v1754 = vlaneseq
        %v1755 = vshrl.u32 %v1754, 7
        %v1756 = vsub.s32 %v1753, %v1755
        %v1757 = vrot.slane %v1749, %v1756
        %v1759 = vunpack.c.l.s4 1934713408
        %v1760 = vunpack.c.0.s8 %v1759
        %v1761 = vlaneseq
        %v1762 = vshrl.u32 %v1761, 7
        %v1763 = vsub.s32 %v1760, %v1762
        %v1764 = vrot.slane %v1750, %v1763
        %v1765 = vcombine.low %v1740, %v1748
        %v1766 = vcombine.high %v1740, %v1748
        %v1768 = vunpack.c.l.s4 1934713408
        %v1769 = vunpack.c.0.s8 %v1768
        %v1770 = vlaneseq
        %v1771 = vshrl.u32 %v1770, 7
        %v1772 = vsub.s32 %v1769, %v1771
        %v1773 = vrot.slane %v1765, %v1772
        %v1775 = vunpack.c.l.s4 1934713408
        %v1776 = vunpack.c.0.s8 %v1775
        %v1777 = vlaneseq
        %v1778 = vshrl.u32 %v1777, 7
        %v1779 = vsub.s32 %v1776, %v1778
        %v1780 = vrot.slane %v1766, %v1779
        %v1781 = vcombine.low %v1757, %v1773
        %v1782 = vcombine.high %v1757, %v1773
        %v1783 = vcombine.low %v1764, %v1780
        %v1784 = vcombine.high %v1764, %v1780
        %1786 = vrot.lane.b32.xlu0 %v1782, 32
        %v1787 = vpop.permute.xlu0 %1786
        %1790 = vrot.lane.b32.xlu0 %v1783, 64
        %v1791 = vpop.permute.xlu0 %1790
        %1794 = vrot.lane.b32.xlu0 %v1784, 96
        %v1795 = vpop.permute.xlu0 %1794
        %v1797 = vsel %vm1218, %v1781, %v1787
        %vm1798 = vcmask 523264
        %v1799 = vsel %vm1798, %v1797, %v1791
        %vm1800 = vcmask 785408
        %v1801 = vsel %vm1800, %v1799, %v1795
        %v1802 = vpack.c.bf16 %v1801, %v1801
        %v1803 = vld [vmem:[#allocation11] sm:$0xf]
        %v1804 = vld [vmem:[#allocation11 + $0x4] sm:$0xf]
        %v1805 = vld [vmem:[#allocation11 + $0x8] sm:$0xf]
        %v1806 = vld [vmem:[#allocation11 + $0xc] sm:$0xf]
        %v1807 = vld [vmem:[#allocation11 + $0x10] sm:$0xf]
        %v1808 = vld [vmem:[#allocation11 + $0x14] sm:$0xf]
        %v1809 = vld [vmem:[#allocation11 + $0x18] sm:$0xf]
        %v1810 = vld [vmem:[#allocation11 + $0x1c] sm:$0xf]
        %v1811 = vld [vmem:[#allocation11 + $0x20] sm:$0xf]
        %v1812 = vld [vmem:[#allocation11 + $0x24] sm:$0xf]
        %v1813 = vld [vmem:[#allocation11 + $0x28] sm:$0xf]
        %v1814 = vld [vmem:[#allocation11 + $0x2c] sm:$0xf]
        %v1815 = vld [vmem:[#allocation11 + $0x30] sm:$0xf]
        %v1816 = vld [vmem:[#allocation11 + $0x34] sm:$0xf]
        %v1817 = vld [vmem:[#allocation11 + $0x38] sm:$0xf]
        %v1818 = vld [vmem:[#allocation11 + $0x3c] sm:$0xf]
        %v1819 = vld [vmem:[#allocation13] sm:$0x1]
        %v1821 = vlaneseq
        %v1822 = vshrl.u32 %v1821, 7
        %v1823 = vsub.s32 0, %v1822
        %v1824 = vrot.slane %v1819, %v1823
        %v1842 = vunpack.c.l.b16 %v1803
        %v1843 = vunpack.c.l.b16 %v1804
        %v1844 = vunpack.c.l.b16 %v1805
        %v1845 = vunpack.c.l.b16 %v1806
        %v1846 = vunpack.c.l.b16 %v1807
        %v1847 = vunpack.c.l.b16 %v1808
        %v1848 = vunpack.c.l.b16 %v1809
        %v1849 = vunpack.c.l.b16 %v1810
        %v1850 = vunpack.c.l.b16 %v1811
        %v1851 = vunpack.c.l.b16 %v1812
        %v1852 = vunpack.c.l.b16 %v1813
        %v1853 = vunpack.c.l.b16 %v1814
        %v1854 = vunpack.c.l.b16 %v1815
        %v1855 = vunpack.c.l.b16 %v1816
        %v1856 = vunpack.c.l.b16 %v1817
        %v1857 = vunpack.c.l.b16 %v1818
        %v1858 = vpack.c.b16 %v1843, %v1842
        %v1859 = vpack.c.b16 %v1845, %v1844
        %v1860 = vpack.c.b16 %v1847, %v1846
        %v1861 = vpack.c.b16 %v1849, %v1848
        %v1862 = vpack.c.b16 %v1851, %v1850
        %v1863 = vpack.c.b16 %v1853, %v1852
        %v1864 = vpack.c.b16 %v1855, %v1854
        %v1865 = vpack.c.b16 %v1857, %v1856
        %1874 = vmatprep.subr.bf16.mxu0 0
        %1875 = vmatpush1.bf16.msra.mxu0 %v1858
        %1876 = vmatprep.subr.bf16.mxu0 0
        %1877 = vmatpush1.bf16.msra.mxu0 %v1859
        %1878 = vmatprep.subr.bf16.mxu0 0
        %1879 = vmatpush1.bf16.msra.mxu0 %v1860
        %1880 = vmatprep.subr.bf16.mxu0 0
        %1881 = vmatpush1.bf16.msra.mxu0 %v1861
        %1882 = vmatprep.subr.bf16.mxu0 0
        %1883 = vmatpush1.bf16.msra.mxu0 %v1862
        %1884 = vmatprep.subr.bf16.mxu0 0
        %1885 = vmatpush1.bf16.msra.mxu0 %v1863
        %1886 = vmatprep.subr.bf16.mxu0 0
        %1887 = vmatpush1.bf16.msra.mxu0 %v1864
        %1888 = vmatprep.subr.bf16.mxu0 0
        %1889 = vmatpush1.bf16.msra.mxu0 %v1865
        %1890 = vmatprep.subr.bf16.mxu0 0
        %1891 = vmatpush1.bf16.msra.mxu0 0
        %1892 = vmatprep.subr.bf16.mxu0 0
        %1893 = vmatpush1.bf16.msra.mxu0 0
        %1894 = vmatprep.subr.bf16.mxu0 0
        %1895 = vmatpush1.bf16.msra.mxu0 0
        %1896 = vmatprep.subr.bf16.mxu0 0
        %1897 = vmatpush1.bf16.msra.mxu0 0
        %1898 = vmatprep.subr.bf16.mxu0 0
        %1899 = vmatpush1.bf16.msra.mxu0 0
        %1900 = vmatprep.subr.bf16.mxu0 0
        %1901 = vmatpush1.bf16.msra.mxu0 0
        %1902 = vmatprep.subr.bf16.mxu0 0
        %1903 = vmatpush1.bf16.msra.mxu0 0
        %1904 = vmatprep.subr.bf16.mxu0 0
        %1905 = vmatpush1.bf16.msra.mxu0 0
        %1906 = vmatprep.mubr.bf16.mxu0 0
        %1907 = vmatmul.mubr.bf16.gmra.mrb[0].mxu0 %v1802
        %v1908 = vpop.f32.mrb[0].mxu0
        %v1909 = vadd.f32 %v1824, %v1908
        %v1910 = vpop.f32.mrb[0].mxu0
        %v1911 = vpop.f32.mrb[0].mxu0
        %v1912 = vpop.f32.mrb[0].mxu0
        %1913 = vdwg.mxu0
        %v1914 = vadd.f32 %v497, %v1909
        %v1915 = vld [vmem:[#allocation14] sm:$0x1]
        %v1916 = vld [vmem:[#allocation16] sm:$0x1]
        %1917 = vadd.xlane.f32.xlu0 %v1914
        %v1918 = vpop.xlane.xlu0 %1917
        %v1919 = vrcp.pop 128.0
        %v1920 = vmul.f32 %v1918, %v1919
        %v1921 = vsub.f32 %v1914, %v1920
        %v1922 = vmul.f32 %v1921, %v1921
        %1923 = vadd.xlane.f32.xlu0 %v1922
        %v1924 = vpop.xlane.xlu0 %1923
        %v1925 = vmul.f32 %v1924, %v1919
        %v1926 = vadd.f32 %v1925, 1e-05
        %v1927 = vrsqrt.pop %v1926
        %v1928 = vmul.f32 %v1921, %v1927
        %v1930 = vlaneseq
        %v1931 = vshrl.u32 %v1930, 7
        %v1932 = vsub.s32 0, %v1931
        %v1933 = vrot.slane %v1915, %v1932
        %v1935 = vmul.f32 %v1928, %v1933
        %v1937 = vlaneseq
        %v1938 = vshrl.u32 %v1937, 7
        %v1939 = vsub.s32 0, %v1938
        %v1940 = vrot.slane %v1916, %v1939
        %v1942 = vadd.f32 %v1935, %v1940
        %v1943 = vpack.c.bf16 %v1942, %v1942
        %1944 = vst [vmem:[%s494] sm:$0xf] %v1943
        %s1945 = sand.u32 %s244, 1
        %s1946 = scalar_lea.sflag [#allocation4], %s1945
        %s1947 = sand.u32 %s244, 1
        %s1948 = smul.addr %s1947, 4
        %s1949 = scalar_lea.vmem [#allocation17], %s1948
        // Predicated region
        $region93: #{transformer_forward.16} parent=55 // pred_check
          %p1950 = pneg %p254
        $region94: #{transformer_forward.16} parent=55 // pred_check_branch
          %1952 = sbr.rel (%p1950) target = $region96
        $region95: #{transformer_forward.16} parent=55 // pred_region
          %s1954 = ssub.s32 64, 64
          %1955 = vsyncadd %s1946, %s1954
          %s1956 = smul.addr %s32, 64
          %s1957 = scalar_lea.hbm %s9, %s1956
          %s1959 = sshll.u32 %s1949, 4
          %s1960 = int_to_ptr.vmem [resolvable:$true] %s1959
          %1962 = dma.vmem_to_hbm [thread:$0]  %s1960, 64, %s1957, %s1946
        $region96: #{transformer_forward.16} parent=55 // pred_fallthru
          _
      $region56: #{transformer_forward.16} parent=5 // pred_fallthru
        _
      %p1963 = scmp.le.s32.totalorder 2, %s27
      // Predicated region
      $region97: #{transformer_forward.16} parent=5 // pred_check
        %p1964 = pneg %p1963
      $region98: #{transformer_forward.16} parent=5 // pred_check_branch
        %1966 = sbr.rel (%p1964) target = $region100
      $region99: #{transformer_forward.16} parent=5 // pred_region
        %s1967 = ssub.s32 %s27, 2
        // Predicated region
        $region101: #{transformer_forward.16} parent=99 // pred_check
          %p1968 = pneg %p260
        $region102: #{transformer_forward.16} parent=99 // pred_check_branch
          %1970 = sbr.rel (%p1968) target = $region104
        $region103: #{transformer_forward.16} parent=99 // pred_region
          %s1971 = sand.u32 %s245, 1
          %s1972 = scalar_lea.sflag [#allocation4], %s1971
          %s1973 = sand.u32 %s245, 1
          %s1974 = smul.addr %s1973, 4
          %s1975 = scalar_lea.vmem [#allocation17], %s1974
          %1976 = dma.done %s1972, 64
        $region104: #{transformer_forward.16} parent=99 // pred_fallthru
          _
      $region100: #{transformer_forward.16} parent=5 // pred_fallthru
        _
    $region6: #{transformer_forward.16} parent=1 // loop_footer
      %s31 = sadd.s32 1, %s27
    $region7: #{transformer_forward.16} parent=1 // loop_footer_branch
      %26 = sbr.rel target = $region3
    $region8: #{transformer_forward.16} parent=1 // loop_exit
      _
    %1977 = vsyncpa [#allocation3], 1
    %s1978 = scalar_lea.sflag [#allocation3], 1
    %1979 = vsyncpa %s1978, 1
    %1980 = vsyncpa [#allocation6], 1
    %s1981 = scalar_lea.sflag [#allocation6], 1
    %1982 = vsyncpa %s1981, 1
    %1983 = vsyncpa [#allocation9], 1
    %1984 = vsyncpa [#allocation12], 1
    %1985 = vsyncpa [#allocation15], 1
    %1986 = vsyncpa [#allocation4], 1
    %s1987 = scalar_lea.sflag [#allocation4], 1
    %1988 = vsyncpa %s1987, 1

// kernel: transformer_forward.11
$region0: #{transformer_forward.11}
  #allocation0 [shape = 'u32[]', space=smem, size = 0x4, offset = 0x4, fixed_abs, tag = 'smem constant byte address 0x4 - core index']
  #allocation1 [shape = 'u32[144,128]{1,0:T(1,128)}', space=vmem, size = 0x12000, scoped, tag = 'internal scratch']
  %s0 = inlined_call_operand.hbm [shape: bf16[2,8,128], index: 0, kind: input, shape index: {}, may-alias: {0,1}]
  %s1 = inlined_call_operand.hbm [shape: bf16[2,8,128], index: 1, kind: input, shape index: {}, may-alias: {0,1}]
  %s2 = inlined_call_operand.hbm [shape: f32[2,1,8], index: 2, kind: input, shape index: {}]
  %s3 = inlined_call_operand.hbm [shape: bf16[128,384], index: 3, kind: input, shape index: {}]
  %s4 = inlined_call_operand.hbm [shape: f32[1,384], index: 4, kind: input, shape index: {}]
  %s5 = inlined_call_operand.hbm [shape: bf16[128,128], index: 5, kind: input, shape index: {}]
  %s6 = inlined_call_operand.hbm [shape: f32[1,128], index: 6, kind: input, shape index: {}]
  %s7 = inlined_call_operand.hbm [shape: f32[1,128], index: 7, kind: input, shape index: {}]
  %s8 = inlined_call_operand.hbm [shape: f32[1,128], index: 8, kind: input, shape index: {}]
  %s9 = inlined_call_operand.hbm [shape: bf16[2,8,128], index: 9, kind: output, shape index: {}]
  %s10 = sld [smem:[#allocation0]]
  $region105: #{transformer_forward.11} parent=0
    _
  %s12 = ssub.s32 1, %s10
  %s13 = scalar_select 0, %s12, %s10
  $region1: #{transformer_forward.11} parent=0
    #allocation2 [shape = 'u8[4096]{0}', space=vmem, size = 0x1000, scoped, tag = 'input window, operand 0']
    #allocation3 [shape = 's32[2]{0}', space=sflag, size = 0x8, scoped, tag = 'scoped memory for transformer_forward.11']
    #allocation4 [shape = 's32[2]{0}', space=sflag, size = 0x8, scoped, tag = 'scoped memory for transformer_forward.11']
    #allocation5 [shape = 'u8[4096]{0}', space=vmem, size = 0x1000, scoped, tag = 'input window, operand 1']
    #allocation6 [shape = 's32[2]{0}', space=sflag, size = 0x8, scoped, tag = 'scoped memory for transformer_forward.11']
    #allocation7 [shape = 'u8[1024]{0}', space=vmem, size = 0x400, scoped, tag = 'input window, operand 2']
    #allocation8 [shape = 'u8[98304]{0}', space=vmem, size = 0x18000, scoped, tag = 'input window, operand 3, single buffered']
    #allocation9 [shape = 's32[1]{0}', space=sflag, size = 0x4, scoped, tag = 'scoped memory for transformer_forward.11']
    #allocation10 [shape = 'u8[1536]{0}', space=vmem, size = 0x800, scoped, tag = 'input window, operand 4, single buffered']
    #allocation11 [shape = 'u8[32768]{0}', space=vmem, size = 0x8000, scoped, tag = 'input window, operand 5, single buffered']
    #allocation12 [shape = 's32[1]{0}', space=sflag, size = 0x4, scoped, tag = 'scoped memory for transformer_forward.11']
    #allocation13 [shape = 'u8[512]{0}', space=vmem, size = 0x400, scoped, tag = 'input window, operand 6, single buffered']
    #allocation14 [shape = 'u8[512]{0}', space=vmem, size = 0x400, scoped, tag = 'input window, operand 7, single buffered']
    #allocation15 [shape = 's32[1]{0}', space=sflag, size = 0x4, scoped, tag = 'scoped memory for transformer_forward.11']
    #allocation16 [shape = 'u8[512]{0}', space=vmem, size = 0x400, scoped, tag = 'input window, operand 8, single buffered']
    #allocation17 [shape = 'u8[4096]{0}', space=vmem, size = 0x1000, scoped, tag = 'output window, operand 0']
    %14 = vsyncpa [#allocation3], 0
    %s15 = scalar_lea.sflag [#allocation3], 1
    %16 = vsyncpa %s15, 0
    %17 = vsyncpa [#allocation6], 0
    %s18 = scalar_lea.sflag [#allocation6], 1
    %19 = vsyncpa %s18, 0
    %20 = vsyncpa [#allocation9], 0
    %21 = vsyncpa [#allocation12], 0
    %22 = vsyncpa [#allocation15], 0
    %23 = vsyncpa [#allocation4], 0
    %s24 = scalar_lea.sflag [#allocation4], 1
    %25 = vsyncpa %s24, 0
    loop: start=0, step=1, limit=4
    $region2: #{transformer_forward.11} parent=1 // loop_pre_header
      _
    $region3: #{transformer_forward.11} parent=1 // loop_header
      %s27 = sphi 0, %s31
      %p28 = scmp.ge.s32.totalorder %s27, 4
      %s37 = sphi 0, %s39
      %s40 = sphi 0, %s37
      %s41 = sphi 0, %s40
      %s57 = sphi 0, %s41
      %s63 = sphi 0, %s65
      %s66 = sphi 0, %s63
      %s67 = sphi 0, %s66
      %s83 = sphi 0, %s67
      %s89 = sphi 0, %s91
      %s92 = sphi 0, %s89
      %s93 = sphi 0, %s92
      %s109 = sphi 0, %s93
      %s113 = sphi 0, %s113
      %s115 = sphi 0, %s113
      %s116 = sphi 0, %s115
      %s130 = sphi 0, %s116
      %s134 = sphi 0, %s134
      %s136 = sphi 0, %s134
      %s137 = sphi 0, %s136
      %s151 = sphi 0, %s137
      %s155 = sphi 0, %s155
      %s157 = sphi 0, %s155
      %s158 = sphi 0, %s157
      %s172 = sphi 0, %s158
      %s176 = sphi 0, %s176
      %s178 = sphi 0, %s176
      %s179 = sphi 0, %s178
      %s193 = sphi 0, %s179
      %s197 = sphi 0, %s197
      %s199 = sphi 0, %s197
      %s200 = sphi 0, %s199
      %s214 = sphi 0, %s200
      %s218 = sphi 0, %s218
      %s220 = sphi 0, %s218
      %s221 = sphi 0, %s220
      %s235 = sphi 0, %s221
      %s241 = sphi 0, %s243
      %s244 = sphi 0, %s241
      %s245 = sphi 0, %s244
      %s261 = sphi 0, %s245
    $region4: #{transformer_forward.11} parent=1 // loop_header_branch
      %30 = sbr.rel (%p28) target = $region8
    $region5: #{transformer_forward.11} parent=1 // loop_body
      %s32 = ssub.s32 %s27, 1
      %s33 = ssub.s32 %s27, 2
      %s34 = sadd.s32 %s27, 1
      %s35 = ssub.s32 %s27, %s34
      %p36 = scmp.eq.s32.totalorder %s35, 0
      %s38 = sadd.s32 %s37, 1
      %s39 = scalar_select %p36, %s37, %s38
      %p42 = pneg %p36
      %p43 = scmp.eq.s32.totalorder %s27, 1
      %p44 = por %p42, %p43
      %p45 = scmp.ne.s32.totalorder %s37, %s40
      %p46 = scmp.eq.s32.totalorder %s27, 0
      %p47 = por %p45, %p46
      %p48 = scmp.ne.s32.totalorder %s37, %s40
      %p49 = scmp.eq.s32.totalorder %s32, 1
      %p50 = por %p48, %p49
      %p51 = scmp.ne.s32.totalorder %s40, %s41
      %p52 = scmp.eq.s32.totalorder %s32, 0
      %p53 = por %p51, %p52
      %p54 = scmp.ne.s32.totalorder %s40, %s41
      %p55 = scmp.eq.s32.totalorder %s33, 1
      %p56 = por %p54, %p55
      %p58 = scmp.ne.s32.totalorder %s41, %s57
      %p59 = scmp.eq.s32.totalorder %s33, 0
      %p60 = por %p58, %p59
      %s61 = ssub.s32 %s27, %s34
      %p62 = scmp.eq.s32.totalorder %s61, 0
      %s64 = sadd.s32 %s63, 1
      %s65 = scalar_select %p62, %s63, %s64
      %p68 = pneg %p62
      %p69 = scmp.eq.s32.totalorder %s27, 1
      %p70 = por %p68, %p69
      %p71 = scmp.ne.s32.totalorder %s63, %s66
      %p72 = scmp.eq.s32.totalorder %s27, 0
      %p73 = por %p71, %p72
      %p74 = scmp.ne.s32.totalorder %s63, %s66
      %p75 = scmp.eq.s32.totalorder %s32, 1
      %p76 = por %p74, %p75
      %p77 = scmp.ne.s32.totalorder %s66, %s67
      %p78 = scmp.eq.s32.totalorder %s32, 0
      %p79 = por %p77, %p78
      %p80 = scmp.ne.s32.totalorder %s66, %s67
      %p81 = scmp.eq.s32.totalorder %s33, 1
      %p82 = por %p80, %p81
      %p84 = scmp.ne.s32.totalorder %s67, %s83
      %p85 = scmp.eq.s32.totalorder %s33, 0
      %p86 = por %p84, %p85
      %s87 = ssub.s32 %s27, %s34
      %p88 = scmp.eq.s32.totalorder %s87, 0
      %s90 = sadd.s32 %s89, 1
      %s91 = scalar_select %p88, %s89, %s90
      %p94 = pneg %p88
      %p95 = scmp.eq.s32.totalorder %s27, 1
      %p96 = por %p94, %p95
      %p97 = scmp.ne.s32.totalorder %s89, %s92
      %p98 = scmp.eq.s32.totalorder %s27, 0
      %p99 = por %p97, %p98
      %p100 = scmp.ne.s32.totalorder %s89, %s92
      %p101 = scmp.eq.s32.totalorder %s32, 1
      %p102 = por %p100, %p101
      %p103 = scmp.ne.s32.totalorder %s92, %s93
      %p104 = scmp.eq.s32.totalorder %s32, 0
      %p105 = por %p103, %p104
      %p106 = scmp.ne.s32.totalorder %s92, %s93
      %p107 = scmp.eq.s32.totalorder %s33, 1
      %p108 = por %p106, %p107
      %p110 = scmp.ne.s32.totalorder %s93, %s109
      %p111 = scmp.eq.s32.totalorder %s33, 0
      %p112 = por %p110, %p111
      %s114 = sadd.s32 %s113, 1
      %p117 = scmp.eq.s32.totalorder %s27, 1
      %p118 = scmp.ne.s32.totalorder %s113, %s115
      %p119 = scmp.eq.s32.totalorder %s27, 0
      %p120 = por %p118, %p119
      %p121 = scmp.ne.s32.totalorder %s113, %s115
      %p122 = scmp.eq.s32.totalorder %s32, 1
      %p123 = por %p121, %p122
      %p124 = scmp.ne.s32.totalorder %s115, %s116
      %p125 = scmp.eq.s32.totalorder %s32, 0
      %p126 = por %p124, %p125
      %p127 = scmp.ne.s32.totalorder %s115, %s116
      %p128 = scmp.eq.s32.totalorder %s33, 1
      %p129 = por %p127, %p128
      %p131 = scmp.ne.s32.totalorder %s116, %s130
      %p132 = scmp.eq.s32.totalorder %s33, 0
      %p133 = por %p131, %p132
      %s135 = sadd.s32 %s134, 1
      %p138 = scmp.eq.s32.totalorder %s27, 1
      %p139 = scmp.ne.s32.totalorder %s134, %s136
      %p140 = scmp.eq.s32.totalorder %s27, 0
      %p141 = por %p139, %p140
      %p142 = scmp.ne.s32.totalorder %s134, %s136
      %p143 = scmp.eq.s32.totalorder %s32, 1
      %p144 = por %p142, %p143
      %p145 = scmp.ne.s32.totalorder %s136, %s137
      %p146 = scmp.eq.s32.totalorder %s32, 0
      %p147 = por %p145, %p146
      %p148 = scmp.ne.s32.totalorder %s136, %s137
      %p149 = scmp.eq.s32.totalorder %s33, 1
      %p150 = por %p148, %p149
      %p152 = scmp.ne.s32.totalorder %s137, %s151
      %p153 = scmp.eq.s32.totalorder %s33, 0
      %p154 = por %p152, %p153
      %s156 = sadd.s32 %s155, 1
      %p159 = scmp.eq.s32.totalorder %s27, 1
      %p160 = scmp.ne.s32.totalorder %s155, %s157
      %p161 = scmp.eq.s32.totalorder %s27, 0
      %p162 = por %p160, %p161
      %p163 = scmp.ne.s32.totalorder %s155, %s157
      %p164 = scmp.eq.s32.totalorder %s32, 1
      %p165 = por %p163, %p164
      %p166 = scmp.ne.s32.totalorder %s157, %s158
      %p167 = scmp.eq.s32.totalorder %s32, 0
      %p168 = por %p166, %p167
      %p169 = scmp.ne.s32.totalorder %s157, %s158
      %p170 = scmp.eq.s32.totalorder %s33, 1
      %p171 = por %p169, %p170
      %p173 = scmp.ne.s32.totalorder %s158, %s172
      %p174 = scmp.eq.s32.totalorder %s33, 0
      %p175 = por %p173, %p174
      %s177 = sadd.s32 %s176, 1
      %p180 = scmp.eq.s32.totalorder %s27, 1
      %p181 = scmp.ne.s32.totalorder %s176, %s178
      %p182 = scmp.eq.s32.totalorder %s27, 0
      %p183 = por %p181, %p182
      %p184 = scmp.ne.s32.totalorder %s176, %s178
      %p185 = scmp.eq.s32.totalorder %s32, 1
      %p186 = por %p184, %p185
      %p187 = scmp.ne.s32.totalorder %s178, %s179
      %p188 = scmp.eq.s32.totalorder %s32, 0
      %p189 = por %p187, %p188
      %p190 = scmp.ne.s32.totalorder %s178, %s179
      %p191 = scmp.eq.s32.totalorder %s33, 1
      %p192 = por %p190, %p191
      %p194 = scmp.ne.s32.totalorder %s179, %s193
      %p195 = scmp.eq.s32.totalorder %s33, 0
      %p196 = por %p194, %p195
      %s198 = sadd.s32 %s197, 1
      %p201 = scmp.eq.s32.totalorder %s27, 1
      %p202 = scmp.ne.s32.totalorder %s197, %s199
      %p203 = scmp.eq.s32.totalorder %s27, 0
      %p204 = por %p202, %p203
      %p205 = scmp.ne.s32.totalorder %s197, %s199
      %p206 = scmp.eq.s32.totalorder %s32, 1
      %p207 = por %p205, %p206
      %p208 = scmp.ne.s32.totalorder %s199, %s200
      %p209 = scmp.eq.s32.totalorder %s32, 0
      %p210 = por %p208, %p209
      %p211 = scmp.ne.s32.totalorder %s199, %s200
      %p212 = scmp.eq.s32.totalorder %s33, 1
      %p213 = por %p211, %p212
      %p215 = scmp.ne.s32.totalorder %s200, %s214
      %p216 = scmp.eq.s32.totalorder %s33, 0
      %p217 = por %p215, %p216
      %s219 = sadd.s32 %s218, 1
      %p222 = scmp.eq.s32.totalorder %s27, 1
      %p223 = scmp.ne.s32.totalorder %s218, %s220
      %p224 = scmp.eq.s32.totalorder %s27, 0
      %p225 = por %p223, %p224
      %p226 = scmp.ne.s32.totalorder %s218, %s220
      %p227 = scmp.eq.s32.totalorder %s32, 1
      %p228 = por %p226, %p227
      %p229 = scmp.ne.s32.totalorder %s220, %s221
      %p230 = scmp.eq.s32.totalorder %s32, 0
      %p231 = por %p229, %p230
      %p232 = scmp.ne.s32.totalorder %s220, %s221
      %p233 = scmp.eq.s32.totalorder %s33, 1
      %p234 = por %p232, %p233
      %p236 = scmp.ne.s32.totalorder %s221, %s235
      %p237 = scmp.eq.s32.totalorder %s33, 0
      %p238 = por %p236, %p237
      %s239 = ssub.s32 %s27, %s34
      %p240 = scmp.eq.s32.totalorder %s239, 0
      %s242 = sadd.s32 %s241, 1
      %s243 = scalar_select %p240, %s241, %s242
      %p246 = pneg %p240
      %p247 = scmp.eq.s32.totalorder %s27, 1
      %p248 = por %p246, %p247
      %p249 = scmp.ne.s32.totalorder %s241, %s244
      %p250 = scmp.eq.s32.totalorder %s27, 0
      %p251 = por %p249, %p250
      %p252 = scmp.ne.s32.totalorder %s241, %s244
      %p253 = scmp.eq.s32.totalorder %s32, 1
      %p254 = por %p252, %p253
      %p255 = scmp.ne.s32.totalorder %s244, %s245
      %p256 = scmp.eq.s32.totalorder %s32, 0
      %p257 = por %p255, %p256
      %p258 = scmp.ne.s32.totalorder %s244, %s245
      %p259 = scmp.eq.s32.totalorder %s33, 1
      %p260 = por %p258, %p259
      %p262 = scmp.ne.s32.totalorder %s245, %s261
      %p263 = scmp.eq.s32.totalorder %s33, 0
      %p264 = por %p262, %p263
      %p265 = scmp.le.s32.totalorder 1, %s27
      %p266 = scmp.lt.s32.totalorder %s27, 3
      %p267 = pnand %p265, %p266
      %p268 = pneg %p267
      // Predicated region
      $region9: #{transformer_forward.11} parent=5 // pred_check
        _
      $region10: #{transformer_forward.11} parent=5 // pred_check_branch
        %270 = sbr.rel (%p267) target = $region12
      $region11: #{transformer_forward.11} parent=5 // pred_region
        %s271 = ssub.s32 %s27, 1
        // Predicated region
        $region13: #{transformer_forward.11} parent=11 // pred_check
          %p272 = pneg %p126
        $region14: #{transformer_forward.11} parent=11 // pred_check_branch
          %274 = sbr.rel (%p272) target = $region16
        $region15: #{transformer_forward.11} parent=11 // pred_region
          %s276 = ssub.s32 3072, 3072
          %277 = vsyncadd [#allocation9], %s276
          %s278 = sshll.u32 [#allocation8], 4
          %s279 = int_to_ptr.vmem [resolvable:$true] %s278
          %284 = dma.hbm_to_vmem [thread:$0]  %s3, 3072, %s279, [#allocation9], 192, 192, 12
        $region16: #{transformer_forward.11} parent=11 // pred_fallthru
          _
        // Predicated region
        $region17: #{transformer_forward.11} parent=11 // pred_check
          %p285 = pneg %p147
        $region18: #{transformer_forward.11} parent=11 // pred_check_branch
          %287 = sbr.rel (%p285) target = $region20
        $region19: #{transformer_forward.11} parent=11 // pred_region
          %s289 = ssub.s32 48, 48
          %290 = vsyncadd [#allocation9], %s289
          %s292 = sshll.u32 [#allocation10], 4
          %s293 = int_to_ptr.vmem [resolvable:$true] %s292
          %295 = dma.hbm_to_vmem [thread:$0]  %s4, 48, %s293, [#allocation9]
        $region20: #{transformer_forward.11} parent=11 // pred_fallthru
          _
        // Predicated region
        $region21: #{transformer_forward.11} parent=11 // pred_check
          %p296 = pneg %p168
        $region22: #{transformer_forward.11} parent=11 // pred_check_branch
          %298 = sbr.rel (%p296) target = $region24
        $region23: #{transformer_forward.11} parent=11 // pred_region
          %s300 = ssub.s32 1024, 1024
          %301 = vsyncadd [#allocation12], %s300
          %s302 = sshll.u32 [#allocation11], 4
          %s303 = int_to_ptr.vmem [resolvable:$true] %s302
          %308 = dma.hbm_to_vmem [thread:$0]  %s5, 1024, %s303, [#allocation12], 64, 64, 4
        $region24: #{transformer_forward.11} parent=11 // pred_fallthru
          _
        // Predicated region
        $region25: #{transformer_forward.11} parent=11 // pred_check
          %p309 = pneg %p189
        $region26: #{transformer_forward.11} parent=11 // pred_check_branch
          %311 = sbr.rel (%p309) target = $region28
        $region27: #{transformer_forward.11} parent=11 // pred_region
          %s313 = ssub.s32 16, 16
          %314 = vsyncadd [#allocation12], %s313
          %s316 = sshll.u32 [#allocation13], 4
          %s317 = int_to_ptr.vmem [resolvable:$true] %s316
          %319 = dma.hbm_to_vmem [thread:$0]  %s6, 16, %s317, [#allocation12]
        $region28: #{transformer_forward.11} parent=11 // pred_fallthru
          _
        // Predicated region
        $region29: #{transformer_forward.11} parent=11 // pred_check
          %p320 = pneg %p210
        $region30: #{transformer_forward.11} parent=11 // pred_check_branch
          %322 = sbr.rel (%p320) target = $region32
        $region31: #{transformer_forward.11} parent=11 // pred_region
          %s324 = ssub.s32 16, 16
          %325 = vsyncadd [#allocation15], %s324
          %s327 = sshll.u32 [#allocation14], 4
          %s328 = int_to_ptr.vmem [resolvable:$true] %s327
          %330 = dma.hbm_to_vmem [thread:$0]  %s7, 16, %s328, [#allocation15]
        $region32: #{transformer_forward.11} parent=11 // pred_fallthru
          _
        // Predicated region
        $region33: #{transformer_forward.11} parent=11 // pred_check
          %p331 = pneg %p231
        $region34: #{transformer_forward.11} parent=11 // pred_check_branch
          %333 = sbr.rel (%p331) target = $region36
        $region35: #{transformer_forward.11} parent=11 // pred_region
          %s335 = ssub.s32 16, 16
          %336 = vsyncadd [#allocation15], %s335
          %s338 = sshll.u32 [#allocation16], 4
          %s339 = int_to_ptr.vmem [resolvable:$true] %s338
          %341 = dma.hbm_to_vmem [thread:$0]  %s8, 16, %s339, [#allocation15]
        $region36: #{transformer_forward.11} parent=11 // pred_fallthru
          _
      $region12: #{transformer_forward.11} parent=5 // pred_fallthru
        _
      %p342 = scmp.lt.s32.totalorder %s27, 2
      // Predicated region
      $region37: #{transformer_forward.11} parent=5 // pred_check
        %p343 = pneg %p342
      $region38: #{transformer_forward.11} parent=5 // pred_check_branch
        %345 = sbr.rel (%p343) target = $region40
      $region39: #{transformer_forward.11} parent=5 // pred_region
        // Predicated region
        $region41: #{transformer_forward.11} parent=39 // pred_check
          %p346 = pneg %p47
        $region42: #{transformer_forward.11} parent=39 // pred_check_branch
          %348 = sbr.rel (%p346) target = $region44
        $region43: #{transformer_forward.11} parent=39 // pred_region
          %s349 = sand.u32 %s37, 1
          %s350 = scalar_lea.sflag [#allocation3], %s349
          %s351 = sand.u32 %s37, 1
          %s352 = smul.addr %s351, 4
          %s353 = scalar_lea.vmem [#allocation2], %s352
          %s355 = ssub.s32 64, 64
          %356 = vsyncadd %s350, %s355
          %s357 = smul.addr %s27, 64
          %s358 = scalar_lea.hbm %s0, %s357
          %s360 = sshll.u32 %s353, 4
          %s361 = int_to_ptr.vmem [resolvable:$true] %s360
          %363 = dma.hbm_to_vmem [thread:$0]  %s358, 64, %s361, %s350
        $region44: #{transformer_forward.11} parent=39 // pred_fallthru
          _
        // Predicated region
        $region45: #{transformer_forward.11} parent=39 // pred_check
          %p364 = pneg %p73
        $region46: #{transformer_forward.11} parent=39 // pred_check_branch
          %366 = sbr.rel (%p364) target = $region48
        $region47: #{transformer_forward.11} parent=39 // pred_region
          %s367 = sand.u32 %s27, 1
          %s368 = scalar_lea.sflag [#allocation6], %s367
          %s369 = sand.u32 %s63, 1
          %s370 = smul.addr %s369, 4
          %s371 = scalar_lea.vmem [#allocation5], %s370
          %s373 = ssub.s32 64, 64
          %374 = vsyncadd %s368, %s373
          %s375 = smul.addr %s27, 64
          %s376 = scalar_lea.hbm %s1, %s375
          %s378 = sshll.u32 %s371, 4
          %s379 = int_to_ptr.vmem [resolvable:$true] %s378
          %381 = dma.hbm_to_vmem [thread:$0]  %s376, 64, %s379, %s368
        $region48: #{transformer_forward.11} parent=39 // pred_fallthru
          _
        // Predicated region
        $region49: #{transformer_forward.11} parent=39 // pred_check
          %p382 = pneg %p99
        $region50: #{transformer_forward.11} parent=39 // pred_check_branch
          %384 = sbr.rel (%p382) target = $region52
        $region51: #{transformer_forward.11} parent=39 // pred_region
          %s385 = sand.u32 %s27, 1
          %s386 = scalar_lea.sflag [#allocation6], %s385
          %s387 = sand.u32 %s89, 1
          %s388 = scalar_lea.vmem [#allocation7], %s387
          %s390 = ssub.s32 16, 16
          %391 = vsyncadd %s386, %s390
          %s392 = smul.addr %s27, 16
          %s393 = scalar_lea.hbm %s2, %s392
          %s395 = sshll.u32 %s388, 4
          %s396 = int_to_ptr.vmem [resolvable:$true] %s395
          %398 = dma.hbm_to_vmem [thread:$0]  %s393, 16, %s396, %s386
        $region52: #{transformer_forward.11} parent=39 // pred_fallthru
          _
      $region40: #{transformer_forward.11} parent=5 // pred_fallthru
        _
      %p399 = scmp.le.s32.totalorder 1, %s27
      %p400 = scmp.lt.s32.totalorder %s27, 3
      %p401 = pnand %p399, %p400
      %p402 = pneg %p401
      // Predicated region
      $region53: #{transformer_forward.11} parent=5 // pred_check
        _
      $region54: #{transformer_forward.11} parent=5 // pred_check_branch
        %404 = sbr.rel (%p401) target = $region56
      $region55: #{transformer_forward.11} parent=5 // pred_region
        %s405 = ssub.s32 %s27, 1
        %s406 = sand.u32 %s40, 1
        %s407 = scalar_lea.sflag [#allocation3], %s406
        %s408 = sand.u32 %s40, 1
        %s409 = smul.addr %s408, 4
        %s410 = scalar_lea.vmem [#allocation2], %s409
        // Predicated region
        $region57: #{transformer_forward.11} parent=55 // pred_check
          %p411 = pneg %p53
        $region58: #{transformer_forward.11} parent=55 // pred_check_branch
          %413 = sbr.rel (%p411) target = $region60
        $region59: #{transformer_forward.11} parent=55 // pred_region
          %414 = dma.done %s407, 64
        $region60: #{transformer_forward.11} parent=55 // pred_fallthru
          _
        %s415 = sand.u32 %s32, 1
        %s416 = scalar_lea.sflag [#allocation6], %s415
        %s417 = sand.u32 %s66, 1
        %s418 = smul.addr %s417, 4
        %s419 = scalar_lea.vmem [#allocation5], %s418
        // Predicated region
        $region61: #{transformer_forward.11} parent=55 // pred_check
          %p420 = pneg %p79
        $region62: #{transformer_forward.11} parent=55 // pred_check_branch
          %422 = sbr.rel (%p420) target = $region64
        $region63: #{transformer_forward.11} parent=55 // pred_region
          %423 = dma.done %s416, 64
        $region64: #{transformer_forward.11} parent=55 // pred_fallthru
          _
        %s424 = sand.u32 %s32, 1
        %s425 = scalar_lea.sflag [#allocation6], %s424
        %s426 = sand.u32 %s92, 1
        %s427 = scalar_lea.vmem [#allocation7], %s426
        // Predicated region
        $region65: #{transformer_forward.11} parent=55 // pred_check
          %p428 = pneg %p105
        $region66: #{transformer_forward.11} parent=55 // pred_check_branch
          %430 = sbr.rel (%p428) target = $region68
        $region67: #{transformer_forward.11} parent=55 // pred_region
          %431 = dma.done %s425, 16
        $region68: #{transformer_forward.11} parent=55 // pred_fallthru
          _
        // Predicated region
        $region69: #{transformer_forward.11} parent=55 // pred_check
          %p432 = pneg %p126
        $region70: #{transformer_forward.11} parent=55 // pred_check_branch
          %434 = sbr.rel (%p432) target = $region72
        $region71: #{transformer_forward.11} parent=55 // pred_region
          %435 = dma.done [#allocation9], 3072
        $region72: #{transformer_forward.11} parent=55 // pred_fallthru
          _
        // Predicated region
        $region73: #{transformer_forward.11} parent=55 // pred_check
          %p436 = pneg %p147
        $region74: #{transformer_forward.11} parent=55 // pred_check_branch
          %438 = sbr.rel (%p436) target = $region76
        $region75: #{transformer_forward.11} parent=55 // pred_region
          %439 = dma.done [#allocation9], 48
        $region76: #{transformer_forward.11} parent=55 // pred_fallthru
          _
        // Predicated region
        $region77: #{transformer_forward.11} parent=55 // pred_check
          %p440 = pneg %p168
        $region78: #{transformer_forward.11} parent=55 // pred_check_branch
          %442 = sbr.rel (%p440) target = $region80
        $region79: #{transformer_forward.11} parent=55 // pred_region
          %443 = dma.done [#allocation12], 1024
        $region80: #{transformer_forward.11} parent=55 // pred_fallthru
          _
        // Predicated region
        $region81: #{transformer_forward.11} parent=55 // pred_check
          %p444 = pneg %p189
        $region82: #{transformer_forward.11} parent=55 // pred_check_branch
          %446 = sbr.rel (%p444) target = $region84
        $region83: #{transformer_forward.11} parent=55 // pred_region
          %447 = dma.done [#allocation12], 16
        $region84: #{transformer_forward.11} parent=55 // pred_fallthru
          _
        // Predicated region
        $region85: #{transformer_forward.11} parent=55 // pred_check
          %p448 = pneg %p210
        $region86: #{transformer_forward.11} parent=55 // pred_check_branch
          %450 = sbr.rel (%p448) target = $region88
        $region87: #{transformer_forward.11} parent=55 // pred_region
          %451 = dma.done [#allocation15], 16
        $region88: #{transformer_forward.11} parent=55 // pred_fallthru
          _
        // Predicated region
        $region89: #{transformer_forward.11} parent=55 // pred_check
          %p452 = pneg %p231
        $region90: #{transformer_forward.11} parent=55 // pred_check_branch
          %454 = sbr.rel (%p452) target = $region92
        $region91: #{transformer_forward.11} parent=55 // pred_region
          %455 = dma.done [#allocation15], 16
        $region92: #{transformer_forward.11} parent=55 // pred_fallthru
          _
        %s456 = sand.u32 %s40, 1
        %s457 = scalar_lea.sflag [#allocation3], %s456
        %s458 = sand.u32 %s40, 1
        %s459 = smul.addr %s458, 4
        %s460 = scalar_lea.vmem [#allocation2], %s459
        %p461 = pneg %p53
        %p462 = pneg %p50
        %s463 = sand.u32 %s32, 1
        %s464 = scalar_lea.sflag [#allocation6], %s463
        %s465 = sand.u32 %s66, 1
        %s466 = smul.addr %s465, 4
        %s467 = scalar_lea.vmem [#allocation5], %s466
        %p468 = pneg %p79
        %p469 = pneg %p76
        %s470 = sand.u32 %s32, 1
        %s471 = scalar_lea.sflag [#allocation6], %s470
        %s472 = sand.u32 %s92, 1
        %s473 = scalar_lea.vmem [#allocation7], %s472
        %p474 = pneg %p105
        %p475 = pneg %p102
        %p476 = pneg %p126
        %p477 = pneg %p123
        %p478 = pneg %p147
        %p479 = pneg %p144
        %p480 = pneg %p168
        %p481 = pneg %p165
        %p482 = pneg %p189
        %p483 = pneg %p186
        %p484 = pneg %p210
        %p485 = pneg %p207
        %p486 = pneg %p231
        %p487 = pneg %p228
        %p488 = pneg %p257
        %p489 = pneg %p254
        %s490 = sand.u32 %s244, 1
        %s491 = scalar_lea.sflag [#allocation4], %s490
        %s492 = sand.u32 %s244, 1
        %s493 = smul.addr %s492, 4
        %s494 = scalar_lea.vmem [#allocation17], %s493
        %v496 = vld [vmem:[%s410] sm:$0xf]
        %v497 = vunpack.c.l.bf16 %v496
        %v498 = vld [vmem:[#allocation8] sm:$0xff]
        %v499 = vld [vmem:[#allocation8 + $0x8] sm:$0xf]
        %v500 = vld [vmem:[#allocation8 + $0xc] sm:$0xff]
        %v501 = vld [vmem:[#allocation8 + $0x14] sm:$0xf]
        %v502 = vld [vmem:[#allocation8 + $0x18] sm:$0xff]
        %v503 = vld [vmem:[#allocation8 + $0x20] sm:$0xf]
        %v504 = vld [vmem:[#allocation8 + $0x24] sm:$0xff]
        %v505 = vld [vmem:[#allocation8 + $0x2c] sm:$0xf]
        %v506 = vld [vmem:[#allocation8 + $0x30] sm:$0xff]
        %v507 = vld [vmem:[#allocation8 + $0x38] sm:$0xf]
        %v508 = vld [vmem:[#allocation8 + $0x3c] sm:$0xff]
        %v509 = vld [vmem:[#allocation8 + $0x44] sm:$0xf]
        %v510 = vld [vmem:[#allocation8 + $0x48] sm:$0xff]
        %v511 = vld [vmem:[#allocation8 + $0x50] sm:$0xf]
        %v512 = vld [vmem:[#allocation8 + $0x54] sm:$0xff]
        %v513 = vld [vmem:[#allocation8 + $0x5c] sm:$0xf]
        %v514 = vld [vmem:[#allocation8 + $0x60] sm:$0xff]
        %v515 = vld [vmem:[#allocation8 + $0x68] sm:$0xf]
        %v516 = vld [vmem:[#allocation8 + $0x6c] sm:$0xff]
        %v517 = vld [vmem:[#allocation8 + $0x74] sm:$0xf]
        %v518 = vld [vmem:[#allocation8 + $0x78] sm:$0xff]
        %v519 = vld [vmem:[#allocation8 + $0x80] sm:$0xf]
        %v520 = vld [vmem:[#allocation8 + $0x84] sm:$0xff]
        %v521 = vld [vmem:[#allocation8 + $0x8c] sm:$0xf]
        %v522 = vld [vmem:[#allocation8 + $0x90] sm:$0xff]
        %v523 = vld [vmem:[#allocation8 + $0x98] sm:$0xf]
        %v524 = vld [vmem:[#allocation8 + $0x9c] sm:$0xff]
        %v525 = vld [vmem:[#allocation8 + $0xa4] sm:$0xf]
        %v526 = vld [vmem:[#allocation8 + $0xa8] sm:$0xff]
        %v527 = vld [vmem:[#allocation8 + $0xb0] sm:$0xf]
        %v528 = vld [vmem:[#allocation8 + $0xb4] sm:$0xff]
        %v529 = vld [vmem:[#allocation8 + $0xbc] sm:$0xf]
        %v530 = vld [vmem:[#allocation10] sm:$0x7]
        %v532 = vlaneseq
        %v533 = vshrl.u32 %v532, 7
        %v534 = vsub.s32 0, %v533
        %v535 = vrot.slane %v530, %v534
        %v536 = vlaneseq
        %v537 = vshrl.u32 %v536, 7
        %v538 = vsub.s32 1, %v537
        %v539 = vrot.slane %v530, %v538
        %v540 = vlaneseq
        %v541 = vshrl.u32 %v540, 7
        %v542 = vsub.s32 2, %v541
        %v543 = vrot.slane %v530, %v542
        %v579 = vunpack.c.l.b16 %v498
        %v580 = vunpack.c.h.b16 %v498
        %v581 = vunpack.c.l.b16 %v499
        %v582 = vunpack.c.l.b16 %v500
        %v583 = vunpack.c.h.b16 %v500
        %v584 = vunpack.c.l.b16 %v501
        %v585 = vunpack.c.l.b16 %v502
        %v586 = vunpack.c.h.b16 %v502
        %v587 = vunpack.c.l.b16 %v503
        %v588 = vunpack.c.l.b16 %v504
        %v589 = vunpack.c.h.b16 %v504
        %v590 = vunpack.c.l.b16 %v505
        %v591 = vunpack.c.l.b16 %v506
        %v592 = vunpack.c.h.b16 %v506
        %v593 = vunpack.c.l.b16 %v507
        %v594 = vunpack.c.l.b16 %v508
        %v595 = vunpack.c.h.b16 %v508
        %v596 = vunpack.c.l.b16 %v509
        %v597 = vunpack.c.l.b16 %v510
        %v598 = vunpack.c.h.b16 %v510
        %v599 = vunpack.c.l.b16 %v511
        %v600 = vunpack.c.l.b16 %v512
        %v601 = vunpack.c.h.b16 %v512
        %v602 = vunpack.c.l.b16 %v513
        %v603 = vunpack.c.l.b16 %v514
        %v604 = vunpack.c.h.b16 %v514
        %v605 = vunpack.c.l.b16 %v515
        %v606 = vunpack.c.l.b16 %v516
        %v607 = vunpack.c.h.b16 %v516
        %v608 = vunpack.c.l.b16 %v517
        %v609 = vunpack.c.l.b16 %v518
        %v610 = vunpack.c.h.b16 %v518
        %v611 = vunpack.c.l.b16 %v519
        %v612 = vunpack.c.l.b16 %v520
        %v613 = vunpack.c.h.b16 %v520
        %v614 = vunpack.c.l.b16 %v521
        %v615 = vunpack.c.l.b16 %v522
        %v616 = vunpack.c.h.b16 %v522
        %v617 = vunpack.c.l.b16 %v523
        %v618 = vunpack.c.l.b16 %v524
        %v619 = vunpack.c.h.b16 %v524
        %v620 = vunpack.c.l.b16 %v525
        %v621 = vunpack.c.l.b16 %v526
        %v622 = vunpack.c.h.b16 %v526
        %v623 = vunpack.c.l.b16 %v527
        %v624 = vunpack.c.l.b16 %v528
        %v625 = vunpack.c.h.b16 %v528
        %v626 = vunpack.c.l.b16 %v529
        %v627 = vpack.c.b16 %v582, %v579
        %v628 = vpack.c.b16 %v583, %v580
        %v629 = vpack.c.b16 %v584, %v581
        %v630 = vpack.c.b16 %v588, %v585
        %v631 = vpack.c.b16 %v589, %v586
        %v632 = vpack.c.b16 %v590, %v587
        %v633 = vpack.c.b16 %v594, %v591
        %v634 = vpack.c.b16 %v595, %v592
        %v635 = vpack.c.b16 %v596, %v593
        %v636 = vpack.c.b16 %v600, %v597
        %v637 = vpack.c.b16 %v601, %v598
        %v638 = vpack.c.b16 %v602, %v599
        %v639 = vpack.c.b16 %v606, %v603
        %v640 = vpack.c.b16 %v607, %v604
        %v641 = vpack.c.b16 %v608, %v605
        %v642 = vpack.c.b16 %v612, %v609
        %v643 = vpack.c.b16 %v613, %v610
        %v644 = vpack.c.b16 %v614, %v611
        %v645 = vpack.c.b16 %v618, %v615
        %v646 = vpack.c.b16 %v619, %v616
        %v647 = vpack.c.b16 %v620, %v617
        %v648 = vpack.c.b16 %v624, %v621
        %v649 = vpack.c.b16 %v625, %v622
        %v650 = vpack.c.b16 %v626, %v623
        %675 = vmatprep.subr.bf16.mxu0 %v628
        %676 = vmatpush1.bf16.msra.mxu0 %v627
        %677 = vmatprep.subr.bf16.mxu0 %v631
        %678 = vmatpush1.bf16.msra.mxu0 %v630
        %679 = vmatprep.subr.bf16.mxu0 %v634
        %680 = vmatpush1.bf16.msra.mxu0 %v633
        %681 = vmatprep.subr.bf16.mxu0 %v637
        %682 = vmatpush1.bf16.msra.mxu0 %v636
        %683 = vmatprep.subr.bf16.mxu0 %v640
        %684 = vmatpush1.bf16.msra.mxu0 %v639
        %685 = vmatprep.subr.bf16.mxu0 %v643
        %686 = vmatpush1.bf16.msra.mxu0 %v642
        %687 = vmatprep.subr.bf16.mxu0 %v646
        %688 = vmatpush1.bf16.msra.mxu0 %v645
        %689 = vmatprep.subr.bf16.mxu0 %v649
        %690 = vmatpush1.bf16.msra.mxu0 %v648
        %691 = vmatprep.subr.bf16.mxu0 0
        %692 = vmatpush1.bf16.msra.mxu0 0
        %693 = vmatprep.subr.bf16.mxu0 0
        %694 = vmatpush1.bf16.msra.mxu0 0
        %695 = vmatprep.subr.bf16.mxu0 0
        %696 = vmatpush1.bf16.msra.mxu0 0
        %697 = vmatprep.subr.bf16.mxu0 0
        %698 = vmatpush1.bf16.msra.mxu0 0
        %699 = vmatprep.subr.bf16.mxu0 0
        %700 = vmatpush1.bf16.msra.mxu0 0
        %701 = vmatprep.subr.bf16.mxu0 0
        %702 = vmatpush1.bf16.msra.mxu0 0
        %703 = vmatprep.subr.bf16.mxu0 0
        %704 = vmatpush1.bf16.msra.mxu0 0
        %705 = vmatprep.subr.bf16.mxu0 0
        %706 = vmatpush1.bf16.msra.mxu0 0
        %707 = vmatprep.mubr.bf16.mxu0 0
        %708 = vmatmul.mubr.bf16.gmra.mrb[0].mxu0 %v496
        %v709 = vpop.f32.mrb[0].mxu0
        %v710 = vadd.f32 %v535, %v709
        %v711 = vpop.f32.mrb[0].mxu0
        %v712 = vadd.f32 %v539, %v711
        %v713 = vpop.f32.mrb[0].mxu0
        %v714 = vpop.f32.mrb[0].mxu0
        %715 = vdwg.mxu0
        %716 = vmatprep.subr.bf16.mxu0 0
        %717 = vmatpush1.bf16.msra.mxu0 %v629
        %718 = vmatprep.subr.bf16.mxu0 0
        %719 = vmatpush1.bf16.msra.mxu0 %v632
        %720 = vmatprep.subr.bf16.mxu0 0
        %721 = vmatpush1.bf16.msra.mxu0 %v635
        %722 = vmatprep.subr.bf16.mxu0 0
        %723 = vmatpush1.bf16.msra.mxu0 %v638
        %724 = vmatprep.subr.bf16.mxu0 0
        %725 = vmatpush1.bf16.msra.mxu0 %v641
        %726 = vmatprep.subr.bf16.mxu0 0
        %727 = vmatpush1.bf16.msra.mxu0 %v644
        %728 = vmatprep.subr.bf16.mxu0 0
        %729 = vmatpush1.bf16.msra.mxu0 %v647
        %730 = vmatprep.subr.bf16.mxu0 0
        %731 = vmatpush1.bf16.msra.mxu0 %v650
        %732 = vmatprep.subr.bf16.mxu0 0
        %733 = vmatpush1.bf16.msra.mxu0 0
        %734 = vmatprep.subr.bf16.mxu0 0
        %735 = vmatpush1.bf16.msra.mxu0 0
        %736 = vmatprep.subr.bf16.mxu0 0
        %737 = vmatpush1.bf16.msra.mxu0 0
        %738 = vmatprep.subr.bf16.mxu0 0
        %739 = vmatpush1.bf16.msra.mxu0 0
        %740 = vmatprep.subr.bf16.mxu0 0
        %741 = vmatpush1.bf16.msra.mxu0 0
        %742 = vmatprep.subr.bf16.mxu0 0
        %743 = vmatpush1.bf16.msra.mxu0 0
        %744 = vmatprep.subr.bf16.mxu0 0
        %745 = vmatpush1.bf16.msra.mxu0 0
        %746 = vmatprep.subr.bf16.mxu0 0
        %747 = vmatpush1.bf16.msra.mxu0 0
        %748 = vmatprep.mubr.bf16.mxu0 0
        %749 = vmatmul.mubr.bf16.gmra.mrb[0].mxu0 %v496
        %v750 = vpop.f32.mrb[0].mxu0
        %v751 = vadd.f32 %v543, %v750
        %v752 = vpop.f32.mrb[0].mxu0
        %v753 = vpop.f32.mrb[0].mxu0
        %v754 = vpop.f32.mrb[0].mxu0
        %755 = vdwg.mxu0
        %v756 = vld [vmem:[%s427] sm:$0x1]
        %vm757 = vcmp.gt.f32.partialorder %v756, 0.0
        %v758 = vsel %vm757, 1, 0
        %v759 = vlaneseq
        %v760 = vshrl.u32 %v759, 7
        %v761 = vsub.s32 0, %v760
        %v762 = vrot.slane %v758, %v761
        %vm763 = vcmp.eq.s32.totalorder %v762, 1
        %v764 = vsel %vm763, 0.0, -1e+09
        %766 = vrot.lane.b32.xlu0 %v710, 96
        %v767 = vpop.permute.xlu0 %766
        %769 = vrot.lane.b32.xlu0 %v710, 64
        %v770 = vpop.permute.xlu0 %769
        %772 = vrot.lane.b32.xlu0 %v710, 32
        %v773 = vpop.permute.xlu0 %772
        %v775 = vcombine.low %v710, %v770
        %v776 = vcombine.high %v710, %v770
        %v778 = vunpack.c.l.s4 1983009808
        %v779 = vunpack.c.0.s8 %v778
        %v780 = vlaneseq
        %v781 = vshrl.u32 %v780, 7
        %v782 = vsub.s32 %v779, %v781
        %v783 = vrot.slane %v775, %v782
        %v785 = vunpack.c.l.s4 1983009808
        %v786 = vunpack.c.0.s8 %v785
        %v787 = vlaneseq
        %v788 = vshrl.u32 %v787, 7
        %v789 = vsub.s32 %v786, %v788
        %v790 = vrot.slane %v776, %v789
        %v791 = vcombine.low %v767, %v773
        %v792 = vcombine.high %v767, %v773
        %v794 = vunpack.c.l.s4 1983009808
        %v795 = vunpack.c.0.s8 %v794
        %v796 = vlaneseq
        %v797 = vshrl.u32 %v796, 7
        %v798 = vsub.s32 %v795, %v797
        %v799 = vrot.slane %v791, %v798
        %v801 = vunpack.c.l.s4 1983009808
        %v802 = vunpack.c.0.s8 %v801
        %v803 = vlaneseq
        %v804 = vshrl.u32 %v803, 7
        %v805 = vsub.s32 %v802, %v804
        %v806 = vrot.slane %v792, %v805
        %v807 = vcombine.low %v783, %v799
        %v808 = vcombine.high %v783, %v799
        %v810 = vunpack.c.l.s4 1934713408
        %v811 = vunpack.c.0.s8 %v810
        %v812 = vlaneseq
        %v813 = vshrl.u32 %v812, 7
        %v814 = vsub.s32 %v811, %v813
        %v815 = vrot.slane %v807, %v814
        %v817 = vunpack.c.l.s4 1934713408
        %v818 = vunpack.c.0.s8 %v817
        %v819 = vlaneseq
        %v820 = vshrl.u32 %v819, 7
        %v821 = vsub.s32 %v818, %v820
        %v822 = vrot.slane %v808, %v821
        %v823 = vcombine.low %v790, %v806
        %v824 = vcombine.high %v790, %v806
        %v826 = vunpack.c.l.s4 1934713408
        %v827 = vunpack.c.0.s8 %v826
        %v828 = vlaneseq
        %v829 = vshrl.u32 %v828, 7
        %v830 = vsub.s32 %v827, %v829
        %v831 = vrot.slane %v823, %v830
        %v833 = vunpack.c.l.s4 1934713408
        %v834 = vunpack.c.0.s8 %v833
        %v835 = vlaneseq
        %v836 = vshrl.u32 %v835, 7
        %v837 = vsub.s32 %v834, %v836
        %v838 = vrot.slane %v824, %v837
        %v839 = vcombine.high %v815, 0.0
        %v840 = vcombine.high %v822, 0.0
        %v841 = vcombine.high %v831, 0.0
        %v842 = vcombine.high %v838, 0.0
        %v843 = vcombine.low %v815, %v822
        %v845 = vunpack.c.l.s4 1983009808
        %v846 = vunpack.c.0.s8 %v845
        %v847 = vlaneseq
        %v848 = vshrl.u32 %v847, 7
        %v849 = vsub.s32 %v846, %v848
        %v850 = vrot.slane %v843, %v849
        %v851 = vcombine.low %v839, %v840
        %v853 = vunpack.c.l.s4 1983009808
        %v854 = vunpack.c.0.s8 %v853
        %v855 = vlaneseq
        %v856 = vshrl.u32 %v855, 7
        %v857 = vsub.s32 %v854, %v856
        %v858 = vrot.slane %v851, %v857
        %v859 = vcombine.low %v831, %v838
        %v861 = vunpack.c.l.s4 1983009808
        %v862 = vunpack.c.0.s8 %v861
        %v863 = vlaneseq
        %v864 = vshrl.u32 %v863, 7
        %v865 = vsub.s32 %v862, %v864
        %v866 = vrot.slane %v859, %v865
        %v867 = vcombine.low %v841, %v842
        %v869 = vunpack.c.l.s4 1983009808
        %v870 = vunpack.c.0.s8 %v869
        %v871 = vlaneseq
        %v872 = vshrl.u32 %v871, 7
        %v873 = vsub.s32 %v870, %v872
        %v874 = vrot.slane %v867, %v873
        %v875 = vcombine.low %v850, %v858
        %v876 = vcombine.high %v850, %v858
        %v878 = vunpack.c.l.s4 1934713408
        %v879 = vunpack.c.0.s8 %v878
        %v880 = vlaneseq
        %v881 = vshrl.u32 %v880, 7
        %v882 = vsub.s32 %v879, %v881
        %v883 = vrot.slane %v875, %v882
        %v885 = vunpack.c.l.s4 1934713408
        %v886 = vunpack.c.0.s8 %v885
        %v887 = vlaneseq
        %v888 = vshrl.u32 %v887, 7
        %v889 = vsub.s32 %v886, %v888
        %v890 = vrot.slane %v876, %v889
        %v891 = vcombine.low %v866, %v874
        %v892 = vcombine.high %v866, %v874
        %v894 = vunpack.c.l.s4 1934713408
        %v895 = vunpack.c.0.s8 %v894
        %v896 = vlaneseq
        %v897 = vshrl.u32 %v896, 7
        %v898 = vsub.s32 %v895, %v897
        %v899 = vrot.slane %v891, %v898
        %v901 = vunpack.c.l.s4 1934713408
        %v902 = vunpack.c.0.s8 %v901
        %v903 = vlaneseq
        %v904 = vshrl.u32 %v903, 7
        %v905 = vsub.s32 %v902, %v904
        %v906 = vrot.slane %v892, %v905
        %v907 = vcombine.low %v883, %v899
        %v908 = vcombine.high %v883, %v899
        %v909 = vcombine.low %v890, %v906
        %v910 = vcombine.high %v890, %v906
        %v911 = vpack.c.bf16 %v907, %v907
        %v912 = vpack.c.bf16 %v908, %v908
        %v913 = vpack.c.bf16 %v909, %v909
        %v914 = vpack.c.bf16 %v910, %v910
        %916 = vrot.lane.b32.xlu0 %v712, 96
        %v917 = vpop.permute.xlu0 %916
        %919 = vrot.lane.b32.xlu0 %v712, 64
        %v920 = vpop.permute.xlu0 %919
        %922 = vrot.lane.b32.xlu0 %v712, 32
        %v923 = vpop.permute.xlu0 %922
        %v925 = vcombine.low %v712, %v920
        %v926 = vcombine.high %v712, %v920
        %v928 = vunpack.c.l.s4 1983009808
        %v929 = vunpack.c.0.s8 %v928
        %v930 = vlaneseq
        %v931 = vshrl.u32 %v930, 7
        %v932 = vsub.s32 %v929, %v931
        %v933 = vrot.slane %v925, %v932
        %v935 = vunpack.c.l.s4 1983009808
        %v936 = vunpack.c.0.s8 %v935
        %v937 = vlaneseq
        %v938 = vshrl.u32 %v937, 7
        %v939 = vsub.s32 %v936, %v938
        %v940 = vrot.slane %v926, %v939
        %v941 = vcombine.low %v917, %v923
        %v942 = vcombine.high %v917, %v923
        %v944 = vunpack.c.l.s4 1983009808
        %v945 = vunpack.c.0.s8 %v944
        %v946 = vlaneseq
        %v947 = vshrl.u32 %v946, 7
        %v948 = vsub.s32 %v945, %v947
        %v949 = vrot.slane %v941, %v948
        %v951 = vunpack.c.l.s4 1983009808
        %v952 = vunpack.c.0.s8 %v951
        %v953 = vlaneseq
        %v954 = vshrl.u32 %v953, 7
        %v955 = vsub.s32 %v952, %v954
        %v956 = vrot.slane %v942, %v955
        %v957 = vcombine.low %v933, %v949
        %v958 = vcombine.high %v933, %v949
        %v960 = vunpack.c.l.s4 1934713408
        %v961 = vunpack.c.0.s8 %v960
        %v962 = vlaneseq
        %v963 = vshrl.u32 %v962, 7
        %v964 = vsub.s32 %v961, %v963
        %v965 = vrot.slane %v957, %v964
        %v967 = vunpack.c.l.s4 1934713408
        %v968 = vunpack.c.0.s8 %v967
        %v969 = vlaneseq
        %v970 = vshrl.u32 %v969, 7
        %v971 = vsub.s32 %v968, %v970
        %v972 = vrot.slane %v958, %v971
        %v973 = vcombine.low %v940, %v956
        %v974 = vcombine.high %v940, %v956
        %v976 = vunpack.c.l.s4 1934713408
        %v977 = vunpack.c.0.s8 %v976
        %v978 = vlaneseq
        %v979 = vshrl.u32 %v978, 7
        %v980 = vsub.s32 %v977, %v979
        %v981 = vrot.slane %v973, %v980
        %v983 = vunpack.c.l.s4 1934713408
        %v984 = vunpack.c.0.s8 %v983
        %v985 = vlaneseq
        %v986 = vshrl.u32 %v985, 7
        %v987 = vsub.s32 %v984, %v986
        %v988 = vrot.slane %v974, %v987
        %v989 = vcombine.high %v965, 0.0
        %v990 = vcombine.high %v972, 0.0
        %v991 = vcombine.high %v981, 0.0
        %v992 = vcombine.high %v988, 0.0
        %v993 = vcombine.low %v965, %v972
        %v995 = vunpack.c.l.s4 1983009808
        %v996 = vunpack.c.0.s8 %v995
        %v997 = vlaneseq
        %v998 = vshrl.u32 %v997, 7
        %v999 = vsub.s32 %v996, %v998
        %v1000 = vrot.slane %v993, %v999
        %v1001 = vcombine.low %v989, %v990
        %v1003 = vunpack.c.l.s4 1983009808
        %v1004 = vunpack.c.0.s8 %v1003
        %v1005 = vlaneseq
        %v1006 = vshrl.u32 %v1005, 7
        %v1007 = vsub.s32 %v1004, %v1006
        %v1008 = vrot.slane %v1001, %v1007
        %v1009 = vcombine.low %v981, %v988
        %v1011 = vunpack.c.l.s4 1983009808
        %v1012 = vunpack.c.0.s8 %v1011
        %v1013 = vlaneseq
        %v1014 = vshrl.u32 %v1013, 7
        %v1015 = vsub.s32 %v1012, %v1014
        %v1016 = vrot.slane %v1009, %v1015
        %v1017 = vcombine.low %v991, %v992
        %v1019 = vunpack.c.l.s4 1983009808
        %v1020 = vunpack.c.0.s8 %v1019
        %v1021 = vlaneseq
        %v1022 = vshrl.u32 %v1021, 7
        %v1023 = vsub.s32 %v1020, %v1022
        %v1024 = vrot.slane %v1017, %v1023
        %v1025 = vcombine.low %v1000, %v1008
        %v1026 = vcombine.high %v1000, %v1008
        %v1028 = vunpack.c.l.s4 1934713408
        %v1029 = vunpack.c.0.s8 %v1028
        %v1030 = vlaneseq
        %v1031 = vshrl.u32 %v1030, 7
        %v1032 = vsub.s32 %v1029, %v1031
        %v1033 = vrot.slane %v1025, %v1032
        %v1035 = vunpack.c.l.s4 1934713408
        %v1036 = vunpack.c.0.s8 %v1035
        %v1037 = vlaneseq
        %v1038 = vshrl.u32 %v1037, 7
        %v1039 = vsub.s32 %v1036, %v1038
        %v1040 = vrot.slane %v1026, %v1039
        %v1041 = vcombine.low %v1016, %v1024
        %v1042 = vcombine.high %v1016, %v1024
        %v1044 = vunpack.c.l.s4 1934713408
        %v1045 = vunpack.c.0.s8 %v1044
        %v1046 = vlaneseq
        %v1047 = vshrl.u32 %v1046, 7
        %v1048 = vsub.s32 %v1045, %v1047
        %v1049 = vrot.slane %v1041, %v1048
        %v1051 = vunpack.c.l.s4 1934713408
        %v1052 = vunpack.c.0.s8 %v1051
        %v1053 = vlaneseq
        %v1054 = vshrl.u32 %v1053, 7
        %v1055 = vsub.s32 %v1052, %v1054
        %v1056 = vrot.slane %v1042, %v1055
        %v1057 = vcombine.low %v1033, %v1049
        %v1058 = vcombine.high %v1033, %v1049
        %v1059 = vcombine.low %v1040, %v1056
        %v1060 = vcombine.high %v1040, %v1056
        %v1061 = vpack.c.bf16 %v1057, %v1057
        %v1062 = vpack.c.bf16 %v1058, %v1058
        %v1063 = vpack.c.bf16 %v1059, %v1059
        %v1064 = vpack.c.bf16 %v1060, %v1060
        %1066 = vrot.lane.b32.xlu0 %v751, 96
        %v1067 = vpop.permute.xlu0 %1066
        %1069 = vrot.lane.b32.xlu0 %v751, 64
        %v1070 = vpop.permute.xlu0 %1069
        %1072 = vrot.lane.b32.xlu0 %v751, 32
        %v1073 = vpop.permute.xlu0 %1072
        %v1075 = vcombine.low %v751, %v1070
        %v1076 = vcombine.high %v751, %v1070
        %v1078 = vunpack.c.l.s4 1983009808
        %v1079 = vunpack.c.0.s8 %v1078
        %v1080 = vlaneseq
        %v1081 = vshrl.u32 %v1080, 7
        %v1082 = vsub.s32 %v1079, %v1081
        %v1083 = vrot.slane %v1075, %v1082
        %v1085 = vunpack.c.l.s4 1983009808
        %v1086 = vunpack.c.0.s8 %v1085
        %v1087 = vlaneseq
        %v1088 = vshrl.u32 %v1087, 7
        %v1089 = vsub.s32 %v1086, %v1088
        %v1090 = vrot.slane %v1076, %v1089
        %v1091 = vcombine.low %v1067, %v1073
        %v1092 = vcombine.high %v1067, %v1073
        %v1094 = vunpack.c.l.s4 1983009808
        %v1095 = vunpack.c.0.s8 %v1094
        %v1096 = vlaneseq
        %v1097 = vshrl.u32 %v1096, 7
        %v1098 = vsub.s32 %v1095, %v1097
        %v1099 = vrot.slane %v1091, %v1098
        %v1101 = vunpack.c.l.s4 1983009808
        %v1102 = vunpack.c.0.s8 %v1101
        %v1103 = vlaneseq
        %v1104 = vshrl.u32 %v1103, 7
        %v1105 = vsub.s32 %v1102, %v1104
        %v1106 = vrot.slane %v1092, %v1105
        %v1107 = vcombine.low %v1083, %v1099
        %v1108 = vcombine.high %v1083, %v1099
        %v1110 = vunpack.c.l.s4 1934713408
        %v1111 = vunpack.c.0.s8 %v1110
        %v1112 = vlaneseq
        %v1113 = vshrl.u32 %v1112, 7
        %v1114 = vsub.s32 %v1111, %v1113
        %v1115 = vrot.slane %v1107, %v1114
        %v1117 = vunpack.c.l.s4 1934713408
        %v1118 = vunpack.c.0.s8 %v1117
        %v1119 = vlaneseq
        %v1120 = vshrl.u32 %v1119, 7
        %v1121 = vsub.s32 %v1118, %v1120
        %v1122 = vrot.slane %v1108, %v1121
        %v1123 = vcombine.low %v1090, %v1106
        %v1124 = vcombine.high %v1090, %v1106
        %v1126 = vunpack.c.l.s4 1934713408
        %v1127 = vunpack.c.0.s8 %v1126
        %v1128 = vlaneseq
        %v1129 = vshrl.u32 %v1128, 7
        %v1130 = vsub.s32 %v1127, %v1129
        %v1131 = vrot.slane %v1123, %v1130
        %v1133 = vunpack.c.l.s4 1934713408
        %v1134 = vunpack.c.0.s8 %v1133
        %v1135 = vlaneseq
        %v1136 = vshrl.u32 %v1135, 7
        %v1137 = vsub.s32 %v1134, %v1136
        %v1138 = vrot.slane %v1124, %v1137
        %v1139 = vcombine.high %v1115, 0.0
        %v1140 = vcombine.high %v1122, 0.0
        %v1141 = vcombine.high %v1131, 0.0
        %v1142 = vcombine.high %v1138, 0.0
        %v1143 = vcombine.low %v1115, %v1122
        %v1145 = vunpack.c.l.s4 1983009808
        %v1146 = vunpack.c.0.s8 %v1145
        %v1147 = vlaneseq
        %v1148 = vshrl.u32 %v1147, 7
        %v1149 = vsub.s32 %v1146, %v1148
        %v1150 = vrot.slane %v1143, %v1149
        %v1151 = vcombine.low %v1139, %v1140
        %v1153 = vunpack.c.l.s4 1983009808
        %v1154 = vunpack.c.0.s8 %v1153
        %v1155 = vlaneseq
        %v1156 = vshrl.u32 %v1155, 7
        %v1157 = vsub.s32 %v1154, %v1156
        %v1158 = vrot.slane %v1151, %v1157
        %v1159 = vcombine.low %v1131, %v1138
        %v1161 = vunpack.c.l.s4 1983009808
        %v1162 = vunpack.c.0.s8 %v1161
        %v1163 = vlaneseq
        %v1164 = vshrl.u32 %v1163, 7
        %v1165 = vsub.s32 %v1162, %v1164
        %v1166 = vrot.slane %v1159, %v1165
        %v1167 = vcombine.low %v1141, %v1142
        %v1169 = vunpack.c.l.s4 1983009808
        %v1170 = vunpack.c.0.s8 %v1169
        %v1171 = vlaneseq
        %v1172 = vshrl.u32 %v1171, 7
        %v1173 = vsub.s32 %v1170, %v1172
        %v1174 = vrot.slane %v1167, %v1173
        %v1175 = vcombine.low %v1150, %v1158
        %v1176 = vcombine.high %v1150, %v1158
        %v1178 = vunpack.c.l.s4 1934713408
        %v1179 = vunpack.c.0.s8 %v1178
        %v1180 = vlaneseq
        %v1181 = vshrl.u32 %v1180, 7
        %v1182 = vsub.s32 %v1179, %v1181
        %v1183 = vrot.slane %v1175, %v1182
        %v1185 = vunpack.c.l.s4 1934713408
        %v1186 = vunpack.c.0.s8 %v1185
        %v1187 = vlaneseq
        %v1188 = vshrl.u32 %v1187, 7
        %v1189 = vsub.s32 %v1186, %v1188
        %v1190 = vrot.slane %v1176, %v1189
        %v1191 = vcombine.low %v1166, %v1174
        %v1192 = vcombine.high %v1166, %v1174
        %v1194 = vunpack.c.l.s4 1934713408
        %v1195 = vunpack.c.0.s8 %v1194
        %v1196 = vlaneseq
        %v1197 = vshrl.u32 %v1196, 7
        %v1198 = vsub.s32 %v1195, %v1197
        %v1199 = vrot.slane %v1191, %v1198
        %v1201 = vunpack.c.l.s4 1934713408
        %v1202 = vunpack.c.0.s8 %v1201
        %v1203 = vlaneseq
        %v1204 = vshrl.u32 %v1203, 7
        %v1205 = vsub.s32 %v1202, %v1204
        %v1206 = vrot.slane %v1192, %v1205
        %v1207 = vcombine.low %v1183, %v1199
        %v1208 = vcombine.high %v1183, %v1199
        %v1209 = vcombine.low %v1190, %v1206
        %v1210 = vcombine.high %v1190, %v1206
        %v1211 = vpack.c.bf16 %v1207, %v1207
        %v1212 = vpack.c.bf16 %v1208, %v1208
        %v1213 = vpack.c.bf16 %v1209, %v1209
        %v1214 = vpack.c.bf16 %v1210, %v1210
        %vm1215 = vcmask 261120
        %v1217 = vsel %vm1215, %v911, 0
        %v1220 = vsel %vm1215, %v1061, 0
        %1222 = vmatprep.subr.bf16.mxu0 0
        %1223 = vmatpush1.bf16.xpose.msra.mxu0 %v1220
        %1224 = vmatprep.subr.bf16.mxu0 0
        %1225 = vmatpush1.bf16.xpose.msra.mxu0 0
        %1226 = vmatprep.subr.bf16.mxu0 0
        %1227 = vmatpush1.bf16.xpose.msra.mxu0 0
        %1228 = vmatprep.subr.bf16.mxu0 0
        %1229 = vmatpush1.bf16.xpose.msra.mxu0 0
        %1230 = vmatprep.subr.bf16.mxu0 0
        %1231 = vmatpush1.bf16.xpose.msra.mxu0 0
        %1232 = vmatprep.subr.bf16.mxu0 0
        %1233 = vmatpush1.bf16.xpose.msra.mxu0 0
        %1234 = vmatprep.subr.bf16.mxu0 0
        %1235 = vmatpush1.bf16.xpose.msra.mxu0 0
        %1236 = vmatprep.subr.bf16.mxu0 0
        %1237 = vmatpush1.bf16.xpose.msra.mxu0 0
        %1238 = vmatprep.subr.bf16.mxu0 0
        %1239 = vmatpush1.bf16.xpose.msra.mxu0 0
        %1240 = vmatprep.subr.bf16.mxu0 0
        %1241 = vmatpush1.bf16.xpose.msra.mxu0 0
        %1242 = vmatprep.subr.bf16.mxu0 0
        %1243 = vmatpush1.bf16.xpose.msra.mxu0 0
        %1244 = vmatprep.subr.bf16.mxu0 0
        %1245 = vmatpush1.bf16.xpose.msra.mxu0 0
        %1246 = vmatprep.subr.bf16.mxu0 0
        %1247 = vmatpush1.bf16.xpose.msra.mxu0 0
        %1248 = vmatprep.subr.bf16.mxu0 0
        %1249 = vmatpush1.bf16.xpose.msra.mxu0 0
        %1250 = vmatprep.subr.bf16.mxu0 0
        %1251 = vmatpush1.bf16.xpose.msra.mxu0 0
        %1252 = vmatprep.subr.bf16.mxu0 0
        %1253 = vmatpush1.bf16.xpose.msra.mxu0 0
        %1254 = vmatprep.mubr.bf16.mxu0 0
        %1255 = vmatmul.mubr.bf16.gmra.mrb[0].mxu0 %v1217
        %v1256 = vpop.f32.mrb[0].mxu0
        %v1257 = vadd.f32 0.0, %v1256
        %v1258 = vpop.f32.mrb[0].mxu0
        %v1259 = vpop.f32.mrb[0].mxu0
        %v1260 = vpop.f32.mrb[0].mxu0
        %1261 = vdwg.mxu0
        %v1263 = vsel %vm1215, %v912, 0
        %v1266 = vsel %vm1215, %v1062, 0
        %1268 = vmatprep.subr.bf16.mxu0 0
        %1269 = vmatpush1.bf16.xpose.msra.mxu0 %v1266
        %1270 = vmatprep.subr.bf16.mxu0 0
        %1271 = vmatpush1.bf16.xpose.msra.mxu0 0
        %1272 = vmatprep.subr.bf16.mxu0 0
        %1273 = vmatpush1.bf16.xpose.msra.mxu0 0
        %1274 = vmatprep.subr.bf16.mxu0 0
        %1275 = vmatpush1.bf16.xpose.msra.mxu0 0
        %1276 = vmatprep.subr.bf16.mxu0 0
        %1277 = vmatpush1.bf16.xpose.msra.mxu0 0
        %1278 = vmatprep.subr.bf16.mxu0 0
        %1279 = vmatpush1.bf16.xpose.msra.mxu0 0
        %1280 = vmatprep.subr.bf16.mxu0 0
        %1281 = vmatpush1.bf16.xpose.msra.mxu0 0
        %1282 = vmatprep.subr.bf16.mxu0 0
        %1283 = vmatpush1.bf16.xpose.msra.mxu0 0
        %1284 = vmatprep.subr.bf16.mxu0 0
        %1285 = vmatpush1.bf16.xpose.msra.mxu0 0
        %1286 = vmatprep.subr.bf16.mxu0 0
        %1287 = vmatpush1.bf16.xpose.msra.mxu0 0
        %1288 = vmatprep.subr.bf16.mxu0 0
        %1289 = vmatpush1.bf16.xpose.msra.mxu0 0
        %1290 = vmatprep.subr.bf16.mxu0 0
        %1291 = vmatpush1.bf16.xpose.msra.mxu0 0
        %1292 = vmatprep.subr.bf16.mxu0 0
        %1293 = vmatpush1.bf16.xpose.msra.mxu0 0
        %1294 = vmatprep.subr.bf16.mxu0 0
        %1295 = vmatpush1.bf16.xpose.msra.mxu0 0
        %1296 = vmatprep.subr.bf16.mxu0 0
        %1297 = vmatpush1.bf16.xpose.msra.mxu0 0
        %1298 = vmatprep.subr.bf16.mxu0 0
        %1299 = vmatpush1.bf16.xpose.msra.mxu0 0
        %1300 = vmatprep.mubr.bf16.mxu0 0
        %1301 = vmatmul.mubr.bf16.gmra.mrb[0].mxu0 %v1263
        %v1302 = vpop.f32.mrb[0].mxu0
        %v1303 = vadd.f32 0.0, %v1302
        %v1304 = vpop.f32.mrb[0].mxu0
        %v1305 = vpop.f32.mrb[0].mxu0
        %v1306 = vpop.f32.mrb[0].mxu0
        %1307 = vdwg.mxu0
        %v1309 = vsel %vm1215, %v913, 0
        %v1312 = vsel %vm1215, %v1063, 0
        %1314 = vmatprep.subr.bf16.mxu0 0
        %1315 = vmatpush1.bf16.xpose.msra.mxu0 %v1312
        %1316 = vmatprep.subr.bf16.mxu0 0
        %1317 = vmatpush1.bf16.xpose.msra.mxu0 0
        %1318 = vmatprep.subr.bf16.mxu0 0
        %1319 = vmatpush1.bf16.xpose.msra.mxu0 0
        %1320 = vmatprep.subr.bf16.mxu0 0
        %1321 = vmatpush1.bf16.xpose.msra.mxu0 0
        %1322 = vmatprep.subr.bf16.mxu0 0
        %1323 = vmatpush1.bf16.xpose.msra.mxu0 0
        %1324 = vmatprep.subr.bf16.mxu0 0
        %1325 = vmatpush1.bf16.xpose.msra.mxu0 0
        %1326 = vmatprep.subr.bf16.mxu0 0
        %1327 = vmatpush1.bf16.xpose.msra.mxu0 0
        %1328 = vmatprep.subr.bf16.mxu0 0
        %1329 = vmatpush1.bf16.xpose.msra.mxu0 0
        %1330 = vmatprep.subr.bf16.mxu0 0
        %1331 = vmatpush1.bf16.xpose.msra.mxu0 0
        %1332 = vmatprep.subr.bf16.mxu0 0
        %1333 = vmatpush1.bf16.xpose.msra.mxu0 0
        %1334 = vmatprep.subr.bf16.mxu0 0
        %1335 = vmatpush1.bf16.xpose.msra.mxu0 0
        %1336 = vmatprep.subr.bf16.mxu0 0
        %1337 = vmatpush1.bf16.xpose.msra.mxu0 0
        %1338 = vmatprep.subr.bf16.mxu0 0
        %1339 = vmatpush1.bf16.xpose.msra.mxu0 0
        %1340 = vmatprep.subr.bf16.mxu0 0
        %1341 = vmatpush1.bf16.xpose.msra.mxu0 0
        %1342 = vmatprep.subr.bf16.mxu0 0
        %1343 = vmatpush1.bf16.xpose.msra.mxu0 0
        %1344 = vmatprep.subr.bf16.mxu0 0
        %1345 = vmatpush1.bf16.xpose.msra.mxu0 0
        %1346 = vmatprep.mubr.bf16.mxu0 0
        %1347 = vmatmul.mubr.bf16.gmra.mrb[0].mxu0 %v1309
        %v1348 = vpop.f32.mrb[0].mxu0
        %v1349 = vadd.f32 0.0, %v1348
        %v1350 = vpop.f32.mrb[0].mxu0
        %v1351 = vpop.f32.mrb[0].mxu0
        %v1352 = vpop.f32.mrb[0].mxu0
        %1353 = vdwg.mxu0
        %v1355 = vsel %vm1215, %v914, 0
        %v1358 = vsel %vm1215, %v1064, 0
        %1360 = vmatprep.subr.bf16.mxu0 0
        %1361 = vmatpush1.bf16.xpose.msra.mxu0 %v1358
        %1362 = vmatprep.subr.bf16.mxu0 0
        %1363 = vmatpush1.bf16.xpose.msra.mxu0 0
        %1364 = vmatprep.subr.bf16.mxu0 0
        %1365 = vmatpush1.bf16.xpose.msra.mxu0 0
        %1366 = vmatprep.subr.bf16.mxu0 0
        %1367 = vmatpush1.bf16.xpose.msra.mxu0 0
        %1368 = vmatprep.subr.bf16.mxu0 0
        %1369 = vmatpush1.bf16.xpose.msra.mxu0 0
        %1370 = vmatprep.subr.bf16.mxu0 0
        %1371 = vmatpush1.bf16.xpose.msra.mxu0 0
        %1372 = vmatprep.subr.bf16.mxu0 0
        %1373 = vmatpush1.bf16.xpose.msra.mxu0 0
        %1374 = vmatprep.subr.bf16.mxu0 0
        %1375 = vmatpush1.bf16.xpose.msra.mxu0 0
        %1376 = vmatprep.subr.bf16.mxu0 0
        %1377 = vmatpush1.bf16.xpose.msra.mxu0 0
        %1378 = vmatprep.subr.bf16.mxu0 0
        %1379 = vmatpush1.bf16.xpose.msra.mxu0 0
        %1380 = vmatprep.subr.bf16.mxu0 0
        %1381 = vmatpush1.bf16.xpose.msra.mxu0 0
        %1382 = vmatprep.subr.bf16.mxu0 0
        %1383 = vmatpush1.bf16.xpose.msra.mxu0 0
        %1384 = vmatprep.subr.bf16.mxu0 0
        %1385 = vmatpush1.bf16.xpose.msra.mxu0 0
        %1386 = vmatprep.subr.bf16.mxu0 0
        %1387 = vmatpush1.bf16.xpose.msra.mxu0 0
        %1388 = vmatprep.subr.bf16.mxu0 0
        %1389 = vmatpush1.bf16.xpose.msra.mxu0 0
        %1390 = vmatprep.subr.bf16.mxu0 0
        %1391 = vmatpush1.bf16.xpose.msra.mxu0 0
        %1392 = vmatprep.mubr.bf16.mxu0 0
        %1393 = vmatmul.mubr.bf16.gmra.mrb[0].mxu0 %v1355
        %v1394 = vpop.f32.mrb[0].mxu0
        %v1395 = vadd.f32 0.0, %v1394
        %v1396 = vpop.f32.mrb[0].mxu0
        %v1397 = vpop.f32.mrb[0].mxu0
        %v1398 = vpop.f32.mrb[0].mxu0
        %1399 = vdwg.mxu0
        %v1400 = vmul.f32 %v1257, 0.17677669
        %v1401 = vmul.f32 %v1303, 0.17677669
        %v1402 = vmul.f32 %v1349, 0.17677669
        %v1403 = vmul.f32 %v1395, 0.17677669
        %v1404 = vadd.f32 %v1400, %v764
        %v1405 = vadd.f32 %v1401, %v764
        %v1406 = vadd.f32 %v1402, %v764
        %v1407 = vadd.f32 %v1403, %v764
        %vm1408 = vcmask 64512
        %v1409 = vsel %vm1408, %v1404, -inf
        %1410 = vmax.xlane.f32.xlu0 %v1409
        %v1411 = vpop.xlane.xlu0 %1410
        %v1412 = vsel %vm1408, %v1405, -inf
        %1413 = vmax.xlane.f32.xlu0 %v1412
        %v1414 = vpop.xlane.xlu0 %1413
        %v1415 = vsel %vm1408, %v1406, -inf
        %1416 = vmax.xlane.f32.xlu0 %v1415
        %v1417 = vpop.xlane.xlu0 %1416
        %v1418 = vsel %vm1408, %v1407, -inf
        %1419 = vmax.xlane.f32.xlu0 %v1418
        %v1420 = vpop.xlane.xlu0 %1419
        %v1421 = vsub.f32 %v1404, %v1411
        %v1422 = vsub.f32 %v1405, %v1414
        %v1423 = vsub.f32 %v1406, %v1417
        %v1424 = vsub.f32 %v1407, %v1420
        %v1425 = vmul.f32 %v1421, 1.442695
        %v1426 = vpow.pop %v1425
        %v1427 = vmul.f32 %v1422, 1.442695
        %v1428 = vpow.pop %v1427
        %v1429 = vmul.f32 %v1423, 1.442695
        %v1430 = vpow.pop %v1429
        %v1431 = vmul.f32 %v1424, 1.442695
        %v1432 = vpow.pop %v1431
        %v1433 = vsel %vm1408, %v1426, 0.0
        %1434 = vadd.xlane.f32.xlu0 %v1433
        %v1435 = vpop.xlane.xlu0 %1434
        %v1436 = vsel %vm1408, %v1428, 0.0
        %1437 = vadd.xlane.f32.xlu0 %v1436
        %v1438 = vpop.xlane.xlu0 %1437
        %v1439 = vsel %vm1408, %v1430, 0.0
        %1440 = vadd.xlane.f32.xlu0 %v1439
        %v1441 = vpop.xlane.xlu0 %1440
        %v1442 = vsel %vm1408, %v1432, 0.0
        %1443 = vadd.xlane.f32.xlu0 %v1442
        %v1444 = vpop.xlane.xlu0 %1443
        %v1445 = vmax.f32 %v1435, 1e-20
        %v1446 = vmax.f32 %v1438, 1e-20
        %v1447 = vmax.f32 %v1441, 1e-20
        %v1448 = vmax.f32 %v1444, 1e-20
        %v1449 = vrcp.pop %v1445
        %v1450 = vrcp.pop %v1446
        %v1451 = vrcp.pop %v1447
        %v1452 = vrcp.pop %v1448
        %v1453 = vmul.f32 %v1426, %v1449
        %v1454 = vmul.f32 %v1428, %v1450
        %v1455 = vmul.f32 %v1430, %v1451
        %v1456 = vmul.f32 %v1432, %v1452
        %v1457 = vpack.c.bf16 %v1453, %v1453
        %v1458 = vpack.c.bf16 %v1454, %v1454
        %v1459 = vpack.c.bf16 %v1455, %v1455
        %v1460 = vpack.c.bf16 %v1456, %v1456
        %v1462 = vsel %vm1408, %v1457, 0
        %vm1464 = vcmask 1043456
        %v1466 = vsel %vm1464, %v1211, 0
        %1468 = vmatprep.subr.bf16.mxu0 0
        %1469 = vmatpush1.bf16.msra.mxu0 %v1466
        %1470 = vmatprep.subr.bf16.mxu0 0
        %1471 = vmatpush1.bf16.msra.mxu0 0
        %1472 = vmatprep.subr.bf16.mxu0 0
        %1473 = vmatpush1.bf16.msra.mxu0 0
        %1474 = vmatprep.subr.bf16.mxu0 0
        %1475 = vmatpush1.bf16.msra.mxu0 0
        %1476 = vmatprep.subr.bf16.mxu0 0
        %1477 = vmatpush1.bf16.msra.mxu0 0
        %1478 = vmatprep.subr.bf16.mxu0 0
        %1479 = vmatpush1.bf16.msra.mxu0 0
        %1480 = vmatprep.subr.bf16.mxu0 0
        %1481 = vmatpush1.bf16.msra.mxu0 0
        %1482 = vmatprep.subr.bf16.mxu0 0
        %1483 = vmatpush1.bf16.msra.mxu0 0
        %1484 = vmatprep.subr.bf16.mxu0 0
        %1485 = vmatpush1.bf16.msra.mxu0 0
        %1486 = vmatprep.subr.bf16.mxu0 0
        %1487 = vmatpush1.bf16.msra.mxu0 0
        %1488 = vmatprep.subr.bf16.mxu0 0
        %1489 = vmatpush1.bf16.msra.mxu0 0
        %1490 = vmatprep.subr.bf16.mxu0 0
        %1491 = vmatpush1.bf16.msra.mxu0 0
        %1492 = vmatprep.subr.bf16.mxu0 0
        %1493 = vmatpush1.bf16.msra.mxu0 0
        %1494 = vmatprep.subr.bf16.mxu0 0
        %1495 = vmatpush1.bf16.msra.mxu0 0
        %1496 = vmatprep.subr.bf16.mxu0 0
        %1497 = vmatpush1.bf16.msra.mxu0 0
        %1498 = vmatprep.subr.bf16.mxu0 0
        %1499 = vmatpush1.bf16.msra.mxu0 0
        %1500 = vmatprep.mubr.bf16.mxu0 0
        %1501 = vmatmul.mubr.bf16.gmra.mrb[0].mxu0 %v1462
        %v1502 = vpop.f32.mrb[0].mxu0
        %v1503 = vadd.f32 0.0, %v1502
        %v1504 = vpop.f32.mrb[0].mxu0
        %v1505 = vpop.f32.mrb[0].mxu0
        %v1506 = vpop.f32.mrb[0].mxu0
        %1507 = vdwg.mxu0
        %v1509 = vsel %vm1408, %v1458, 0
        %v1512 = vsel %vm1464, %v1212, 0
        %1514 = vmatprep.subr.bf16.mxu0 0
        %1515 = vmatpush1.bf16.msra.mxu0 %v1512
        %1516 = vmatprep.subr.bf16.mxu0 0
        %1517 = vmatpush1.bf16.msra.mxu0 0
        %1518 = vmatprep.subr.bf16.mxu0 0
        %1519 = vmatpush1.bf16.msra.mxu0 0
        %1520 = vmatprep.subr.bf16.mxu0 0
        %1521 = vmatpush1.bf16.msra.mxu0 0
        %1522 = vmatprep.subr.bf16.mxu0 0
        %1523 = vmatpush1.bf16.msra.mxu0 0
        %1524 = vmatprep.subr.bf16.mxu0 0
        %1525 = vmatpush1.bf16.msra.mxu0 0
        %1526 = vmatprep.subr.bf16.mxu0 0
        %1527 = vmatpush1.bf16.msra.mxu0 0
        %1528 = vmatprep.subr.bf16.mxu0 0
        %1529 = vmatpush1.bf16.msra.mxu0 0
        %1530 = vmatprep.subr.bf16.mxu0 0
        %1531 = vmatpush1.bf16.msra.mxu0 0
        %1532 = vmatprep.subr.bf16.mxu0 0
        %1533 = vmatpush1.bf16.msra.mxu0 0
        %1534 = vmatprep.subr.bf16.mxu0 0
        %1535 = vmatpush1.bf16.msra.mxu0 0
        %1536 = vmatprep.subr.bf16.mxu0 0
        %1537 = vmatpush1.bf16.msra.mxu0 0
        %1538 = vmatprep.subr.bf16.mxu0 0
        %1539 = vmatpush1.bf16.msra.mxu0 0
        %1540 = vmatprep.subr.bf16.mxu0 0
        %1541 = vmatpush1.bf16.msra.mxu0 0
        %1542 = vmatprep.subr.bf16.mxu0 0
        %1543 = vmatpush1.bf16.msra.mxu0 0
        %1544 = vmatprep.subr.bf16.mxu0 0
        %1545 = vmatpush1.bf16.msra.mxu0 0
        %1546 = vmatprep.mubr.bf16.mxu0 0
        %1547 = vmatmul.mubr.bf16.gmra.mrb[0].mxu0 %v1509
        %v1548 = vpop.f32.mrb[0].mxu0
        %v1549 = vadd.f32 0.0, %v1548
        %v1550 = vpop.f32.mrb[0].mxu0
        %v1551 = vpop.f32.mrb[0].mxu0
        %v1552 = vpop.f32.mrb[0].mxu0
        %1553 = vdwg.mxu0
        %v1555 = vsel %vm1408, %v1459, 0
        %v1558 = vsel %vm1464, %v1213, 0
        %1560 = vmatprep.subr.bf16.mxu0 0
        %1561 = vmatpush1.bf16.msra.mxu0 %v1558
        %1562 = vmatprep.subr.bf16.mxu0 0
        %1563 = vmatpush1.bf16.msra.mxu0 0
        %1564 = vmatprep.subr.bf16.mxu0 0
        %1565 = vmatpush1.bf16.msra.mxu0 0
        %1566 = vmatprep.subr.bf16.mxu0 0
        %1567 = vmatpush1.bf16.msra.mxu0 0
        %1568 = vmatprep.subr.bf16.mxu0 0
        %1569 = vmatpush1.bf16.msra.mxu0 0
        %1570 = vmatprep.subr.bf16.mxu0 0
        %1571 = vmatpush1.bf16.msra.mxu0 0
        %1572 = vmatprep.subr.bf16.mxu0 0
        %1573 = vmatpush1.bf16.msra.mxu0 0
        %1574 = vmatprep.subr.bf16.mxu0 0
        %1575 = vmatpush1.bf16.msra.mxu0 0
        %1576 = vmatprep.subr.bf16.mxu0 0
        %1577 = vmatpush1.bf16.msra.mxu0 0
        %1578 = vmatprep.subr.bf16.mxu0 0
        %1579 = vmatpush1.bf16.msra.mxu0 0
        %1580 = vmatprep.subr.bf16.mxu0 0
        %1581 = vmatpush1.bf16.msra.mxu0 0
        %1582 = vmatprep.subr.bf16.mxu0 0
        %1583 = vmatpush1.bf16.msra.mxu0 0
        %1584 = vmatprep.subr.bf16.mxu0 0
        %1585 = vmatpush1.bf16.msra.mxu0 0
        %1586 = vmatprep.subr.bf16.mxu0 0
        %1587 = vmatpush1.bf16.msra.mxu0 0
        %1588 = vmatprep.subr.bf16.mxu0 0
        %1589 = vmatpush1.bf16.msra.mxu0 0
        %1590 = vmatprep.subr.bf16.mxu0 0
        %1591 = vmatpush1.bf16.msra.mxu0 0
        %1592 = vmatprep.mubr.bf16.mxu0 0
        %1593 = vmatmul.mubr.bf16.gmra.mrb[0].mxu0 %v1555
        %v1594 = vpop.f32.mrb[0].mxu0
        %v1595 = vadd.f32 0.0, %v1594
        %v1596 = vpop.f32.mrb[0].mxu0
        %v1597 = vpop.f32.mrb[0].mxu0
        %v1598 = vpop.f32.mrb[0].mxu0
        %1599 = vdwg.mxu0
        %v1601 = vsel %vm1408, %v1460, 0
        %v1604 = vsel %vm1464, %v1214, 0
        %1606 = vmatprep.subr.bf16.mxu0 0
        %1607 = vmatpush1.bf16.msra.mxu0 %v1604
        %1608 = vmatprep.subr.bf16.mxu0 0
        %1609 = vmatpush1.bf16.msra.mxu0 0
        %1610 = vmatprep.subr.bf16.mxu0 0
        %1611 = vmatpush1.bf16.msra.mxu0 0
        %1612 = vmatprep.subr.bf16.mxu0 0
        %1613 = vmatpush1.bf16.msra.mxu0 0
        %1614 = vmatprep.subr.bf16.mxu0 0
        %1615 = vmatpush1.bf16.msra.mxu0 0
        %1616 = vmatprep.subr.bf16.mxu0 0
        %1617 = vmatpush1.bf16.msra.mxu0 0
        %1618 = vmatprep.subr.bf16.mxu0 0
        %1619 = vmatpush1.bf16.msra.mxu0 0
        %1620 = vmatprep.subr.bf16.mxu0 0
        %1621 = vmatpush1.bf16.msra.mxu0 0
        %1622 = vmatprep.subr.bf16.mxu0 0
        %1623 = vmatpush1.bf16.msra.mxu0 0
        %1624 = vmatprep.subr.bf16.mxu0 0
        %1625 = vmatpush1.bf16.msra.mxu0 0
        %1626 = vmatprep.subr.bf16.mxu0 0
        %1627 = vmatpush1.bf16.msra.mxu0 0
        %1628 = vmatprep.subr.bf16.mxu0 0
        %1629 = vmatpush1.bf16.msra.mxu0 0
        %1630 = vmatprep.subr.bf16.mxu0 0
        %1631 = vmatpush1.bf16.msra.mxu0 0
        %1632 = vmatprep.subr.bf16.mxu0 0
        %1633 = vmatpush1.bf16.msra.mxu0 0
        %1634 = vmatprep.subr.bf16.mxu0 0
        %1635 = vmatpush1.bf16.msra.mxu0 0
        %1636 = vmatprep.subr.bf16.mxu0 0
        %1637 = vmatpush1.bf16.msra.mxu0 0
        %1638 = vmatprep.mubr.bf16.mxu0 0
        %1639 = vmatmul.mubr.bf16.gmra.mrb[0].mxu0 %v1601
        %v1640 = vpop.f32.mrb[0].mxu0
        %v1641 = vadd.f32 0.0, %v1640
        %v1642 = vpop.f32.mrb[0].mxu0
        %v1643 = vpop.f32.mrb[0].mxu0
        %v1644 = vpop.f32.mrb[0].mxu0
        %1645 = vdwg.mxu0
        %v1646 = vcombine.low %v1503, %v1595
        %v1647 = vcombine.high %v1503, %v1595
        %v1649 = vunpack.c.l.s4 1983009808
        %v1650 = vunpack.c.0.s8 %v1649
        %v1651 = vlaneseq
        %v1652 = vshrl.u32 %v1651, 7
        %v1653 = vsub.s32 %v1650, %v1652
        %v1654 = vrot.slane %v1646, %v1653
        %v1656 = vunpack.c.l.s4 1983009808
        %v1657 = vunpack.c.0.s8 %v1656
        %v1658 = vlaneseq
        %v1659 = vshrl.u32 %v1658, 7
        %v1660 = vsub.s32 %v1657, %v1659
        %v1661 = vrot.slane %v1647, %v1660
        %v1662 = vcombine.low %v1549, %v1641
        %v1663 = vcombine.high %v1549, %v1641
        %v1665 = vunpack.c.l.s4 1983009808
        %v1666 = vunpack.c.0.s8 %v1665
        %v1667 = vlaneseq
        %v1668 = vshrl.u32 %v1667, 7
        %v1669 = vsub.s32 %v1666, %v1668
        %v1670 = vrot.slane %v1662, %v1669
        %v1672 = vunpack.c.l.s4 1983009808
        %v1673 = vunpack.c.0.s8 %v1672
        %v1674 = vlaneseq
        %v1675 = vshrl.u32 %v1674, 7
        %v1676 = vsub.s32 %v1673, %v1675
        %v1677 = vrot.slane %v1663, %v1676
        %v1678 = vcombine.low %v1654, %v1670
        %v1679 = vcombine.high %v1654, %v1670
        %v1681 = vunpack.c.l.s4 1934713408
        %v1682 = vunpack.c.0.s8 %v1681
        %v1683 = vlaneseq
        %v1684 = vshrl.u32 %v1683, 7
        %v1685 = vsub.s32 %v1682, %v1684
        %v1686 = vrot.slane %v1678, %v1685
        %v1688 = vunpack.c.l.s4 1934713408
        %v1689 = vunpack.c.0.s8 %v1688
        %v1690 = vlaneseq
        %v1691 = vshrl.u32 %v1690, 7
        %v1692 = vsub.s32 %v1689, %v1691
        %v1693 = vrot.slane %v1679, %v1692
        %v1694 = vcombine.low %v1661, %v1677
        %v1695 = vcombine.high %v1661, %v1677
        %v1697 = vunpack.c.l.s4 1934713408
        %v1698 = vunpack.c.0.s8 %v1697
        %v1699 = vlaneseq
        %v1700 = vshrl.u32 %v1699, 7
        %v1701 = vsub.s32 %v1698, %v1700
        %v1702 = vrot.slane %v1694, %v1701
        %v1704 = vunpack.c.l.s4 1934713408
        %v1705 = vunpack.c.0.s8 %v1704
        %v1706 = vlaneseq
        %v1707 = vshrl.u32 %v1706, 7
        %v1708 = vsub.s32 %v1705, %v1707
        %v1709 = vrot.slane %v1695, %v1708
        %v1710 = vcombine.high %v1686, 0.0
        %v1711 = vcombine.high %v1693, 0.0
        %v1712 = vcombine.high %v1702, 0.0
        %v1713 = vcombine.high %v1709, 0.0
        %v1714 = vcombine.low %v1686, %v1693
        %v1716 = vunpack.c.l.s4 1983009808
        %v1717 = vunpack.c.0.s8 %v1716
        %v1718 = vlaneseq
        %v1719 = vshrl.u32 %v1718, 7
        %v1720 = vsub.s32 %v1717, %v1719
        %v1721 = vrot.slane %v1714, %v1720
        %v1722 = vcombine.low %v1710, %v1711
        %v1724 = vunpack.c.l.s4 1983009808
        %v1725 = vunpack.c.0.s8 %v1724
        %v1726 = vlaneseq
        %v1727 = vshrl.u32 %v1726, 7
        %v1728 = vsub.s32 %v1725, %v1727
        %v1729 = vrot.slane %v1722, %v1728
        %v1730 = vcombine.low %v1702, %v1709
        %v1732 = vunpack.c.l.s4 1983009808
        %v1733 = vunpack.c.0.s8 %v1732
        %v1734 = vlaneseq
        %v1735 = vshrl.u32 %v1734, 7
        %v1736 = vsub.s32 %v1733, %v1735
        %v1737 = vrot.slane %v1730, %v1736
        %v1738 = vcombine.low %v1712, %v1713
        %v1740 = vunpack.c.l.s4 1983009808
        %v1741 = vunpack.c.0.s8 %v1740
        %v1742 = vlaneseq
        %v1743 = vshrl.u32 %v1742, 7
        %v1744 = vsub.s32 %v1741, %v1743
        %v1745 = vrot.slane %v1738, %v1744
        %v1746 = vcombine.low %v1721, %v1729
        %v1747 = vcombine.high %v1721, %v1729
        %v1749 = vunpack.c.l.s4 1934713408
        %v1750 = vunpack.c.0.s8 %v1749
        %v1751 = vlaneseq
        %v1752 = vshrl.u32 %v1751, 7
        %v1753 = vsub.s32 %v1750, %v1752
        %v1754 = vrot.slane %v1746, %v1753
        %v1756 = vunpack.c.l.s4 1934713408
        %v1757 = vunpack.c.0.s8 %v1756
        %v1758 = vlaneseq
        %v1759 = vshrl.u32 %v1758, 7
        %v1760 = vsub.s32 %v1757, %v1759
        %v1761 = vrot.slane %v1747, %v1760
        %v1762 = vcombine.low %v1737, %v1745
        %v1763 = vcombine.high %v1737, %v1745
        %v1765 = vunpack.c.l.s4 1934713408
        %v1766 = vunpack.c.0.s8 %v1765
        %v1767 = vlaneseq
        %v1768 = vshrl.u32 %v1767, 7
        %v1769 = vsub.s32 %v1766, %v1768
        %v1770 = vrot.slane %v1762, %v1769
        %v1772 = vunpack.c.l.s4 1934713408
        %v1773 = vunpack.c.0.s8 %v1772
        %v1774 = vlaneseq
        %v1775 = vshrl.u32 %v1774, 7
        %v1776 = vsub.s32 %v1773, %v1775
        %v1777 = vrot.slane %v1763, %v1776
        %v1778 = vcombine.low %v1754, %v1770
        %v1779 = vcombine.high %v1754, %v1770
        %v1780 = vcombine.low %v1761, %v1777
        %v1781 = vcombine.high %v1761, %v1777
        %1783 = vrot.lane.b32.xlu0 %v1779, 32
        %v1784 = vpop.permute.xlu0 %1783
        %1787 = vrot.lane.b32.xlu0 %v1780, 64
        %v1788 = vpop.permute.xlu0 %1787
        %1791 = vrot.lane.b32.xlu0 %v1781, 96
        %v1792 = vpop.permute.xlu0 %1791
        %v1794 = vsel %vm1215, %v1778, %v1784
        %vm1795 = vcmask 523264
        %v1796 = vsel %vm1795, %v1794, %v1788
        %vm1797 = vcmask 785408
        %v1798 = vsel %vm1797, %v1796, %v1792
        %v1799 = vpack.c.bf16 %v1798, %v1798
        %v1800 = vld [vmem:[#allocation11] sm:$0xf]
        %v1801 = vld [vmem:[#allocation11 + $0x4] sm:$0xf]
        %v1802 = vld [vmem:[#allocation11 + $0x8] sm:$0xf]
        %v1803 = vld [vmem:[#allocation11 + $0xc] sm:$0xf]
        %v1804 = vld [vmem:[#allocation11 + $0x10] sm:$0xf]
        %v1805 = vld [vmem:[#allocation11 + $0x14] sm:$0xf]
        %v1806 = vld [vmem:[#allocation11 + $0x18] sm:$0xf]
        %v1807 = vld [vmem:[#allocation11 + $0x1c] sm:$0xf]
        %v1808 = vld [vmem:[#allocation11 + $0x20] sm:$0xf]
        %v1809 = vld [vmem:[#allocation11 + $0x24] sm:$0xf]
        %v1810 = vld [vmem:[#allocation11 + $0x28] sm:$0xf]
        %v1811 = vld [vmem:[#allocation11 + $0x2c] sm:$0xf]
        %v1812 = vld [vmem:[#allocation11 + $0x30] sm:$0xf]
        %v1813 = vld [vmem:[#allocation11 + $0x34] sm:$0xf]
        %v1814 = vld [vmem:[#allocation11 + $0x38] sm:$0xf]
        %v1815 = vld [vmem:[#allocation11 + $0x3c] sm:$0xf]
        %v1816 = vld [vmem:[#allocation13] sm:$0x1]
        %v1818 = vlaneseq
        %v1819 = vshrl.u32 %v1818, 7
        %v1820 = vsub.s32 0, %v1819
        %v1821 = vrot.slane %v1816, %v1820
        %v1839 = vunpack.c.l.b16 %v1800
        %v1840 = vunpack.c.l.b16 %v1801
        %v1841 = vunpack.c.l.b16 %v1802
        %v1842 = vunpack.c.l.b16 %v1803
        %v1843 = vunpack.c.l.b16 %v1804
        %v1844 = vunpack.c.l.b16 %v1805
        %v1845 = vunpack.c.l.b16 %v1806
        %v1846 = vunpack.c.l.b16 %v1807
        %v1847 = vunpack.c.l.b16 %v1808
        %v1848 = vunpack.c.l.b16 %v1809
        %v1849 = vunpack.c.l.b16 %v1810
        %v1850 = vunpack.c.l.b16 %v1811
        %v1851 = vunpack.c.l.b16 %v1812
        %v1852 = vunpack.c.l.b16 %v1813
        %v1853 = vunpack.c.l.b16 %v1814
        %v1854 = vunpack.c.l.b16 %v1815
        %v1855 = vpack.c.b16 %v1840, %v1839
        %v1856 = vpack.c.b16 %v1842, %v1841
        %v1857 = vpack.c.b16 %v1844, %v1843
        %v1858 = vpack.c.b16 %v1846, %v1845
        %v1859 = vpack.c.b16 %v1848, %v1847
        %v1860 = vpack.c.b16 %v1850, %v1849
        %v1861 = vpack.c.b16 %v1852, %v1851
        %v1862 = vpack.c.b16 %v1854, %v1853
        %1871 = vmatprep.subr.bf16.mxu0 0
        %1872 = vmatpush1.bf16.msra.mxu0 %v1855
        %1873 = vmatprep.subr.bf16.mxu0 0
        %1874 = vmatpush1.bf16.msra.mxu0 %v1856
        %1875 = vmatprep.subr.bf16.mxu0 0
        %1876 = vmatpush1.bf16.msra.mxu0 %v1857
        %1877 = vmatprep.subr.bf16.mxu0 0
        %1878 = vmatpush1.bf16.msra.mxu0 %v1858
        %1879 = vmatprep.subr.bf16.mxu0 0
        %1880 = vmatpush1.bf16.msra.mxu0 %v1859
        %1881 = vmatprep.subr.bf16.mxu0 0
        %1882 = vmatpush1.bf16.msra.mxu0 %v1860
        %1883 = vmatprep.subr.bf16.mxu0 0
        %1884 = vmatpush1.bf16.msra.mxu0 %v1861
        %1885 = vmatprep.subr.bf16.mxu0 0
        %1886 = vmatpush1.bf16.msra.mxu0 %v1862
        %1887 = vmatprep.subr.bf16.mxu0 0
        %1888 = vmatpush1.bf16.msra.mxu0 0
        %1889 = vmatprep.subr.bf16.mxu0 0
        %1890 = vmatpush1.bf16.msra.mxu0 0
        %1891 = vmatprep.subr.bf16.mxu0 0
        %1892 = vmatpush1.bf16.msra.mxu0 0
        %1893 = vmatprep.subr.bf16.mxu0 0
        %1894 = vmatpush1.bf16.msra.mxu0 0
        %1895 = vmatprep.subr.bf16.mxu0 0
        %1896 = vmatpush1.bf16.msra.mxu0 0
        %1897 = vmatprep.subr.bf16.mxu0 0
        %1898 = vmatpush1.bf16.msra.mxu0 0
        %1899 = vmatprep.subr.bf16.mxu0 0
        %1900 = vmatpush1.bf16.msra.mxu0 0
        %1901 = vmatprep.subr.bf16.mxu0 0
        %1902 = vmatpush1.bf16.msra.mxu0 0
        %1903 = vmatprep.mubr.bf16.mxu0 0
        %1904 = vmatmul.mubr.bf16.gmra.mrb[0].mxu0 %v1799
        %v1905 = vpop.f32.mrb[0].mxu0
        %v1906 = vadd.f32 %v1821, %v1905
        %v1907 = vpop.f32.mrb[0].mxu0
        %v1908 = vpop.f32.mrb[0].mxu0
        %v1909 = vpop.f32.mrb[0].mxu0
        %1910 = vdwg.mxu0
        %v1911 = vadd.f32 %v497, %v1906
        %v1912 = vld [vmem:[#allocation14] sm:$0x1]
        %v1913 = vld [vmem:[#allocation16] sm:$0x1]
        %1914 = vadd.xlane.f32.xlu0 %v1911
        %v1915 = vpop.xlane.xlu0 %1914
        %v1916 = vrcp.pop 128.0
        %v1917 = vmul.f32 %v1915, %v1916
        %v1918 = vsub.f32 %v1911, %v1917
        %v1919 = vmul.f32 %v1918, %v1918
        %1920 = vadd.xlane.f32.xlu0 %v1919
        %v1921 = vpop.xlane.xlu0 %1920
        %v1922 = vmul.f32 %v1921, %v1916
        %v1923 = vadd.f32 %v1922, 1e-05
        %v1924 = vrsqrt.pop %v1923
        %v1925 = vmul.f32 %v1918, %v1924
        %v1927 = vlaneseq
        %v1928 = vshrl.u32 %v1927, 7
        %v1929 = vsub.s32 0, %v1928
        %v1930 = vrot.slane %v1912, %v1929
        %v1932 = vmul.f32 %v1925, %v1930
        %v1934 = vlaneseq
        %v1935 = vshrl.u32 %v1934, 7
        %v1936 = vsub.s32 0, %v1935
        %v1937 = vrot.slane %v1913, %v1936
        %v1939 = vadd.f32 %v1932, %v1937
        %v1940 = vpack.c.bf16 %v1939, %v1939
        %1941 = vst [vmem:[%s494] sm:$0xf] %v1940
        %s1942 = sand.u32 %s244, 1
        %s1943 = scalar_lea.sflag [#allocation4], %s1942
        %s1944 = sand.u32 %s244, 1
        %s1945 = smul.addr %s1944, 4
        %s1946 = scalar_lea.vmem [#allocation17], %s1945
        // Predicated region
        $region93: #{transformer_forward.11} parent=55 // pred_check
          %p1947 = pneg %p254
        $region94: #{transformer_forward.11} parent=55 // pred_check_branch
          %1949 = sbr.rel (%p1947) target = $region96
        $region95: #{transformer_forward.11} parent=55 // pred_region
          %s1951 = ssub.s32 64, 64
          %1952 = vsyncadd %s1943, %s1951
          %s1953 = smul.addr %s32, 64
          %s1954 = scalar_lea.hbm %s9, %s1953
          %s1956 = sshll.u32 %s1946, 4
          %s1957 = int_to_ptr.vmem [resolvable:$true] %s1956
          %1959 = dma.vmem_to_hbm [thread:$0]  %s1957, 64, %s1954, %s1943
        $region96: #{transformer_forward.11} parent=55 // pred_fallthru
          _
      $region56: #{transformer_forward.11} parent=5 // pred_fallthru
        _
      %p1960 = scmp.le.s32.totalorder 2, %s27
      // Predicated region
      $region97: #{transformer_forward.11} parent=5 // pred_check
        %p1961 = pneg %p1960
      $region98: #{transformer_forward.11} parent=5 // pred_check_branch
        %1963 = sbr.rel (%p1961) target = $region100
      $region99: #{transformer_forward.11} parent=5 // pred_region
        %s1964 = ssub.s32 %s27, 2
        // Predicated region
        $region101: #{transformer_forward.11} parent=99 // pred_check
          %p1965 = pneg %p260
        $region102: #{transformer_forward.11} parent=99 // pred_check_branch
          %1967 = sbr.rel (%p1965) target = $region104
        $region103: #{transformer_forward.11} parent=99 // pred_region
          %s1968 = sand.u32 %s245, 1
          %s1969 = scalar_lea.sflag [#allocation4], %s1968
          %s1970 = sand.u32 %s245, 1
          %s1971 = smul.addr %s1970, 4
          %s1972 = scalar_lea.vmem [#allocation17], %s1971
          %1973 = dma.done %s1969, 64
        $region104: #{transformer_forward.11} parent=99 // pred_fallthru
          _
      $region100: #{transformer_forward.11} parent=5 // pred_fallthru
        _
    $region6: #{transformer_forward.11} parent=1 // loop_footer
      %s31 = sadd.s32 1, %s27
    $region7: #{transformer_forward.11} parent=1 // loop_footer_branch
      %26 = sbr.rel target = $region3
    $region8: #{transformer_forward.11} parent=1 // loop_exit
      _
    %1974 = vsyncpa [#allocation3], 1
    %s1975 = scalar_lea.sflag [#allocation3], 1
    %1976 = vsyncpa %s1975, 1
    %1977 = vsyncpa [#allocation6], 1
    %s1978 = scalar_lea.sflag [#allocation6], 1
    %1979 = vsyncpa %s1978, 1
    %1980 = vsyncpa [#allocation9], 1
    %1981 = vsyncpa [#allocation12], 1
    %1982 = vsyncpa [#allocation15], 1
    %1983 = vsyncpa [#allocation4], 1
    %s1984 = scalar_lea.sflag [#allocation4], 1
    %1985 = vsyncpa %s1984, 1

// kernel: transformer_forward.21
$region0: #{transformer_forward.21}
  #allocation0 [shape = 'u32[]', space=smem, size = 0x4, offset = 0x4, fixed_abs, tag = 'smem constant byte address 0x4 - core index']
  #allocation1 [shape = 'u32[144,128]{1,0:T(1,128)}', space=vmem, size = 0x12000, scoped, tag = 'internal scratch']
  %s0 = inlined_call_operand.hbm [shape: bf16[16,128], index: 0, kind: input, shape index: {}]
  %s1 = inlined_call_operand.hbm [shape: bf16[128,256], index: 1, kind: input, shape index: {}]
  %s2 = inlined_call_operand.hbm [shape: f32[1,256], index: 2, kind: input, shape index: {}]
  %s3 = inlined_call_operand.hbm [shape: f32[16,256], index: 3, kind: output, shape index: {}]
  %s4 = sld [smem:[#allocation0]]
  $region57: #{transformer_forward.21} parent=0
    _
  %s6 = ssub.s32 1, %s4
  %s7 = scalar_select 0, %s6, %s4
  $region1: #{transformer_forward.21} parent=0
    #allocation2 [shape = 'u8[4096]{0}', space=vmem, size = 0x1000, scoped, tag = 'input window, operand 0']
    #allocation3 [shape = 's32[2]{0}', space=sflag, size = 0x8, scoped, tag = 'scoped memory for transformer_forward.21']
    #allocation4 [shape = 's32[2]{0}', space=sflag, size = 0x8, scoped, tag = 'scoped memory for transformer_forward.21']
    #allocation5 [shape = 'u8[65536]{0}', space=vmem, size = 0x10000, scoped, tag = 'input window, operand 1, single buffered']
    #allocation6 [shape = 's32[1]{0}', space=sflag, size = 0x4, scoped, tag = 'scoped memory for transformer_forward.21']
    #allocation7 [shape = 'u8[1024]{0}', space=vmem, size = 0x400, scoped, tag = 'input window, operand 2, single buffered']
    #allocation8 [shape = 'u8[16384]{0}', space=vmem, size = 0x4000, scoped, tag = 'output window, operand 0']
    %8 = vsyncpa [#allocation3], 0
    %s9 = scalar_lea.sflag [#allocation3], 1
    %10 = vsyncpa %s9, 0
    %11 = vsyncpa [#allocation6], 0
    %12 = vsyncpa [#allocation4], 0
    %s13 = scalar_lea.sflag [#allocation4], 1
    %14 = vsyncpa %s13, 0
    loop: start=0, step=1, limit=4
    $region2: #{transformer_forward.21} parent=1 // loop_pre_header
      _
    $region3: #{transformer_forward.21} parent=1 // loop_header
      %s16 = sphi 0, %s20
      %p17 = scmp.ge.s32.totalorder %s16, 4
      %s23 = sphi 0, %s35
      %s24 = sphi 0, %s31
      %s25 = sphi 0, %s23
      %s26 = sphi 0, %s24
      %s27 = sphi 0, %s25
      %s28 = sphi 0, %s26
      %s38 = sphi 0, %s40
      %s41 = sphi 0, %s38
      %s42 = sphi 0, %s41
      %s58 = sphi 0, %s42
      %s64 = sphi 0, %s66
      %s67 = sphi 0, %s64
      %s68 = sphi 0, %s67
      %s84 = sphi 0, %s68
      %s90 = sphi 0, %s92
      %s93 = sphi 0, %s90
      %s94 = sphi 0, %s93
      %s110 = sphi 0, %s94
      %s118 = sphi 0, %s120
      %s121 = sphi 0, %s118
      %s122 = sphi 0, %s121
      %s138 = sphi 0, %s122
    $region4: #{transformer_forward.21} parent=1 // loop_header_branch
      %19 = sbr.rel (%p17) target = $region8
    $region5: #{transformer_forward.21} parent=1 // loop_body
      %s21 = ssub.s32 %s16, 1
      %s22 = ssub.s32 %s16, 2
      %s29 = sadd.s32 1, %s24
      %p30 = scmp.ge.s32.totalorder %s29, 1
      %s31 = scalar_select %p30, 0, %s29
      %s32 = sadd.s32 1, %s23
      %s33 = scalar_select %p30, %s32, %s23
      %p34 = scmp.ge.s32.totalorder %s33, 2
      %s35 = scalar_select %p34, 0, %s33
      %s36 = ssub.s32 %s23, %s35
      %p37 = scmp.eq.s32.totalorder %s36, 0
      %s39 = sadd.s32 %s38, 1
      %s40 = scalar_select %p37, %s38, %s39
      %p43 = pneg %p37
      %p44 = scmp.eq.s32.totalorder %s16, 1
      %p45 = por %p43, %p44
      %p46 = scmp.ne.s32.totalorder %s38, %s41
      %p47 = scmp.eq.s32.totalorder %s16, 0
      %p48 = por %p46, %p47
      %p49 = scmp.ne.s32.totalorder %s38, %s41
      %p50 = scmp.eq.s32.totalorder %s21, 1
      %p51 = por %p49, %p50
      %p52 = scmp.ne.s32.totalorder %s41, %s42
      %p53 = scmp.eq.s32.totalorder %s21, 0
      %p54 = por %p52, %p53
      %p55 = scmp.ne.s32.totalorder %s41, %s42
      %p56 = scmp.eq.s32.totalorder %s22, 1
      %p57 = por %p55, %p56
      %p59 = scmp.ne.s32.totalorder %s42, %s58
      %p60 = scmp.eq.s32.totalorder %s22, 0
      %p61 = por %p59, %p60
      %s62 = ssub.s32 %s24, %s31
      %p63 = scmp.eq.s32.totalorder %s62, 0
      %s65 = sadd.s32 %s64, 1
      %s66 = scalar_select %p63, %s64, %s65
      %p69 = pneg %p63
      %p70 = scmp.eq.s32.totalorder %s16, 1
      %p71 = por %p69, %p70
      %p72 = scmp.ne.s32.totalorder %s64, %s67
      %p73 = scmp.eq.s32.totalorder %s16, 0
      %p74 = por %p72, %p73
      %p75 = scmp.ne.s32.totalorder %s64, %s67
      %p76 = scmp.eq.s32.totalorder %s21, 1
      %p77 = por %p75, %p76
      %p78 = scmp.ne.s32.totalorder %s67, %s68
      %p79 = scmp.eq.s32.totalorder %s21, 0
      %p80 = por %p78, %p79
      %p81 = scmp.ne.s32.totalorder %s67, %s68
      %p82 = scmp.eq.s32.totalorder %s22, 1
      %p83 = por %p81, %p82
      %p85 = scmp.ne.s32.totalorder %s68, %s84
      %p86 = scmp.eq.s32.totalorder %s22, 0
      %p87 = por %p85, %p86
      %s88 = ssub.s32 %s24, %s31
      %p89 = scmp.eq.s32.totalorder %s88, 0
      %s91 = sadd.s32 %s90, 1
      %s92 = scalar_select %p89, %s90, %s91
      %p95 = pneg %p89
      %p96 = scmp.eq.s32.totalorder %s16, 1
      %p97 = por %p95, %p96
      %p98 = scmp.ne.s32.totalorder %s90, %s93
      %p99 = scmp.eq.s32.totalorder %s16, 0
      %p100 = por %p98, %p99
      %p101 = scmp.ne.s32.totalorder %s90, %s93
      %p102 = scmp.eq.s32.totalorder %s21, 1
      %p103 = por %p101, %p102
      %p104 = scmp.ne.s32.totalorder %s93, %s94
      %p105 = scmp.eq.s32.totalorder %s21, 0
      %p106 = por %p104, %p105
      %p107 = scmp.ne.s32.totalorder %s93, %s94
      %p108 = scmp.eq.s32.totalorder %s22, 1
      %p109 = por %p107, %p108
      %p111 = scmp.ne.s32.totalorder %s94, %s110
      %p112 = scmp.eq.s32.totalorder %s22, 0
      %p113 = por %p111, %p112
      %s114 = ssub.s32 %s23, %s35
      %s115 = ssub.s32 %s24, %s31
      %s116 = sor.u32 %s114, %s115
      %p117 = scmp.eq.s32.totalorder %s116, 0
      %s119 = sadd.s32 %s118, 1
      %s120 = scalar_select %p117, %s118, %s119
      %p123 = pneg %p117
      %p124 = scmp.eq.s32.totalorder %s16, 1
      %p125 = por %p123, %p124
      %p126 = scmp.ne.s32.totalorder %s118, %s121
      %p127 = scmp.eq.s32.totalorder %s16, 0
      %p128 = por %p126, %p127
      %p129 = scmp.ne.s32.totalorder %s118, %s121
      %p130 = scmp.eq.s32.totalorder %s21, 1
      %p131 = por %p129, %p130
      %p132 = scmp.ne.s32.totalorder %s121, %s122
      %p133 = scmp.eq.s32.totalorder %s21, 0
      %p134 = por %p132, %p133
      %p135 = scmp.ne.s32.totalorder %s121, %s122
      %p136 = scmp.eq.s32.totalorder %s22, 1
      %p137 = por %p135, %p136
      %p139 = scmp.ne.s32.totalorder %s122, %s138
      %p140 = scmp.eq.s32.totalorder %s22, 0
      %p141 = por %p139, %p140
      %p142 = scmp.le.s32.totalorder 1, %s16
      %p143 = scmp.lt.s32.totalorder %s16, 3
      %p144 = pnand %p142, %p143
      %p145 = pneg %p144
      // Predicated region
      $region9: #{transformer_forward.21} parent=5 // pred_check
        _
      $region10: #{transformer_forward.21} parent=5 // pred_check_branch
        %147 = sbr.rel (%p144) target = $region12
      $region11: #{transformer_forward.21} parent=5 // pred_region
        %s148 = ssub.s32 %s16, 1
        // Predicated region
        $region13: #{transformer_forward.21} parent=11 // pred_check
          %p149 = pneg %p80
        $region14: #{transformer_forward.21} parent=11 // pred_check_branch
          %151 = sbr.rel (%p149) target = $region16
        $region15: #{transformer_forward.21} parent=11 // pred_region
          %s152 = smul.u32 2, %s26
          %s154 = ssub.s32 2048, 2048
          %155 = vsyncadd [#allocation6], %s154
          %s156 = smul.addr %s152, 64
          %s157 = scalar_lea.hbm %s1, %s156
          %s158 = sshll.u32 [#allocation5], 4
          %s159 = int_to_ptr.vmem [resolvable:$true] %s158
          %164 = dma.hbm_to_vmem [thread:$0]  %s157, 2048, %s159, [#allocation6], 128, 128, 8
        $region16: #{transformer_forward.21} parent=11 // pred_fallthru
          _
        // Predicated region
        $region17: #{transformer_forward.21} parent=11 // pred_check
          %p165 = pneg %p106
        $region18: #{transformer_forward.21} parent=11 // pred_check_branch
          %167 = sbr.rel (%p165) target = $region20
        $region19: #{transformer_forward.21} parent=11 // pred_region
          %s168 = smul.u32 2, %s26
          %s170 = ssub.s32 32, 32
          %171 = vsyncadd [#allocation6], %s170
          %s172 = smul.addr %s168, 16
          %s173 = scalar_lea.hbm %s2, %s172
          %s175 = sshll.u32 [#allocation7], 4
          %s176 = int_to_ptr.vmem [resolvable:$true] %s175
          %178 = dma.hbm_to_vmem [thread:$0]  %s173, 32, %s176, [#allocation6]
        $region20: #{transformer_forward.21} parent=11 // pred_fallthru
          _
      $region12: #{transformer_forward.21} parent=5 // pred_fallthru
        _
      %p179 = scmp.lt.s32.totalorder %s16, 2
      // Predicated region
      $region21: #{transformer_forward.21} parent=5 // pred_check
        %p180 = pneg %p179
      $region22: #{transformer_forward.21} parent=5 // pred_check_branch
        %182 = sbr.rel (%p180) target = $region24
      $region23: #{transformer_forward.21} parent=5 // pred_region
        // Predicated region
        $region25: #{transformer_forward.21} parent=23 // pred_check
          %p183 = pneg %p48
        $region26: #{transformer_forward.21} parent=23 // pred_check_branch
          %185 = sbr.rel (%p183) target = $region28
        $region27: #{transformer_forward.21} parent=23 // pred_region
          %s186 = sand.u32 %s38, 1
          %s187 = scalar_lea.sflag [#allocation3], %s186
          %s188 = sand.u32 %s38, 1
          %s189 = smul.addr %s188, 4
          %s190 = scalar_lea.vmem [#allocation2], %s189
          %s192 = ssub.s32 64, 64
          %193 = vsyncadd %s187, %s192
          %s194 = smul.addr %s23, 64
          %s195 = scalar_lea.hbm %s0, %s194
          %s197 = sshll.u32 %s190, 4
          %s198 = int_to_ptr.vmem [resolvable:$true] %s197
          %200 = dma.hbm_to_vmem [thread:$0]  %s195, 64, %s198, %s187
        $region28: #{transformer_forward.21} parent=23 // pred_fallthru
          _
      $region24: #{transformer_forward.21} parent=5 // pred_fallthru
        _
      %p201 = scmp.le.s32.totalorder 1, %s16
      %p202 = scmp.lt.s32.totalorder %s16, 3
      %p203 = pnand %p201, %p202
      %p204 = pneg %p203
      // Predicated region
      $region29: #{transformer_forward.21} parent=5 // pred_check
        _
      $region30: #{transformer_forward.21} parent=5 // pred_check_branch
        %206 = sbr.rel (%p203) target = $region32
      $region31: #{transformer_forward.21} parent=5 // pred_region
        %s207 = ssub.s32 %s16, 1
        %s208 = sand.u32 %s41, 1
        %s209 = scalar_lea.sflag [#allocation3], %s208
        %s210 = sand.u32 %s41, 1
        %s211 = smul.addr %s210, 4
        %s212 = scalar_lea.vmem [#allocation2], %s211
        // Predicated region
        $region33: #{transformer_forward.21} parent=31 // pred_check
          %p213 = pneg %p54
        $region34: #{transformer_forward.21} parent=31 // pred_check_branch
          %215 = sbr.rel (%p213) target = $region36
        $region35: #{transformer_forward.21} parent=31 // pred_region
          %216 = dma.done %s209, 64
        $region36: #{transformer_forward.21} parent=31 // pred_fallthru
          _
        // Predicated region
        $region37: #{transformer_forward.21} parent=31 // pred_check
          %p217 = pneg %p80
        $region38: #{transformer_forward.21} parent=31 // pred_check_branch
          %219 = sbr.rel (%p217) target = $region40
        $region39: #{transformer_forward.21} parent=31 // pred_region
          %220 = dma.done [#allocation6], 2048
        $region40: #{transformer_forward.21} parent=31 // pred_fallthru
          _
        // Predicated region
        $region41: #{transformer_forward.21} parent=31 // pred_check
          %p221 = pneg %p106
        $region42: #{transformer_forward.21} parent=31 // pred_check_branch
          %223 = sbr.rel (%p221) target = $region44
        $region43: #{transformer_forward.21} parent=31 // pred_region
          %224 = dma.done [#allocation6], 32
        $region44: #{transformer_forward.21} parent=31 // pred_fallthru
          _
        %s225 = sand.u32 %s41, 1
        %s226 = scalar_lea.sflag [#allocation3], %s225
        %s227 = sand.u32 %s41, 1
        %s228 = smul.addr %s227, 4
        %s229 = scalar_lea.vmem [#allocation2], %s228
        %p230 = pneg %p54
        %p231 = pneg %p51
        %p232 = pneg %p80
        %p233 = pneg %p77
        %p234 = pneg %p106
        %p235 = pneg %p103
        %p236 = pneg %p134
        %p237 = pneg %p131
        %s238 = sand.u32 %s121, 1
        %s239 = scalar_lea.sflag [#allocation4], %s238
        %s240 = sand.u32 %s121, 1
        %s241 = smul.addr %s240, 16
        %s242 = scalar_lea.vmem [#allocation8], %s241
        %s243 = smul.u32 2, %s26
        %s244 = smul.u32 2, %s26
        %s245 = smul.u32 2, %s26
        %v247 = vld [vmem:[%s212] sm:$0xf]
        %v248 = vld [vmem:[#allocation5] sm:$0xff]
        %v249 = vld [vmem:[#allocation5 + $0x8] sm:$0xff]
        %v250 = vld [vmem:[#allocation5 + $0x10] sm:$0xff]
        %v251 = vld [vmem:[#allocation5 + $0x18] sm:$0xff]
        %v252 = vld [vmem:[#allocation5 + $0x20] sm:$0xff]
        %v253 = vld [vmem:[#allocation5 + $0x28] sm:$0xff]
        %v254 = vld [vmem:[#allocation5 + $0x30] sm:$0xff]
        %v255 = vld [vmem:[#allocation5 + $0x38] sm:$0xff]
        %v256 = vld [vmem:[#allocation5 + $0x40] sm:$0xff]
        %v257 = vld [vmem:[#allocation5 + $0x48] sm:$0xff]
        %v258 = vld [vmem:[#allocation5 + $0x50] sm:$0xff]
        %v259 = vld [vmem:[#allocation5 + $0x58] sm:$0xff]
        %v260 = vld [vmem:[#allocation5 + $0x60] sm:$0xff]
        %v261 = vld [vmem:[#allocation5 + $0x68] sm:$0xff]
        %v262 = vld [vmem:[#allocation5 + $0x70] sm:$0xff]
        %v263 = vld [vmem:[#allocation5 + $0x78] sm:$0xff]
        %v264 = vld [vmem:[#allocation7] sm:$0x3]
        %v266 = vlaneseq
        %v267 = vshrl.u32 %v266, 7
        %v268 = vsub.s32 0, %v267
        %v269 = vrot.slane %v264, %v268
        %v270 = vlaneseq
        %v271 = vshrl.u32 %v270, 7
        %v272 = vsub.s32 1, %v271
        %v273 = vrot.slane %v264, %v272
        %v292 = vunpack.c.l.b16 %v248
        %v293 = vunpack.c.h.b16 %v248
        %v294 = vunpack.c.l.b16 %v249
        %v295 = vunpack.c.h.b16 %v249
        %v296 = vunpack.c.l.b16 %v250
        %v297 = vunpack.c.h.b16 %v250
        %v298 = vunpack.c.l.b16 %v251
        %v299 = vunpack.c.h.b16 %v251
        %v300 = vunpack.c.l.b16 %v252
        %v301 = vunpack.c.h.b16 %v252
        %v302 = vunpack.c.l.b16 %v253
        %v303 = vunpack.c.h.b16 %v253
        %v304 = vunpack.c.l.b16 %v254
        %v305 = vunpack.c.h.b16 %v254
        %v306 = vunpack.c.l.b16 %v255
        %v307 = vunpack.c.h.b16 %v255
        %v308 = vunpack.c.l.b16 %v256
        %v309 = vunpack.c.h.b16 %v256
        %v310 = vunpack.c.l.b16 %v257
        %v311 = vunpack.c.h.b16 %v257
        %v312 = vunpack.c.l.b16 %v258
        %v313 = vunpack.c.h.b16 %v258
        %v314 = vunpack.c.l.b16 %v259
        %v315 = vunpack.c.h.b16 %v259
        %v316 = vunpack.c.l.b16 %v260
        %v317 = vunpack.c.h.b16 %v260
        %v318 = vunpack.c.l.b16 %v261
        %v319 = vunpack.c.h.b16 %v261
        %v320 = vunpack.c.l.b16 %v262
        %v321 = vunpack.c.h.b16 %v262
        %v322 = vunpack.c.l.b16 %v263
        %v323 = vunpack.c.h.b16 %v263
        %v324 = vpack.c.b16 %v294, %v292
        %v325 = vpack.c.b16 %v295, %v293
        %v326 = vpack.c.b16 %v298, %v296
        %v327 = vpack.c.b16 %v299, %v297
        %v328 = vpack.c.b16 %v302, %v300
        %v329 = vpack.c.b16 %v303, %v301
        %v330 = vpack.c.b16 %v306, %v304
        %v331 = vpack.c.b16 %v307, %v305
        %v332 = vpack.c.b16 %v310, %v308
        %v333 = vpack.c.b16 %v311, %v309
        %v334 = vpack.c.b16 %v314, %v312
        %v335 = vpack.c.b16 %v315, %v313
        %v336 = vpack.c.b16 %v318, %v316
        %v337 = vpack.c.b16 %v319, %v317
        %v338 = vpack.c.b16 %v322, %v320
        %v339 = vpack.c.b16 %v323, %v321
        %356 = vmatprep.subr.bf16.mxu0 %v325
        %357 = vmatpush1.bf16.msra.mxu0 %v324
        %358 = vmatprep.subr.bf16.mxu0 %v327
        %359 = vmatpush1.bf16.msra.mxu0 %v326
        %360 = vmatprep.subr.bf16.mxu0 %v329
        %361 = vmatpush1.bf16.msra.mxu0 %v328
        %362 = vmatprep.subr.bf16.mxu0 %v331
        %363 = vmatpush1.bf16.msra.mxu0 %v330
        %364 = vmatprep.subr.bf16.mxu0 %v333
        %365 = vmatpush1.bf16.msra.mxu0 %v332
        %366 = vmatprep.subr.bf16.mxu0 %v335
        %367 = vmatpush1.bf16.msra.mxu0 %v334
        %368 = vmatprep.subr.bf16.mxu0 %v337
        %369 = vmatpush1.bf16.msra.mxu0 %v336
        %370 = vmatprep.subr.bf16.mxu0 %v339
        %371 = vmatpush1.bf16.msra.mxu0 %v338
        %372 = vmatprep.subr.bf16.mxu0 0
        %373 = vmatpush1.bf16.msra.mxu0 0
        %374 = vmatprep.subr.bf16.mxu0 0
        %375 = vmatpush1.bf16.msra.mxu0 0
        %376 = vmatprep.subr.bf16.mxu0 0
        %377 = vmatpush1.bf16.msra.mxu0 0
        %378 = vmatprep.subr.bf16.mxu0 0
        %379 = vmatpush1.bf16.msra.mxu0 0
        %380 = vmatprep.subr.bf16.mxu0 0
        %381 = vmatpush1.bf16.msra.mxu0 0
        %382 = vmatprep.subr.bf16.mxu0 0
        %383 = vmatpush1.bf16.msra.mxu0 0
        %384 = vmatprep.subr.bf16.mxu0 0
        %385 = vmatpush1.bf16.msra.mxu0 0
        %386 = vmatprep.subr.bf16.mxu0 0
        %387 = vmatpush1.bf16.msra.mxu0 0
        %388 = vmatprep.mubr.bf16.mxu0 0
        %389 = vmatmul.mubr.bf16.gmra.mrb[0].mxu0 %v247
        %v390 = vpop.f32.mrb[0].mxu0
        %v391 = vadd.f32 %v269, %v390
        %v392 = vpop.f32.mrb[0].mxu0
        %v393 = vadd.f32 %v273, %v392
        %v394 = vpop.f32.mrb[0].mxu0
        %v395 = vpop.f32.mrb[0].mxu0
        %396 = vdwg.mxu0
        %397 = vst [vmem:[%s242] sm:$0xff] %v391
        %398 = vst [vmem:[%s242 + $0x8] sm:$0xff] %v393
        %s399 = sand.u32 %s121, 1
        %s400 = scalar_lea.sflag [#allocation4], %s399
        %s401 = sand.u32 %s121, 1
        %s402 = smul.addr %s401, 16
        %s403 = scalar_lea.vmem [#allocation8], %s402
        // Predicated region
        $region45: #{transformer_forward.21} parent=31 // pred_check
          %p404 = pneg %p131
        $region46: #{transformer_forward.21} parent=31 // pred_check_branch
          %406 = sbr.rel (%p404) target = $region48
        $region47: #{transformer_forward.21} parent=31 // pred_region
          %s407 = smul.u32 2, %s26
          %s409 = ssub.s32 256, 256
          %410 = vsyncadd %s400, %s409
          %s411 = smul.addr %s25, 2
          %s412 = sadd.s32 %s407, %s411
          %s413 = smul.addr %s412, 128
          %s414 = scalar_lea.hbm %s3, %s413
          %s416 = sshll.u32 %s403, 4
          %s417 = int_to_ptr.vmem [resolvable:$true] %s416
          %419 = dma.vmem_to_hbm [thread:$0]  %s417, 256, %s414, %s400
        $region48: #{transformer_forward.21} parent=31 // pred_fallthru
          _
      $region32: #{transformer_forward.21} parent=5 // pred_fallthru
        _
      %p420 = scmp.le.s32.totalorder 2, %s16
      // Predicated region
      $region49: #{transformer_forward.21} parent=5 // pred_check
        %p421 = pneg %p420
      $region50: #{transformer_forward.21} parent=5 // pred_check_branch
        %423 = sbr.rel (%p421) target = $region52
      $region51: #{transformer_forward.21} parent=5 // pred_region
        %s424 = ssub.s32 %s16, 2
        // Predicated region
        $region53: #{transformer_forward.21} parent=51 // pred_check
          %p425 = pneg %p137
        $region54: #{transformer_forward.21} parent=51 // pred_check_branch
          %427 = sbr.rel (%p425) target = $region56
        $region55: #{transformer_forward.21} parent=51 // pred_region
          %s428 = sand.u32 %s122, 1
          %s429 = scalar_lea.sflag [#allocation4], %s428
          %s430 = sand.u32 %s122, 1
          %s431 = smul.addr %s430, 16
          %s432 = scalar_lea.vmem [#allocation8], %s431
          %433 = dma.done %s429, 256
        $region56: #{transformer_forward.21} parent=51 // pred_fallthru
          _
      $region52: #{transformer_forward.21} parent=5 // pred_fallthru
        _
    $region6: #{transformer_forward.21} parent=1 // loop_footer
      %s20 = sadd.s32 1, %s16
    $region7: #{transformer_forward.21} parent=1 // loop_footer_branch
      %15 = sbr.rel target = $region3
    $region8: #{transformer_forward.21} parent=1 // loop_exit
      _
    %434 = vsyncpa [#allocation3], 1
    %s435 = scalar_lea.sflag [#allocation3], 1
    %436 = vsyncpa %s435, 1
    %437 = vsyncpa [#allocation6], 1
    %438 = vsyncpa [#allocation4], 1
    %s439 = scalar_lea.sflag [#allocation4], 1
    %440 = vsyncpa %s439, 1

</llo_original>
